<compile_context>
chip_gen: v6e
topology: v6e:2x2x1
jax: 0.10.0
libtpu: 0.0.40
codegen_flags: <defaults>
</compile_context>

<pallas_src>
import math
import functools

import jax
import jax.numpy as jnp
from jax import lax
from jax.experimental import pallas as pl
from jax.experimental.pallas import tpu as pltpu  # noqa: F401  (TPU backend)


NEG_INF = -1e30


# ----------------------------------------------------------------------------
# In-kernel helpers (traced inside the Pallas kernels)
# ----------------------------------------------------------------------------
def _mm(a, b):
    """MXU matmul: bf16 operands, f32 accumulation."""
    return lax.dot_general(
        a.astype(jnp.bfloat16), b.astype(jnp.bfloat16),
        dimension_numbers=(((1,), (0,)), ((), ())),
        preferred_element_type=jnp.float32)


def _layer_norm(x, g, b, eps):
    mean = jnp.mean(x, axis=-1, keepdims=True)
    var = jnp.mean(jnp.square(x - mean), axis=-1, keepdims=True)
    return (x - mean) * lax.rsqrt(var + eps) * g + b


def _mha(q_all, k_all, v_all, *, B, Lq, Lk, H, Dh, scale, key_bias=None):
    """Multi-head attention over batch-major flattened rows.

    q_all: (B*Lq, H*Dh), k_all/v_all: (B*Lk, H*Dh), key_bias: (1, Lk) additive or None.
    Static Python loops over (batch, head) — everything stays in VMEM/vregs.
    """
    out_rows = []
    for b in range(B):
        q_b = q_all[b * Lq:(b + 1) * Lq, :]
        k_b = k_all[b * Lk:(b + 1) * Lk, :]
        v_b = v_all[b * Lk:(b + 1) * Lk, :]
        heads = []
        for h in range(H):
            sl = slice(h * Dh, (h + 1) * Dh)
            qh = q_b[:, sl] * scale
            kh = k_b[:, sl]
            vh = v_b[:, sl]
            s = lax.dot_general(qh, kh,
                                dimension_numbers=(((1,), (1,)), ((), ())),
                                preferred_element_type=jnp.float32)   # (Lq, Lk)
            if key_bias is not None:
                s = s + key_bias
            s = s - jnp.max(s, axis=-1, keepdims=True)
            p = jnp.exp(s)
            p = p * pl.reciprocal(jnp.sum(p, axis=-1, keepdims=True), approx=True)
            heads.append(jnp.dot(p, vh, preferred_element_type=jnp.float32))
        out_rows.append(jnp.concatenate(heads, axis=-1))
    return jnp.concatenate(out_rows, axis=0)   # (B*Lq, H*Dh)


# ----------------------------------------------------------------------------
# Fused Pallas kernels
# ----------------------------------------------------------------------------
def _linear_kernel(x_ref, w_ref, b_ref, o_ref):
    o_ref[...] = _mm(x_ref[...], w_ref[...]) + b_ref[...]


def linear(x2d, w, b):
    """x2d: (M, K), w: (K, N), b: (1, N) -> (M, N). Single fused call."""
    M = x2d.shape[0]
    N = w.shape[1]
    return pl.pallas_call(
        _linear_kernel,
        out_shape=jax.ShapeDtypeStruct((M, N), jnp.float32),
    )(x2d, w, b)


def _encoder_layer_kernel(x_ref, wqkv_ref, bqkv_ref, wo_ref, bo_ref,
                          n1w_ref, n1b_ref, w1_ref, b1_ref, w2_ref, b2_ref,
                          n2w_ref, n2b_ref, o_ref, *, B, L, H, Dh, eps):
    E = H * Dh
    scale = 1.0 / math.sqrt(Dh)
    x = x_ref[...]                                        # (B*L, E) f32

    qkv = _mm(x, wqkv_ref[...]) + bqkv_ref[...]           # fused QKV projection
    q, k, v = qkv[:, :E], qkv[:, E:2 * E], qkv[:, 2 * E:]
    a = _mha(q, k, v, B=B, Lq=L, Lk=L, H=H, Dh=Dh, scale=scale)
    a = _mm(a, wo_ref[...]) + bo_ref[...]
    y = _layer_norm(x + a, n1w_ref[...], n1b_ref[...], eps)

    hmid = jnp.maximum(_mm(y, w1_ref[...]) + b1_ref[...], 0.0)
    ffn = _mm(hmid, w2_ref[...]) + b2_ref[...]
    o_ref[...] = _layer_norm(y + ffn, n2w_ref[...], n2b_ref[...], eps)


def encoder_layer(x_flat, p, B, L, n_heads):
    E = x_flat.shape[1]
    kern = functools.partial(_encoder_layer_kernel, B=B, L=L, H=n_heads,
                             Dh=E // n_heads, eps=1e-5)
    return pl.pallas_call(
        kern,
        out_shape=jax.ShapeDtypeStruct(x_flat.shape, jnp.float32),
    )(x_flat, p["w_qkv"], p["b_qkv"], p["w_out"], p["b_out"],
      p["norm1_w"], p["norm1_b"], p["w1"], p["b1"], p["w2"], p["b2"],
      p["norm2_w"], p["norm2_b"])


def _decoder_layer_kernel(x_ref, memkv_ref, kbias_ref,
                          wqkv_ref, bqkv_ref, wos_ref, bos_ref, n1w_ref, n1b_ref,
                          wqc_ref, bqc_ref, woc_ref, boc_ref, n2w_ref, n2b_ref,
                          w1_ref, b1_ref, w2_ref, b2_ref, n3w_ref, n3b_ref,
                          o_ref, *, B, Ld, Lm, H, Dh, eps):
    E = H * Dh
    scale = 1.0 / math.sqrt(Dh)
    x = x_ref[...]                                        # (B*Ld, E) f32

    # --- self attention (padded key positions masked via additive bias) ---
    qkv = _mm(x, wqkv_ref[...]) + bqkv_ref[...]
    q, k, v = qkv[:, :E], qkv[:, E:2 * E], qkv[:, 2 * E:]
    a = _mha(q, k, v, B=B, Lq=Ld, Lk=Ld, H=H, Dh=Dh, scale=scale,
             key_bias=kbias_ref[...])
    a = _mm(a, wos_ref[...]) + bos_ref[...]
    y = _layer_norm(x + a, n1w_ref[...], n1b_ref[...], eps)

    # --- cross attention (K/V of memory precomputed outside the decode loop) ---
    memkv = memkv_ref[...]                                # (B*Lm, 2E)
    mk, mv = memkv[:, :E], memkv[:, E:]
    qc = _mm(y, wqc_ref[...]) + bqc_ref[...]
    c = _mha(qc, mk, mv, B=B, Lq=Ld, Lk=Lm, H=H, Dh=Dh, scale=scale)
    c = _mm(c, woc_ref[...]) + boc_ref[...]
    y2 = _layer_norm(y + c, n2w_ref[...], n2b_ref[...], eps)

    # --- FFN ---
    hmid = jnp.maximum(_mm(y2, w1_ref[...]) + b1_ref[...], 0.0)
    ffn = _mm(hmid, w2_ref[...]) + b2_ref[...]
    o_ref[...] = _layer_norm(y2 + ffn, n3w_ref[...], n3b_ref[...], eps)


def decoder_layer(x_flat, mem_kv, key_bias, p, B, Ld, Lm, n_heads):
    E = x_flat.shape[1]
    kern = functools.partial(_decoder_layer_kernel, B=B, Ld=Ld, Lm=Lm,
                             H=n_heads, Dh=E // n_heads, eps=1e-5)
    return pl.pallas_call(
        kern,
        out_shape=jax.ShapeDtypeStruct(x_flat.shape, jnp.float32),
    )(x_flat, mem_kv, key_bias,
      p["w_qkv"], p["b_qkv"], p["w_out"], p["b_out"], p["norm1_w"], p["norm1_b"],
      p["c_w_q"], p["c_b_q"], p["c_w_out"], p["c_b_out"], p["norm2_w"], p["norm2_b"],
      p["w1"], p["b1"], p["w2"], p["b2"], p["norm3_w"], p["norm3_b"])


# ----------------------------------------------------------------------------
# Full forward pass (single jitted program; fixed-shape greedy decode loop)
# ----------------------------------------------------------------------------
def _transformer_forward(params, tokens, *, n_heads, max_iter, bos_idx):
    emb = params["embedding"]                       # (n_emb, E)
    L, B = tokens.shape
    E = emb.shape[1]
    n_out = params["out_w"].shape[1]

    # Encoder: embedding + positional encoding (dropout = identity), then fused layers.
    x = emb[tokens] + params["pe"][:L]              # (L, B, E)
    x = jnp.transpose(x, (1, 0, 2)).reshape(B * L, E)   # batch-major rows
    for p in params["encoder_layers"]:
        x = encoder_layer(x, p, B, L, n_heads)
    memory = x                                      # (B*L, E)

    # Cross-attention K/V of the fixed memory, computed once per decoder layer.
    mem_kv = [linear(memory, p["c_w_kv"], p["c_b_kv"]) for p in params["decoder_layers"]]

    Ld = max_iter
    # TODO(synk): the PyTorch code writes curr_seq[max_iter] on the final iteration,
    # which is out of bounds; we allocate max_iter+1 rows so the loop is well defined.
    curr_seq = jnp.zeros((max_iter + 1, B), dtype=jnp.int32)
    curr_seq = curr_seq.at[0].set(bos_idx)
    logits0 = jnp.zeros((B, Ld, n_out), jnp.float32)

    def step(i, carry):
        seq, _ = carry
        # Padded prefix: tokens beyond i are 0 (padding_idx -> zero embedding) and their
        # key positions are masked out, so valid rows match the reference exactly.
        d = emb[seq[:Ld]]                                   # (Ld, B, E); no positional (as in ref)
        d = jnp.transpose(d, (1, 0, 2)).reshape(B * Ld, E)
        key_bias = jnp.where(jnp.arange(Ld) < (i + 1), 0.0, NEG_INF)
        key_bias = key_bias.astype(jnp.float32).reshape(1, Ld)
        for p, kv in zip(params["decoder_layers"], mem_kv):
            d = decoder_layer(d, kv, key_bias, p, B, Ld, L, n_heads)
        logits = linear(d, params["out_w"], params["out_b"]).reshape(B, Ld, n_out)
        nxt = jnp.argmax(logits[:, i, :], axis=-1).astype(jnp.int32)
        seq = seq.at[i + 1].set(nxt)
        return seq, logits

    _, logits = lax.fori_loop(0, max_iter, step, (curr_seq, logits0))
    return jnp.transpose(logits, (1, 0, 2))          # (max_iter, B, n_emb)


transformer_forward = jax.jit(_transformer_forward,
                              static_argnames=("n_heads", "max_iter", "bos_idx"))


# ----------------------------------------------------------------------------
# Deterministic parameter init (weights stored pre-transposed, biases (1, N))
# ----------------------------------------------------------------------------
def _uniform(key, shape, bound):
    return jax.random.uniform(key, shape, minval=-bound, maxval=bound, dtype=jnp.float32)


def init_enc_layer(key, E, Hff):
    ks = jax.random.split(key, 6)
    s_e = 1.0 / math.sqrt(E)
    s_h = 1.0 / math.sqrt(Hff)
    return dict(
        w_qkv=_uniform(ks[0], (E, 3 * E), s_e), b_qkv=jnp.zeros((1, 3 * E), jnp.float32),
        w_out=_uniform(ks[1], (E, E), s_e), b_out=jnp.zeros((1, E), jnp.float32),
        w1=_uniform(ks[2], (E, Hff), s_e), b1=_uniform(ks[3], (1, Hff), s_e),
        w2=_uniform(ks[4], (Hff, E), s_h), b2=_uniform(ks[5], (1, E), s_h),
        norm1_w=jnp.ones((1, E), jnp.float32), norm1_b=jnp.zeros((1, E), jnp.float32),
        norm2_w=jnp.ones((1, E), jnp.float32), norm2_b=jnp.zeros((1, E), jnp.float32),
    )


def init_dec_layer(key, E, Hff):
    k0, k1, k2, k3 = jax.random.split(key, 4)
    p = init_enc_layer(k0, E, Hff)
    s_e = 1.0 / math.sqrt(E)
    p.update(
        c_w_q=_uniform(k1, (E, E), s_e), c_b_q=jnp.zeros((1, E), jnp.float32),
        c_w_kv=_uniform(k2, (E, 2 * E), s_e), c_b_kv=jnp.zeros((1, 2 * E), jnp.float32),
        c_w_out=_uniform(k3, (E, E), s_e), c_b_out=jnp.zeros((1, E), jnp.float32),
        norm3_w=jnp.ones((1, E), jnp.float32), norm3_b=jnp.zeros((1, E), jnp.float32),
    )
    return p


def make_positional_table(d_model, max_len=64):
    position = jnp.arange(max_len, dtype=jnp.float32)[:, None]
    div_term = jnp.exp(jnp.arange(0, d_model, 2, dtype=jnp.float32)
                       * (-math.log(10000.0) / d_model))
    pe = jnp.zeros((max_len, d_model), jnp.float32)
    pe = pe.at[:, 0::2].set(jnp.sin(position * div_term))
    pe = pe.at[:, 1::2].set(jnp.cos(position * div_term))
    return pe[:, None, :]                            # (max_len, 1, d_model)


def init_transformer(key, n_emb, d_model, n_heads, h_dim, n_layers):
    ks = jax.random.split(key, 2 * n_layers + 3)
    emb = jax.random.normal(ks[0], (n_emb, d_model), jnp.float32)
    emb = emb.at[0].set(0.0)                         # padding_idx=0
    return dict(
        embedding=emb,
        pe=make_positional_table(d_model),
        encoder_layers=[init_enc_layer(ks[1 + i], d_model, h_dim) for i in range(n_layers)],
        decoder_layers=[init_dec_layer(ks[1 + n_layers + i], d_model, h_dim)
                        for i in range(n_layers)],
        out_w=_uniform(ks[-2], (d_model, n_emb), 1.0 / math.sqrt(d_model)),
        out_b=_uniform(ks[-1], (1, n_emb), 1.0 / math.sqrt(d_model)),
    )


# ----------------------------------------------------------------------------
if __name__ == "__main__":
    n_emb, d_model, n_heads, h_dim, n_layers = 16, 32, 4, 64, 2
    seq_len, batch, max_iter = 8, 2, 4

    key = jax.random.PRNGKey(0)
    pkey, tkey = jax.random.split(key)
    params = init_transformer(pkey, n_emb, d_model, n_heads, h_dim, n_layers)

    tokens = jax.random.randint(tkey, (seq_len, batch), 0, n_emb, dtype=jnp.int32)

    out = transformer_forward(params, tokens, n_heads=n_heads, max_iter=max_iter, bos_idx=1)
    out = jax.block_until_ready(out)
    assert out.shape == (max_iter, batch, n_emb), out.shape
    assert jnp.all(jnp.isfinite(out))
    print("KERNEL_OK")
</pallas_src>

<mosaic_0001>
module attributes {stable_mosaic.version = 11 : i64} {
  func.func @_linear_kernel(%arg0: memref<16x32xf32, #tpu.memory_space<vmem>>, %arg1: memref<32x64xf32, #tpu.memory_space<vmem>>, %arg2: memref<1x64xf32, #tpu.memory_space<vmem>>, %arg3: memref<16x64xf32, #tpu.memory_space<vmem>>) attributes {dimension_semantics = [], scalar_prefetch = 0 : i64, scratch_operands = 0 : i64, tpu.core_type = #tpu.core_type<tc>} {
    %c0 = arith.constant 0 : index
    %c0_0 = arith.constant 0 : index
    %0 = vector.load %arg0[%c0, %c0_0] : memref<16x32xf32, #tpu.memory_space<vmem>>, vector<16x32xf32>
    %c0_1 = arith.constant 0 : index
    %c0_2 = arith.constant 0 : index
    %1 = vector.load %arg1[%c0_1, %c0_2] : memref<32x64xf32, #tpu.memory_space<vmem>>, vector<32x64xf32>
    %2 = arith.truncf %0 : vector<16x32xf32> to vector<16x32xbf16>
    %3 = arith.truncf %1 : vector<32x64xf32> to vector<32x64xbf16>
    %cst = arith.constant dense<0.000000e+00> : vector<16x64xf32>
    %4 = tpu.matmul %2, %3, %cst {dimension_numbers = #tpu.dot_dimension_numbers<[1], [0], [0], [1], [0, 0, 1, 1], [], []>} : vector<16x32xbf16>, vector<32x64xbf16>, vector<16x64xf32> -> vector<16x64xf32>
    %c0_3 = arith.constant 0 : index
    %c0_4 = arith.constant 0 : index
    %5 = vector.load %arg2[%c0_3, %c0_4] : memref<1x64xf32, #tpu.memory_space<vmem>>, vector<1x64xf32>
    %6 = vector.broadcast %5 : vector<1x64xf32> to vector<16x64xf32>
    %7 = arith.addf %4, %6 : vector<16x64xf32>
    %c0_5 = arith.constant 0 : index
    %c0_6 = arith.constant 0 : index
    %8 = vector.load %arg3[%c0_5, %c0_6] : memref<16x64xf32, #tpu.memory_space<vmem>>, vector<16x64xf32>
    tpu.vector_store %arg3[%c0_5, %c0_6], %7 {strides = array<i32>} : memref<16x64xf32, #tpu.memory_space<vmem>>, vector<16x64xf32>,
    return
  }
}

module attributes {stable_mosaic.version = 11 : i64} {
  func.func @_encoder_layer_kernel(%arg0: memref<16x32xf32, #tpu.memory_space<vmem>>, %arg1: memref<32x96xf32, #tpu.memory_space<vmem>>, %arg2: memref<1x96xf32, #tpu.memory_space<vmem>>, %arg3: memref<32x32xf32, #tpu.memory_space<vmem>>, %arg4: memref<1x32xf32, #tpu.memory_space<vmem>>, %arg5: memref<1x32xf32, #tpu.memory_space<vmem>>, %arg6: memref<1x32xf32, #tpu.memory_space<vmem>>, %arg7: memref<32x64xf32, #tpu.memory_space<vmem>>, %arg8: memref<1x64xf32, #tpu.memory_space<vmem>>, %arg9: memref<64x32xf32, #tpu.memory_space<vmem>>, %arg10: memref<1x32xf32, #tpu.memory_space<vmem>>, %arg11: memref<1x32xf32, #tpu.memory_space<vmem>>, %arg12: memref<1x32xf32, #tpu.memory_space<vmem>>, %arg13: memref<16x32xf32, #tpu.memory_space<vmem>>) attributes {dimension_semantics = [], scalar_prefetch = 0 : i64, scratch_operands = 0 : i64, tpu.core_type = #tpu.core_type<tc>} {
    %c0 = arith.constant 0 : index
    %c0_0 = arith.constant 0 : index
    %0 = vector.load %arg0[%c0, %c0_0] : memref<16x32xf32, #tpu.memory_space<vmem>>, vector<16x32xf32>
    %c0_1 = arith.constant 0 : index
    %c0_2 = arith.constant 0 : index
    %1 = vector.load %arg1[%c0_1, %c0_2] : memref<32x96xf32, #tpu.memory_space<vmem>>, vector<32x96xf32>
    %2 = arith.truncf %0 : vector<16x32xf32> to vector<16x32xbf16>
    %3 = arith.truncf %1 : vector<32x96xf32> to vector<32x96xbf16>
    %cst = arith.constant dense<0.000000e+00> : vector<16x96xf32>
    %4 = tpu.matmul %2, %3, %cst {dimension_numbers = #tpu.dot_dimension_numbers<[1], [0], [0], [1], [0, 0, 1, 1], [], []>} : vector<16x32xbf16>, vector<32x96xbf16>, vector<16x96xf32> -> vector<16x96xf32>
    %c0_3 = arith.constant 0 : index
    %c0_4 = arith.constant 0 : index
    %5 = vector.load %arg2[%c0_3, %c0_4] : memref<1x96xf32, #tpu.memory_space<vmem>>, vector<1x96xf32>
    %6 = vector.broadcast %5 : vector<1x96xf32> to vector<16x96xf32>
    %7 = arith.addf %4, %6 : vector<16x96xf32>
    %8 = vector.extract_strided_slice %7 {offsets = [0, 0], sizes = [16, 32], strides = [1, 1]} : vector<16x96xf32> to vector<16x32xf32>
    %9 = vector.extract_strided_slice %7 {offsets = [0, 32], sizes = [16, 32], strides = [1, 1]} : vector<16x96xf32> to vector<16x32xf32>
    %10 = vector.extract_strided_slice %7 {offsets = [0, 64], sizes = [16, 32], strides = [1, 1]} : vector<16x96xf32> to vector<16x32xf32>
    %11 = vector.extract_strided_slice %8 {offsets = [0, 0], sizes = [8, 32], strides = [1, 1]} : vector<16x32xf32> to vector<8x32xf32>
    %12 = vector.extract_strided_slice %9 {offsets = [0, 0], sizes = [8, 32], strides = [1, 1]} : vector<16x32xf32> to vector<8x32xf32>
    %13 = vector.extract_strided_slice %10 {offsets = [0, 0], sizes = [8, 32], strides = [1, 1]} : vector<16x32xf32> to vector<8x32xf32>
    %14 = vector.extract_strided_slice %11 {offsets = [0, 0], sizes = [8, 8], strides = [1, 1]} : vector<8x32xf32> to vector<8x8xf32>
    %cst_5 = arith.constant 0.353553385 : f32
    %15 = vector.broadcast %cst_5 : f32 to vector<8x8xf32>
    %16 = arith.mulf %14, %15 : vector<8x8xf32>
    %17 = vector.extract_strided_slice %12 {offsets = [0, 0], sizes = [8, 8], strides = [1, 1]} : vector<8x32xf32> to vector<8x8xf32>
    %18 = vector.extract_strided_slice %13 {offsets = [0, 0], sizes = [8, 8], strides = [1, 1]} : vector<8x32xf32> to vector<8x8xf32>
    %cst_6 = arith.constant dense<0.000000e+00> : vector<8x8xf32>
    %19 = tpu.matmul %16, %17, %cst_6 {dimension_numbers = #tpu.dot_dimension_numbers<[1], [1], [0], [0], [0, 0, 1, 0], [], []>} : vector<8x8xf32>, vector<8x8xf32>, vector<8x8xf32> -> vector<8x8xf32>
    %cst_7 = arith.constant dense<0xFF800000> : vector<8xf32>
    %20 = vector.multi_reduction <maximumf>, %19, %cst_7 [1] : vector<8x8xf32> to vector<8xf32>
    %21 = vector.shape_cast %20 : vector<8xf32> to vector<8x1xf32>
    %22 = vector.broadcast %21 : vector<8x1xf32> to vector<8x8xf32>
    %23 = arith.subf %19, %22 : vector<8x8xf32>
    %24 = math.exp %23 : vector<8x8xf32>
    %cst_8 = arith.constant dense<0.000000e+00> : vector<8xf32>
    %25 = vector.multi_reduction <add>, %24, %cst_8 [1] : vector<8x8xf32> to vector<8xf32>
    %26 = vector.shape_cast %25 : vector<8xf32> to vector<8x1xf32>
    %27 = tpu.reciprocal %26 {approx = true} : vector<8x1xf32> -> vector<8x1xf32>
    %28 = vector.broadcast %27 : vector<8x1xf32> to vector<8x8xf32>
    %29 = arith.mulf %24, %28 : vector<8x8xf32>
    %cst_9 = arith.constant dense<0.000000e+00> : vector<8x8xf32>
    %30 = tpu.matmul %29, %18, %cst_9 {dimension_numbers = #tpu.dot_dimension_numbers<[1], [0], [0], [1], [0, 0, 1, 1], [], []>} : vector<8x8xf32>, vector<8x8xf32>, vector<8x8xf32> -> vector<8x8xf32>
    %31 = vector.extract_strided_slice %11 {offsets = [0, 8], sizes = [8, 8], strides = [1, 1]} : vector<8x32xf32> to vector<8x8xf32>
    %cst_10 = arith.constant 0.353553385 : f32
    %32 = vector.broadcast %cst_10 : f32 to vector<8x8xf32>
    %33 = arith.mulf %31, %32 : vector<8x8xf32>
    %34 = vector.extract_strided_slice %12 {offsets = [0, 8], sizes = [8, 8], strides = [1, 1]} : vector<8x32xf32> to vector<8x8xf32>
    %35 = vector.extract_strided_slice %13 {offsets = [0, 8], sizes = [8, 8], strides = [1, 1]} : vector<8x32xf32> to vector<8x8xf32>
    %cst_11 = arith.constant dense<0.000000e+00> : vector<8x8xf32>
    %36 = tpu.matmul %33, %34, %cst_11 {dimension_numbers = #tpu.dot_dimension_numbers<[1], [1], [0], [0], [0, 0, 1, 0], [], []>} : vector<8x8xf32>, vector<8x8xf32>, vector<8x8xf32> -> vector<8x8xf32>
    %cst_12 = arith.constant dense<0xFF800000> : vector<8xf32>
    %37 = vector.multi_reduction <maximumf>, %36, %cst_12 [1] : vector<8x8xf32> to vector<8xf32>
    %38 = vector.shape_cast %37 : vector<8xf32> to vector<8x1xf32>
    %39 = vector.broadcast %38 : vector<8x1xf32> to vector<8x8xf32>
    %40 = arith.subf %36, %39 : vector<8x8xf32>
    %41 = math.exp %40 : vector<8x8xf32>
    %cst_13 = arith.constant dense<0.000000e+00> : vector<8xf32>
    %42 = vector.multi_reduction <add>, %41, %cst_13 [1] : vector<8x8xf32> to vector<8xf32>
    %43 = vector.shape_cast %42 : vector<8xf32> to vector<8x1xf32>
    %44 = tpu.reciprocal %43 {approx = true} : vector<8x1xf32> -> vector<8x1xf32>
    %45 = vector.broadcast %44 : vector<8x1xf32> to vector<8x8xf32>
    %46 = arith.mulf %41, %45 : vector<8x8xf32>
    %cst_14 = arith.constant dense<0.000000e+00> : vector<8x8xf32>
    %47 = tpu.matmul %46, %35, %cst_14 {dimension_numbers = #tpu.dot_dimension_numbers<[1], [0], [0], [1], [0, 0, 1, 1], [], []>} : vector<8x8xf32>, vector<8x8xf32>, vector<8x8xf32> -> vector<8x8xf32>
    %48 = vector.extract_strided_slice %11 {offsets = [0, 16], sizes = [8, 8], strides = [1, 1]} : vector<8x32xf32> to vector<8x8xf32>
    %cst_15 = arith.constant 0.353553385 : f32
    %49 = vector.broadcast %cst_15 : f32 to vector<8x8xf32>
    %50 = arith.mulf %48, %49 : vector<8x8xf32>
    %51 = vector.extract_strided_slice %12 {offsets = [0, 16], sizes = [8, 8], strides = [1, 1]} : vector<8x32xf32> to vector<8x8xf32>
    %52 = vector.extract_strided_slice %13 {offsets = [0, 16], sizes = [8, 8], strides = [1, 1]} : vector<8x32xf32> to vector<8x8xf32>
    %cst_16 = arith.constant dense<0.000000e+00> : vector<8x8xf32>
    %53 = tpu.matmul %50, %51, %cst_16 {dimension_numbers = #tpu.dot_dimension_numbers<[1], [1], [0], [0], [0, 0, 1, 0], [], []>} : vector<8x8xf32>, vector<8x8xf32>, vector<8x8xf32> -> vector<8x8xf32>
    %cst_17 = arith.constant dense<0xFF800000> : vector<8xf32>
    %54 = vector.multi_reduction <maximumf>, %53, %cst_17 [1] : vector<8x8xf32> to vector<8xf32>
    %55 = vector.shape_cast %54 : vector<8xf32> to vector<8x1xf32>
    %56 = vector.broadcast %55 : vector<8x1xf32> to vector<8x8xf32>
    %57 = arith.subf %53, %56 : vector<8x8xf32>
    %58 = math.exp %57 : vector<8x8xf32>
    %cst_18 = arith.constant dense<0.000000e+00> : vector<8xf32>
    %59 = vector.multi_reduction <add>, %58, %cst_18 [1] : vector<8x8xf32> to vector<8xf32>
    %60 = vector.shape_cast %59 : vector<8xf32> to vector<8x1xf32>
    %61 = tpu.reciprocal %60 {approx = true} : vector<8x1xf32> -> vector<8x1xf32>
    %62 = vector.broadcast %61 : vector<8x1xf32> to vector<8x8xf32>
    %63 = arith.mulf %58, %62 : vector<8x8xf32>
    %cst_19 = arith.constant dense<0.000000e+00> : vector<8x8xf32>
    %64 = tpu.matmul %63, %52, %cst_19 {dimension_numbers = #tpu.dot_dimension_numbers<[1], [0], [0], [1], [0, 0, 1, 1], [], []>} : vector<8x8xf32>, vector<8x8xf32>, vector<8x8xf32> -> vector<8x8xf32>
    %65 = vector.extract_strided_slice %11 {offsets = [0, 24], sizes = [8, 8], strides = [1, 1]} : vector<8x32xf32> to vector<8x8xf32>
    %cst_20 = arith.constant 0.353553385 : f32
    %66 = vector.broadcast %cst_20 : f32 to vector<8x8xf32>
    %67 = arith.mulf %65, %66 : vector<8x8xf32>
    %68 = vector.extract_strided_slice %12 {offsets = [0, 24], sizes = [8, 8], strides = [1, 1]} : vector<8x32xf32> to vector<8x8xf32>
    %69 = vector.extract_strided_slice %13 {offsets = [0, 24], sizes = [8, 8], strides = [1, 1]} : vector<8x32xf32> to vector<8x8xf32>
    %cst_21 = arith.constant dense<0.000000e+00> : vector<8x8xf32>
    %70 = tpu.matmul %67, %68, %cst_21 {dimension_numbers = #tpu.dot_dimension_numbers<[1], [1], [0], [0], [0, 0, 1, 0], [], []>} : vector<8x8xf32>, vector<8x8xf32>, vector<8x8xf32> -> vector<8x8xf32>
    %cst_22 = arith.constant dense<0xFF800000> : vector<8xf32>
    %71 = vector.multi_reduction <maximumf>, %70, %cst_22 [1] : vector<8x8xf32> to vector<8xf32>
    %72 = vector.shape_cast %71 : vector<8xf32> to vector<8x1xf32>
    %73 = vector.broadcast %72 : vector<8x1xf32> to vector<8x8xf32>
    %74 = arith.subf %70, %73 : vector<8x8xf32>
    %75 = math.exp %74 : vector<8x8xf32>
    %cst_23 = arith.constant dense<0.000000e+00> : vector<8xf32>
    %76 = vector.multi_reduction <add>, %75, %cst_23 [1] : vector<8x8xf32> to vector<8xf32>
    %77 = vector.shape_cast %76 : vector<8xf32> to vector<8x1xf32>
    %78 = tpu.reciprocal %77 {approx = true} : vector<8x1xf32> -> vector<8x1xf32>
    %79 = vector.broadcast %78 : vector<8x1xf32> to vector<8x8xf32>
    %80 = arith.mulf %75, %79 : vector<8x8xf32>
    %cst_24 = arith.constant dense<0.000000e+00> : vector<8x8xf32>
    %81 = tpu.matmul %80, %69, %cst_24 {dimension_numbers = #tpu.dot_dimension_numbers<[1], [0], [0], [1], [0, 0, 1, 1], [], []>} : vector<8x8xf32>, vector<8x8xf32>, vector<8x8xf32> -> vector<8x8xf32>
    %82 = tpu.concatenate %30, %47, %64, %81 in 1 : vector<8x8xf32>, vector<8x8xf32>, vector<8x8xf32>, vector<8x8xf32> -> vector<8x32xf32>
    %83 = vector.extract_strided_slice %8 {offsets = [8, 0], sizes = [8, 32], strides = [1, 1]} : vector<16x32xf32> to vector<8x32xf32>
    %84 = vector.extract_strided_slice %9 {offsets = [8, 0], sizes = [8, 32], strides = [1, 1]} : vector<16x32xf32> to vector<8x32xf32>
    %85 = vector.extract_strided_slice %10 {offsets = [8, 0], sizes = [8, 32], strides = [1, 1]} : vector<16x32xf32> to vector<8x32xf32>
    %86 = vector.extract_strided_slice %83 {offsets = [0, 0], sizes = [8, 8], strides = [1, 1]} : vector<8x32xf32> to vector<8x8xf32>
    %cst_25 = arith.constant 0.353553385 : f32
    %87 = vector.broadcast %cst_25 : f32 to vector<8x8xf32>
    %88 = arith.mulf %86, %87 : vector<8x8xf32>
    %89 = vector.extract_strided_slice %84 {offsets = [0, 0], sizes = [8, 8], strides = [1, 1]} : vector<8x32xf32> to vector<8x8xf32>
    %90 = vector.extract_strided_slice %85 {offsets = [0, 0], sizes = [8, 8], strides = [1, 1]} : vector<8x32xf32> to vector<8x8xf32>
    %cst_26 = arith.constant dense<0.000000e+00> : vector<8x8xf32>
    %91 = tpu.matmul %88, %89, %cst_26 {dimension_numbers = #tpu.dot_dimension_numbers<[1], [1], [0], [0], [0, 0, 1, 0], [], []>} : vector<8x8xf32>, vector<8x8xf32>, vector<8x8xf32> -> vector<8x8xf32>
    %cst_27 = arith.constant dense<0xFF800000> : vector<8xf32>
    %92 = vector.multi_reduction <maximumf>, %91, %cst_27 [1] : vector<8x8xf32> to vector<8xf32>
    %93 = vector.shape_cast %92 : vector<8xf32> to vector<8x1xf32>
    %94 = vector.broadcast %93 : vector<8x1xf32> to vector<8x8xf32>
    %95 = arith.subf %91, %94 : vector<8x8xf32>
    %96 = math.exp %95 : vector<8x8xf32>
    %cst_28 = arith.constant dense<0.000000e+00> : vector<8xf32>
    %97 = vector.multi_reduction <add>, %96, %cst_28 [1] : vector<8x8xf32> to vector<8xf32>
    %98 = vector.shape_cast %97 : vector<8xf32> to vector<8x1xf32>
    %99 = tpu.reciprocal %98 {approx = true} : vector<8x1xf32> -> vector<8x1xf32>
    %100 = vector.broadcast %99 : vector<8x1xf32> to vector<8x8xf32>
    %101 = arith.mulf %96, %100 : vector<8x8xf32>
    %cst_29 = arith.constant dense<0.000000e+00> : vector<8x8xf32>
    %102 = tpu.matmul %101, %90, %cst_29 {dimension_numbers = #tpu.dot_dimension_numbers<[1], [0], [0], [1], [0, 0, 1, 1], [], []>} : vector<8x8xf32>, vector<8x8xf32>, vector<8x8xf32> -> vector<8x8xf32>
    %103 = vector.extract_strided_slice %83 {offsets = [0, 8], sizes = [8, 8], strides = [1, 1]} : vector<8x32xf32> to vector<8x8xf32>
    %cst_30 = arith.constant 0.353553385 : f32
    %104 = vector.broadcast %cst_30 : f32 to vector<8x8xf32>
    %105 = arith.mulf %103, %104 : vector<8x8xf32>
    %106 = vector.extract_strided_slice %84 {offsets = [0, 8], sizes = [8, 8], strides = [1, 1]} : vector<8x32xf32> to vector<8x8xf32>
    %107 = vector.extract_strided_slice %85 {offsets = [0, 8], sizes = [8, 8], strides = [1, 1]} : vector<8x32xf32> to vector<8x8xf32>
    %cst_31 = arith.constant dense<0.000000e+00> : vector<8x8xf32>
    %108 = tpu.matmul %105, %106, %cst_31 {dimension_numbers = #tpu.dot_dimension_numbers<[1], [1], [0], [0], [0, 0, 1, 0], [], []>} : vector<8x8xf32>, vector<8x8xf32>, vector<8x8xf32> -> vector<8x8xf32>
    %cst_32 = arith.constant dense<0xFF800000> : vector<8xf32>
    %109 = vector.multi_reduction <maximumf>, %108, %cst_32 [1] : vector<8x8xf32> to vector<8xf32>
    %110 = vector.shape_cast %109 : vector<8xf32> to vector<8x1xf32>
    %111 = vector.broadcast %110 : vector<8x1xf32> to vector<8x8xf32>
    %112 = arith.subf %108, %111 : vector<8x8xf32>
    %113 = math.exp %112 : vector<8x8xf32>
    %cst_33 = arith.constant dense<0.000000e+00> : vector<8xf32>
    %114 = vector.multi_reduction <add>, %113, %cst_33 [1] : vector<8x8xf32> to vector<8xf32>
    %115 = vector.shape_cast %114 : vector<8xf32> to vector<8x1xf32>
    %116 = tpu.reciprocal %115 {approx = true} : vector<8x1xf32> -> vector<8x1xf32>
    %117 = vector.broadcast %116 : vector<8x1xf32> to vector<8x8xf32>
    %118 = arith.mulf %113, %117 : vector<8x8xf32>
    %cst_34 = arith.constant dense<0.000000e+00> : vector<8x8xf32>
    %119 = tpu.matmul %118, %107, %cst_34 {dimension_numbers = #tpu.dot_dimension_numbers<[1], [0], [0], [1], [0, 0, 1, 1], [], []>} : vector<8x8xf32>, vector<8x8xf32>, vector<8x8xf32> -> vector<8x8xf32>
    %120 = vector.extract_strided_slice %83 {offsets = [0, 16], sizes = [8, 8], strides = [1, 1]} : vector<8x32xf32> to vector<8x8xf32>
    %cst_35 = arith.constant 0.353553385 : f32
    %121 = vector.broadcast %cst_35 : f32 to vector<8x8xf32>
    %122 = arith.mulf %120, %121 : vector<8x8xf32>
    %123 = vector.extract_strided_slice %84 {offsets = [0, 16], sizes = [8, 8], strides = [1, 1]} : vector<8x32xf32> to vector<8x8xf32>
    %124 = vector.extract_strided_slice %85 {offsets = [0, 16], sizes = [8, 8], strides = [1, 1]} : vector<8x32xf32> to vector<8x8xf32>
    %cst_36 = arith.constant dense<0.000000e+00> : vector<8x8xf32>
    %125 = tpu.matmul %122, %123, %cst_36 {dimension_numbers = #tpu.dot_dimension_numbers<[1], [1], [0], [0], [0, 0, 1, 0], [], []>} : vector<8x8xf32>, vector<8x8xf32>, vector<8x8xf32> -> vector<8x8xf32>
    %cst_37 = arith.constant dense<0xFF800000> : vector<8xf32>
    %126 = vector.multi_reduction <maximumf>, %125, %cst_37 [1] : vector<8x8xf32> to vector<8xf32>
    %127 = vector.shape_cast %126 : vector<8xf32> to vector<8x1xf32>
    %128 = vector.broadcast %127 : vector<8x1xf32> to vector<8x8xf32>
    %129 = arith.subf %125, %128 : vector<8x8xf32>
    %130 = math.exp %129 : vector<8x8xf32>
    %cst_38 = arith.constant dense<0.000000e+00> : vector<8xf32>
    %131 = vector.multi_reduction <add>, %130, %cst_38 [1] : vector<8x8xf32> to vector<8xf32>
    %132 = vector.shape_cast %131 : vector<8xf32> to vector<8x1xf32>
    %133 = tpu.reciprocal %132 {approx = true} : vector<8x1xf32> -> vector<8x1xf32>
    %134 = vector.broadcast %133 : vector<8x1xf32> to vector<8x8xf32>
    %135 = arith.mulf %130, %134 : vector<8x8xf32>
    %cst_39 = arith.constant dense<0.000000e+00> : vector<8x8xf32>
    %136 = tpu.matmul %135, %124, %cst_39 {dimension_numbers = #tpu.dot_dimension_numbers<[1], [0], [0], [1], [0, 0, 1, 1], [], []>} : vector<8x8xf32>, vector<8x8xf32>, vector<8x8xf32> -> vector<8x8xf32>
    %137 = vector.extract_strided_slice %83 {offsets = [0, 24], sizes = [8, 8], strides = [1, 1]} : vector<8x32xf32> to vector<8x8xf32>
    %cst_40 = arith.constant 0.353553385 : f32
    %138 = vector.broadcast %cst_40 : f32 to vector<8x8xf32>
    %139 = arith.mulf %137, %138 : vector<8x8xf32>
    %140 = vector.extract_strided_slice %84 {offsets = [0, 24], sizes = [8, 8], strides = [1, 1]} : vector<8x32xf32> to vector<8x8xf32>
    %141 = vector.extract_strided_slice %85 {offsets = [0, 24], sizes = [8, 8], strides = [1, 1]} : vector<8x32xf32> to vector<8x8xf32>
    %cst_41 = arith.constant dense<0.000000e+00> : vector<8x8xf32>
    %142 = tpu.matmul %139, %140, %cst_41 {dimension_numbers = #tpu.dot_dimension_numbers<[1], [1], [0], [0], [0, 0, 1, 0], [], []>} : vector<8x8xf32>, vector<8x8xf32>, vector<8x8xf32> -> vector<8x8xf32>
    %cst_42 = arith.constant dense<0xFF800000> : vector<8xf32>
    %143 = vector.multi_reduction <maximumf>, %142, %cst_42 [1] : vector<8x8xf32> to vector<8xf32>
    %144 = vector.shape_cast %143 : vector<8xf32> to vector<8x1xf32>
    %145 = vector.broadcast %144 : vector<8x1xf32> to vector<8x8xf32>
    %146 = arith.subf %142, %145 : vector<8x8xf32>
    %147 = math.exp %146 : vector<8x8xf32>
    %cst_43 = arith.constant dense<0.000000e+00> : vector<8xf32>
    %148 = vector.multi_reduction <add>, %147, %cst_43 [1] : vector<8x8xf32> to vector<8xf32>
    %149 = vector.shape_cast %148 : vector<8xf32> to vector<8x1xf32>
    %150 = tpu.reciprocal %149 {approx = true} : vector<8x1xf32> -> vector<8x1xf32>
    %151 = vector.broadcast %150 : vector<8x1xf32> to vector<8x8xf32>
    %152 = arith.mulf %147, %151 : vector<8x8xf32>
    %cst_44 = arith.constant dense<0.000000e+00> : vector<8x8xf32>
    %153 = tpu.matmul %152, %141, %cst_44 {dimension_numbers = #tpu.dot_dimension_numbers<[1], [0], [0], [1], [0, 0, 1, 1], [], []>} : vector<8x8xf32>, vector<8x8xf32>, vector<8x8xf32> -> vector<8x8xf32>
    %154 = tpu.concatenate %102, %119, %136, %153 in 1 : vector<8x8xf32>, vector<8x8xf32>, vector<8x8xf32>, vector<8x8xf32> -> vector<8x32xf32>
    %155 = tpu.concatenate %82, %154 in 0 : vector<8x32xf32>, vector<8x32xf32> -> vector<16x32xf32>
    %c0_45 = arith.constant 0 : index
    %c0_46 = arith.constant 0 : index
    %156 = vector.load %arg3[%c0_45, %c0_46] : memref<32x32xf32, #tpu.memory_space<vmem>>, vector<32x32xf32>
    %157 = arith.truncf %155 : vector<16x32xf32> to vector<16x32xbf16>
    %158 = arith.truncf %156 : vector<32x32xf32> to vector<32x32xbf16>
    %cst_47 = arith.constant dense<0.000000e+00> : vector<16x32xf32>
    %159 = tpu.matmul %157, %158, %cst_47 {dimension_numbers = #tpu.dot_dimension_numbers<[1], [0], [0], [1], [0, 0, 1, 1], [], []>} : vector<16x32xbf16>, vector<32x32xbf16>, vector<16x32xf32> -> vector<16x32xf32>
    %c0_48 = arith.constant 0 : index
    %c0_49 = arith.constant 0 : index
    %160 = vector.load %arg4[%c0_48, %c0_49] : memref<1x32xf32, #tpu.memory_space<vmem>>, vector<1x32xf32>
    %161 = vector.broadcast %160 : vector<1x32xf32> to vector<16x32xf32>
    %162 = arith.addf %159, %161 : vector<16x32xf32>
    %163 = arith.addf %0, %162 : vector<16x32xf32>
    %c0_50 = arith.constant 0 : index
    %c0_51 = arith.constant 0 : index
    %164 = vector.load %arg5[%c0_50, %c0_51] : memref<1x32xf32, #tpu.memory_space<vmem>>, vector<1x32xf32>
    %c0_52 = arith.constant 0 : index
    %c0_53 = arith.constant 0 : index
    %165 = vector.load %arg6[%c0_52, %c0_53] : memref<1x32xf32, #tpu.memory_space<vmem>>, vector<1x32xf32>
    %cst_54 = arith.constant dense<0.000000e+00> : vector<16xf32>
    %166 = vector.multi_reduction <add>, %163, %cst_54 [1] : vector<16x32xf32> to vector<16xf32>
    %167 = vector.shape_cast %166 : vector<16xf32> to vector<16x1xf32>
    %cst_55 = arith.constant 3.200000e+01 : f32
    %168 = vector.broadcast %cst_55 : f32 to vector<16x1xf32>
    %169 = arith.divf %167, %168 : vector<16x1xf32>
    %170 = vector.broadcast %169 : vector<16x1xf32> to vector<16x32xf32>
    %171 = arith.subf %163, %170 : vector<16x32xf32>
    %172 = arith.mulf %171, %171 : vector<16x32xf32>
    %cst_56 = arith.constant dense<0.000000e+00> : vector<16xf32>
    %173 = vector.multi_reduction <add>, %172, %cst_56 [1] : vector<16x32xf32> to vector<16xf32>
    %174 = vector.shape_cast %173 : vector<16xf32> to vector<16x1xf32>
    %cst_57 = arith.constant 3.200000e+01 : f32
    %175 = vector.broadcast %cst_57 : f32 to vector<16x1xf32>
    %176 = arith.divf %174, %175 : vector<16x1xf32>
    %177 = vector.broadcast %169 : vector<16x1xf32> to vector<16x32xf32>
    %178 = arith.subf %163, %177 : vector<16x32xf32>
    %cst_58 = arith.constant 9.99999974E-6 : f32
    %179 = vector.broadcast %cst_58 : f32 to vector<16x1xf32>
    %180 = arith.addf %176, %179 : vector<16x1xf32>
    %181 = math.rsqrt %180 : vector<16x1xf32>
    %182 = vector.broadcast %181 : vector<16x1xf32> to vector<16x32xf32>
    %183 = arith.mulf %178, %182 : vector<16x32xf32>
    %184 = vector.broadcast %164 : vector<1x32xf32> to vector<16x32xf32>
    %185 = arith.mulf %183, %184 : vector<16x32xf32>
    %186 = vector.broadcast %165 : vector<1x32xf32> to vector<16x32xf32>
    %187 = arith.addf %185, %186 : vector<16x32xf32>
    %c0_59 = arith.constant 0 : index
    %c0_60 = arith.constant 0 : index
    %188 = vector.load %arg7[%c0_59, %c0_60] : memref<32x64xf32, #tpu.memory_space<vmem>>, vector<32x64xf32>
    %189 = arith.truncf %187 : vector<16x32xf32> to vector<16x32xbf16>
    %190 = arith.truncf %188 : vector<32x64xf32> to vector<32x64xbf16>
    %cst_61 = arith.constant dense<0.000000e+00> : vector<16x64xf32>
    %191 = tpu.matmul %189, %190, %cst_61 {dimension_numbers = #tpu.dot_dimension_numbers<[1], [0], [0], [1], [0, 0, 1, 1], [], []>} : vector<16x32xbf16>, vector<32x64xbf16>, vector<16x64xf32> -> vector<16x64xf32>
    %c0_62 = arith.constant 0 : index
    %c0_63 = arith.constant 0 : index
    %192 = vector.load %arg8[%c0_62, %c0_63] : memref<1x64xf32, #tpu.memory_space<vmem>>, vector<1x64xf32>
    %193 = vector.broadcast %192 : vector<1x64xf32> to vector<16x64xf32>
    %194 = arith.addf %191, %193 : vector<16x64xf32>
    %cst_64 = arith.constant 0.000000e+00 : f32
    %195 = vector.broadcast %cst_64 : f32 to vector<16x64xf32>
    %196 = arith.maximumf %194, %195 : vector<16x64xf32>
    %c0_65 = arith.constant 0 : index
    %c0_66 = arith.constant 0 : index
    %197 = vector.load %arg9[%c0_65, %c0_66] : memref<64x32xf32, #tpu.memory_space<vmem>>, vector<64x32xf32>
    %198 = arith.truncf %196 : vector<16x64xf32> to vector<16x64xbf16>
    %199 = arith.truncf %197 : vector<64x32xf32> to vector<64x32xbf16>
    %cst_67 = arith.constant dense<0.000000e+00> : vector<16x32xf32>
    %200 = tpu.matmul %198, %199, %cst_67 {dimension_numbers = #tpu.dot_dimension_numbers<[1], [0], [0], [1], [0, 0, 1, 1], [], []>} : vector<16x64xbf16>, vector<64x32xbf16>, vector<16x32xf32> -> vector<16x32xf32>
    %c0_68 = arith.constant 0 : index
    %c0_69 = arith.constant 0 : index
    %201 = vector.load %arg10[%c0_68, %c0_69] : memref<1x32xf32, #tpu.memory_space<vmem>>, vector<1x32xf32>
    %202 = vector.broadcast %201 : vector<1x32xf32> to vector<16x32xf32>
    %203 = arith.addf %200, %202 : vector<16x32xf32>
    %204 = arith.addf %187, %203 : vector<16x32xf32>
    %c0_70 = arith.constant 0 : index
    %c0_71 = arith.constant 0 : index
    %205 = vector.load %arg11[%c0_70, %c0_71] : memref<1x32xf32, #tpu.memory_space<vmem>>, vector<1x32xf32>
    %c0_72 = arith.constant 0 : index
    %c0_73 = arith.constant 0 : index
    %206 = vector.load %arg12[%c0_72, %c0_73] : memref<1x32xf32, #tpu.memory_space<vmem>>, vector<1x32xf32>
    %cst_74 = arith.constant dense<0.000000e+00> : vector<16xf32>
    %207 = vector.multi_reduction <add>, %204, %cst_74 [1] : vector<16x32xf32> to vector<16xf32>
    %208 = vector.shape_cast %207 : vector<16xf32> to vector<16x1xf32>
    %cst_75 = arith.constant 3.200000e+01 : f32
    %209 = vector.broadcast %cst_75 : f32 to vector<16x1xf32>
    %210 = arith.divf %208, %209 : vector<16x1xf32>
    %211 = vector.broadcast %210 : vector<16x1xf32> to vector<16x32xf32>
    %212 = arith.subf %204, %211 : vector<16x32xf32>
    %213 = arith.mulf %212, %212 : vector<16x32xf32>
    %cst_76 = arith.constant dense<0.000000e+00> : vector<16xf32>
    %214 = vector.multi_reduction <add>, %213, %cst_76 [1] : vector<16x32xf32> to vector<16xf32>
    %215 = vector.shape_cast %214 : vector<16xf32> to vector<16x1xf32>
    %cst_77 = arith.constant 3.200000e+01 : f32
    %216 = vector.broadcast %cst_77 : f32 to vector<16x1xf32>
    %217 = arith.divf %215, %216 : vector<16x1xf32>
    %218 = vector.broadcast %210 : vector<16x1xf32> to vector<16x32xf32>
    %219 = arith.subf %204, %218 : vector<16x32xf32>
    %cst_78 = arith.constant 9.99999974E-6 : f32
    %220 = vector.broadcast %cst_78 : f32 to vector<16x1xf32>
    %221 = arith.addf %217, %220 : vector<16x1xf32>
    %222 = math.rsqrt %221 : vector<16x1xf32>
    %223 = vector.broadcast %222 : vector<16x1xf32> to vector<16x32xf32>
    %224 = arith.mulf %219, %223 : vector<16x32xf32>
    %225 = vector.broadcast %205 : vector<1x32xf32> to vector<16x32xf32>
    %226 = arith.mulf %224, %225 : vector<16x32xf32>
    %227 = vector.broadcast %206 : vector<1x32xf32> to vector<16x32xf32>
    %228 = arith.addf %226, %227 : vector<16x32xf32>
    %c0_79 = arith.constant 0 : index
    %c0_80 = arith.constant 0 : index
    %229 = vector.load %arg13[%c0_79, %c0_80] : memref<16x32xf32, #tpu.memory_space<vmem>>, vector<16x32xf32>
    tpu.vector_store %arg13[%c0_79, %c0_80], %228 {strides = array<i32>} : memref<16x32xf32, #tpu.memory_space<vmem>>, vector<16x32xf32>,
    return
  }
}

module attributes {stable_mosaic.version = 11 : i64} {
  func.func @_linear_kernel(%arg0: memref<16x32xf32, #tpu.memory_space<vmem>>, %arg1: memref<32x64xf32, #tpu.memory_space<vmem>>, %arg2: memref<1x64xf32, #tpu.memory_space<vmem>>, %arg3: memref<16x64xf32, #tpu.memory_space<vmem>>) attributes {dimension_semantics = [], scalar_prefetch = 0 : i64, scratch_operands = 0 : i64, tpu.core_type = #tpu.core_type<tc>} {
    %c0 = arith.constant 0 : index
    %c0_0 = arith.constant 0 : index
    %0 = vector.load %arg0[%c0, %c0_0] : memref<16x32xf32, #tpu.memory_space<vmem>>, vector<16x32xf32>
    %c0_1 = arith.constant 0 : index
    %c0_2 = arith.constant 0 : index
    %1 = vector.load %arg1[%c0_1, %c0_2] : memref<32x64xf32, #tpu.memory_space<vmem>>, vector<32x64xf32>
    %2 = arith.truncf %0 : vector<16x32xf32> to vector<16x32xbf16>
    %3 = arith.truncf %1 : vector<32x64xf32> to vector<32x64xbf16>
    %cst = arith.constant dense<0.000000e+00> : vector<16x64xf32>
    %4 = tpu.matmul %2, %3, %cst {dimension_numbers = #tpu.dot_dimension_numbers<[1], [0], [0], [1], [0, 0, 1, 1], [], []>} : vector<16x32xbf16>, vector<32x64xbf16>, vector<16x64xf32> -> vector<16x64xf32>
    %c0_3 = arith.constant 0 : index
    %c0_4 = arith.constant 0 : index
    %5 = vector.load %arg2[%c0_3, %c0_4] : memref<1x64xf32, #tpu.memory_space<vmem>>, vector<1x64xf32>
    %6 = vector.broadcast %5 : vector<1x64xf32> to vector<16x64xf32>
    %7 = arith.addf %4, %6 : vector<16x64xf32>
    %c0_5 = arith.constant 0 : index
    %c0_6 = arith.constant 0 : index
    %8 = vector.load %arg3[%c0_5, %c0_6] : memref<16x64xf32, #tpu.memory_space<vmem>>, vector<16x64xf32>
    tpu.vector_store %arg3[%c0_5, %c0_6], %7 {strides = array<i32>} : memref<16x64xf32, #tpu.memory_space<vmem>>, vector<16x64xf32>,
    return
  }
}

module attributes {stable_mosaic.version = 11 : i64} {
  func.func @_decoder_layer_kernel(%arg0: memref<8x32xf32, #tpu.memory_space<vmem>>, %arg1: memref<16x64xf32, #tpu.memory_space<vmem>>, %arg2: memref<1x4xf32, #tpu.memory_space<vmem>>, %arg3: memref<32x96xf32, #tpu.memory_space<vmem>>, %arg4: memref<1x96xf32, #tpu.memory_space<vmem>>, %arg5: memref<32x32xf32, #tpu.memory_space<vmem>>, %arg6: memref<1x32xf32, #tpu.memory_space<vmem>>, %arg7: memref<1x32xf32, #tpu.memory_space<vmem>>, %arg8: memref<1x32xf32, #tpu.memory_space<vmem>>, %arg9: memref<32x32xf32, #tpu.memory_space<vmem>>, %arg10: memref<1x32xf32, #tpu.memory_space<vmem>>, %arg11: memref<32x32xf32, #tpu.memory_space<vmem>>, %arg12: memref<1x32xf32, #tpu.memory_space<vmem>>, %arg13: memref<1x32xf32, #tpu.memory_space<vmem>>, %arg14: memref<1x32xf32, #tpu.memory_space<vmem>>, %arg15: memref<32x64xf32, #tpu.memory_space<vmem>>, %arg16: memref<1x64xf32, #tpu.memory_space<vmem>>, %arg17: memref<64x32xf32, #tpu.memory_space<vmem>>, %arg18: memref<1x32xf32, #tpu.memory_space<vmem>>, %arg19: memref<1x32xf32, #tpu.memory_space<vmem>>, %arg20: memref<1x32xf32, #tpu.memory_space<vmem>>, %arg21: memref<8x32xf32, #tpu.memory_space<vmem>>) attributes {dimension_semantics = [], scalar_prefetch = 0 : i64, scratch_operands = 0 : i64, tpu.core_type = #tpu.core_type<tc>} {
    %c0 = arith.constant 0 : index
    %c0_0 = arith.constant 0 : index
    %0 = vector.load %arg0[%c0, %c0_0] : memref<8x32xf32, #tpu.memory_space<vmem>>, vector<8x32xf32>
    %c0_1 = arith.constant 0 : index
    %c0_2 = arith.constant 0 : index
    %1 = vector.load %arg3[%c0_1, %c0_2] : memref<32x96xf32, #tpu.memory_space<vmem>>, vector<32x96xf32>
    %2 = arith.truncf %0 : vector<8x32xf32> to vector<8x32xbf16>
    %3 = arith.truncf %1 : vector<32x96xf32> to vector<32x96xbf16>
    %cst = arith.constant dense<0.000000e+00> : vector<8x96xf32>
    %4 = tpu.matmul %2, %3, %cst {dimension_numbers = #tpu.dot_dimension_numbers<[1], [0], [0], [1], [0, 0, 1, 1], [], []>} : vector<8x32xbf16>, vector<32x96xbf16>, vector<8x96xf32> -> vector<8x96xf32>
    %c0_3 = arith.constant 0 : index
    %c0_4 = arith.constant 0 : index
    %5 = vector.load %arg4[%c0_3, %c0_4] : memref<1x96xf32, #tpu.memory_space<vmem>>, vector<1x96xf32>
    %6 = vector.broadcast %5 : vector<1x96xf32> to vector<8x96xf32>
    %7 = arith.addf %4, %6 : vector<8x96xf32>
    %8 = vector.extract_strided_slice %7 {offsets = [0, 0], sizes = [8, 32], strides = [1, 1]} : vector<8x96xf32> to vector<8x32xf32>
    %9 = vector.extract_strided_slice %7 {offsets = [0, 32], sizes = [8, 32], strides = [1, 1]} : vector<8x96xf32> to vector<8x32xf32>
    %10 = vector.extract_strided_slice %7 {offsets = [0, 64], sizes = [8, 32], strides = [1, 1]} : vector<8x96xf32> to vector<8x32xf32>
    %c0_5 = arith.constant 0 : index
    %c0_6 = arith.constant 0 : index
    %11 = vector.load %arg2[%c0_5, %c0_6] : memref<1x4xf32, #tpu.memory_space<vmem>>, vector<1x4xf32>
    %12 = vector.extract_strided_slice %8 {offsets = [0, 0], sizes = [4, 32], strides = [1, 1]} : vector<8x32xf32> to vector<4x32xf32>
    %13 = vector.extract_strided_slice %9 {offsets = [0, 0], sizes = [4, 32], strides = [1, 1]} : vector<8x32xf32> to vector<4x32xf32>
    %14 = vector.extract_strided_slice %10 {offsets = [0, 0], sizes = [4, 32], strides = [1, 1]} : vector<8x32xf32> to vector<4x32xf32>
    %15 = vector.extract_strided_slice %12 {offsets = [0, 0], sizes = [4, 8], strides = [1, 1]} : vector<4x32xf32> to vector<4x8xf32>
    %cst_7 = arith.constant 0.353553385 : f32
    %16 = vector.broadcast %cst_7 : f32 to vector<4x8xf32>
    %17 = arith.mulf %15, %16 : vector<4x8xf32>
    %18 = vector.extract_strided_slice %13 {offsets = [0, 0], sizes = [4, 8], strides = [1, 1]} : vector<4x32xf32> to vector<4x8xf32>
    %19 = vector.extract_strided_slice %14 {offsets = [0, 0], sizes = [4, 8], strides = [1, 1]} : vector<4x32xf32> to vector<4x8xf32>
    %cst_8 = arith.constant dense<0.000000e+00> : vector<4x4xf32>
    %20 = tpu.matmul %17, %18, %cst_8 {dimension_numbers = #tpu.dot_dimension_numbers<[1], [1], [0], [0], [0, 0, 1, 0], [], []>} : vector<4x8xf32>, vector<4x8xf32>, vector<4x4xf32> -> vector<4x4xf32>
    %21 = vector.broadcast %11 : vector<1x4xf32> to vector<4x4xf32>
    %22 = arith.addf %20, %21 : vector<4x4xf32>
    %cst_9 = arith.constant dense<0xFF800000> : vector<4xf32>
    %23 = vector.multi_reduction <maximumf>, %22, %cst_9 [1] : vector<4x4xf32> to vector<4xf32>
    %24 = vector.shape_cast %23 : vector<4xf32> to vector<4x1xf32>
    %25 = vector.broadcast %24 : vector<4x1xf32> to vector<4x4xf32>
    %26 = arith.subf %22, %25 : vector<4x4xf32>
    %27 = math.exp %26 : vector<4x4xf32>
    %cst_10 = arith.constant dense<0.000000e+00> : vector<4xf32>
    %28 = vector.multi_reduction <add>, %27, %cst_10 [1] : vector<4x4xf32> to vector<4xf32>
    %29 = vector.shape_cast %28 : vector<4xf32> to vector<4x1xf32>
    %30 = tpu.reciprocal %29 {approx = true} : vector<4x1xf32> -> vector<4x1xf32>
    %31 = vector.broadcast %30 : vector<4x1xf32> to vector<4x4xf32>
    %32 = arith.mulf %27, %31 : vector<4x4xf32>
    %cst_11 = arith.constant dense<0.000000e+00> : vector<4x8xf32>
    %33 = tpu.matmul %32, %19, %cst_11 {dimension_numbers = #tpu.dot_dimension_numbers<[1], [0], [0], [1], [0, 0, 1, 1], [], []>} : vector<4x4xf32>, vector<4x8xf32>, vector<4x8xf32> -> vector<4x8xf32>
    %34 = vector.extract_strided_slice %12 {offsets = [0, 8], sizes = [4, 8], strides = [1, 1]} : vector<4x32xf32> to vector<4x8xf32>
    %cst_12 = arith.constant 0.353553385 : f32
    %35 = vector.broadcast %cst_12 : f32 to vector<4x8xf32>
    %36 = arith.mulf %34, %35 : vector<4x8xf32>
    %37 = vector.extract_strided_slice %13 {offsets = [0, 8], sizes = [4, 8], strides = [1, 1]} : vector<4x32xf32> to vector<4x8xf32>
    %38 = vector.extract_strided_slice %14 {offsets = [0, 8], sizes = [4, 8], strides = [1, 1]} : vector<4x32xf32> to vector<4x8xf32>
    %cst_13 = arith.constant dense<0.000000e+00> : vector<4x4xf32>
    %39 = tpu.matmul %36, %37, %cst_13 {dimension_numbers = #tpu.dot_dimension_numbers<[1], [1], [0], [0], [0, 0, 1, 0], [], []>} : vector<4x8xf32>, vector<4x8xf32>, vector<4x4xf32> -> vector<4x4xf32>
    %40 = vector.broadcast %11 : vector<1x4xf32> to vector<4x4xf32>
    %41 = arith.addf %39, %40 : vector<4x4xf32>
    %cst_14 = arith.constant dense<0xFF800000> : vector<4xf32>
    %42 = vector.multi_reduction <maximumf>, %41, %cst_14 [1] : vector<4x4xf32> to vector<4xf32>
    %43 = vector.shape_cast %42 : vector<4xf32> to vector<4x1xf32>
    %44 = vector.broadcast %43 : vector<4x1xf32> to vector<4x4xf32>
    %45 = arith.subf %41, %44 : vector<4x4xf32>
    %46 = math.exp %45 : vector<4x4xf32>
    %cst_15 = arith.constant dense<0.000000e+00> : vector<4xf32>
    %47 = vector.multi_reduction <add>, %46, %cst_15 [1] : vector<4x4xf32> to vector<4xf32>
    %48 = vector.shape_cast %47 : vector<4xf32> to vector<4x1xf32>
    %49 = tpu.reciprocal %48 {approx = true} : vector<4x1xf32> -> vector<4x1xf32>
    %50 = vector.broadcast %49 : vector<4x1xf32> to vector<4x4xf32>
    %51 = arith.mulf %46, %50 : vector<4x4xf32>
    %cst_16 = arith.constant dense<0.000000e+00> : vector<4x8xf32>
    %52 = tpu.matmul %51, %38, %cst_16 {dimension_numbers = #tpu.dot_dimension_numbers<[1], [0], [0], [1], [0, 0, 1, 1], [], []>} : vector<4x4xf32>, vector<4x8xf32>, vector<4x8xf32> -> vector<4x8xf32>
    %53 = vector.extract_strided_slice %12 {offsets = [0, 16], sizes = [4, 8], strides = [1, 1]} : vector<4x32xf32> to vector<4x8xf32>
    %cst_17 = arith.constant 0.353553385 : f32
    %54 = vector.broadcast %cst_17 : f32 to vector<4x8xf32>
    %55 = arith.mulf %53, %54 : vector<4x8xf32>
    %56 = vector.extract_strided_slice %13 {offsets = [0, 16], sizes = [4, 8], strides = [1, 1]} : vector<4x32xf32> to vector<4x8xf32>
    %57 = vector.extract_strided_slice %14 {offsets = [0, 16], sizes = [4, 8], strides = [1, 1]} : vector<4x32xf32> to vector<4x8xf32>
    %cst_18 = arith.constant dense<0.000000e+00> : vector<4x4xf32>
    %58 = tpu.matmul %55, %56, %cst_18 {dimension_numbers = #tpu.dot_dimension_numbers<[1], [1], [0], [0], [0, 0, 1, 0], [], []>} : vector<4x8xf32>, vector<4x8xf32>, vector<4x4xf32> -> vector<4x4xf32>
    %59 = vector.broadcast %11 : vector<1x4xf32> to vector<4x4xf32>
    %60 = arith.addf %58, %59 : vector<4x4xf32>
    %cst_19 = arith.constant dense<0xFF800000> : vector<4xf32>
    %61 = vector.multi_reduction <maximumf>, %60, %cst_19 [1] : vector<4x4xf32> to vector<4xf32>
    %62 = vector.shape_cast %61 : vector<4xf32> to vector<4x1xf32>
    %63 = vector.broadcast %62 : vector<4x1xf32> to vector<4x4xf32>
    %64 = arith.subf %60, %63 : vector<4x4xf32>
    %65 = math.exp %64 : vector<4x4xf32>
    %cst_20 = arith.constant dense<0.000000e+00> : vector<4xf32>
    %66 = vector.multi_reduction <add>, %65, %cst_20 [1] : vector<4x4xf32> to vector<4xf32>
    %67 = vector.shape_cast %66 : vector<4xf32> to vector<4x1xf32>
    %68 = tpu.reciprocal %67 {approx = true} : vector<4x1xf32> -> vector<4x1xf32>
    %69 = vector.broadcast %68 : vector<4x1xf32> to vector<4x4xf32>
    %70 = arith.mulf %65, %69 : vector<4x4xf32>
    %cst_21 = arith.constant dense<0.000000e+00> : vector<4x8xf32>
    %71 = tpu.matmul %70, %57, %cst_21 {dimension_numbers = #tpu.dot_dimension_numbers<[1], [0], [0], [1], [0, 0, 1, 1], [], []>} : vector<4x4xf32>, vector<4x8xf32>, vector<4x8xf32> -> vector<4x8xf32>
    %72 = vector.extract_strided_slice %12 {offsets = [0, 24], sizes = [4, 8], strides = [1, 1]} : vector<4x32xf32> to vector<4x8xf32>
    %cst_22 = arith.constant 0.353553385 : f32
    %73 = vector.broadcast %cst_22 : f32 to vector<4x8xf32>
    %74 = arith.mulf %72, %73 : vector<4x8xf32>
    %75 = vector.extract_strided_slice %13 {offsets = [0, 24], sizes = [4, 8], strides = [1, 1]} : vector<4x32xf32> to vector<4x8xf32>
    %76 = vector.extract_strided_slice %14 {offsets = [0, 24], sizes = [4, 8], strides = [1, 1]} : vector<4x32xf32> to vector<4x8xf32>
    %cst_23 = arith.constant dense<0.000000e+00> : vector<4x4xf32>
    %77 = tpu.matmul %74, %75, %cst_23 {dimension_numbers = #tpu.dot_dimension_numbers<[1], [1], [0], [0], [0, 0, 1, 0], [], []>} : vector<4x8xf32>, vector<4x8xf32>, vector<4x4xf32> -> vector<4x4xf32>
    %78 = vector.broadcast %11 : vector<1x4xf32> to vector<4x4xf32>
    %79 = arith.addf %77, %78 : vector<4x4xf32>
    %cst_24 = arith.constant dense<0xFF800000> : vector<4xf32>
    %80 = vector.multi_reduction <maximumf>, %79, %cst_24 [1] : vector<4x4xf32> to vector<4xf32>
    %81 = vector.shape_cast %80 : vector<4xf32> to vector<4x1xf32>
    %82 = vector.broadcast %81 : vector<4x1xf32> to vector<4x4xf32>
    %83 = arith.subf %79, %82 : vector<4x4xf32>
    %84 = math.exp %83 : vector<4x4xf32>
    %cst_25 = arith.constant dense<0.000000e+00> : vector<4xf32>
    %85 = vector.multi_reduction <add>, %84, %cst_25 [1] : vector<4x4xf32> to vector<4xf32>
    %86 = vector.shape_cast %85 : vector<4xf32> to vector<4x1xf32>
    %87 = tpu.reciprocal %86 {approx = true} : vector<4x1xf32> -> vector<4x1xf32>
    %88 = vector.broadcast %87 : vector<4x1xf32> to vector<4x4xf32>
    %89 = arith.mulf %84, %88 : vector<4x4xf32>
    %cst_26 = arith.constant dense<0.000000e+00> : vector<4x8xf32>
    %90 = tpu.matmul %89, %76, %cst_26 {dimension_numbers = #tpu.dot_dimension_numbers<[1], [0], [0], [1], [0, 0, 1, 1], [], []>} : vector<4x4xf32>, vector<4x8xf32>, vector<4x8xf32> -> vector<4x8xf32>
    %91 = tpu.concatenate %33, %52, %71, %90 in 1 : vector<4x8xf32>, vector<4x8xf32>, vector<4x8xf32>, vector<4x8xf32> -> vector<4x32xf32>
    %92 = vector.extract_strided_slice %8 {offsets = [4, 0], sizes = [4, 32], strides = [1, 1]} : vector<8x32xf32> to vector<4x32xf32>
    %93 = vector.extract_strided_slice %9 {offsets = [4, 0], sizes = [4, 32], strides = [1, 1]} : vector<8x32xf32> to vector<4x32xf32>
    %94 = vector.extract_strided_slice %10 {offsets = [4, 0], sizes = [4, 32], strides = [1, 1]} : vector<8x32xf32> to vector<4x32xf32>
    %95 = vector.extract_strided_slice %92 {offsets = [0, 0], sizes = [4, 8], strides = [1, 1]} : vector<4x32xf32> to vector<4x8xf32>
    %cst_27 = arith.constant 0.353553385 : f32
    %96 = vector.broadcast %cst_27 : f32 to vector<4x8xf32>
    %97 = arith.mulf %95, %96 : vector<4x8xf32>
    %98 = vector.extract_strided_slice %93 {offsets = [0, 0], sizes = [4, 8], strides = [1, 1]} : vector<4x32xf32> to vector<4x8xf32>
    %99 = vector.extract_strided_slice %94 {offsets = [0, 0], sizes = [4, 8], strides = [1, 1]} : vector<4x32xf32> to vector<4x8xf32>
    %cst_28 = arith.constant dense<0.000000e+00> : vector<4x4xf32>
    %100 = tpu.matmul %97, %98, %cst_28 {dimension_numbers = #tpu.dot_dimension_numbers<[1], [1], [0], [0], [0, 0, 1, 0], [], []>} : vector<4x8xf32>, vector<4x8xf32>, vector<4x4xf32> -> vector<4x4xf32>
    %101 = vector.broadcast %11 : vector<1x4xf32> to vector<4x4xf32>
    %102 = arith.addf %100, %101 : vector<4x4xf32>
    %cst_29 = arith.constant dense<0xFF800000> : vector<4xf32>
    %103 = vector.multi_reduction <maximumf>, %102, %cst_29 [1] : vector<4x4xf32> to vector<4xf32>
    %104 = vector.shape_cast %103 : vector<4xf32> to vector<4x1xf32>
    %105 = vector.broadcast %104 : vector<4x1xf32> to vector<4x4xf32>
    %106 = arith.subf %102, %105 : vector<4x4xf32>
    %107 = math.exp %106 : vector<4x4xf32>
    %cst_30 = arith.constant dense<0.000000e+00> : vector<4xf32>
    %108 = vector.multi_reduction <add>, %107, %cst_30 [1] : vector<4x4xf32> to vector<4xf32>
    %109 = vector.shape_cast %108 : vector<4xf32> to vector<4x1xf32>
    %110 = tpu.reciprocal %109 {approx = true} : vector<4x1xf32> -> vector<4x1xf32>
    %111 = vector.broadcast %110 : vector<4x1xf32> to vector<4x4xf32>
    %112 = arith.mulf %107, %111 : vector<4x4xf32>
    %cst_31 = arith.constant dense<0.000000e+00> : vector<4x8xf32>
    %113 = tpu.matmul %112, %99, %cst_31 {dimension_numbers = #tpu.dot_dimension_numbers<[1], [0], [0], [1], [0, 0, 1, 1], [], []>} : vector<4x4xf32>, vector<4x8xf32>, vector<4x8xf32> -> vector<4x8xf32>
    %114 = vector.extract_strided_slice %92 {offsets = [0, 8], sizes = [4, 8], strides = [1, 1]} : vector<4x32xf32> to vector<4x8xf32>
    %cst_32 = arith.constant 0.353553385 : f32
    %115 = vector.broadcast %cst_32 : f32 to vector<4x8xf32>
    %116 = arith.mulf %114, %115 : vector<4x8xf32>
    %117 = vector.extract_strided_slice %93 {offsets = [0, 8], sizes = [4, 8], strides = [1, 1]} : vector<4x32xf32> to vector<4x8xf32>
    %118 = vector.extract_strided_slice %94 {offsets = [0, 8], sizes = [4, 8], strides = [1, 1]} : vector<4x32xf32> to vector<4x8xf32>
    %cst_33 = arith.constant dense<0.000000e+00> : vector<4x4xf32>
    %119 = tpu.matmul %116, %117, %cst_33 {dimension_numbers = #tpu.dot_dimension_numbers<[1], [1], [0], [0], [0, 0, 1, 0], [], []>} : vector<4x8xf32>, vector<4x8xf32>, vector<4x4xf32> -> vector<4x4xf32>
    %120 = vector.broadcast %11 : vector<1x4xf32> to vector<4x4xf32>
    %121 = arith.addf %119, %120 : vector<4x4xf32>
    %cst_34 = arith.constant dense<0xFF800000> : vector<4xf32>
    %122 = vector.multi_reduction <maximumf>, %121, %cst_34 [1] : vector<4x4xf32> to vector<4xf32>
    %123 = vector.shape_cast %122 : vector<4xf32> to vector<4x1xf32>
    %124 = vector.broadcast %123 : vector<4x1xf32> to vector<4x4xf32>
    %125 = arith.subf %121, %124 : vector<4x4xf32>
    %126 = math.exp %125 : vector<4x4xf32>
    %cst_35 = arith.constant dense<0.000000e+00> : vector<4xf32>
    %127 = vector.multi_reduction <add>, %126, %cst_35 [1] : vector<4x4xf32> to vector<4xf32>
    %128 = vector.shape_cast %127 : vector<4xf32> to vector<4x1xf32>
    %129 = tpu.reciprocal %128 {approx = true} : vector<4x1xf32> -> vector<4x1xf32>
    %130 = vector.broadcast %129 : vector<4x1xf32> to vector<4x4xf32>
    %131 = arith.mulf %126, %130 : vector<4x4xf32>
    %cst_36 = arith.constant dense<0.000000e+00> : vector<4x8xf32>
    %132 = tpu.matmul %131, %118, %cst_36 {dimension_numbers = #tpu.dot_dimension_numbers<[1], [0], [0], [1], [0, 0, 1, 1], [], []>} : vector<4x4xf32>, vector<4x8xf32>, vector<4x8xf32> -> vector<4x8xf32>
    %133 = vector.extract_strided_slice %92 {offsets = [0, 16], sizes = [4, 8], strides = [1, 1]} : vector<4x32xf32> to vector<4x8xf32>
    %cst_37 = arith.constant 0.353553385 : f32
    %134 = vector.broadcast %cst_37 : f32 to vector<4x8xf32>
    %135 = arith.mulf %133, %134 : vector<4x8xf32>
    %136 = vector.extract_strided_slice %93 {offsets = [0, 16], sizes = [4, 8], strides = [1, 1]} : vector<4x32xf32> to vector<4x8xf32>
    %137 = vector.extract_strided_slice %94 {offsets = [0, 16], sizes = [4, 8], strides = [1, 1]} : vector<4x32xf32> to vector<4x8xf32>
    %cst_38 = arith.constant dense<0.000000e+00> : vector<4x4xf32>
    %138 = tpu.matmul %135, %136, %cst_38 {dimension_numbers = #tpu.dot_dimension_numbers<[1], [1], [0], [0], [0, 0, 1, 0], [], []>} : vector<4x8xf32>, vector<4x8xf32>, vector<4x4xf32> -> vector<4x4xf32>
    %139 = vector.broadcast %11 : vector<1x4xf32> to vector<4x4xf32>
    %140 = arith.addf %138, %139 : vector<4x4xf32>
    %cst_39 = arith.constant dense<0xFF800000> : vector<4xf32>
    %141 = vector.multi_reduction <maximumf>, %140, %cst_39 [1] : vector<4x4xf32> to vector<4xf32>
    %142 = vector.shape_cast %141 : vector<4xf32> to vector<4x1xf32>
    %143 = vector.broadcast %142 : vector<4x1xf32> to vector<4x4xf32>
    %144 = arith.subf %140, %143 : vector<4x4xf32>
    %145 = math.exp %144 : vector<4x4xf32>
    %cst_40 = arith.constant dense<0.000000e+00> : vector<4xf32>
    %146 = vector.multi_reduction <add>, %145, %cst_40 [1] : vector<4x4xf32> to vector<4xf32>
    %147 = vector.shape_cast %146 : vector<4xf32> to vector<4x1xf32>
    %148 = tpu.reciprocal %147 {approx = true} : vector<4x1xf32> -> vector<4x1xf32>
    %149 = vector.broadcast %148 : vector<4x1xf32> to vector<4x4xf32>
    %150 = arith.mulf %145, %149 : vector<4x4xf32>
    %cst_41 = arith.constant dense<0.000000e+00> : vector<4x8xf32>
    %151 = tpu.matmul %150, %137, %cst_41 {dimension_numbers = #tpu.dot_dimension_numbers<[1], [0], [0], [1], [0, 0, 1, 1], [], []>} : vector<4x4xf32>, vector<4x8xf32>, vector<4x8xf32> -> vector<4x8xf32>
    %152 = vector.extract_strided_slice %92 {offsets = [0, 24], sizes = [4, 8], strides = [1, 1]} : vector<4x32xf32> to vector<4x8xf32>
    %cst_42 = arith.constant 0.353553385 : f32
    %153 = vector.broadcast %cst_42 : f32 to vector<4x8xf32>
    %154 = arith.mulf %152, %153 : vector<4x8xf32>
    %155 = vector.extract_strided_slice %93 {offsets = [0, 24], sizes = [4, 8], strides = [1, 1]} : vector<4x32xf32> to vector<4x8xf32>
    %156 = vector.extract_strided_slice %94 {offsets = [0, 24], sizes = [4, 8], strides = [1, 1]} : vector<4x32xf32> to vector<4x8xf32>
    %cst_43 = arith.constant dense<0.000000e+00> : vector<4x4xf32>
    %157 = tpu.matmul %154, %155, %cst_43 {dimension_numbers = #tpu.dot_dimension_numbers<[1], [1], [0], [0], [0, 0, 1, 0], [], []>} : vector<4x8xf32>, vector<4x8xf32>, vector<4x4xf32> -> vector<4x4xf32>
    %158 = vector.broadcast %11 : vector<1x4xf32> to vector<4x4xf32>
    %159 = arith.addf %157, %158 : vector<4x4xf32>
    %cst_44 = arith.constant dense<0xFF800000> : vector<4xf32>
    %160 = vector.multi_reduction <maximumf>, %159, %cst_44 [1] : vector<4x4xf32> to vector<4xf32>
    %161 = vector.shape_cast %160 : vector<4xf32> to vector<4x1xf32>
    %162 = vector.broadcast %161 : vector<4x1xf32> to vector<4x4xf32>
    %163 = arith.subf %159, %162 : vector<4x4xf32>
    %164 = math.exp %163 : vector<4x4xf32>
    %cst_45 = arith.constant dense<0.000000e+00> : vector<4xf32>
    %165 = vector.multi_reduction <add>, %164, %cst_45 [1] : vector<4x4xf32> to vector<4xf32>
    %166 = vector.shape_cast %165 : vector<4xf32> to vector<4x1xf32>
    %167 = tpu.reciprocal %166 {approx = true} : vector<4x1xf32> -> vector<4x1xf32>
    %168 = vector.broadcast %167 : vector<4x1xf32> to vector<4x4xf32>
    %169 = arith.mulf %164, %168 : vector<4x4xf32>
    %cst_46 = arith.constant dense<0.000000e+00> : vector<4x8xf32>
    %170 = tpu.matmul %169, %156, %cst_46 {dimension_numbers = #tpu.dot_dimension_numbers<[1], [0], [0], [1], [0, 0, 1, 1], [], []>} : vector<4x4xf32>, vector<4x8xf32>, vector<4x8xf32> -> vector<4x8xf32>
    %171 = tpu.concatenate %113, %132, %151, %170 in 1 : vector<4x8xf32>, vector<4x8xf32>, vector<4x8xf32>, vector<4x8xf32> -> vector<4x32xf32>
    %172 = tpu.concatenate %91, %171 in 0 : vector<4x32xf32>, vector<4x32xf32> -> vector<8x32xf32>
    %c0_47 = arith.constant 0 : index
    %c0_48 = arith.constant 0 : index
    %173 = vector.load %arg5[%c0_47, %c0_48] : memref<32x32xf32, #tpu.memory_space<vmem>>, vector<32x32xf32>
    %174 = arith.truncf %172 : vector<8x32xf32> to vector<8x32xbf16>
    %175 = arith.truncf %173 : vector<32x32xf32> to vector<32x32xbf16>
    %cst_49 = arith.constant dense<0.000000e+00> : vector<8x32xf32>
    %176 = tpu.matmul %174, %175, %cst_49 {dimension_numbers = #tpu.dot_dimension_numbers<[1], [0], [0], [1], [0, 0, 1, 1], [], []>} : vector<8x32xbf16>, vector<32x32xbf16>, vector<8x32xf32> -> vector<8x32xf32>
    %c0_50 = arith.constant 0 : index
    %c0_51 = arith.constant 0 : index
    %177 = vector.load %arg6[%c0_50, %c0_51] : memref<1x32xf32, #tpu.memory_space<vmem>>, vector<1x32xf32>
    %178 = vector.broadcast %177 : vector<1x32xf32> to vector<8x32xf32>
    %179 = arith.addf %176, %178 : vector<8x32xf32>
    %180 = arith.addf %0, %179 : vector<8x32xf32>
    %c0_52 = arith.constant 0 : index
    %c0_53 = arith.constant 0 : index
    %181 = vector.load %arg7[%c0_52, %c0_53] : memref<1x32xf32, #tpu.memory_space<vmem>>, vector<1x32xf32>
    %c0_54 = arith.constant 0 : index
    %c0_55 = arith.constant 0 : index
    %182 = vector.load %arg8[%c0_54, %c0_55] : memref<1x32xf32, #tpu.memory_space<vmem>>, vector<1x32xf32>
    %cst_56 = arith.constant dense<0.000000e+00> : vector<8xf32>
    %183 = vector.multi_reduction <add>, %180, %cst_56 [1] : vector<8x32xf32> to vector<8xf32>
    %184 = vector.shape_cast %183 : vector<8xf32> to vector<8x1xf32>
    %cst_57 = arith.constant 3.200000e+01 : f32
    %185 = vector.broadcast %cst_57 : f32 to vector<8x1xf32>
    %186 = arith.divf %184, %185 : vector<8x1xf32>
    %187 = vector.broadcast %186 : vector<8x1xf32> to vector<8x32xf32>
    %188 = arith.subf %180, %187 : vector<8x32xf32>
    %189 = arith.mulf %188, %188 : vector<8x32xf32>
    %cst_58 = arith.constant dense<0.000000e+00> : vector<8xf32>
    %190 = vector.multi_reduction <add>, %189, %cst_58 [1] : vector<8x32xf32> to vector<8xf32>
    %191 = vector.shape_cast %190 : vector<8xf32> to vector<8x1xf32>
    %cst_59 = arith.constant 3.200000e+01 : f32
    %192 = vector.broadcast %cst_59 : f32 to vector<8x1xf32>
    %193 = arith.divf %191, %192 : vector<8x1xf32>
    %194 = vector.broadcast %186 : vector<8x1xf32> to vector<8x32xf32>
    %195 = arith.subf %180, %194 : vector<8x32xf32>
    %cst_60 = arith.constant 9.99999974E-6 : f32
    %196 = vector.broadcast %cst_60 : f32 to vector<8x1xf32>
    %197 = arith.addf %193, %196 : vector<8x1xf32>
    %198 = math.rsqrt %197 : vector<8x1xf32>
    %199 = vector.broadcast %198 : vector<8x1xf32> to vector<8x32xf32>
    %200 = arith.mulf %195, %199 : vector<8x32xf32>
    %201 = vector.broadcast %181 : vector<1x32xf32> to vector<8x32xf32>
    %202 = arith.mulf %200, %201 : vector<8x32xf32>
    %203 = vector.broadcast %182 : vector<1x32xf32> to vector<8x32xf32>
    %204 = arith.addf %202, %203 : vector<8x32xf32>
    %c0_61 = arith.constant 0 : index
    %c0_62 = arith.constant 0 : index
    %205 = vector.load %arg1[%c0_61, %c0_62] : memref<16x64xf32, #tpu.memory_space<vmem>>, vector<16x64xf32>
    %206 = vector.extract_strided_slice %205 {offsets = [0, 0], sizes = [16, 32], strides = [1, 1]} : vector<16x64xf32> to vector<16x32xf32>
    %207 = vector.extract_strided_slice %205 {offsets = [0, 32], sizes = [16, 32], strides = [1, 1]} : vector<16x64xf32> to vector<16x32xf32>
    %c0_63 = arith.constant 0 : index
    %c0_64 = arith.constant 0 : index
    %208 = vector.load %arg9[%c0_63, %c0_64] : memref<32x32xf32, #tpu.memory_space<vmem>>, vector<32x32xf32>
    %209 = arith.truncf %204 : vector<8x32xf32> to vector<8x32xbf16>
    %210 = arith.truncf %208 : vector<32x32xf32> to vector<32x32xbf16>
    %cst_65 = arith.constant dense<0.000000e+00> : vector<8x32xf32>
    %211 = tpu.matmul %209, %210, %cst_65 {dimension_numbers = #tpu.dot_dimension_numbers<[1], [0], [0], [1], [0, 0, 1, 1], [], []>} : vector<8x32xbf16>, vector<32x32xbf16>, vector<8x32xf32> -> vector<8x32xf32>
    %c0_66 = arith.constant 0 : index
    %c0_67 = arith.constant 0 : index
    %212 = vector.load %arg10[%c0_66, %c0_67] : memref<1x32xf32, #tpu.memory_space<vmem>>, vector<1x32xf32>
    %213 = vector.broadcast %212 : vector<1x32xf32> to vector<8x32xf32>
    %214 = arith.addf %211, %213 : vector<8x32xf32>
    %215 = vector.extract_strided_slice %214 {offsets = [0, 0], sizes = [4, 32], strides = [1, 1]} : vector<8x32xf32> to vector<4x32xf32>
    %216 = vector.extract_strided_slice %206 {offsets = [0, 0], sizes = [8, 32], strides = [1, 1]} : vector<16x32xf32> to vector<8x32xf32>
    %217 = vector.extract_strided_slice %207 {offsets = [0, 0], sizes = [8, 32], strides = [1, 1]} : vector<16x32xf32> to vector<8x32xf32>
    %218 = vector.extract_strided_slice %215 {offsets = [0, 0], sizes = [4, 8], strides = [1, 1]} : vector<4x32xf32> to vector<4x8xf32>
    %cst_68 = arith.constant 0.353553385 : f32
    %219 = vector.broadcast %cst_68 : f32 to vector<4x8xf32>
    %220 = arith.mulf %218, %219 : vector<4x8xf32>
    %221 = vector.extract_strided_slice %216 {offsets = [0, 0], sizes = [8, 8], strides = [1, 1]} : vector<8x32xf32> to vector<8x8xf32>
    %222 = vector.extract_strided_slice %217 {offsets = [0, 0], sizes = [8, 8], strides = [1, 1]} : vector<8x32xf32> to vector<8x8xf32>
    %cst_69 = arith.constant dense<0.000000e+00> : vector<4x8xf32>
    %223 = tpu.matmul %220, %221, %cst_69 {dimension_numbers = #tpu.dot_dimension_numbers<[1], [1], [0], [0], [0, 0, 1, 0], [], []>} : vector<4x8xf32>, vector<8x8xf32>, vector<4x8xf32> -> vector<4x8xf32>
    %cst_70 = arith.constant dense<0xFF800000> : vector<4xf32>
    %224 = vector.multi_reduction <maximumf>, %223, %cst_70 [1] : vector<4x8xf32> to vector<4xf32>
    %225 = vector.shape_cast %224 : vector<4xf32> to vector<4x1xf32>
    %226 = vector.broadcast %225 : vector<4x1xf32> to vector<4x8xf32>
    %227 = arith.subf %223, %226 : vector<4x8xf32>
    %228 = math.exp %227 : vector<4x8xf32>
    %cst_71 = arith.constant dense<0.000000e+00> : vector<4xf32>
    %229 = vector.multi_reduction <add>, %228, %cst_71 [1] : vector<4x8xf32> to vector<4xf32>
    %230 = vector.shape_cast %229 : vector<4xf32> to vector<4x1xf32>
    %231 = tpu.reciprocal %230 {approx = true} : vector<4x1xf32> -> vector<4x1xf32>
    %232 = vector.broadcast %231 : vector<4x1xf32> to vector<4x8xf32>
    %233 = arith.mulf %228, %232 : vector<4x8xf32>
    %cst_72 = arith.constant dense<0.000000e+00> : vector<4x8xf32>
    %234 = tpu.matmul %233, %222, %cst_72 {dimension_numbers = #tpu.dot_dimension_numbers<[1], [0], [0], [1], [0, 0, 1, 1], [], []>} : vector<4x8xf32>, vector<8x8xf32>, vector<4x8xf32> -> vector<4x8xf32>
    %235 = vector.extract_strided_slice %215 {offsets = [0, 8], sizes = [4, 8], strides = [1, 1]} : vector<4x32xf32> to vector<4x8xf32>
    %cst_73 = arith.constant 0.353553385 : f32
    %236 = vector.broadcast %cst_73 : f32 to vector<4x8xf32>
    %237 = arith.mulf %235, %236 : vector<4x8xf32>
    %238 = vector.extract_strided_slice %216 {offsets = [0, 8], sizes = [8, 8], strides = [1, 1]} : vector<8x32xf32> to vector<8x8xf32>
    %239 = vector.extract_strided_slice %217 {offsets = [0, 8], sizes = [8, 8], strides = [1, 1]} : vector<8x32xf32> to vector<8x8xf32>
    %cst_74 = arith.constant dense<0.000000e+00> : vector<4x8xf32>
    %240 = tpu.matmul %237, %238, %cst_74 {dimension_numbers = #tpu.dot_dimension_numbers<[1], [1], [0], [0], [0, 0, 1, 0], [], []>} : vector<4x8xf32>, vector<8x8xf32>, vector<4x8xf32> -> vector<4x8xf32>
    %cst_75 = arith.constant dense<0xFF800000> : vector<4xf32>
    %241 = vector.multi_reduction <maximumf>, %240, %cst_75 [1] : vector<4x8xf32> to vector<4xf32>
    %242 = vector.shape_cast %241 : vector<4xf32> to vector<4x1xf32>
    %243 = vector.broadcast %242 : vector<4x1xf32> to vector<4x8xf32>
    %244 = arith.subf %240, %243 : vector<4x8xf32>
    %245 = math.exp %244 : vector<4x8xf32>
    %cst_76 = arith.constant dense<0.000000e+00> : vector<4xf32>
    %246 = vector.multi_reduction <add>, %245, %cst_76 [1] : vector<4x8xf32> to vector<4xf32>
    %247 = vector.shape_cast %246 : vector<4xf32> to vector<4x1xf32>
    %248 = tpu.reciprocal %247 {approx = true} : vector<4x1xf32> -> vector<4x1xf32>
    %249 = vector.broadcast %248 : vector<4x1xf32> to vector<4x8xf32>
    %250 = arith.mulf %245, %249 : vector<4x8xf32>
    %cst_77 = arith.constant dense<0.000000e+00> : vector<4x8xf32>
    %251 = tpu.matmul %250, %239, %cst_77 {dimension_numbers = #tpu.dot_dimension_numbers<[1], [0], [0], [1], [0, 0, 1, 1], [], []>} : vector<4x8xf32>, vector<8x8xf32>, vector<4x8xf32> -> vector<4x8xf32>
    %252 = vector.extract_strided_slice %215 {offsets = [0, 16], sizes = [4, 8], strides = [1, 1]} : vector<4x32xf32> to vector<4x8xf32>
    %cst_78 = arith.constant 0.353553385 : f32
    %253 = vector.broadcast %cst_78 : f32 to vector<4x8xf32>
    %254 = arith.mulf %252, %253 : vector<4x8xf32>
    %255 = vector.extract_strided_slice %216 {offsets = [0, 16], sizes = [8, 8], strides = [1, 1]} : vector<8x32xf32> to vector<8x8xf32>
    %256 = vector.extract_strided_slice %217 {offsets = [0, 16], sizes = [8, 8], strides = [1, 1]} : vector<8x32xf32> to vector<8x8xf32>
    %cst_79 = arith.constant dense<0.000000e+00> : vector<4x8xf32>
    %257 = tpu.matmul %254, %255, %cst_79 {dimension_numbers = #tpu.dot_dimension_numbers<[1], [1], [0], [0], [0, 0, 1, 0], [], []>} : vector<4x8xf32>, vector<8x8xf32>, vector<4x8xf32> -> vector<4x8xf32>
    %cst_80 = arith.constant dense<0xFF800000> : vector<4xf32>
    %258 = vector.multi_reduction <maximumf>, %257, %cst_80 [1] : vector<4x8xf32> to vector<4xf32>
    %259 = vector.shape_cast %258 : vector<4xf32> to vector<4x1xf32>
    %260 = vector.broadcast %259 : vector<4x1xf32> to vector<4x8xf32>
    %261 = arith.subf %257, %260 : vector<4x8xf32>
    %262 = math.exp %261 : vector<4x8xf32>
    %cst_81 = arith.constant dense<0.000000e+00> : vector<4xf32>
    %263 = vector.multi_reduction <add>, %262, %cst_81 [1] : vector<4x8xf32> to vector<4xf32>
    %264 = vector.shape_cast %263 : vector<4xf32> to vector<4x1xf32>
    %265 = tpu.reciprocal %264 {approx = true} : vector<4x1xf32> -> vector<4x1xf32>
    %266 = vector.broadcast %265 : vector<4x1xf32> to vector<4x8xf32>
    %267 = arith.mulf %262, %266 : vector<4x8xf32>
    %cst_82 = arith.constant dense<0.000000e+00> : vector<4x8xf32>
    %268 = tpu.matmul %267, %256, %cst_82 {dimension_numbers = #tpu.dot_dimension_numbers<[1], [0], [0], [1], [0, 0, 1, 1], [], []>} : vector<4x8xf32>, vector<8x8xf32>, vector<4x8xf32> -> vector<4x8xf32>
    %269 = vector.extract_strided_slice %215 {offsets = [0, 24], sizes = [4, 8], strides = [1, 1]} : vector<4x32xf32> to vector<4x8xf32>
    %cst_83 = arith.constant 0.353553385 : f32
    %270 = vector.broadcast %cst_83 : f32 to vector<4x8xf32>
    %271 = arith.mulf %269, %270 : vector<4x8xf32>
    %272 = vector.extract_strided_slice %216 {offsets = [0, 24], sizes = [8, 8], strides = [1, 1]} : vector<8x32xf32> to vector<8x8xf32>
    %273 = vector.extract_strided_slice %217 {offsets = [0, 24], sizes = [8, 8], strides = [1, 1]} : vector<8x32xf32> to vector<8x8xf32>
    %cst_84 = arith.constant dense<0.000000e+00> : vector<4x8xf32>
    %274 = tpu.matmul %271, %272, %cst_84 {dimension_numbers = #tpu.dot_dimension_numbers<[1], [1], [0], [0], [0, 0, 1, 0], [], []>} : vector<4x8xf32>, vector<8x8xf32>, vector<4x8xf32> -> vector<4x8xf32>
    %cst_85 = arith.constant dense<0xFF800000> : vector<4xf32>
    %275 = vector.multi_reduction <maximumf>, %274, %cst_85 [1] : vector<4x8xf32> to vector<4xf32>
    %276 = vector.shape_cast %275 : vector<4xf32> to vector<4x1xf32>
    %277 = vector.broadcast %276 : vector<4x1xf32> to vector<4x8xf32>
    %278 = arith.subf %274, %277 : vector<4x8xf32>
    %279 = math.exp %278 : vector<4x8xf32>
    %cst_86 = arith.constant dense<0.000000e+00> : vector<4xf32>
    %280 = vector.multi_reduction <add>, %279, %cst_86 [1] : vector<4x8xf32> to vector<4xf32>
    %281 = vector.shape_cast %280 : vector<4xf32> to vector<4x1xf32>
    %282 = tpu.reciprocal %281 {approx = true} : vector<4x1xf32> -> vector<4x1xf32>
    %283 = vector.broadcast %282 : vector<4x1xf32> to vector<4x8xf32>
    %284 = arith.mulf %279, %283 : vector<4x8xf32>
    %cst_87 = arith.constant dense<0.000000e+00> : vector<4x8xf32>
    %285 = tpu.matmul %284, %273, %cst_87 {dimension_numbers = #tpu.dot_dimension_numbers<[1], [0], [0], [1], [0, 0, 1, 1], [], []>} : vector<4x8xf32>, vector<8x8xf32>, vector<4x8xf32> -> vector<4x8xf32>
    %286 = tpu.concatenate %234, %251, %268, %285 in 1 : vector<4x8xf32>, vector<4x8xf32>, vector<4x8xf32>, vector<4x8xf32> -> vector<4x32xf32>
    %287 = vector.extract_strided_slice %214 {offsets = [4, 0], sizes = [4, 32], strides = [1, 1]} : vector<8x32xf32> to vector<4x32xf32>
    %288 = vector.extract_strided_slice %206 {offsets = [8, 0], sizes = [8, 32], strides = [1, 1]} : vector<16x32xf32> to vector<8x32xf32>
    %289 = vector.extract_strided_slice %207 {offsets = [8, 0], sizes = [8, 32], strides = [1, 1]} : vector<16x32xf32> to vector<8x32xf32>
    %290 = vector.extract_strided_slice %287 {offsets = [0, 0], sizes = [4, 8], strides = [1, 1]} : vector<4x32xf32> to vector<4x8xf32>
    %cst_88 = arith.constant 0.353553385 : f32
    %291 = vector.broadcast %cst_88 : f32 to vector<4x8xf32>
    %292 = arith.mulf %290, %291 : vector<4x8xf32>
    %293 = vector.extract_strided_slice %288 {offsets = [0, 0], sizes = [8, 8], strides = [1, 1]} : vector<8x32xf32> to vector<8x8xf32>
    %294 = vector.extract_strided_slice %289 {offsets = [0, 0], sizes = [8, 8], strides = [1, 1]} : vector<8x32xf32> to vector<8x8xf32>
    %cst_89 = arith.constant dense<0.000000e+00> : vector<4x8xf32>
    %295 = tpu.matmul %292, %293, %cst_89 {dimension_numbers = #tpu.dot_dimension_numbers<[1], [1], [0], [0], [0, 0, 1, 0], [], []>} : vector<4x8xf32>, vector<8x8xf32>, vector<4x8xf32> -> vector<4x8xf32>
    %cst_90 = arith.constant dense<0xFF800000> : vector<4xf32>
    %296 = vector.multi_reduction <maximumf>, %295, %cst_90 [1] : vector<4x8xf32> to vector<4xf32>
    %297 = vector.shape_cast %296 : vector<4xf32> to vector<4x1xf32>
    %298 = vector.broadcast %297 : vector<4x1xf32> to vector<4x8xf32>
    %299 = arith.subf %295, %298 : vector<4x8xf32>
    %300 = math.exp %299 : vector<4x8xf32>
    %cst_91 = arith.constant dense<0.000000e+00> : vector<4xf32>
    %301 = vector.multi_reduction <add>, %300, %cst_91 [1] : vector<4x8xf32> to vector<4xf32>
    %302 = vector.shape_cast %301 : vector<4xf32> to vector<4x1xf32>
    %303 = tpu.reciprocal %302 {approx = true} : vector<4x1xf32> -> vector<4x1xf32>
    %304 = vector.broadcast %303 : vector<4x1xf32> to vector<4x8xf32>
    %305 = arith.mulf %300, %304 : vector<4x8xf32>
    %cst_92 = arith.constant dense<0.000000e+00> : vector<4x8xf32>
    %306 = tpu.matmul %305, %294, %cst_92 {dimension_numbers = #tpu.dot_dimension_numbers<[1], [0], [0], [1], [0, 0, 1, 1], [], []>} : vector<4x8xf32>, vector<8x8xf32>, vector<4x8xf32> -> vector<4x8xf32>
    %307 = vector.extract_strided_slice %287 {offsets = [0, 8], sizes = [4, 8], strides = [1, 1]} : vector<4x32xf32> to vector<4x8xf32>
    %cst_93 = arith.constant 0.353553385 : f32
    %308 = vector.broadcast %cst_93 : f32 to vector<4x8xf32>
    %309 = arith.mulf %307, %308 : vector<4x8xf32>
    %310 = vector.extract_strided_slice %288 {offsets = [0, 8], sizes = [8, 8], strides = [1, 1]} : vector<8x32xf32> to vector<8x8xf32>
    %311 = vector.extract_strided_slice %289 {offsets = [0, 8], sizes = [8, 8], strides = [1, 1]} : vector<8x32xf32> to vector<8x8xf32>
    %cst_94 = arith.constant dense<0.000000e+00> : vector<4x8xf32>
    %312 = tpu.matmul %309, %310, %cst_94 {dimension_numbers = #tpu.dot_dimension_numbers<[1], [1], [0], [0], [0, 0, 1, 0], [], []>} : vector<4x8xf32>, vector<8x8xf32>, vector<4x8xf32> -> vector<4x8xf32>
    %cst_95 = arith.constant dense<0xFF800000> : vector<4xf32>
    %313 = vector.multi_reduction <maximumf>, %312, %cst_95 [1] : vector<4x8xf32> to vector<4xf32>
    %314 = vector.shape_cast %313 : vector<4xf32> to vector<4x1xf32>
    %315 = vector.broadcast %314 : vector<4x1xf32> to vector<4x8xf32>
    %316 = arith.subf %312, %315 : vector<4x8xf32>
    %317 = math.exp %316 : vector<4x8xf32>
    %cst_96 = arith.constant dense<0.000000e+00> : vector<4xf32>
    %318 = vector.multi_reduction <add>, %317, %cst_96 [1] : vector<4x8xf32> to vector<4xf32>
    %319 = vector.shape_cast %318 : vector<4xf32> to vector<4x1xf32>
    %320 = tpu.reciprocal %319 {approx = true} : vector<4x1xf32> -> vector<4x1xf32>
    %321 = vector.broadcast %320 : vector<4x1xf32> to vector<4x8xf32>
    %322 = arith.mulf %317, %321 : vector<4x8xf32>
    %cst_97 = arith.constant dense<0.000000e+00> : vector<4x8xf32>
    %323 = tpu.matmul %322, %311, %cst_97 {dimension_numbers = #tpu.dot_dimension_numbers<[1], [0], [0], [1], [0, 0, 1, 1], [], []>} : vector<4x8xf32>, vector<8x8xf32>, vector<4x8xf32> -> vector<4x8xf32>
    %324 = vector.extract_strided_slice %287 {offsets = [0, 16], sizes = [4, 8], strides = [1, 1]} : vector<4x32xf32> to vector<4x8xf32>
    %cst_98 = arith.constant 0.353553385 : f32
    %325 = vector.broadcast %cst_98 : f32 to vector<4x8xf32>
    %326 = arith.mulf %324, %325 : vector<4x8xf32>
    %327 = vector.extract_strided_slice %288 {offsets = [0, 16], sizes = [8, 8], strides = [1, 1]} : vector<8x32xf32> to vector<8x8xf32>
    %328 = vector.extract_strided_slice %289 {offsets = [0, 16], sizes = [8, 8], strides = [1, 1]} : vector<8x32xf32> to vector<8x8xf32>
    %cst_99 = arith.constant dense<0.000000e+00> : vector<4x8xf32>
    %329 = tpu.matmul %326, %327, %cst_99 {dimension_numbers = #tpu.dot_dimension_numbers<[1], [1], [0], [0], [0, 0, 1, 0], [], []>} : vector<4x8xf32>, vector<8x8xf32>, vector<4x8xf32> -> vector<4x8xf32>
    %cst_100 = arith.constant dense<0xFF800000> : vector<4xf32>
    %330 = vector.multi_reduction <maximumf>, %329, %cst_100 [1] : vector<4x8xf32> to vector<4xf32>
    %331 = vector.shape_cast %330 : vector<4xf32> to vector<4x1xf32>
    %332 = vector.broadcast %331 : vector<4x1xf32> to vector<4x8xf32>
    %333 = arith.subf %329, %332 : vector<4x8xf32>
    %334 = math.exp %333 : vector<4x8xf32>
    %cst_101 = arith.constant dense<0.000000e+00> : vector<4xf32>
    %335 = vector.multi_reduction <add>, %334, %cst_101 [1] : vector<4x8xf32> to vector<4xf32>
    %336 = vector.shape_cast %335 : vector<4xf32> to vector<4x1xf32>
    %337 = tpu.reciprocal %336 {approx = true} : vector<4x1xf32> -> vector<4x1xf32>
    %338 = vector.broadcast %337 : vector<4x1xf32> to vector<4x8xf32>
    %339 = arith.mulf %334, %338 : vector<4x8xf32>
    %cst_102 = arith.constant dense<0.000000e+00> : vector<4x8xf32>
    %340 = tpu.matmul %339, %328, %cst_102 {dimension_numbers = #tpu.dot_dimension_numbers<[1], [0], [0], [1], [0, 0, 1, 1], [], []>} : vector<4x8xf32>, vector<8x8xf32>, vector<4x8xf32> -> vector<4x8xf32>
    %341 = vector.extract_strided_slice %287 {offsets = [0, 24], sizes = [4, 8], strides = [1, 1]} : vector<4x32xf32> to vector<4x8xf32>
    %cst_103 = arith.constant 0.353553385 : f32
    %342 = vector.broadcast %cst_103 : f32 to vector<4x8xf32>
    %343 = arith.mulf %341, %342 : vector<4x8xf32>
    %344 = vector.extract_strided_slice %288 {offsets = [0, 24], sizes = [8, 8], strides = [1, 1]} : vector<8x32xf32> to vector<8x8xf32>
    %345 = vector.extract_strided_slice %289 {offsets = [0, 24], sizes = [8, 8], strides = [1, 1]} : vector<8x32xf32> to vector<8x8xf32>
    %cst_104 = arith.constant dense<0.000000e+00> : vector<4x8xf32>
    %346 = tpu.matmul %343, %344, %cst_104 {dimension_numbers = #tpu.dot_dimension_numbers<[1], [1], [0], [0], [0, 0, 1, 0], [], []>} : vector<4x8xf32>, vector<8x8xf32>, vector<4x8xf32> -> vector<4x8xf32>
    %cst_105 = arith.constant dense<0xFF800000> : vector<4xf32>
    %347 = vector.multi_reduction <maximumf>, %346, %cst_105 [1] : vector<4x8xf32> to vector<4xf32>
    %348 = vector.shape_cast %347 : vector<4xf32> to vector<4x1xf32>
    %349 = vector.broadcast %348 : vector<4x1xf32> to vector<4x8xf32>
    %350 = arith.subf %346, %349 : vector<4x8xf32>
    %351 = math.exp %350 : vector<4x8xf32>
    %cst_106 = arith.constant dense<0.000000e+00> : vector<4xf32>
    %352 = vector.multi_reduction <add>, %351, %cst_106 [1] : vector<4x8xf32> to vector<4xf32>
    %353 = vector.shape_cast %352 : vector<4xf32> to vector<4x1xf32>
    %354 = tpu.reciprocal %353 {approx = true} : vector<4x1xf32> -> vector<4x1xf32>
    %355 = vector.broadcast %354 : vector<4x1xf32> to vector<4x8xf32>
    %356 = arith.mulf %351, %355 : vector<4x8xf32>
    %cst_107 = arith.constant dense<0.000000e+00> : vector<4x8xf32>
    %357 = tpu.matmul %356, %345, %cst_107 {dimension_numbers = #tpu.dot_dimension_numbers<[1], [0], [0], [1], [0, 0, 1, 1], [], []>} : vector<4x8xf32>, vector<8x8xf32>, vector<4x8xf32> -> vector<4x8xf32>
    %358 = tpu.concatenate %306, %323, %340, %357 in 1 : vector<4x8xf32>, vector<4x8xf32>, vector<4x8xf32>, vector<4x8xf32> -> vector<4x32xf32>
    %359 = tpu.concatenate %286, %358 in 0 : vector<4x32xf32>, vector<4x32xf32> -> vector<8x32xf32>
    %c0_108 = arith.constant 0 : index
    %c0_109 = arith.constant 0 : index
    %360 = vector.load %arg11[%c0_108, %c0_109] : memref<32x32xf32, #tpu.memory_space<vmem>>, vector<32x32xf32>
    %361 = arith.truncf %359 : vector<8x32xf32> to vector<8x32xbf16>
    %362 = arith.truncf %360 : vector<32x32xf32> to vector<32x32xbf16>
    %cst_110 = arith.constant dense<0.000000e+00> : vector<8x32xf32>
    %363 = tpu.matmul %361, %362, %cst_110 {dimension_numbers = #tpu.dot_dimension_numbers<[1], [0], [0], [1], [0, 0, 1, 1], [], []>} : vector<8x32xbf16>, vector<32x32xbf16>, vector<8x32xf32> -> vector<8x32xf32>
    %c0_111 = arith.constant 0 : index
    %c0_112 = arith.constant 0 : index
    %364 = vector.load %arg12[%c0_111, %c0_112] : memref<1x32xf32, #tpu.memory_space<vmem>>, vector<1x32xf32>
    %365 = vector.broadcast %364 : vector<1x32xf32> to vector<8x32xf32>
    %366 = arith.addf %363, %365 : vector<8x32xf32>
    %367 = arith.addf %204, %366 : vector<8x32xf32>
    %c0_113 = arith.constant 0 : index
    %c0_114 = arith.constant 0 : index
    %368 = vector.load %arg13[%c0_113, %c0_114] : memref<1x32xf32, #tpu.memory_space<vmem>>, vector<1x32xf32>
    %c0_115 = arith.constant 0 : index
    %c0_116 = arith.constant 0 : index
    %369 = vector.load %arg14[%c0_115, %c0_116] : memref<1x32xf32, #tpu.memory_space<vmem>>, vector<1x32xf32>
    %cst_117 = arith.constant dense<0.000000e+00> : vector<8xf32>
    %370 = vector.multi_reduction <add>, %367, %cst_117 [1] : vector<8x32xf32> to vector<8xf32>
    %371 = vector.shape_cast %370 : vector<8xf32> to vector<8x1xf32>
    %cst_118 = arith.constant 3.200000e+01 : f32
    %372 = vector.broadcast %cst_118 : f32 to vector<8x1xf32>
    %373 = arith.divf %371, %372 : vector<8x1xf32>
    %374 = vector.broadcast %373 : vector<8x1xf32> to vector<8x32xf32>
    %375 = arith.subf %367, %374 : vector<8x32xf32>
    %376 = arith.mulf %375, %375 : vector<8x32xf32>
    %cst_119 = arith.constant dense<0.000000e+00> : vector<8xf32>
    %377 = vector.multi_reduction <add>, %376, %cst_119 [1] : vector<8x32xf32> to vector<8xf32>
    %378 = vector.shape_cast %377 : vector<8xf32> to vector<8x1xf32>
    %cst_120 = arith.constant 3.200000e+01 : f32
    %379 = vector.broadcast %cst_120 : f32 to vector<8x1xf32>
    %380 = arith.divf %378, %379 : vector<8x1xf32>
    %381 = vector.broadcast %373 : vector<8x1xf32> to vector<8x32xf32>
    %382 = arith.subf %367, %381 : vector<8x32xf32>
    %cst_121 = arith.constant 9.99999974E-6 : f32
    %383 = vector.broadcast %cst_121 : f32 to vector<8x1xf32>
    %384 = arith.addf %380, %383 : vector<8x1xf32>
    %385 = math.rsqrt %384 : vector<8x1xf32>
    %386 = vector.broadcast %385 : vector<8x1xf32> to vector<8x32xf32>
    %387 = arith.mulf %382, %386 : vector<8x32xf32>
    %388 = vector.broadcast %368 : vector<1x32xf32> to vector<8x32xf32>
    %389 = arith.mulf %387, %388 : vector<8x32xf32>
    %390 = vector.broadcast %369 : vector<1x32xf32> to vector<8x32xf32>
    %391 = arith.addf %389, %390 : vector<8x32xf32>
    %c0_122 = arith.constant 0 : index
    %c0_123 = arith.constant 0 : index
    %392 = vector.load %arg15[%c0_122, %c0_123] : memref<32x64xf32, #tpu.memory_space<vmem>>, vector<32x64xf32>
    %393 = arith.truncf %391 : vector<8x32xf32> to vector<8x32xbf16>
    %394 = arith.truncf %392 : vector<32x64xf32> to vector<32x64xbf16>
    %cst_124 = arith.constant dense<0.000000e+00> : vector<8x64xf32>
    %395 = tpu.matmul %393, %394, %cst_124 {dimension_numbers = #tpu.dot_dimension_numbers<[1], [0], [0], [1], [0, 0, 1, 1], [], []>} : vector<8x32xbf16>, vector<32x64xbf16>, vector<8x64xf32> -> vector<8x64xf32>
    %c0_125 = arith.constant 0 : index
    %c0_126 = arith.constant 0 : index
    %396 = vector.load %arg16[%c0_125, %c0_126] : memref<1x64xf32, #tpu.memory_space<vmem>>, vector<1x64xf32>
    %397 = vector.broadcast %396 : vector<1x64xf32> to vector<8x64xf32>
    %398 = arith.addf %395, %397 : vector<8x64xf32>
    %cst_127 = arith.constant 0.000000e+00 : f32
    %399 = vector.broadcast %cst_127 : f32 to vector<8x64xf32>
    %400 = arith.maximumf %398, %399 : vector<8x64xf32>
    %c0_128 = arith.constant 0 : index
    %c0_129 = arith.constant 0 : index
    %401 = vector.load %arg17[%c0_128, %c0_129] : memref<64x32xf32, #tpu.memory_space<vmem>>, vector<64x32xf32>
    %402 = arith.truncf %400 : vector<8x64xf32> to vector<8x64xbf16>
    %403 = arith.truncf %401 : vector<64x32xf32> to vector<64x32xbf16>
    %cst_130 = arith.constant dense<0.000000e+00> : vector<8x32xf32>
    %404 = tpu.matmul %402, %403, %cst_130 {dimension_numbers = #tpu.dot_dimension_numbers<[1], [0], [0], [1], [0, 0, 1, 1], [], []>} : vector<8x64xbf16>, vector<64x32xbf16>, vector<8x32xf32> -> vector<8x32xf32>
    %c0_131 = arith.constant 0 : index
    %c0_132 = arith.constant 0 : index
    %405 = vector.load %arg18[%c0_131, %c0_132] : memref<1x32xf32, #tpu.memory_space<vmem>>, vector<1x32xf32>
    %406 = vector.broadcast %405 : vector<1x32xf32> to vector<8x32xf32>
    %407 = arith.addf %404, %406 : vector<8x32xf32>
    %408 = arith.addf %391, %407 : vector<8x32xf32>
    %c0_133 = arith.constant 0 : index
    %c0_134 = arith.constant 0 : index
    %409 = vector.load %arg19[%c0_133, %c0_134] : memref<1x32xf32, #tpu.memory_space<vmem>>, vector<1x32xf32>
    %c0_135 = arith.constant 0 : index
    %c0_136 = arith.constant 0 : index
    %410 = vector.load %arg20[%c0_135, %c0_136] : memref<1x32xf32, #tpu.memory_space<vmem>>, vector<1x32xf32>
    %cst_137 = arith.constant dense<0.000000e+00> : vector<8xf32>
    %411 = vector.multi_reduction <add>, %408, %cst_137 [1] : vector<8x32xf32> to vector<8xf32>
    %412 = vector.shape_cast %411 : vector<8xf32> to vector<8x1xf32>
    %cst_138 = arith.constant 3.200000e+01 : f32
    %413 = vector.broadcast %cst_138 : f32 to vector<8x1xf32>
    %414 = arith.divf %412, %413 : vector<8x1xf32>
    %415 = vector.broadcast %414 : vector<8x1xf32> to vector<8x32xf32>
    %416 = arith.subf %408, %415 : vector<8x32xf32>
    %417 = arith.mulf %416, %416 : vector<8x32xf32>
    %cst_139 = arith.constant dense<0.000000e+00> : vector<8xf32>
    %418 = vector.multi_reduction <add>, %417, %cst_139 [1] : vector<8x32xf32> to vector<8xf32>
    %419 = vector.shape_cast %418 : vector<8xf32> to vector<8x1xf32>
    %cst_140 = arith.constant 3.200000e+01 : f32
    %420 = vector.broadcast %cst_140 : f32 to vector<8x1xf32>
    %421 = arith.divf %419, %420 : vector<8x1xf32>
    %422 = vector.broadcast %414 : vector<8x1xf32> to vector<8x32xf32>
    %423 = arith.subf %408, %422 : vector<8x32xf32>
    %cst_141 = arith.constant 9.99999974E-6 : f32
    %424 = vector.broadcast %cst_141 : f32 to vector<8x1xf32>
    %425 = arith.addf %421, %424 : vector<8x1xf32>
    %426 = math.rsqrt %425 : vector<8x1xf32>
    %427 = vector.broadcast %426 : vector<8x1xf32> to vector<8x32xf32>
    %428 = arith.mulf %423, %427 : vector<8x32xf32>
    %429 = vector.broadcast %409 : vector<1x32xf32> to vector<8x32xf32>
    %430 = arith.mulf %428, %429 : vector<8x32xf32>
    %431 = vector.broadcast %410 : vector<1x32xf32> to vector<8x32xf32>
    %432 = arith.addf %430, %431 : vector<8x32xf32>
    %c0_142 = arith.constant 0 : index
    %c0_143 = arith.constant 0 : index
    %433 = vector.load %arg21[%c0_142, %c0_143] : memref<8x32xf32, #tpu.memory_space<vmem>>, vector<8x32xf32>
    tpu.vector_store %arg21[%c0_142, %c0_143], %432 {strides = array<i32>} : memref<8x32xf32, #tpu.memory_space<vmem>>, vector<8x32xf32>,
    return
  }
}

module attributes {stable_mosaic.version = 11 : i64} {
  func.func @_linear_kernel(%arg0: memref<8x32xf32, #tpu.memory_space<vmem>>, %arg1: memref<32x16xf32, #tpu.memory_space<vmem>>, %arg2: memref<1x16xf32, #tpu.memory_space<vmem>>, %arg3: memref<8x16xf32, #tpu.memory_space<vmem>>) attributes {dimension_semantics = [], scalar_prefetch = 0 : i64, scratch_operands = 0 : i64, tpu.core_type = #tpu.core_type<tc>} {
    %c0 = arith.constant 0 : index
    %c0_0 = arith.constant 0 : index
    %0 = vector.load %arg0[%c0, %c0_0] : memref<8x32xf32, #tpu.memory_space<vmem>>, vector<8x32xf32>
    %c0_1 = arith.constant 0 : index
    %c0_2 = arith.constant 0 : index
    %1 = vector.load %arg1[%c0_1, %c0_2] : memref<32x16xf32, #tpu.memory_space<vmem>>, vector<32x16xf32>
    %2 = arith.truncf %0 : vector<8x32xf32> to vector<8x32xbf16>
    %3 = arith.truncf %1 : vector<32x16xf32> to vector<32x16xbf16>
    %cst = arith.constant dense<0.000000e+00> : vector<8x16xf32>
    %4 = tpu.matmul %2, %3, %cst {dimension_numbers = #tpu.dot_dimension_numbers<[1], [0], [0], [1], [0, 0, 1, 1], [], []>} : vector<8x32xbf16>, vector<32x16xbf16>, vector<8x16xf32> -> vector<8x16xf32>
    %c0_3 = arith.constant 0 : index
    %c0_4 = arith.constant 0 : index
    %5 = vector.load %arg2[%c0_3, %c0_4] : memref<1x16xf32, #tpu.memory_space<vmem>>, vector<1x16xf32>
    %6 = vector.broadcast %5 : vector<1x16xf32> to vector<8x16xf32>
    %7 = arith.addf %4, %6 : vector<8x16xf32>
    %c0_5 = arith.constant 0 : index
    %c0_6 = arith.constant 0 : index
    %8 = vector.load %arg3[%c0_5, %c0_6] : memref<8x16xf32, #tpu.memory_space<vmem>>, vector<8x16xf32>
    tpu.vector_store %arg3[%c0_5, %c0_6], %7 {strides = array<i32>} : memref<8x16xf32, #tpu.memory_space<vmem>>, vector<8x16xf32>,
    return
  }
}

</mosaic_0001>

<llo_original>
// kernel: custom-call.4
$region0: #{custom-call.4}
  %s0 = inlined_call_operand.hbm [shape: f32[2,4,16], index: 0, kind: output, shape index: {}]

// kernel: _transformer_forward.6
$region0: #{_transformer_forward.6}
  #allocation0 [shape = 'u32[]', space=smem, size = 0x4, offset = 0x4, fixed_abs, tag = 'smem constant byte address 0x4 - core index']
  #allocation1 [shape = 'u32[144,128]{1,0:T(1,128)}', space=vmem, size = 0x12000, scoped, tag = 'internal scratch']
  %s0 = inlined_call_operand.vmem [shape: f32[16,32], index: 0, kind: input, shape index: {}]
  %s1 = inlined_call_operand.vmem [shape: f32[32,64], index: 1, kind: input, shape index: {}]
  %s2 = inlined_call_operand.vmem [shape: f32[1,64], index: 2, kind: input, shape index: {}]
  %s3 = inlined_call_operand.vmem [shape: f32[16,64], index: 3, kind: output, shape index: {}]
  %s4 = sld [smem:[#allocation0]]
  $region22: #{_transformer_forward.6} parent=0
    _
  %s6 = ssub.s32 1, %s4
  %s7 = scalar_select 0, %s6, %s4
  // Predicated region
  $region2: #{_transformer_forward.6} parent=0 // pred_check
    _
  $region3: #{_transformer_forward.6} parent=0 // pred_check_branch
    %9 = sbr.rel (0) target = $region5
  $region4: #{_transformer_forward.6} parent=0 // pred_region
    _
  $region5: #{_transformer_forward.6} parent=0 // pred_fallthru
    _
  // Predicated region
  $region6: #{_transformer_forward.6} parent=0 // pred_check
    _
  $region7: #{_transformer_forward.6} parent=0 // pred_check_branch
    %11 = sbr.rel (0) target = $region9
  $region8: #{_transformer_forward.6} parent=0 // pred_region
    _
  $region9: #{_transformer_forward.6} parent=0 // pred_fallthru
    _
  // Predicated region
  $region10: #{_transformer_forward.6} parent=0 // pred_check
    _
  $region11: #{_transformer_forward.6} parent=0 // pred_check_branch
    %13 = sbr.rel (0) target = $region13
  $region12: #{_transformer_forward.6} parent=0 // pred_region
    _
  $region13: #{_transformer_forward.6} parent=0 // pred_fallthru
    _
  %v15 = vld [vmem:[%s0] sm:$0xff]
  %v16 = vld [vmem:[%s0 + $0x8] sm:$0xff]
  %v17 = vld [vmem:[%s1] sm:$0xff]
  %v18 = vld [vmem:[%s1 + $0x8] sm:$0xff]
  %v19 = vld [vmem:[%s1 + $0x10] sm:$0xff]
  %v20 = vld [vmem:[%s1 + $0x18] sm:$0xff]
  %v21 = vpack.c.bf16 %v16, %v15
  %v22 = vpack.c.bf16 %v18, %v17
  %v23 = vpack.c.bf16 %v20, %v19
  %v24 = vld [vmem:[%s2] sm:$0x1]
  %v26 = vlaneseq
  %v27 = vshrl.u32 %v26, 7
  %v28 = vsub.s32 0, %v27
  %v29 = vrot.slane %v24, %v28
  %vm31 = vcmask 261120
  %v33 = vsel %vm31, %v21, 0
  %35 = vmatprep.subr.bf16.mxu0 0
  %36 = vmatpush1.bf16.msra.mxu0 0
  %37 = vmatprep.subr.bf16.mxu0 0
  %38 = vmatpush1.bf16.msra.mxu0 0
  %39 = vmatprep.subr.bf16.mxu0 0
  %40 = vmatpush1.bf16.msra.mxu0 0
  %41 = vmatprep.subr.bf16.mxu0 0
  %42 = vmatpush1.bf16.msra.mxu0 0
  %43 = vmatprep.subr.bf16.mxu0 0
  %44 = vmatpush1.bf16.msra.mxu0 0
  %45 = vmatprep.subr.bf16.mxu0 0
  %46 = vmatpush1.bf16.msra.mxu0 0
  %47 = vmatprep.subr.bf16.mxu0 0
  %48 = vmatpush1.bf16.msra.mxu0 %v23
  %49 = vmatprep.subr.bf16.mxu0 0
  %50 = vmatpush1.bf16.msra.mxu0 %v22
  %51 = vmatprep.subr.bf16.mxu0 0
  %52 = vmatpush2.bf16.msra.mxu0 0
  %53 = vmatprep.subr.bf16.mxu0 0
  %54 = vmatpush2.bf16.msra.mxu0 0
  %55 = vmatprep.subr.bf16.mxu0 0
  %56 = vmatpush2.bf16.msra.mxu0 0
  %57 = vmatprep.subr.bf16.mxu0 0
  %58 = vmatpush2.bf16.msra.mxu0 0
  %59 = vmatprep.subr.bf16.mxu0 0
  %60 = vmatpush2.bf16.msra.mxu0 0
  %61 = vmatprep.subr.bf16.mxu0 0
  %62 = vmatpush2.bf16.msra.mxu0 0
  %63 = vmatprep.subr.bf16.mxu0 0
  %64 = vmatpush2.bf16.msra.mxu0 0
  %65 = vmatprep.subr.bf16.mxu0 0
  %66 = vmatpush2.bf16.msra.mxu0 0
  %67 = vmatprep.mubr.bf16.mxu0 0
  %68 = vmatmul.mubr.bf16.gmra.mxu0 %v33
  %v69 = vpop.f32.mrf.mxu0
  %v70 = vadd.f32 %v29, %v69
  %v71 = vpop.f32.mrf.mxu0
  %v72 = vpop.f32.mrf.mxu0
  %v73 = vadd.f32 %v29, %v72
  %v74 = vpop.f32.mrf.mxu0
  %75 = vdwg.mxu0
  %vm76 = vcmask 523264
  %77 = vst.msk [vmem:[%s3] sm:$0xff] %vm76, %v70
  %78 = vst.msk [vmem:[%s3 + $0x8] sm:$0xff] %vm76, %v73
  // Predicated region
  $region14: #{_transformer_forward.6} parent=0 // pred_check
    _
  $region15: #{_transformer_forward.6} parent=0 // pred_check_branch
    %80 = sbr.rel (0) target = $region17
  $region16: #{_transformer_forward.6} parent=0 // pred_region
    _
  $region17: #{_transformer_forward.6} parent=0 // pred_fallthru
    _
  // Predicated region
  $region18: #{_transformer_forward.6} parent=0 // pred_check
    _
  $region19: #{_transformer_forward.6} parent=0 // pred_check_branch
    %82 = sbr.rel (0) target = $region21
  $region20: #{_transformer_forward.6} parent=0 // pred_region
    _
  $region21: #{_transformer_forward.6} parent=0 // pred_fallthru
    _

// kernel: _transformer_forward.7
$region0: #{_transformer_forward.7}
  #allocation0 [shape = 'u32[]', space=smem, size = 0x4, offset = 0x4, fixed_abs, tag = 'smem constant byte address 0x4 - core index']
  #allocation1 [shape = 'u32[144,128]{1,0:T(1,128)}', space=vmem, size = 0x12000, scoped, tag = 'internal scratch']
  %s0 = inlined_call_operand.vmem [shape: f32[16,32], index: 0, kind: input, shape index: {}]
  %s1 = inlined_call_operand.vmem [shape: f32[32,64], index: 1, kind: input, shape index: {}]
  %s2 = inlined_call_operand.hbm [shape: f32[1,64], index: 2, kind: input, shape index: {}]
  %s3 = inlined_call_operand.vmem [shape: f32[16,64], index: 3, kind: output, shape index: {}]
  %s4 = sld [smem:[#allocation0]]
  $region26: #{_transformer_forward.7} parent=0
    _
  %s6 = ssub.s32 1, %s4
  %s7 = scalar_select 0, %s6, %s4
  $region1: #{_transformer_forward.7} parent=0
    #allocation2 [shape = 'u8[512]{0}', space=vmem, size = 0x400, scoped, tag = 'input window, operand 2, single buffered']
    #allocation3 [shape = 's32[1]{0}', space=sflag, size = 0x4, scoped, tag = 'scoped memory for _transformer_forward.7']
    %8 = vsyncpa [#allocation3], 0
    // Predicated region
    $region2: #{_transformer_forward.7} parent=1 // pred_check
      _
    $region3: #{_transformer_forward.7} parent=1 // pred_check_branch
      %10 = sbr.rel (0) target = $region5
    $region4: #{_transformer_forward.7} parent=1 // pred_region
      _
    $region5: #{_transformer_forward.7} parent=1 // pred_fallthru
      _
    // Predicated region
    $region6: #{_transformer_forward.7} parent=1 // pred_check
      _
    $region7: #{_transformer_forward.7} parent=1 // pred_check_branch
      %12 = sbr.rel (0) target = $region9
    $region8: #{_transformer_forward.7} parent=1 // pred_region
      _
    $region9: #{_transformer_forward.7} parent=1 // pred_fallthru
      _
    // Predicated region
    $region10: #{_transformer_forward.7} parent=1 // pred_check
      _
    $region11: #{_transformer_forward.7} parent=1 // pred_check_branch
      %14 = sbr.rel (0) target = $region13
    $region12: #{_transformer_forward.7} parent=1 // pred_region
      %s16 = ssub.s32 16, 16
      %17 = vsyncadd [#allocation3], %s16
      %s19 = sshll.u32 [#allocation2], 4
      %s20 = int_to_ptr.vmem [resolvable:$true] %s19
      %22 = dma.hbm_to_vmem [thread:$0]  %s2, 16, %s20, [#allocation3]
    $region13: #{_transformer_forward.7} parent=1 // pred_fallthru
      _
    // Predicated region
    $region14: #{_transformer_forward.7} parent=1 // pred_check
      _
    $region15: #{_transformer_forward.7} parent=1 // pred_check_branch
      %24 = sbr.rel (0) target = $region17
    $region16: #{_transformer_forward.7} parent=1 // pred_region
      %25 = dma.done [#allocation3], 16
    $region17: #{_transformer_forward.7} parent=1 // pred_fallthru
      _
    %v27 = vld [vmem:[%s0] sm:$0xff]
    %v28 = vld [vmem:[%s0 + $0x8] sm:$0xff]
    %v29 = vld [vmem:[%s1] sm:$0xff]
    %v30 = vld [vmem:[%s1 + $0x8] sm:$0xff]
    %v31 = vld [vmem:[%s1 + $0x10] sm:$0xff]
    %v32 = vld [vmem:[%s1 + $0x18] sm:$0xff]
    %v33 = vpack.c.bf16 %v28, %v27
    %v34 = vpack.c.bf16 %v30, %v29
    %v35 = vpack.c.bf16 %v32, %v31
    %v36 = vld [vmem:[#allocation2] sm:$0x1]
    %v38 = vlaneseq
    %v39 = vshrl.u32 %v38, 7
    %v40 = vsub.s32 0, %v39
    %v41 = vrot.slane %v36, %v40
    %vm43 = vcmask 261120
    %v45 = vsel %vm43, %v33, 0
    %47 = vmatprep.subr.bf16.mxu0 0
    %48 = vmatpush1.bf16.msra.mxu0 0
    %49 = vmatprep.subr.bf16.mxu0 0
    %50 = vmatpush1.bf16.msra.mxu0 0
    %51 = vmatprep.subr.bf16.mxu0 0
    %52 = vmatpush1.bf16.msra.mxu0 0
    %53 = vmatprep.subr.bf16.mxu0 0
    %54 = vmatpush1.bf16.msra.mxu0 0
    %55 = vmatprep.subr.bf16.mxu0 0
    %56 = vmatpush1.bf16.msra.mxu0 0
    %57 = vmatprep.subr.bf16.mxu0 0
    %58 = vmatpush1.bf16.msra.mxu0 0
    %59 = vmatprep.subr.bf16.mxu0 0
    %60 = vmatpush1.bf16.msra.mxu0 %v35
    %61 = vmatprep.subr.bf16.mxu0 0
    %62 = vmatpush1.bf16.msra.mxu0 %v34
    %63 = vmatprep.subr.bf16.mxu0 0
    %64 = vmatpush2.bf16.msra.mxu0 0
    %65 = vmatprep.subr.bf16.mxu0 0
    %66 = vmatpush2.bf16.msra.mxu0 0
    %67 = vmatprep.subr.bf16.mxu0 0
    %68 = vmatpush2.bf16.msra.mxu0 0
    %69 = vmatprep.subr.bf16.mxu0 0
    %70 = vmatpush2.bf16.msra.mxu0 0
    %71 = vmatprep.subr.bf16.mxu0 0
    %72 = vmatpush2.bf16.msra.mxu0 0
    %73 = vmatprep.subr.bf16.mxu0 0
    %74 = vmatpush2.bf16.msra.mxu0 0
    %75 = vmatprep.subr.bf16.mxu0 0
    %76 = vmatpush2.bf16.msra.mxu0 0
    %77 = vmatprep.subr.bf16.mxu0 0
    %78 = vmatpush2.bf16.msra.mxu0 0
    %79 = vmatprep.mubr.bf16.mxu0 0
    %80 = vmatmul.mubr.bf16.gmra.mxu0 %v45
    %v81 = vpop.f32.mrf.mxu0
    %v82 = vadd.f32 %v41, %v81
    %v83 = vpop.f32.mrf.mxu0
    %v84 = vpop.f32.mrf.mxu0
    %v85 = vadd.f32 %v41, %v84
    %v86 = vpop.f32.mrf.mxu0
    %87 = vdwg.mxu0
    %vm88 = vcmask 523264
    %89 = vst.msk [vmem:[%s3] sm:$0xff] %vm88, %v82
    %90 = vst.msk [vmem:[%s3 + $0x8] sm:$0xff] %vm88, %v85
    // Predicated region
    $region18: #{_transformer_forward.7} parent=1 // pred_check
      _
    $region19: #{_transformer_forward.7} parent=1 // pred_check_branch
      %92 = sbr.rel (0) target = $region21
    $region20: #{_transformer_forward.7} parent=1 // pred_region
      _
    $region21: #{_transformer_forward.7} parent=1 // pred_fallthru
      _
    // Predicated region
    $region22: #{_transformer_forward.7} parent=1 // pred_check
      _
    $region23: #{_transformer_forward.7} parent=1 // pred_check_branch
      %94 = sbr.rel (0) target = $region25
    $region24: #{_transformer_forward.7} parent=1 // pred_region
      _
    $region25: #{_transformer_forward.7} parent=1 // pred_fallthru
      _
    %95 = vsyncpa [#allocation3], 1

// kernel: _transformer_forward.4
$region0: #{_transformer_forward.4}
  #allocation0 [shape = 'u32[]', space=smem, size = 0x4, offset = 0x4, fixed_abs, tag = 'smem constant byte address 0x4 - core index']
  #allocation1 [shape = 'u32[144,128]{1,0:T(1,128)}', space=vmem, size = 0x12000, scoped, tag = 'internal scratch']
  %s0 = inlined_call_operand.vmem [shape: f32[16,32], index: 0, kind: input, shape index: {}]
  %s1 = inlined_call_operand.vmem [shape: f32[32,96], index: 1, kind: input, shape index: {}]
  %s2 = inlined_call_operand.vmem [shape: f32[1,96], index: 2, kind: input, shape index: {}]
  %s3 = inlined_call_operand.vmem [shape: f32[32,32], index: 3, kind: input, shape index: {}]
  %s4 = inlined_call_operand.vmem [shape: f32[1,32], index: 4, kind: input, shape index: {}]
  %s5 = inlined_call_operand.vmem [shape: f32[1,32], index: 5, kind: input, shape index: {}]
  %s6 = inlined_call_operand.vmem [shape: f32[1,32], index: 6, kind: input, shape index: {}]
  %s7 = inlined_call_operand.vmem [shape: f32[32,64], index: 7, kind: input, shape index: {}]
  %s8 = inlined_call_operand.vmem [shape: f32[1,64], index: 8, kind: input, shape index: {}]
  %s9 = inlined_call_operand.vmem [shape: f32[64,32], index: 9, kind: input, shape index: {}]
  %s10 = inlined_call_operand.vmem [shape: f32[1,32], index: 10, kind: input, shape index: {}]
  %s11 = inlined_call_operand.vmem [shape: f32[1,32], index: 11, kind: input, shape index: {}]
  %s12 = inlined_call_operand.vmem [shape: f32[1,32], index: 12, kind: input, shape index: {}]
  %s13 = inlined_call_operand.vmem [shape: f32[16,32], index: 13, kind: output, shape index: {}]
  %s14 = sld [smem:[#allocation0]]
  $region62: #{_transformer_forward.4} parent=0
    _
  %s16 = ssub.s32 1, %s14
  %s17 = scalar_select 0, %s16, %s14
  // Predicated region
  $region2: #{_transformer_forward.4} parent=0 // pred_check
    _
  $region3: #{_transformer_forward.4} parent=0 // pred_check_branch
    %19 = sbr.rel (0) target = $region5
  $region4: #{_transformer_forward.4} parent=0 // pred_region
    _
  $region5: #{_transformer_forward.4} parent=0 // pred_fallthru
    _
  // Predicated region
  $region6: #{_transformer_forward.4} parent=0 // pred_check
    _
  $region7: #{_transformer_forward.4} parent=0 // pred_check_branch
    %21 = sbr.rel (0) target = $region9
  $region8: #{_transformer_forward.4} parent=0 // pred_region
    _
  $region9: #{_transformer_forward.4} parent=0 // pred_fallthru
    _
  // Predicated region
  $region10: #{_transformer_forward.4} parent=0 // pred_check
    _
  $region11: #{_transformer_forward.4} parent=0 // pred_check_branch
    %23 = sbr.rel (0) target = $region13
  $region12: #{_transformer_forward.4} parent=0 // pred_region
    _
  $region13: #{_transformer_forward.4} parent=0 // pred_fallthru
    _
  // Predicated region
  $region14: #{_transformer_forward.4} parent=0 // pred_check
    _
  $region15: #{_transformer_forward.4} parent=0 // pred_check_branch
    %25 = sbr.rel (0) target = $region17
  $region16: #{_transformer_forward.4} parent=0 // pred_region
    _
  $region17: #{_transformer_forward.4} parent=0 // pred_fallthru
    _
  // Predicated region
  $region18: #{_transformer_forward.4} parent=0 // pred_check
    _
  $region19: #{_transformer_forward.4} parent=0 // pred_check_branch
    %27 = sbr.rel (0) target = $region21
  $region20: #{_transformer_forward.4} parent=0 // pred_region
    _
  $region21: #{_transformer_forward.4} parent=0 // pred_fallthru
    _
  // Predicated region
  $region22: #{_transformer_forward.4} parent=0 // pred_check
    _
  $region23: #{_transformer_forward.4} parent=0 // pred_check_branch
    %29 = sbr.rel (0) target = $region25
  $region24: #{_transformer_forward.4} parent=0 // pred_region
    _
  $region25: #{_transformer_forward.4} parent=0 // pred_fallthru
    _
  // Predicated region
  $region26: #{_transformer_forward.4} parent=0 // pred_check
    _
  $region27: #{_transformer_forward.4} parent=0 // pred_check_branch
    %31 = sbr.rel (0) target = $region29
  $region28: #{_transformer_forward.4} parent=0 // pred_region
    _
  $region29: #{_transformer_forward.4} parent=0 // pred_fallthru
    _
  // Predicated region
  $region30: #{_transformer_forward.4} parent=0 // pred_check
    _
  $region31: #{_transformer_forward.4} parent=0 // pred_check_branch
    %33 = sbr.rel (0) target = $region33
  $region32: #{_transformer_forward.4} parent=0 // pred_region
    _
  $region33: #{_transformer_forward.4} parent=0 // pred_fallthru
    _
  // Predicated region
  $region34: #{_transformer_forward.4} parent=0 // pred_check
    _
  $region35: #{_transformer_forward.4} parent=0 // pred_check_branch
    %35 = sbr.rel (0) target = $region37
  $region36: #{_transformer_forward.4} parent=0 // pred_region
    _
  $region37: #{_transformer_forward.4} parent=0 // pred_fallthru
    _
  // Predicated region
  $region38: #{_transformer_forward.4} parent=0 // pred_check
    _
  $region39: #{_transformer_forward.4} parent=0 // pred_check_branch
    %37 = sbr.rel (0) target = $region41
  $region40: #{_transformer_forward.4} parent=0 // pred_region
    _
  $region41: #{_transformer_forward.4} parent=0 // pred_fallthru
    _
  // Predicated region
  $region42: #{_transformer_forward.4} parent=0 // pred_check
    _
  $region43: #{_transformer_forward.4} parent=0 // pred_check_branch
    %39 = sbr.rel (0) target = $region45
  $region44: #{_transformer_forward.4} parent=0 // pred_region
    _
  $region45: #{_transformer_forward.4} parent=0 // pred_fallthru
    _
  // Predicated region
  $region46: #{_transformer_forward.4} parent=0 // pred_check
    _
  $region47: #{_transformer_forward.4} parent=0 // pred_check_branch
    %41 = sbr.rel (0) target = $region49
  $region48: #{_transformer_forward.4} parent=0 // pred_region
    _
  $region49: #{_transformer_forward.4} parent=0 // pred_fallthru
    _
  // Predicated region
  $region50: #{_transformer_forward.4} parent=0 // pred_check
    _
  $region51: #{_transformer_forward.4} parent=0 // pred_check_branch
    %43 = sbr.rel (0) target = $region53
  $region52: #{_transformer_forward.4} parent=0 // pred_region
    _
  $region53: #{_transformer_forward.4} parent=0 // pred_fallthru
    _
  %v45 = vld [vmem:[%s0] sm:$0xff]
  %v46 = vld [vmem:[%s0 + $0x8] sm:$0xff]
  %v47 = vld [vmem:[%s1] sm:$0xff]
  %v48 = vld [vmem:[%s1 + $0x8] sm:$0xff]
  %v49 = vld [vmem:[%s1 + $0x10] sm:$0xff]
  %v50 = vld [vmem:[%s1 + $0x18] sm:$0xff]
  %v51 = vpack.c.bf16 %v46, %v45
  %v52 = vpack.c.bf16 %v48, %v47
  %v53 = vpack.c.bf16 %v50, %v49
  %v54 = vld [vmem:[%s2] sm:$0x1]
  %v56 = vlaneseq
  %v57 = vshrl.u32 %v56, 7
  %v58 = vsub.s32 0, %v57
  %v59 = vrot.slane %v54, %v58
  %vm61 = vcmask 261120
  %v63 = vsel %vm61, %v51, 0
  %65 = vmatprep.subr.bf16.mxu0 0
  %66 = vmatpush1.bf16.msra.mxu0 0
  %67 = vmatprep.subr.bf16.mxu0 0
  %68 = vmatpush1.bf16.msra.mxu0 0
  %69 = vmatprep.subr.bf16.mxu0 0
  %70 = vmatpush1.bf16.msra.mxu0 0
  %71 = vmatprep.subr.bf16.mxu0 0
  %72 = vmatpush1.bf16.msra.mxu0 0
  %73 = vmatprep.subr.bf16.mxu0 0
  %74 = vmatpush1.bf16.msra.mxu0 0
  %75 = vmatprep.subr.bf16.mxu0 0
  %76 = vmatpush1.bf16.msra.mxu0 0
  %77 = vmatprep.subr.bf16.mxu0 0
  %78 = vmatpush1.bf16.msra.mxu0 %v53
  %79 = vmatprep.subr.bf16.mxu0 0
  %80 = vmatpush1.bf16.msra.mxu0 %v52
  %81 = vmatprep.subr.bf16.mxu0 0
  %82 = vmatpush2.bf16.msra.mxu0 0
  %83 = vmatprep.subr.bf16.mxu0 0
  %84 = vmatpush2.bf16.msra.mxu0 0
  %85 = vmatprep.subr.bf16.mxu0 0
  %86 = vmatpush2.bf16.msra.mxu0 0
  %87 = vmatprep.subr.bf16.mxu0 0
  %88 = vmatpush2.bf16.msra.mxu0 0
  %89 = vmatprep.subr.bf16.mxu0 0
  %90 = vmatpush2.bf16.msra.mxu0 0
  %91 = vmatprep.subr.bf16.mxu0 0
  %92 = vmatpush2.bf16.msra.mxu0 0
  %93 = vmatprep.subr.bf16.mxu0 0
  %94 = vmatpush2.bf16.msra.mxu0 0
  %95 = vmatprep.subr.bf16.mxu0 0
  %96 = vmatpush2.bf16.msra.mxu0 0
  %97 = vmatprep.mubr.bf16.mxu0 0
  %98 = vmatmul.mubr.bf16.gmra.mxu0 %v63
  %v99 = vpop.f32.mrf.mxu0
  %v100 = vadd.f32 %v59, %v99
  %v101 = vpop.f32.mrf.mxu0
  %v102 = vpop.f32.mrf.mxu0
  %v103 = vadd.f32 %v59, %v102
  %v104 = vpop.f32.mrf.mxu0
  %105 = vdwg.mxu0
  %v106 = vmul.f32 %v100, 0.35355338
  %108 = vrot.lane.b32.xlu0 %v100, 96
  %v109 = vpop.permute.xlu0 %108
  %vm110 = vcmask 64512
  %v112 = vsel %vm110, %v106, 0
  %v114 = vsel %vm110, %v109, 0
  %116 = vmatprep.subr.mxu0 0.0
  %117 = vmatpush1.xpose.msra.mxu0 0.0
  %118 = vmatprep.subr.mxu0 0.0
  %119 = vmatpush1.xpose.msra.mxu0 0.0
  %120 = vmatprep.subr.mxu0 0.0
  %121 = vmatpush1.xpose.msra.mxu0 0.0
  %122 = vmatprep.subr.mxu0 0.0
  %123 = vmatpush1.xpose.msra.mxu0 0.0
  %124 = vmatprep.subr.mxu0 0.0
  %125 = vmatpush1.xpose.msra.mxu0 0.0
  %126 = vmatprep.subr.mxu0 0.0
  %127 = vmatpush1.xpose.msra.mxu0 0.0
  %128 = vmatprep.subr.mxu0 0.0
  %129 = vmatpush1.xpose.msra.mxu0 0.0
  %130 = vmatprep.subr.mxu0 0.0
  %131 = vmatpush1.xpose.msra.mxu0 0.0
  %132 = vmatprep.subr.mxu0 0.0
  %133 = vmatpush1.xpose.msra.mxu0 0.0
  %134 = vmatprep.subr.mxu0 0.0
  %135 = vmatpush1.xpose.msra.mxu0 0.0
  %136 = vmatprep.subr.mxu0 0.0
  %137 = vmatpush1.xpose.msra.mxu0 0.0
  %138 = vmatprep.subr.mxu0 0.0
  %139 = vmatpush1.xpose.msra.mxu0 0.0
  %140 = vmatprep.subr.mxu0 0.0
  %141 = vmatpush1.xpose.msra.mxu0 0.0
  %142 = vmatprep.subr.mxu0 0.0
  %143 = vmatpush1.xpose.msra.mxu0 0.0
  %144 = vmatprep.subr.mxu0 0.0
  %145 = vmatpush1.xpose.msra.mxu0 0.0
  %146 = vmatprep.subr.mxu0 0.0
  %147 = vmatpush1.xpose.msra.mxu0 %v114
  %148 = vmatprep.subr.mxu0 0.0
  %149 = vmatpush2.xpose.msra.mxu0 0.0
  %150 = vmatprep.subr.mxu0 0.0
  %151 = vmatpush2.xpose.msra.mxu0 0.0
  %152 = vmatprep.subr.mxu0 0.0
  %153 = vmatpush2.xpose.msra.mxu0 0.0
  %154 = vmatprep.subr.mxu0 0.0
  %155 = vmatpush2.xpose.msra.mxu0 0.0
  %156 = vmatprep.subr.mxu0 0.0
  %157 = vmatpush2.xpose.msra.mxu0 0.0
  %158 = vmatprep.subr.mxu0 0.0
  %159 = vmatpush2.xpose.msra.mxu0 0.0
  %160 = vmatprep.subr.mxu0 0.0
  %161 = vmatpush2.xpose.msra.mxu0 0.0
  %162 = vmatprep.subr.mxu0 0.0
  %163 = vmatpush2.xpose.msra.mxu0 0.0
  %164 = vmatprep.subr.mxu0 0.0
  %165 = vmatpush2.xpose.msra.mxu0 0.0
  %166 = vmatprep.subr.mxu0 0.0
  %167 = vmatpush2.xpose.msra.mxu0 0.0
  %168 = vmatprep.subr.mxu0 0.0
  %169 = vmatpush2.xpose.msra.mxu0 0.0
  %170 = vmatprep.subr.mxu0 0.0
  %171 = vmatpush2.xpose.msra.mxu0 0.0
  %172 = vmatprep.subr.mxu0 0.0
  %173 = vmatpush2.xpose.msra.mxu0 0.0
  %174 = vmatprep.subr.mxu0 0.0
  %175 = vmatpush2.xpose.msra.mxu0 0.0
  %176 = vmatprep.subr.mxu0 0.0
  %177 = vmatpush2.xpose.msra.mxu0 0.0
  %178 = vmatprep.subr.mxu0 0.0
  %179 = vmatpush2.xpose.msra.mxu0 0.0
  %180 = vmatprep.mubr.f32.mxu0 0.0
  %181 = vmatmul.mubr.f32.gmra.mxu0 %v112
  %v182 = vpop.f32.mrf.mxu0
  %v183 = vadd.f32 0.0, %v182
  %v184 = vpop.f32.mrf.mxu0
  %185 = vdwg.mxu0
  %v186 = vsel %vm110, %v183, -inf
  %187 = vmax.xlane.f32.xlu0 %v186
  %v188 = vpop.xlane.xlu0 %187
  %v189 = vsub.f32 %v183, %v188
  %v190 = vmul.f32 %v189, 1.442695
  %v191 = vpow.pop %v190
  %v192 = vsel %vm110, %v191, 0.0
  %193 = vadd.xlane.f32.xlu0 %v192
  %v194 = vpop.xlane.xlu0 %193
  %v195 = vrcp.pop %v194
  %v196 = vmul.f32 %v191, %v195
  %197 = vrot.lane.b32.xlu0 %v100, 64
  %v198 = vpop.permute.xlu0 %197
  %v201 = vsel %vm110, %v196, 0
  %203 = vmatprep.subr.mxu0 0.0
  %204 = vmatpush1.msra.mxu0 0.0
  %205 = vmatprep.subr.mxu0 0.0
  %206 = vmatpush1.msra.mxu0 0.0
  %207 = vmatprep.subr.mxu0 0.0
  %208 = vmatpush1.msra.mxu0 0.0
  %209 = vmatprep.subr.mxu0 0.0
  %210 = vmatpush1.msra.mxu0 0.0
  %211 = vmatprep.subr.mxu0 0.0
  %212 = vmatpush1.msra.mxu0 0.0
  %213 = vmatprep.subr.mxu0 0.0
  %214 = vmatpush1.msra.mxu0 0.0
  %215 = vmatprep.subr.mxu0 0.0
  %216 = vmatpush1.msra.mxu0 0.0
  %217 = vmatprep.subr.mxu0 0.0
  %218 = vmatpush1.msra.mxu0 0.0
  %219 = vmatprep.subr.mxu0 0.0
  %220 = vmatpush1.msra.mxu0 0.0
  %221 = vmatprep.subr.mxu0 0.0
  %222 = vmatpush1.msra.mxu0 0.0
  %223 = vmatprep.subr.mxu0 0.0
  %224 = vmatpush1.msra.mxu0 0.0
  %225 = vmatprep.subr.mxu0 0.0
  %226 = vmatpush1.msra.mxu0 0.0
  %227 = vmatprep.subr.mxu0 0.0
  %228 = vmatpush1.msra.mxu0 0.0
  %229 = vmatprep.subr.mxu0 0.0
  %230 = vmatpush1.msra.mxu0 0.0
  %231 = vmatprep.subr.mxu0 0.0
  %232 = vmatpush1.msra.mxu0 0.0
  %233 = vmatprep.subr.mxu0 0.0
  %234 = vmatpush1.msra.mxu0 %v198
  %235 = vmatprep.subr.mxu0 0.0
  %236 = vmatpush2.msra.mxu0 0.0
  %237 = vmatprep.subr.mxu0 0.0
  %238 = vmatpush2.msra.mxu0 0.0
  %239 = vmatprep.subr.mxu0 0.0
  %240 = vmatpush2.msra.mxu0 0.0
  %241 = vmatprep.subr.mxu0 0.0
  %242 = vmatpush2.msra.mxu0 0.0
  %243 = vmatprep.subr.mxu0 0.0
  %244 = vmatpush2.msra.mxu0 0.0
  %245 = vmatprep.subr.mxu0 0.0
  %246 = vmatpush2.msra.mxu0 0.0
  %247 = vmatprep.subr.mxu0 0.0
  %248 = vmatpush2.msra.mxu0 0.0
  %249 = vmatprep.subr.mxu0 0.0
  %250 = vmatpush2.msra.mxu0 0.0
  %251 = vmatprep.subr.mxu0 0.0
  %252 = vmatpush2.msra.mxu0 0.0
  %253 = vmatprep.subr.mxu0 0.0
  %254 = vmatpush2.msra.mxu0 0.0
  %255 = vmatprep.subr.mxu0 0.0
  %256 = vmatpush2.msra.mxu0 0.0
  %257 = vmatprep.subr.mxu0 0.0
  %258 = vmatpush2.msra.mxu0 0.0
  %259 = vmatprep.subr.mxu0 0.0
  %260 = vmatpush2.msra.mxu0 0.0
  %261 = vmatprep.subr.mxu0 0.0
  %262 = vmatpush2.msra.mxu0 0.0
  %263 = vmatprep.subr.mxu0 0.0
  %264 = vmatpush2.msra.mxu0 0.0
  %265 = vmatprep.subr.mxu0 0.0
  %266 = vmatpush2.msra.mxu0 0.0
  %267 = vmatprep.mubr.f32.mxu0 0.0
  %268 = vmatmul.mubr.f32.gmra.mxu0 %v201
  %v269 = vpop.f32.mrf.mxu0
  %v270 = vadd.f32 0.0, %v269
  %v271 = vpop.f32.mrf.mxu0
  %272 = vdwg.mxu0
  %273 = vrot.lane.b32.xlu0 %v106, 120
  %v274 = vpop.permute.xlu0 %273
  %275 = vrot.lane.b32.xlu0 %v100, 88
  %v276 = vpop.permute.xlu0 %275
  %v277 = vsel %vm110, %v274, 0
  %v279 = vsel %vm110, %v276, 0
  %281 = vmatprep.subr.mxu0 0.0
  %282 = vmatpush1.xpose.msra.mxu0 0.0
  %283 = vmatprep.subr.mxu0 0.0
  %284 = vmatpush1.xpose.msra.mxu0 0.0
  %285 = vmatprep.subr.mxu0 0.0
  %286 = vmatpush1.xpose.msra.mxu0 0.0
  %287 = vmatprep.subr.mxu0 0.0
  %288 = vmatpush1.xpose.msra.mxu0 0.0
  %289 = vmatprep.subr.mxu0 0.0
  %290 = vmatpush1.xpose.msra.mxu0 0.0
  %291 = vmatprep.subr.mxu0 0.0
  %292 = vmatpush1.xpose.msra.mxu0 0.0
  %293 = vmatprep.subr.mxu0 0.0
  %294 = vmatpush1.xpose.msra.mxu0 0.0
  %295 = vmatprep.subr.mxu0 0.0
  %296 = vmatpush1.xpose.msra.mxu0 0.0
  %297 = vmatprep.subr.mxu0 0.0
  %298 = vmatpush1.xpose.msra.mxu0 0.0
  %299 = vmatprep.subr.mxu0 0.0
  %300 = vmatpush1.xpose.msra.mxu0 0.0
  %301 = vmatprep.subr.mxu0 0.0
  %302 = vmatpush1.xpose.msra.mxu0 0.0
  %303 = vmatprep.subr.mxu0 0.0
  %304 = vmatpush1.xpose.msra.mxu0 0.0
  %305 = vmatprep.subr.mxu0 0.0
  %306 = vmatpush1.xpose.msra.mxu0 0.0
  %307 = vmatprep.subr.mxu0 0.0
  %308 = vmatpush1.xpose.msra.mxu0 0.0
  %309 = vmatprep.subr.mxu0 0.0
  %310 = vmatpush1.xpose.msra.mxu0 0.0
  %311 = vmatprep.subr.mxu0 0.0
  %312 = vmatpush1.xpose.msra.mxu0 %v279
  %313 = vmatprep.subr.mxu0 0.0
  %314 = vmatpush2.xpose.msra.mxu0 0.0
  %315 = vmatprep.subr.mxu0 0.0
  %316 = vmatpush2.xpose.msra.mxu0 0.0
  %317 = vmatprep.subr.mxu0 0.0
  %318 = vmatpush2.xpose.msra.mxu0 0.0
  %319 = vmatprep.subr.mxu0 0.0
  %320 = vmatpush2.xpose.msra.mxu0 0.0
  %321 = vmatprep.subr.mxu0 0.0
  %322 = vmatpush2.xpose.msra.mxu0 0.0
  %323 = vmatprep.subr.mxu0 0.0
  %324 = vmatpush2.xpose.msra.mxu0 0.0
  %325 = vmatprep.subr.mxu0 0.0
  %326 = vmatpush2.xpose.msra.mxu0 0.0
  %327 = vmatprep.subr.mxu0 0.0
  %328 = vmatpush2.xpose.msra.mxu0 0.0
  %329 = vmatprep.subr.mxu0 0.0
  %330 = vmatpush2.xpose.msra.mxu0 0.0
  %331 = vmatprep.subr.mxu0 0.0
  %332 = vmatpush2.xpose.msra.mxu0 0.0
  %333 = vmatprep.subr.mxu0 0.0
  %334 = vmatpush2.xpose.msra.mxu0 0.0
  %335 = vmatprep.subr.mxu0 0.0
  %336 = vmatpush2.xpose.msra.mxu0 0.0
  %337 = vmatprep.subr.mxu0 0.0
  %338 = vmatpush2.xpose.msra.mxu0 0.0
  %339 = vmatprep.subr.mxu0 0.0
  %340 = vmatpush2.xpose.msra.mxu0 0.0
  %341 = vmatprep.subr.mxu0 0.0
  %342 = vmatpush2.xpose.msra.mxu0 0.0
  %343 = vmatprep.subr.mxu0 0.0
  %344 = vmatpush2.xpose.msra.mxu0 0.0
  %345 = vmatprep.mubr.f32.mxu0 0.0
  %346 = vmatmul.mubr.f32.gmra.mxu0 %v277
  %v347 = vpop.f32.mrf.mxu0
  %v348 = vadd.f32 0.0, %v347
  %v349 = vpop.f32.mrf.mxu0
  %350 = vdwg.mxu0
  %v351 = vsel %vm110, %v348, -inf
  %352 = vmax.xlane.f32.xlu0 %v351
  %v353 = vpop.xlane.xlu0 %352
  %v354 = vsub.f32 %v348, %v353
  %v355 = vmul.f32 %v354, 1.442695
  %v356 = vpow.pop %v355
  %v357 = vsel %vm110, %v356, 0.0
  %358 = vadd.xlane.f32.xlu0 %v357
  %v359 = vpop.xlane.xlu0 %358
  %v360 = vrcp.pop %v359
  %v361 = vmul.f32 %v356, %v360
  %362 = vrot.lane.b32.xlu0 %v100, 56
  %v363 = vpop.permute.xlu0 %362
  %v366 = vsel %vm110, %v361, 0
  %368 = vmatprep.subr.mxu0 0.0
  %369 = vmatpush1.msra.mxu0 0.0
  %370 = vmatprep.subr.mxu0 0.0
  %371 = vmatpush1.msra.mxu0 0.0
  %372 = vmatprep.subr.mxu0 0.0
  %373 = vmatpush1.msra.mxu0 0.0
  %374 = vmatprep.subr.mxu0 0.0
  %375 = vmatpush1.msra.mxu0 0.0
  %376 = vmatprep.subr.mxu0 0.0
  %377 = vmatpush1.msra.mxu0 0.0
  %378 = vmatprep.subr.mxu0 0.0
  %379 = vmatpush1.msra.mxu0 0.0
  %380 = vmatprep.subr.mxu0 0.0
  %381 = vmatpush1.msra.mxu0 0.0
  %382 = vmatprep.subr.mxu0 0.0
  %383 = vmatpush1.msra.mxu0 0.0
  %384 = vmatprep.subr.mxu0 0.0
  %385 = vmatpush1.msra.mxu0 0.0
  %386 = vmatprep.subr.mxu0 0.0
  %387 = vmatpush1.msra.mxu0 0.0
  %388 = vmatprep.subr.mxu0 0.0
  %389 = vmatpush1.msra.mxu0 0.0
  %390 = vmatprep.subr.mxu0 0.0
  %391 = vmatpush1.msra.mxu0 0.0
  %392 = vmatprep.subr.mxu0 0.0
  %393 = vmatpush1.msra.mxu0 0.0
  %394 = vmatprep.subr.mxu0 0.0
  %395 = vmatpush1.msra.mxu0 0.0
  %396 = vmatprep.subr.mxu0 0.0
  %397 = vmatpush1.msra.mxu0 0.0
  %398 = vmatprep.subr.mxu0 0.0
  %399 = vmatpush1.msra.mxu0 %v363
  %400 = vmatprep.subr.mxu0 0.0
  %401 = vmatpush2.msra.mxu0 0.0
  %402 = vmatprep.subr.mxu0 0.0
  %403 = vmatpush2.msra.mxu0 0.0
  %404 = vmatprep.subr.mxu0 0.0
  %405 = vmatpush2.msra.mxu0 0.0
  %406 = vmatprep.subr.mxu0 0.0
  %407 = vmatpush2.msra.mxu0 0.0
  %408 = vmatprep.subr.mxu0 0.0
  %409 = vmatpush2.msra.mxu0 0.0
  %410 = vmatprep.subr.mxu0 0.0
  %411 = vmatpush2.msra.mxu0 0.0
  %412 = vmatprep.subr.mxu0 0.0
  %413 = vmatpush2.msra.mxu0 0.0
  %414 = vmatprep.subr.mxu0 0.0
  %415 = vmatpush2.msra.mxu0 0.0
  %416 = vmatprep.subr.mxu0 0.0
  %417 = vmatpush2.msra.mxu0 0.0
  %418 = vmatprep.subr.mxu0 0.0
  %419 = vmatpush2.msra.mxu0 0.0
  %420 = vmatprep.subr.mxu0 0.0
  %421 = vmatpush2.msra.mxu0 0.0
  %422 = vmatprep.subr.mxu0 0.0
  %423 = vmatpush2.msra.mxu0 0.0
  %424 = vmatprep.subr.mxu0 0.0
  %425 = vmatpush2.msra.mxu0 0.0
  %426 = vmatprep.subr.mxu0 0.0
  %427 = vmatpush2.msra.mxu0 0.0
  %428 = vmatprep.subr.mxu0 0.0
  %429 = vmatpush2.msra.mxu0 0.0
  %430 = vmatprep.subr.mxu0 0.0
  %431 = vmatpush2.msra.mxu0 0.0
  %432 = vmatprep.mubr.f32.mxu0 0.0
  %433 = vmatmul.mubr.f32.gmra.mxu0 %v366
  %v434 = vpop.f32.mrf.mxu0
  %v435 = vadd.f32 0.0, %v434
  %v436 = vpop.f32.mrf.mxu0
  %437 = vdwg.mxu0
  %438 = vrot.lane.b32.xlu0 %v106, 112
  %v439 = vpop.permute.xlu0 %438
  %440 = vrot.lane.b32.xlu0 %v100, 80
  %v441 = vpop.permute.xlu0 %440
  %v442 = vsel %vm110, %v439, 0
  %v444 = vsel %vm110, %v441, 0
  %446 = vmatprep.subr.mxu0 0.0
  %447 = vmatpush1.xpose.msra.mxu0 0.0
  %448 = vmatprep.subr.mxu0 0.0
  %449 = vmatpush1.xpose.msra.mxu0 0.0
  %450 = vmatprep.subr.mxu0 0.0
  %451 = vmatpush1.xpose.msra.mxu0 0.0
  %452 = vmatprep.subr.mxu0 0.0
  %453 = vmatpush1.xpose.msra.mxu0 0.0
  %454 = vmatprep.subr.mxu0 0.0
  %455 = vmatpush1.xpose.msra.mxu0 0.0
  %456 = vmatprep.subr.mxu0 0.0
  %457 = vmatpush1.xpose.msra.mxu0 0.0
  %458 = vmatprep.subr.mxu0 0.0
  %459 = vmatpush1.xpose.msra.mxu0 0.0
  %460 = vmatprep.subr.mxu0 0.0
  %461 = vmatpush1.xpose.msra.mxu0 0.0
  %462 = vmatprep.subr.mxu0 0.0
  %463 = vmatpush1.xpose.msra.mxu0 0.0
  %464 = vmatprep.subr.mxu0 0.0
  %465 = vmatpush1.xpose.msra.mxu0 0.0
  %466 = vmatprep.subr.mxu0 0.0
  %467 = vmatpush1.xpose.msra.mxu0 0.0
  %468 = vmatprep.subr.mxu0 0.0
  %469 = vmatpush1.xpose.msra.mxu0 0.0
  %470 = vmatprep.subr.mxu0 0.0
  %471 = vmatpush1.xpose.msra.mxu0 0.0
  %472 = vmatprep.subr.mxu0 0.0
  %473 = vmatpush1.xpose.msra.mxu0 0.0
  %474 = vmatprep.subr.mxu0 0.0
  %475 = vmatpush1.xpose.msra.mxu0 0.0
  %476 = vmatprep.subr.mxu0 0.0
  %477 = vmatpush1.xpose.msra.mxu0 %v444
  %478 = vmatprep.subr.mxu0 0.0
  %479 = vmatpush2.xpose.msra.mxu0 0.0
  %480 = vmatprep.subr.mxu0 0.0
  %481 = vmatpush2.xpose.msra.mxu0 0.0
  %482 = vmatprep.subr.mxu0 0.0
  %483 = vmatpush2.xpose.msra.mxu0 0.0
  %484 = vmatprep.subr.mxu0 0.0
  %485 = vmatpush2.xpose.msra.mxu0 0.0
  %486 = vmatprep.subr.mxu0 0.0
  %487 = vmatpush2.xpose.msra.mxu0 0.0
  %488 = vmatprep.subr.mxu0 0.0
  %489 = vmatpush2.xpose.msra.mxu0 0.0
  %490 = vmatprep.subr.mxu0 0.0
  %491 = vmatpush2.xpose.msra.mxu0 0.0
  %492 = vmatprep.subr.mxu0 0.0
  %493 = vmatpush2.xpose.msra.mxu0 0.0
  %494 = vmatprep.subr.mxu0 0.0
  %495 = vmatpush2.xpose.msra.mxu0 0.0
  %496 = vmatprep.subr.mxu0 0.0
  %497 = vmatpush2.xpose.msra.mxu0 0.0
  %498 = vmatprep.subr.mxu0 0.0
  %499 = vmatpush2.xpose.msra.mxu0 0.0
  %500 = vmatprep.subr.mxu0 0.0
  %501 = vmatpush2.xpose.msra.mxu0 0.0
  %502 = vmatprep.subr.mxu0 0.0
  %503 = vmatpush2.xpose.msra.mxu0 0.0
  %504 = vmatprep.subr.mxu0 0.0
  %505 = vmatpush2.xpose.msra.mxu0 0.0
  %506 = vmatprep.subr.mxu0 0.0
  %507 = vmatpush2.xpose.msra.mxu0 0.0
  %508 = vmatprep.subr.mxu0 0.0
  %509 = vmatpush2.xpose.msra.mxu0 0.0
  %510 = vmatprep.mubr.f32.mxu0 0.0
  %511 = vmatmul.mubr.f32.gmra.mxu0 %v442
  %v512 = vpop.f32.mrf.mxu0
  %v513 = vadd.f32 0.0, %v512
  %v514 = vpop.f32.mrf.mxu0
  %515 = vdwg.mxu0
  %v516 = vsel %vm110, %v513, -inf
  %517 = vmax.xlane.f32.xlu0 %v516
  %v518 = vpop.xlane.xlu0 %517
  %v519 = vsub.f32 %v513, %v518
  %v520 = vmul.f32 %v519, 1.442695
  %v521 = vpow.pop %v520
  %v522 = vsel %vm110, %v521, 0.0
  %523 = vadd.xlane.f32.xlu0 %v522
  %v524 = vpop.xlane.xlu0 %523
  %v525 = vrcp.pop %v524
  %v526 = vmul.f32 %v521, %v525
  %527 = vrot.lane.b32.xlu0 %v100, 48
  %v528 = vpop.permute.xlu0 %527
  %v531 = vsel %vm110, %v526, 0
  %533 = vmatprep.subr.mxu0 0.0
  %534 = vmatpush1.msra.mxu0 0.0
  %535 = vmatprep.subr.mxu0 0.0
  %536 = vmatpush1.msra.mxu0 0.0
  %537 = vmatprep.subr.mxu0 0.0
  %538 = vmatpush1.msra.mxu0 0.0
  %539 = vmatprep.subr.mxu0 0.0
  %540 = vmatpush1.msra.mxu0 0.0
  %541 = vmatprep.subr.mxu0 0.0
  %542 = vmatpush1.msra.mxu0 0.0
  %543 = vmatprep.subr.mxu0 0.0
  %544 = vmatpush1.msra.mxu0 0.0
  %545 = vmatprep.subr.mxu0 0.0
  %546 = vmatpush1.msra.mxu0 0.0
  %547 = vmatprep.subr.mxu0 0.0
  %548 = vmatpush1.msra.mxu0 0.0
  %549 = vmatprep.subr.mxu0 0.0
  %550 = vmatpush1.msra.mxu0 0.0
  %551 = vmatprep.subr.mxu0 0.0
  %552 = vmatpush1.msra.mxu0 0.0
  %553 = vmatprep.subr.mxu0 0.0
  %554 = vmatpush1.msra.mxu0 0.0
  %555 = vmatprep.subr.mxu0 0.0
  %556 = vmatpush1.msra.mxu0 0.0
  %557 = vmatprep.subr.mxu0 0.0
  %558 = vmatpush1.msra.mxu0 0.0
  %559 = vmatprep.subr.mxu0 0.0
  %560 = vmatpush1.msra.mxu0 0.0
  %561 = vmatprep.subr.mxu0 0.0
  %562 = vmatpush1.msra.mxu0 0.0
  %563 = vmatprep.subr.mxu0 0.0
  %564 = vmatpush1.msra.mxu0 %v528
  %565 = vmatprep.subr.mxu0 0.0
  %566 = vmatpush2.msra.mxu0 0.0
  %567 = vmatprep.subr.mxu0 0.0
  %568 = vmatpush2.msra.mxu0 0.0
  %569 = vmatprep.subr.mxu0 0.0
  %570 = vmatpush2.msra.mxu0 0.0
  %571 = vmatprep.subr.mxu0 0.0
  %572 = vmatpush2.msra.mxu0 0.0
  %573 = vmatprep.subr.mxu0 0.0
  %574 = vmatpush2.msra.mxu0 0.0
  %575 = vmatprep.subr.mxu0 0.0
  %576 = vmatpush2.msra.mxu0 0.0
  %577 = vmatprep.subr.mxu0 0.0
  %578 = vmatpush2.msra.mxu0 0.0
  %579 = vmatprep.subr.mxu0 0.0
  %580 = vmatpush2.msra.mxu0 0.0
  %581 = vmatprep.subr.mxu0 0.0
  %582 = vmatpush2.msra.mxu0 0.0
  %583 = vmatprep.subr.mxu0 0.0
  %584 = vmatpush2.msra.mxu0 0.0
  %585 = vmatprep.subr.mxu0 0.0
  %586 = vmatpush2.msra.mxu0 0.0
  %587 = vmatprep.subr.mxu0 0.0
  %588 = vmatpush2.msra.mxu0 0.0
  %589 = vmatprep.subr.mxu0 0.0
  %590 = vmatpush2.msra.mxu0 0.0
  %591 = vmatprep.subr.mxu0 0.0
  %592 = vmatpush2.msra.mxu0 0.0
  %593 = vmatprep.subr.mxu0 0.0
  %594 = vmatpush2.msra.mxu0 0.0
  %595 = vmatprep.subr.mxu0 0.0
  %596 = vmatpush2.msra.mxu0 0.0
  %597 = vmatprep.mubr.f32.mxu0 0.0
  %598 = vmatmul.mubr.f32.gmra.mxu0 %v531
  %v599 = vpop.f32.mrf.mxu0
  %v600 = vadd.f32 0.0, %v599
  %v601 = vpop.f32.mrf.mxu0
  %602 = vdwg.mxu0
  %603 = vrot.lane.b32.xlu0 %v106, 104
  %v604 = vpop.permute.xlu0 %603
  %605 = vrot.lane.b32.xlu0 %v100, 72
  %v606 = vpop.permute.xlu0 %605
  %v607 = vsel %vm110, %v604, 0
  %v609 = vsel %vm110, %v606, 0
  %611 = vmatprep.subr.mxu0 0.0
  %612 = vmatpush1.xpose.msra.mxu0 0.0
  %613 = vmatprep.subr.mxu0 0.0
  %614 = vmatpush1.xpose.msra.mxu0 0.0
  %615 = vmatprep.subr.mxu0 0.0
  %616 = vmatpush1.xpose.msra.mxu0 0.0
  %617 = vmatprep.subr.mxu0 0.0
  %618 = vmatpush1.xpose.msra.mxu0 0.0
  %619 = vmatprep.subr.mxu0 0.0
  %620 = vmatpush1.xpose.msra.mxu0 0.0
  %621 = vmatprep.subr.mxu0 0.0
  %622 = vmatpush1.xpose.msra.mxu0 0.0
  %623 = vmatprep.subr.mxu0 0.0
  %624 = vmatpush1.xpose.msra.mxu0 0.0
  %625 = vmatprep.subr.mxu0 0.0
  %626 = vmatpush1.xpose.msra.mxu0 0.0
  %627 = vmatprep.subr.mxu0 0.0
  %628 = vmatpush1.xpose.msra.mxu0 0.0
  %629 = vmatprep.subr.mxu0 0.0
  %630 = vmatpush1.xpose.msra.mxu0 0.0
  %631 = vmatprep.subr.mxu0 0.0
  %632 = vmatpush1.xpose.msra.mxu0 0.0
  %633 = vmatprep.subr.mxu0 0.0
  %634 = vmatpush1.xpose.msra.mxu0 0.0
  %635 = vmatprep.subr.mxu0 0.0
  %636 = vmatpush1.xpose.msra.mxu0 0.0
  %637 = vmatprep.subr.mxu0 0.0
  %638 = vmatpush1.xpose.msra.mxu0 0.0
  %639 = vmatprep.subr.mxu0 0.0
  %640 = vmatpush1.xpose.msra.mxu0 0.0
  %641 = vmatprep.subr.mxu0 0.0
  %642 = vmatpush1.xpose.msra.mxu0 %v609
  %643 = vmatprep.subr.mxu0 0.0
  %644 = vmatpush2.xpose.msra.mxu0 0.0
  %645 = vmatprep.subr.mxu0 0.0
  %646 = vmatpush2.xpose.msra.mxu0 0.0
  %647 = vmatprep.subr.mxu0 0.0
  %648 = vmatpush2.xpose.msra.mxu0 0.0
  %649 = vmatprep.subr.mxu0 0.0
  %650 = vmatpush2.xpose.msra.mxu0 0.0
  %651 = vmatprep.subr.mxu0 0.0
  %652 = vmatpush2.xpose.msra.mxu0 0.0
  %653 = vmatprep.subr.mxu0 0.0
  %654 = vmatpush2.xpose.msra.mxu0 0.0
  %655 = vmatprep.subr.mxu0 0.0
  %656 = vmatpush2.xpose.msra.mxu0 0.0
  %657 = vmatprep.subr.mxu0 0.0
  %658 = vmatpush2.xpose.msra.mxu0 0.0
  %659 = vmatprep.subr.mxu0 0.0
  %660 = vmatpush2.xpose.msra.mxu0 0.0
  %661 = vmatprep.subr.mxu0 0.0
  %662 = vmatpush2.xpose.msra.mxu0 0.0
  %663 = vmatprep.subr.mxu0 0.0
  %664 = vmatpush2.xpose.msra.mxu0 0.0
  %665 = vmatprep.subr.mxu0 0.0
  %666 = vmatpush2.xpose.msra.mxu0 0.0
  %667 = vmatprep.subr.mxu0 0.0
  %668 = vmatpush2.xpose.msra.mxu0 0.0
  %669 = vmatprep.subr.mxu0 0.0
  %670 = vmatpush2.xpose.msra.mxu0 0.0
  %671 = vmatprep.subr.mxu0 0.0
  %672 = vmatpush2.xpose.msra.mxu0 0.0
  %673 = vmatprep.subr.mxu0 0.0
  %674 = vmatpush2.xpose.msra.mxu0 0.0
  %675 = vmatprep.mubr.f32.mxu0 0.0
  %676 = vmatmul.mubr.f32.gmra.mxu0 %v607
  %v677 = vpop.f32.mrf.mxu0
  %v678 = vadd.f32 0.0, %v677
  %v679 = vpop.f32.mrf.mxu0
  %680 = vdwg.mxu0
  %v681 = vsel %vm110, %v678, -inf
  %682 = vmax.xlane.f32.xlu0 %v681
  %v683 = vpop.xlane.xlu0 %682
  %v684 = vsub.f32 %v678, %v683
  %v685 = vmul.f32 %v684, 1.442695
  %v686 = vpow.pop %v685
  %v687 = vsel %vm110, %v686, 0.0
  %688 = vadd.xlane.f32.xlu0 %v687
  %v689 = vpop.xlane.xlu0 %688
  %v690 = vrcp.pop %v689
  %v691 = vmul.f32 %v686, %v690
  %692 = vrot.lane.b32.xlu0 %v100, 40
  %v693 = vpop.permute.xlu0 %692
  %v696 = vsel %vm110, %v691, 0
  %698 = vmatprep.subr.mxu0 0.0
  %699 = vmatpush1.msra.mxu0 0.0
  %700 = vmatprep.subr.mxu0 0.0
  %701 = vmatpush1.msra.mxu0 0.0
  %702 = vmatprep.subr.mxu0 0.0
  %703 = vmatpush1.msra.mxu0 0.0
  %704 = vmatprep.subr.mxu0 0.0
  %705 = vmatpush1.msra.mxu0 0.0
  %706 = vmatprep.subr.mxu0 0.0
  %707 = vmatpush1.msra.mxu0 0.0
  %708 = vmatprep.subr.mxu0 0.0
  %709 = vmatpush1.msra.mxu0 0.0
  %710 = vmatprep.subr.mxu0 0.0
  %711 = vmatpush1.msra.mxu0 0.0
  %712 = vmatprep.subr.mxu0 0.0
  %713 = vmatpush1.msra.mxu0 0.0
  %714 = vmatprep.subr.mxu0 0.0
  %715 = vmatpush1.msra.mxu0 0.0
  %716 = vmatprep.subr.mxu0 0.0
  %717 = vmatpush1.msra.mxu0 0.0
  %718 = vmatprep.subr.mxu0 0.0
  %719 = vmatpush1.msra.mxu0 0.0
  %720 = vmatprep.subr.mxu0 0.0
  %721 = vmatpush1.msra.mxu0 0.0
  %722 = vmatprep.subr.mxu0 0.0
  %723 = vmatpush1.msra.mxu0 0.0
  %724 = vmatprep.subr.mxu0 0.0
  %725 = vmatpush1.msra.mxu0 0.0
  %726 = vmatprep.subr.mxu0 0.0
  %727 = vmatpush1.msra.mxu0 0.0
  %728 = vmatprep.subr.mxu0 0.0
  %729 = vmatpush1.msra.mxu0 %v693
  %730 = vmatprep.subr.mxu0 0.0
  %731 = vmatpush2.msra.mxu0 0.0
  %732 = vmatprep.subr.mxu0 0.0
  %733 = vmatpush2.msra.mxu0 0.0
  %734 = vmatprep.subr.mxu0 0.0
  %735 = vmatpush2.msra.mxu0 0.0
  %736 = vmatprep.subr.mxu0 0.0
  %737 = vmatpush2.msra.mxu0 0.0
  %738 = vmatprep.subr.mxu0 0.0
  %739 = vmatpush2.msra.mxu0 0.0
  %740 = vmatprep.subr.mxu0 0.0
  %741 = vmatpush2.msra.mxu0 0.0
  %742 = vmatprep.subr.mxu0 0.0
  %743 = vmatpush2.msra.mxu0 0.0
  %744 = vmatprep.subr.mxu0 0.0
  %745 = vmatpush2.msra.mxu0 0.0
  %746 = vmatprep.subr.mxu0 0.0
  %747 = vmatpush2.msra.mxu0 0.0
  %748 = vmatprep.subr.mxu0 0.0
  %749 = vmatpush2.msra.mxu0 0.0
  %750 = vmatprep.subr.mxu0 0.0
  %751 = vmatpush2.msra.mxu0 0.0
  %752 = vmatprep.subr.mxu0 0.0
  %753 = vmatpush2.msra.mxu0 0.0
  %754 = vmatprep.subr.mxu0 0.0
  %755 = vmatpush2.msra.mxu0 0.0
  %756 = vmatprep.subr.mxu0 0.0
  %757 = vmatpush2.msra.mxu0 0.0
  %758 = vmatprep.subr.mxu0 0.0
  %759 = vmatpush2.msra.mxu0 0.0
  %760 = vmatprep.subr.mxu0 0.0
  %761 = vmatpush2.msra.mxu0 0.0
  %762 = vmatprep.mubr.f32.mxu0 0.0
  %763 = vmatmul.mubr.f32.gmra.mxu0 %v696
  %v764 = vpop.f32.mrf.mxu0
  %v765 = vadd.f32 0.0, %v764
  %v766 = vpop.f32.mrf.mxu0
  %767 = vdwg.mxu0
  %769 = vrot.lane.b32.xlu0 %v435, 8
  %v770 = vpop.permute.xlu0 %769
  %773 = vrot.lane.b32.xlu0 %v600, 16
  %v774 = vpop.permute.xlu0 %773
  %777 = vrot.lane.b32.xlu0 %v765, 24
  %v778 = vpop.permute.xlu0 %777
  %v780 = vsel %vm110, %v270, %v770
  %vm781 = vcmask 130048
  %v782 = vsel %vm781, %v780, %v774
  %vm783 = vcmask 195584
  %v784 = vsel %vm783, %v782, %v778
  %v785 = vmul.f32 %v103, 0.35355338
  %787 = vrot.lane.b32.xlu0 %v103, 96
  %v788 = vpop.permute.xlu0 %787
  %v790 = vsel %vm110, %v785, 0
  %v792 = vsel %vm110, %v788, 0
  %794 = vmatprep.subr.mxu0 0.0
  %795 = vmatpush1.xpose.msra.mxu0 0.0
  %796 = vmatprep.subr.mxu0 0.0
  %797 = vmatpush1.xpose.msra.mxu0 0.0
  %798 = vmatprep.subr.mxu0 0.0
  %799 = vmatpush1.xpose.msra.mxu0 0.0
  %800 = vmatprep.subr.mxu0 0.0
  %801 = vmatpush1.xpose.msra.mxu0 0.0
  %802 = vmatprep.subr.mxu0 0.0
  %803 = vmatpush1.xpose.msra.mxu0 0.0
  %804 = vmatprep.subr.mxu0 0.0
  %805 = vmatpush1.xpose.msra.mxu0 0.0
  %806 = vmatprep.subr.mxu0 0.0
  %807 = vmatpush1.xpose.msra.mxu0 0.0
  %808 = vmatprep.subr.mxu0 0.0
  %809 = vmatpush1.xpose.msra.mxu0 0.0
  %810 = vmatprep.subr.mxu0 0.0
  %811 = vmatpush1.xpose.msra.mxu0 0.0
  %812 = vmatprep.subr.mxu0 0.0
  %813 = vmatpush1.xpose.msra.mxu0 0.0
  %814 = vmatprep.subr.mxu0 0.0
  %815 = vmatpush1.xpose.msra.mxu0 0.0
  %816 = vmatprep.subr.mxu0 0.0
  %817 = vmatpush1.xpose.msra.mxu0 0.0
  %818 = vmatprep.subr.mxu0 0.0
  %819 = vmatpush1.xpose.msra.mxu0 0.0
  %820 = vmatprep.subr.mxu0 0.0
  %821 = vmatpush1.xpose.msra.mxu0 0.0
  %822 = vmatprep.subr.mxu0 0.0
  %823 = vmatpush1.xpose.msra.mxu0 0.0
  %824 = vmatprep.subr.mxu0 0.0
  %825 = vmatpush1.xpose.msra.mxu0 %v792
  %826 = vmatprep.subr.mxu0 0.0
  %827 = vmatpush2.xpose.msra.mxu0 0.0
  %828 = vmatprep.subr.mxu0 0.0
  %829 = vmatpush2.xpose.msra.mxu0 0.0
  %830 = vmatprep.subr.mxu0 0.0
  %831 = vmatpush2.xpose.msra.mxu0 0.0
  %832 = vmatprep.subr.mxu0 0.0
  %833 = vmatpush2.xpose.msra.mxu0 0.0
  %834 = vmatprep.subr.mxu0 0.0
  %835 = vmatpush2.xpose.msra.mxu0 0.0
  %836 = vmatprep.subr.mxu0 0.0
  %837 = vmatpush2.xpose.msra.mxu0 0.0
  %838 = vmatprep.subr.mxu0 0.0
  %839 = vmatpush2.xpose.msra.mxu0 0.0
  %840 = vmatprep.subr.mxu0 0.0
  %841 = vmatpush2.xpose.msra.mxu0 0.0
  %842 = vmatprep.subr.mxu0 0.0
  %843 = vmatpush2.xpose.msra.mxu0 0.0
  %844 = vmatprep.subr.mxu0 0.0
  %845 = vmatpush2.xpose.msra.mxu0 0.0
  %846 = vmatprep.subr.mxu0 0.0
  %847 = vmatpush2.xpose.msra.mxu0 0.0
  %848 = vmatprep.subr.mxu0 0.0
  %849 = vmatpush2.xpose.msra.mxu0 0.0
  %850 = vmatprep.subr.mxu0 0.0
  %851 = vmatpush2.xpose.msra.mxu0 0.0
  %852 = vmatprep.subr.mxu0 0.0
  %853 = vmatpush2.xpose.msra.mxu0 0.0
  %854 = vmatprep.subr.mxu0 0.0
  %855 = vmatpush2.xpose.msra.mxu0 0.0
  %856 = vmatprep.subr.mxu0 0.0
  %857 = vmatpush2.xpose.msra.mxu0 0.0
  %858 = vmatprep.mubr.f32.mxu0 0.0
  %859 = vmatmul.mubr.f32.gmra.mxu0 %v790
  %v860 = vpop.f32.mrf.mxu0
  %v861 = vadd.f32 0.0, %v860
  %v862 = vpop.f32.mrf.mxu0
  %863 = vdwg.mxu0
  %v864 = vsel %vm110, %v861, -inf
  %865 = vmax.xlane.f32.xlu0 %v864
  %v866 = vpop.xlane.xlu0 %865
  %v867 = vsub.f32 %v861, %v866
  %v868 = vmul.f32 %v867, 1.442695
  %v869 = vpow.pop %v868
  %v870 = vsel %vm110, %v869, 0.0
  %871 = vadd.xlane.f32.xlu0 %v870
  %v872 = vpop.xlane.xlu0 %871
  %v873 = vrcp.pop %v872
  %v874 = vmul.f32 %v869, %v873
  %875 = vrot.lane.b32.xlu0 %v103, 64
  %v876 = vpop.permute.xlu0 %875
  %v879 = vsel %vm110, %v874, 0
  %881 = vmatprep.subr.mxu0 0.0
  %882 = vmatpush1.msra.mxu0 0.0
  %883 = vmatprep.subr.mxu0 0.0
  %884 = vmatpush1.msra.mxu0 0.0
  %885 = vmatprep.subr.mxu0 0.0
  %886 = vmatpush1.msra.mxu0 0.0
  %887 = vmatprep.subr.mxu0 0.0
  %888 = vmatpush1.msra.mxu0 0.0
  %889 = vmatprep.subr.mxu0 0.0
  %890 = vmatpush1.msra.mxu0 0.0
  %891 = vmatprep.subr.mxu0 0.0
  %892 = vmatpush1.msra.mxu0 0.0
  %893 = vmatprep.subr.mxu0 0.0
  %894 = vmatpush1.msra.mxu0 0.0
  %895 = vmatprep.subr.mxu0 0.0
  %896 = vmatpush1.msra.mxu0 0.0
  %897 = vmatprep.subr.mxu0 0.0
  %898 = vmatpush1.msra.mxu0 0.0
  %899 = vmatprep.subr.mxu0 0.0
  %900 = vmatpush1.msra.mxu0 0.0
  %901 = vmatprep.subr.mxu0 0.0
  %902 = vmatpush1.msra.mxu0 0.0
  %903 = vmatprep.subr.mxu0 0.0
  %904 = vmatpush1.msra.mxu0 0.0
  %905 = vmatprep.subr.mxu0 0.0
  %906 = vmatpush1.msra.mxu0 0.0
  %907 = vmatprep.subr.mxu0 0.0
  %908 = vmatpush1.msra.mxu0 0.0
  %909 = vmatprep.subr.mxu0 0.0
  %910 = vmatpush1.msra.mxu0 0.0
  %911 = vmatprep.subr.mxu0 0.0
  %912 = vmatpush1.msra.mxu0 %v876
  %913 = vmatprep.subr.mxu0 0.0
  %914 = vmatpush2.msra.mxu0 0.0
  %915 = vmatprep.subr.mxu0 0.0
  %916 = vmatpush2.msra.mxu0 0.0
  %917 = vmatprep.subr.mxu0 0.0
  %918 = vmatpush2.msra.mxu0 0.0
  %919 = vmatprep.subr.mxu0 0.0
  %920 = vmatpush2.msra.mxu0 0.0
  %921 = vmatprep.subr.mxu0 0.0
  %922 = vmatpush2.msra.mxu0 0.0
  %923 = vmatprep.subr.mxu0 0.0
  %924 = vmatpush2.msra.mxu0 0.0
  %925 = vmatprep.subr.mxu0 0.0
  %926 = vmatpush2.msra.mxu0 0.0
  %927 = vmatprep.subr.mxu0 0.0
  %928 = vmatpush2.msra.mxu0 0.0
  %929 = vmatprep.subr.mxu0 0.0
  %930 = vmatpush2.msra.mxu0 0.0
  %931 = vmatprep.subr.mxu0 0.0
  %932 = vmatpush2.msra.mxu0 0.0
  %933 = vmatprep.subr.mxu0 0.0
  %934 = vmatpush2.msra.mxu0 0.0
  %935 = vmatprep.subr.mxu0 0.0
  %936 = vmatpush2.msra.mxu0 0.0
  %937 = vmatprep.subr.mxu0 0.0
  %938 = vmatpush2.msra.mxu0 0.0
  %939 = vmatprep.subr.mxu0 0.0
  %940 = vmatpush2.msra.mxu0 0.0
  %941 = vmatprep.subr.mxu0 0.0
  %942 = vmatpush2.msra.mxu0 0.0
  %943 = vmatprep.subr.mxu0 0.0
  %944 = vmatpush2.msra.mxu0 0.0
  %945 = vmatprep.mubr.f32.mxu0 0.0
  %946 = vmatmul.mubr.f32.gmra.mxu0 %v879
  %v947 = vpop.f32.mrf.mxu0
  %v948 = vadd.f32 0.0, %v947
  %v949 = vpop.f32.mrf.mxu0
  %950 = vdwg.mxu0
  %951 = vrot.lane.b32.xlu0 %v785, 120
  %v952 = vpop.permute.xlu0 %951
  %953 = vrot.lane.b32.xlu0 %v103, 88
  %v954 = vpop.permute.xlu0 %953
  %v955 = vsel %vm110, %v952, 0
  %v957 = vsel %vm110, %v954, 0
  %959 = vmatprep.subr.mxu0 0.0
  %960 = vmatpush1.xpose.msra.mxu0 0.0
  %961 = vmatprep.subr.mxu0 0.0
  %962 = vmatpush1.xpose.msra.mxu0 0.0
  %963 = vmatprep.subr.mxu0 0.0
  %964 = vmatpush1.xpose.msra.mxu0 0.0
  %965 = vmatprep.subr.mxu0 0.0
  %966 = vmatpush1.xpose.msra.mxu0 0.0
  %967 = vmatprep.subr.mxu0 0.0
  %968 = vmatpush1.xpose.msra.mxu0 0.0
  %969 = vmatprep.subr.mxu0 0.0
  %970 = vmatpush1.xpose.msra.mxu0 0.0
  %971 = vmatprep.subr.mxu0 0.0
  %972 = vmatpush1.xpose.msra.mxu0 0.0
  %973 = vmatprep.subr.mxu0 0.0
  %974 = vmatpush1.xpose.msra.mxu0 0.0
  %975 = vmatprep.subr.mxu0 0.0
  %976 = vmatpush1.xpose.msra.mxu0 0.0
  %977 = vmatprep.subr.mxu0 0.0
  %978 = vmatpush1.xpose.msra.mxu0 0.0
  %979 = vmatprep.subr.mxu0 0.0
  %980 = vmatpush1.xpose.msra.mxu0 0.0
  %981 = vmatprep.subr.mxu0 0.0
  %982 = vmatpush1.xpose.msra.mxu0 0.0
  %983 = vmatprep.subr.mxu0 0.0
  %984 = vmatpush1.xpose.msra.mxu0 0.0
  %985 = vmatprep.subr.mxu0 0.0
  %986 = vmatpush1.xpose.msra.mxu0 0.0
  %987 = vmatprep.subr.mxu0 0.0
  %988 = vmatpush1.xpose.msra.mxu0 0.0
  %989 = vmatprep.subr.mxu0 0.0
  %990 = vmatpush1.xpose.msra.mxu0 %v957
  %991 = vmatprep.subr.mxu0 0.0
  %992 = vmatpush2.xpose.msra.mxu0 0.0
  %993 = vmatprep.subr.mxu0 0.0
  %994 = vmatpush2.xpose.msra.mxu0 0.0
  %995 = vmatprep.subr.mxu0 0.0
  %996 = vmatpush2.xpose.msra.mxu0 0.0
  %997 = vmatprep.subr.mxu0 0.0
  %998 = vmatpush2.xpose.msra.mxu0 0.0
  %999 = vmatprep.subr.mxu0 0.0
  %1000 = vmatpush2.xpose.msra.mxu0 0.0
  %1001 = vmatprep.subr.mxu0 0.0
  %1002 = vmatpush2.xpose.msra.mxu0 0.0
  %1003 = vmatprep.subr.mxu0 0.0
  %1004 = vmatpush2.xpose.msra.mxu0 0.0
  %1005 = vmatprep.subr.mxu0 0.0
  %1006 = vmatpush2.xpose.msra.mxu0 0.0
  %1007 = vmatprep.subr.mxu0 0.0
  %1008 = vmatpush2.xpose.msra.mxu0 0.0
  %1009 = vmatprep.subr.mxu0 0.0
  %1010 = vmatpush2.xpose.msra.mxu0 0.0
  %1011 = vmatprep.subr.mxu0 0.0
  %1012 = vmatpush2.xpose.msra.mxu0 0.0
  %1013 = vmatprep.subr.mxu0 0.0
  %1014 = vmatpush2.xpose.msra.mxu0 0.0
  %1015 = vmatprep.subr.mxu0 0.0
  %1016 = vmatpush2.xpose.msra.mxu0 0.0
  %1017 = vmatprep.subr.mxu0 0.0
  %1018 = vmatpush2.xpose.msra.mxu0 0.0
  %1019 = vmatprep.subr.mxu0 0.0
  %1020 = vmatpush2.xpose.msra.mxu0 0.0
  %1021 = vmatprep.subr.mxu0 0.0
  %1022 = vmatpush2.xpose.msra.mxu0 0.0
  %1023 = vmatprep.mubr.f32.mxu0 0.0
  %1024 = vmatmul.mubr.f32.gmra.mxu0 %v955
  %v1025 = vpop.f32.mrf.mxu0
  %v1026 = vadd.f32 0.0, %v1025
  %v1027 = vpop.f32.mrf.mxu0
  %1028 = vdwg.mxu0
  %v1029 = vsel %vm110, %v1026, -inf
  %1030 = vmax.xlane.f32.xlu0 %v1029
  %v1031 = vpop.xlane.xlu0 %1030
  %v1032 = vsub.f32 %v1026, %v1031
  %v1033 = vmul.f32 %v1032, 1.442695
  %v1034 = vpow.pop %v1033
  %v1035 = vsel %vm110, %v1034, 0.0
  %1036 = vadd.xlane.f32.xlu0 %v1035
  %v1037 = vpop.xlane.xlu0 %1036
  %v1038 = vrcp.pop %v1037
  %v1039 = vmul.f32 %v1034, %v1038
  %1040 = vrot.lane.b32.xlu0 %v103, 56
  %v1041 = vpop.permute.xlu0 %1040
  %v1044 = vsel %vm110, %v1039, 0
  %1046 = vmatprep.subr.mxu0 0.0
  %1047 = vmatpush1.msra.mxu0 0.0
  %1048 = vmatprep.subr.mxu0 0.0
  %1049 = vmatpush1.msra.mxu0 0.0
  %1050 = vmatprep.subr.mxu0 0.0
  %1051 = vmatpush1.msra.mxu0 0.0
  %1052 = vmatprep.subr.mxu0 0.0
  %1053 = vmatpush1.msra.mxu0 0.0
  %1054 = vmatprep.subr.mxu0 0.0
  %1055 = vmatpush1.msra.mxu0 0.0
  %1056 = vmatprep.subr.mxu0 0.0
  %1057 = vmatpush1.msra.mxu0 0.0
  %1058 = vmatprep.subr.mxu0 0.0
  %1059 = vmatpush1.msra.mxu0 0.0
  %1060 = vmatprep.subr.mxu0 0.0
  %1061 = vmatpush1.msra.mxu0 0.0
  %1062 = vmatprep.subr.mxu0 0.0
  %1063 = vmatpush1.msra.mxu0 0.0
  %1064 = vmatprep.subr.mxu0 0.0
  %1065 = vmatpush1.msra.mxu0 0.0
  %1066 = vmatprep.subr.mxu0 0.0
  %1067 = vmatpush1.msra.mxu0 0.0
  %1068 = vmatprep.subr.mxu0 0.0
  %1069 = vmatpush1.msra.mxu0 0.0
  %1070 = vmatprep.subr.mxu0 0.0
  %1071 = vmatpush1.msra.mxu0 0.0
  %1072 = vmatprep.subr.mxu0 0.0
  %1073 = vmatpush1.msra.mxu0 0.0
  %1074 = vmatprep.subr.mxu0 0.0
  %1075 = vmatpush1.msra.mxu0 0.0
  %1076 = vmatprep.subr.mxu0 0.0
  %1077 = vmatpush1.msra.mxu0 %v1041
  %1078 = vmatprep.subr.mxu0 0.0
  %1079 = vmatpush2.msra.mxu0 0.0
  %1080 = vmatprep.subr.mxu0 0.0
  %1081 = vmatpush2.msra.mxu0 0.0
  %1082 = vmatprep.subr.mxu0 0.0
  %1083 = vmatpush2.msra.mxu0 0.0
  %1084 = vmatprep.subr.mxu0 0.0
  %1085 = vmatpush2.msra.mxu0 0.0
  %1086 = vmatprep.subr.mxu0 0.0
  %1087 = vmatpush2.msra.mxu0 0.0
  %1088 = vmatprep.subr.mxu0 0.0
  %1089 = vmatpush2.msra.mxu0 0.0
  %1090 = vmatprep.subr.mxu0 0.0
  %1091 = vmatpush2.msra.mxu0 0.0
  %1092 = vmatprep.subr.mxu0 0.0
  %1093 = vmatpush2.msra.mxu0 0.0
  %1094 = vmatprep.subr.mxu0 0.0
  %1095 = vmatpush2.msra.mxu0 0.0
  %1096 = vmatprep.subr.mxu0 0.0
  %1097 = vmatpush2.msra.mxu0 0.0
  %1098 = vmatprep.subr.mxu0 0.0
  %1099 = vmatpush2.msra.mxu0 0.0
  %1100 = vmatprep.subr.mxu0 0.0
  %1101 = vmatpush2.msra.mxu0 0.0
  %1102 = vmatprep.subr.mxu0 0.0
  %1103 = vmatpush2.msra.mxu0 0.0
  %1104 = vmatprep.subr.mxu0 0.0
  %1105 = vmatpush2.msra.mxu0 0.0
  %1106 = vmatprep.subr.mxu0 0.0
  %1107 = vmatpush2.msra.mxu0 0.0
  %1108 = vmatprep.subr.mxu0 0.0
  %1109 = vmatpush2.msra.mxu0 0.0
  %1110 = vmatprep.mubr.f32.mxu0 0.0
  %1111 = vmatmul.mubr.f32.gmra.mxu0 %v1044
  %v1112 = vpop.f32.mrf.mxu0
  %v1113 = vadd.f32 0.0, %v1112
  %v1114 = vpop.f32.mrf.mxu0
  %1115 = vdwg.mxu0
  %1116 = vrot.lane.b32.xlu0 %v785, 112
  %v1117 = vpop.permute.xlu0 %1116
  %1118 = vrot.lane.b32.xlu0 %v103, 80
  %v1119 = vpop.permute.xlu0 %1118
  %v1120 = vsel %vm110, %v1117, 0
  %v1122 = vsel %vm110, %v1119, 0
  %1124 = vmatprep.subr.mxu0 0.0
  %1125 = vmatpush1.xpose.msra.mxu0 0.0
  %1126 = vmatprep.subr.mxu0 0.0
  %1127 = vmatpush1.xpose.msra.mxu0 0.0
  %1128 = vmatprep.subr.mxu0 0.0
  %1129 = vmatpush1.xpose.msra.mxu0 0.0
  %1130 = vmatprep.subr.mxu0 0.0
  %1131 = vmatpush1.xpose.msra.mxu0 0.0
  %1132 = vmatprep.subr.mxu0 0.0
  %1133 = vmatpush1.xpose.msra.mxu0 0.0
  %1134 = vmatprep.subr.mxu0 0.0
  %1135 = vmatpush1.xpose.msra.mxu0 0.0
  %1136 = vmatprep.subr.mxu0 0.0
  %1137 = vmatpush1.xpose.msra.mxu0 0.0
  %1138 = vmatprep.subr.mxu0 0.0
  %1139 = vmatpush1.xpose.msra.mxu0 0.0
  %1140 = vmatprep.subr.mxu0 0.0
  %1141 = vmatpush1.xpose.msra.mxu0 0.0
  %1142 = vmatprep.subr.mxu0 0.0
  %1143 = vmatpush1.xpose.msra.mxu0 0.0
  %1144 = vmatprep.subr.mxu0 0.0
  %1145 = vmatpush1.xpose.msra.mxu0 0.0
  %1146 = vmatprep.subr.mxu0 0.0
  %1147 = vmatpush1.xpose.msra.mxu0 0.0
  %1148 = vmatprep.subr.mxu0 0.0
  %1149 = vmatpush1.xpose.msra.mxu0 0.0
  %1150 = vmatprep.subr.mxu0 0.0
  %1151 = vmatpush1.xpose.msra.mxu0 0.0
  %1152 = vmatprep.subr.mxu0 0.0
  %1153 = vmatpush1.xpose.msra.mxu0 0.0
  %1154 = vmatprep.subr.mxu0 0.0
  %1155 = vmatpush1.xpose.msra.mxu0 %v1122
  %1156 = vmatprep.subr.mxu0 0.0
  %1157 = vmatpush2.xpose.msra.mxu0 0.0
  %1158 = vmatprep.subr.mxu0 0.0
  %1159 = vmatpush2.xpose.msra.mxu0 0.0
  %1160 = vmatprep.subr.mxu0 0.0
  %1161 = vmatpush2.xpose.msra.mxu0 0.0
  %1162 = vmatprep.subr.mxu0 0.0
  %1163 = vmatpush2.xpose.msra.mxu0 0.0
  %1164 = vmatprep.subr.mxu0 0.0
  %1165 = vmatpush2.xpose.msra.mxu0 0.0
  %1166 = vmatprep.subr.mxu0 0.0
  %1167 = vmatpush2.xpose.msra.mxu0 0.0
  %1168 = vmatprep.subr.mxu0 0.0
  %1169 = vmatpush2.xpose.msra.mxu0 0.0
  %1170 = vmatprep.subr.mxu0 0.0
  %1171 = vmatpush2.xpose.msra.mxu0 0.0
  %1172 = vmatprep.subr.mxu0 0.0
  %1173 = vmatpush2.xpose.msra.mxu0 0.0
  %1174 = vmatprep.subr.mxu0 0.0
  %1175 = vmatpush2.xpose.msra.mxu0 0.0
  %1176 = vmatprep.subr.mxu0 0.0
  %1177 = vmatpush2.xpose.msra.mxu0 0.0
  %1178 = vmatprep.subr.mxu0 0.0
  %1179 = vmatpush2.xpose.msra.mxu0 0.0
  %1180 = vmatprep.subr.mxu0 0.0
  %1181 = vmatpush2.xpose.msra.mxu0 0.0
  %1182 = vmatprep.subr.mxu0 0.0
  %1183 = vmatpush2.xpose.msra.mxu0 0.0
  %1184 = vmatprep.subr.mxu0 0.0
  %1185 = vmatpush2.xpose.msra.mxu0 0.0
  %1186 = vmatprep.subr.mxu0 0.0
  %1187 = vmatpush2.xpose.msra.mxu0 0.0
  %1188 = vmatprep.mubr.f32.mxu0 0.0
  %1189 = vmatmul.mubr.f32.gmra.mxu0 %v1120
  %v1190 = vpop.f32.mrf.mxu0
  %v1191 = vadd.f32 0.0, %v1190
  %v1192 = vpop.f32.mrf.mxu0
  %1193 = vdwg.mxu0
  %v1194 = vsel %vm110, %v1191, -inf
  %1195 = vmax.xlane.f32.xlu0 %v1194
  %v1196 = vpop.xlane.xlu0 %1195
  %v1197 = vsub.f32 %v1191, %v1196
  %v1198 = vmul.f32 %v1197, 1.442695
  %v1199 = vpow.pop %v1198
  %v1200 = vsel %vm110, %v1199, 0.0
  %1201 = vadd.xlane.f32.xlu0 %v1200
  %v1202 = vpop.xlane.xlu0 %1201
  %v1203 = vrcp.pop %v1202
  %v1204 = vmul.f32 %v1199, %v1203
  %1205 = vrot.lane.b32.xlu0 %v103, 48
  %v1206 = vpop.permute.xlu0 %1205
  %v1209 = vsel %vm110, %v1204, 0
  %1211 = vmatprep.subr.mxu0 0.0
  %1212 = vmatpush1.msra.mxu0 0.0
  %1213 = vmatprep.subr.mxu0 0.0
  %1214 = vmatpush1.msra.mxu0 0.0
  %1215 = vmatprep.subr.mxu0 0.0
  %1216 = vmatpush1.msra.mxu0 0.0
  %1217 = vmatprep.subr.mxu0 0.0
  %1218 = vmatpush1.msra.mxu0 0.0
  %1219 = vmatprep.subr.mxu0 0.0
  %1220 = vmatpush1.msra.mxu0 0.0
  %1221 = vmatprep.subr.mxu0 0.0
  %1222 = vmatpush1.msra.mxu0 0.0
  %1223 = vmatprep.subr.mxu0 0.0
  %1224 = vmatpush1.msra.mxu0 0.0
  %1225 = vmatprep.subr.mxu0 0.0
  %1226 = vmatpush1.msra.mxu0 0.0
  %1227 = vmatprep.subr.mxu0 0.0
  %1228 = vmatpush1.msra.mxu0 0.0
  %1229 = vmatprep.subr.mxu0 0.0
  %1230 = vmatpush1.msra.mxu0 0.0
  %1231 = vmatprep.subr.mxu0 0.0
  %1232 = vmatpush1.msra.mxu0 0.0
  %1233 = vmatprep.subr.mxu0 0.0
  %1234 = vmatpush1.msra.mxu0 0.0
  %1235 = vmatprep.subr.mxu0 0.0
  %1236 = vmatpush1.msra.mxu0 0.0
  %1237 = vmatprep.subr.mxu0 0.0
  %1238 = vmatpush1.msra.mxu0 0.0
  %1239 = vmatprep.subr.mxu0 0.0
  %1240 = vmatpush1.msra.mxu0 0.0
  %1241 = vmatprep.subr.mxu0 0.0
  %1242 = vmatpush1.msra.mxu0 %v1206
  %1243 = vmatprep.subr.mxu0 0.0
  %1244 = vmatpush2.msra.mxu0 0.0
  %1245 = vmatprep.subr.mxu0 0.0
  %1246 = vmatpush2.msra.mxu0 0.0
  %1247 = vmatprep.subr.mxu0 0.0
  %1248 = vmatpush2.msra.mxu0 0.0
  %1249 = vmatprep.subr.mxu0 0.0
  %1250 = vmatpush2.msra.mxu0 0.0
  %1251 = vmatprep.subr.mxu0 0.0
  %1252 = vmatpush2.msra.mxu0 0.0
  %1253 = vmatprep.subr.mxu0 0.0
  %1254 = vmatpush2.msra.mxu0 0.0
  %1255 = vmatprep.subr.mxu0 0.0
  %1256 = vmatpush2.msra.mxu0 0.0
  %1257 = vmatprep.subr.mxu0 0.0
  %1258 = vmatpush2.msra.mxu0 0.0
  %1259 = vmatprep.subr.mxu0 0.0
  %1260 = vmatpush2.msra.mxu0 0.0
  %1261 = vmatprep.subr.mxu0 0.0
  %1262 = vmatpush2.msra.mxu0 0.0
  %1263 = vmatprep.subr.mxu0 0.0
  %1264 = vmatpush2.msra.mxu0 0.0
  %1265 = vmatprep.subr.mxu0 0.0
  %1266 = vmatpush2.msra.mxu0 0.0
  %1267 = vmatprep.subr.mxu0 0.0
  %1268 = vmatpush2.msra.mxu0 0.0
  %1269 = vmatprep.subr.mxu0 0.0
  %1270 = vmatpush2.msra.mxu0 0.0
  %1271 = vmatprep.subr.mxu0 0.0
  %1272 = vmatpush2.msra.mxu0 0.0
  %1273 = vmatprep.subr.mxu0 0.0
  %1274 = vmatpush2.msra.mxu0 0.0
  %1275 = vmatprep.mubr.f32.mxu0 0.0
  %1276 = vmatmul.mubr.f32.gmra.mxu0 %v1209
  %v1277 = vpop.f32.mrf.mxu0
  %v1278 = vadd.f32 0.0, %v1277
  %v1279 = vpop.f32.mrf.mxu0
  %1280 = vdwg.mxu0
  %1281 = vrot.lane.b32.xlu0 %v785, 104
  %v1282 = vpop.permute.xlu0 %1281
  %1283 = vrot.lane.b32.xlu0 %v103, 72
  %v1284 = vpop.permute.xlu0 %1283
  %v1285 = vsel %vm110, %v1282, 0
  %v1287 = vsel %vm110, %v1284, 0
  %1289 = vmatprep.subr.mxu0 0.0
  %1290 = vmatpush1.xpose.msra.mxu0 0.0
  %1291 = vmatprep.subr.mxu0 0.0
  %1292 = vmatpush1.xpose.msra.mxu0 0.0
  %1293 = vmatprep.subr.mxu0 0.0
  %1294 = vmatpush1.xpose.msra.mxu0 0.0
  %1295 = vmatprep.subr.mxu0 0.0
  %1296 = vmatpush1.xpose.msra.mxu0 0.0
  %1297 = vmatprep.subr.mxu0 0.0
  %1298 = vmatpush1.xpose.msra.mxu0 0.0
  %1299 = vmatprep.subr.mxu0 0.0
  %1300 = vmatpush1.xpose.msra.mxu0 0.0
  %1301 = vmatprep.subr.mxu0 0.0
  %1302 = vmatpush1.xpose.msra.mxu0 0.0
  %1303 = vmatprep.subr.mxu0 0.0
  %1304 = vmatpush1.xpose.msra.mxu0 0.0
  %1305 = vmatprep.subr.mxu0 0.0
  %1306 = vmatpush1.xpose.msra.mxu0 0.0
  %1307 = vmatprep.subr.mxu0 0.0
  %1308 = vmatpush1.xpose.msra.mxu0 0.0
  %1309 = vmatprep.subr.mxu0 0.0
  %1310 = vmatpush1.xpose.msra.mxu0 0.0
  %1311 = vmatprep.subr.mxu0 0.0
  %1312 = vmatpush1.xpose.msra.mxu0 0.0
  %1313 = vmatprep.subr.mxu0 0.0
  %1314 = vmatpush1.xpose.msra.mxu0 0.0
  %1315 = vmatprep.subr.mxu0 0.0
  %1316 = vmatpush1.xpose.msra.mxu0 0.0
  %1317 = vmatprep.subr.mxu0 0.0
  %1318 = vmatpush1.xpose.msra.mxu0 0.0
  %1319 = vmatprep.subr.mxu0 0.0
  %1320 = vmatpush1.xpose.msra.mxu0 %v1287
  %1321 = vmatprep.subr.mxu0 0.0
  %1322 = vmatpush2.xpose.msra.mxu0 0.0
  %1323 = vmatprep.subr.mxu0 0.0
  %1324 = vmatpush2.xpose.msra.mxu0 0.0
  %1325 = vmatprep.subr.mxu0 0.0
  %1326 = vmatpush2.xpose.msra.mxu0 0.0
  %1327 = vmatprep.subr.mxu0 0.0
  %1328 = vmatpush2.xpose.msra.mxu0 0.0
  %1329 = vmatprep.subr.mxu0 0.0
  %1330 = vmatpush2.xpose.msra.mxu0 0.0
  %1331 = vmatprep.subr.mxu0 0.0
  %1332 = vmatpush2.xpose.msra.mxu0 0.0
  %1333 = vmatprep.subr.mxu0 0.0
  %1334 = vmatpush2.xpose.msra.mxu0 0.0
  %1335 = vmatprep.subr.mxu0 0.0
  %1336 = vmatpush2.xpose.msra.mxu0 0.0
  %1337 = vmatprep.subr.mxu0 0.0
  %1338 = vmatpush2.xpose.msra.mxu0 0.0
  %1339 = vmatprep.subr.mxu0 0.0
  %1340 = vmatpush2.xpose.msra.mxu0 0.0
  %1341 = vmatprep.subr.mxu0 0.0
  %1342 = vmatpush2.xpose.msra.mxu0 0.0
  %1343 = vmatprep.subr.mxu0 0.0
  %1344 = vmatpush2.xpose.msra.mxu0 0.0
  %1345 = vmatprep.subr.mxu0 0.0
  %1346 = vmatpush2.xpose.msra.mxu0 0.0
  %1347 = vmatprep.subr.mxu0 0.0
  %1348 = vmatpush2.xpose.msra.mxu0 0.0
  %1349 = vmatprep.subr.mxu0 0.0
  %1350 = vmatpush2.xpose.msra.mxu0 0.0
  %1351 = vmatprep.subr.mxu0 0.0
  %1352 = vmatpush2.xpose.msra.mxu0 0.0
  %1353 = vmatprep.mubr.f32.mxu0 0.0
  %1354 = vmatmul.mubr.f32.gmra.mxu0 %v1285
  %v1355 = vpop.f32.mrf.mxu0
  %v1356 = vadd.f32 0.0, %v1355
  %v1357 = vpop.f32.mrf.mxu0
  %1358 = vdwg.mxu0
  %v1359 = vsel %vm110, %v1356, -inf
  %1360 = vmax.xlane.f32.xlu0 %v1359
  %v1361 = vpop.xlane.xlu0 %1360
  %v1362 = vsub.f32 %v1356, %v1361
  %v1363 = vmul.f32 %v1362, 1.442695
  %v1364 = vpow.pop %v1363
  %v1365 = vsel %vm110, %v1364, 0.0
  %1366 = vadd.xlane.f32.xlu0 %v1365
  %v1367 = vpop.xlane.xlu0 %1366
  %v1368 = vrcp.pop %v1367
  %v1369 = vmul.f32 %v1364, %v1368
  %1370 = vrot.lane.b32.xlu0 %v103, 40
  %v1371 = vpop.permute.xlu0 %1370
  %v1374 = vsel %vm110, %v1369, 0
  %1376 = vmatprep.subr.mxu0 0.0
  %1377 = vmatpush1.msra.mxu0 0.0
  %1378 = vmatprep.subr.mxu0 0.0
  %1379 = vmatpush1.msra.mxu0 0.0
  %1380 = vmatprep.subr.mxu0 0.0
  %1381 = vmatpush1.msra.mxu0 0.0
  %1382 = vmatprep.subr.mxu0 0.0
  %1383 = vmatpush1.msra.mxu0 0.0
  %1384 = vmatprep.subr.mxu0 0.0
  %1385 = vmatpush1.msra.mxu0 0.0
  %1386 = vmatprep.subr.mxu0 0.0
  %1387 = vmatpush1.msra.mxu0 0.0
  %1388 = vmatprep.subr.mxu0 0.0
  %1389 = vmatpush1.msra.mxu0 0.0
  %1390 = vmatprep.subr.mxu0 0.0
  %1391 = vmatpush1.msra.mxu0 0.0
  %1392 = vmatprep.subr.mxu0 0.0
  %1393 = vmatpush1.msra.mxu0 0.0
  %1394 = vmatprep.subr.mxu0 0.0
  %1395 = vmatpush1.msra.mxu0 0.0
  %1396 = vmatprep.subr.mxu0 0.0
  %1397 = vmatpush1.msra.mxu0 0.0
  %1398 = vmatprep.subr.mxu0 0.0
  %1399 = vmatpush1.msra.mxu0 0.0
  %1400 = vmatprep.subr.mxu0 0.0
  %1401 = vmatpush1.msra.mxu0 0.0
  %1402 = vmatprep.subr.mxu0 0.0
  %1403 = vmatpush1.msra.mxu0 0.0
  %1404 = vmatprep.subr.mxu0 0.0
  %1405 = vmatpush1.msra.mxu0 0.0
  %1406 = vmatprep.subr.mxu0 0.0
  %1407 = vmatpush1.msra.mxu0 %v1371
  %1408 = vmatprep.subr.mxu0 0.0
  %1409 = vmatpush2.msra.mxu0 0.0
  %1410 = vmatprep.subr.mxu0 0.0
  %1411 = vmatpush2.msra.mxu0 0.0
  %1412 = vmatprep.subr.mxu0 0.0
  %1413 = vmatpush2.msra.mxu0 0.0
  %1414 = vmatprep.subr.mxu0 0.0
  %1415 = vmatpush2.msra.mxu0 0.0
  %1416 = vmatprep.subr.mxu0 0.0
  %1417 = vmatpush2.msra.mxu0 0.0
  %1418 = vmatprep.subr.mxu0 0.0
  %1419 = vmatpush2.msra.mxu0 0.0
  %1420 = vmatprep.subr.mxu0 0.0
  %1421 = vmatpush2.msra.mxu0 0.0
  %1422 = vmatprep.subr.mxu0 0.0
  %1423 = vmatpush2.msra.mxu0 0.0
  %1424 = vmatprep.subr.mxu0 0.0
  %1425 = vmatpush2.msra.mxu0 0.0
  %1426 = vmatprep.subr.mxu0 0.0
  %1427 = vmatpush2.msra.mxu0 0.0
  %1428 = vmatprep.subr.mxu0 0.0
  %1429 = vmatpush2.msra.mxu0 0.0
  %1430 = vmatprep.subr.mxu0 0.0
  %1431 = vmatpush2.msra.mxu0 0.0
  %1432 = vmatprep.subr.mxu0 0.0
  %1433 = vmatpush2.msra.mxu0 0.0
  %1434 = vmatprep.subr.mxu0 0.0
  %1435 = vmatpush2.msra.mxu0 0.0
  %1436 = vmatprep.subr.mxu0 0.0
  %1437 = vmatpush2.msra.mxu0 0.0
  %1438 = vmatprep.subr.mxu0 0.0
  %1439 = vmatpush2.msra.mxu0 0.0
  %1440 = vmatprep.mubr.f32.mxu0 0.0
  %1441 = vmatmul.mubr.f32.gmra.mxu0 %v1374
  %v1442 = vpop.f32.mrf.mxu0
  %v1443 = vadd.f32 0.0, %v1442
  %v1444 = vpop.f32.mrf.mxu0
  %1445 = vdwg.mxu0
  %1447 = vrot.lane.b32.xlu0 %v1113, 8
  %v1448 = vpop.permute.xlu0 %1447
  %1451 = vrot.lane.b32.xlu0 %v1278, 16
  %v1452 = vpop.permute.xlu0 %1451
  %1455 = vrot.lane.b32.xlu0 %v1443, 24
  %v1456 = vpop.permute.xlu0 %1455
  %v1458 = vsel %vm110, %v948, %v1448
  %v1459 = vsel %vm781, %v1458, %v1452
  %v1460 = vsel %vm783, %v1459, %v1456
  %v1461 = vld [vmem:[%s3] sm:$0xff]
  %v1462 = vld [vmem:[%s3 + $0x8] sm:$0xff]
  %v1463 = vld [vmem:[%s3 + $0x10] sm:$0xff]
  %v1464 = vld [vmem:[%s3 + $0x18] sm:$0xff]
  %v1465 = vpack.c.bf16 %v1460, %v784
  %v1466 = vpack.c.bf16 %v1462, %v1461
  %v1467 = vpack.c.bf16 %v1464, %v1463
  %v1468 = vld [vmem:[%s4] sm:$0x1]
  %v1470 = vlaneseq
  %v1471 = vshrl.u32 %v1470, 7
  %v1472 = vsub.s32 0, %v1471
  %v1473 = vrot.slane %v1468, %v1472
  %v1476 = vsel %vm61, %v1465, 0
  %1478 = vmatprep.subr.bf16.mxu0 0
  %1479 = vmatpush1.bf16.msra.mxu0 0
  %1480 = vmatprep.subr.bf16.mxu0 0
  %1481 = vmatpush1.bf16.msra.mxu0 0
  %1482 = vmatprep.subr.bf16.mxu0 0
  %1483 = vmatpush1.bf16.msra.mxu0 0
  %1484 = vmatprep.subr.bf16.mxu0 0
  %1485 = vmatpush1.bf16.msra.mxu0 0
  %1486 = vmatprep.subr.bf16.mxu0 0
  %1487 = vmatpush1.bf16.msra.mxu0 0
  %1488 = vmatprep.subr.bf16.mxu0 0
  %1489 = vmatpush1.bf16.msra.mxu0 0
  %1490 = vmatprep.subr.bf16.mxu0 0
  %1491 = vmatpush1.bf16.msra.mxu0 %v1467
  %1492 = vmatprep.subr.bf16.mxu0 0
  %1493 = vmatpush1.bf16.msra.mxu0 %v1466
  %1494 = vmatprep.subr.bf16.mxu0 0
  %1495 = vmatpush2.bf16.msra.mxu0 0
  %1496 = vmatprep.subr.bf16.mxu0 0
  %1497 = vmatpush2.bf16.msra.mxu0 0
  %1498 = vmatprep.subr.bf16.mxu0 0
  %1499 = vmatpush2.bf16.msra.mxu0 0
  %1500 = vmatprep.subr.bf16.mxu0 0
  %1501 = vmatpush2.bf16.msra.mxu0 0
  %1502 = vmatprep.subr.bf16.mxu0 0
  %1503 = vmatpush2.bf16.msra.mxu0 0
  %1504 = vmatprep.subr.bf16.mxu0 0
  %1505 = vmatpush2.bf16.msra.mxu0 0
  %1506 = vmatprep.subr.bf16.mxu0 0
  %1507 = vmatpush2.bf16.msra.mxu0 0
  %1508 = vmatprep.subr.bf16.mxu0 0
  %1509 = vmatpush2.bf16.msra.mxu0 0
  %1510 = vmatprep.mubr.bf16.mxu0 0
  %1511 = vmatmul.mubr.bf16.gmra.mxu0 %v1476
  %v1512 = vpop.f32.mrf.mxu0
  %v1513 = vadd.f32 %v1473, %v1512
  %v1514 = vpop.f32.mrf.mxu0
  %v1515 = vpop.f32.mrf.mxu0
  %v1516 = vadd.f32 %v1473, %v1515
  %v1517 = vpop.f32.mrf.mxu0
  %1518 = vdwg.mxu0
  %v1519 = vadd.f32 %v45, %v1513
  %v1520 = vadd.f32 %v46, %v1516
  %v1521 = vld [vmem:[%s5] sm:$0x1]
  %v1522 = vld [vmem:[%s6] sm:$0x1]
  %v1523 = vsel %vm61, %v1519, 0.0
  %1524 = vadd.xlane.f32.xlu0 %v1523
  %v1525 = vpop.xlane.xlu0 %1524
  %v1526 = vsel %vm61, %v1520, 0.0
  %1527 = vadd.xlane.f32.xlu0 %v1526
  %v1528 = vpop.xlane.xlu0 %1527
  %v1529 = vrcp.pop 32.0
  %v1530 = vmul.f32 %v1525, %v1529
  %v1531 = vmul.f32 %v1528, %v1529
  %v1532 = vsub.f32 %v1519, %v1530
  %v1533 = vsub.f32 %v1520, %v1531
  %v1534 = vmul.f32 %v1532, %v1532
  %v1535 = vmul.f32 %v1533, %v1533
  %v1536 = vsel %vm61, %v1534, 0.0
  %1537 = vadd.xlane.f32.xlu0 %v1536
  %v1538 = vpop.xlane.xlu0 %1537
  %v1539 = vsel %vm61, %v1535, 0.0
  %1540 = vadd.xlane.f32.xlu0 %v1539
  %v1541 = vpop.xlane.xlu0 %1540
  %v1542 = vmul.f32 %v1538, %v1529
  %v1543 = vmul.f32 %v1541, %v1529
  %v1544 = vadd.f32 %v1542, 1e-05
  %v1545 = vadd.f32 %v1543, 1e-05
  %v1546 = vrsqrt.pop %v1544
  %v1547 = vrsqrt.pop %v1545
  %v1548 = vmul.f32 %v1532, %v1546
  %v1549 = vmul.f32 %v1533, %v1547
  %v1551 = vlaneseq
  %v1552 = vshrl.u32 %v1551, 7
  %v1553 = vsub.s32 0, %v1552
  %v1554 = vrot.slane %v1521, %v1553
  %v1556 = vmul.f32 %v1548, %v1554
  %v1557 = vmul.f32 %v1549, %v1554
  %v1559 = vlaneseq
  %v1560 = vshrl.u32 %v1559, 7
  %v1561 = vsub.s32 0, %v1560
  %v1562 = vrot.slane %v1522, %v1561
  %v1564 = vadd.f32 %v1556, %v1562
  %v1565 = vadd.f32 %v1557, %v1562
  %v1566 = vld [vmem:[%s7] sm:$0xff]
  %v1567 = vld [vmem:[%s7 + $0x8] sm:$0xff]
  %v1568 = vld [vmem:[%s7 + $0x10] sm:$0xff]
  %v1569 = vld [vmem:[%s7 + $0x18] sm:$0xff]
  %v1570 = vpack.c.bf16 %v1565, %v1564
  %v1571 = vpack.c.bf16 %v1567, %v1566
  %v1572 = vpack.c.bf16 %v1569, %v1568
  %v1573 = vld [vmem:[%s8] sm:$0x1]
  %v1575 = vlaneseq
  %v1576 = vshrl.u32 %v1575, 7
  %v1577 = vsub.s32 0, %v1576
  %v1578 = vrot.slane %v1573, %v1577
  %v1581 = vsel %vm61, %v1570, 0
  %1583 = vmatprep.subr.bf16.mxu0 0
  %1584 = vmatpush1.bf16.msra.mxu0 0
  %1585 = vmatprep.subr.bf16.mxu0 0
  %1586 = vmatpush1.bf16.msra.mxu0 0
  %1587 = vmatprep.subr.bf16.mxu0 0
  %1588 = vmatpush1.bf16.msra.mxu0 0
  %1589 = vmatprep.subr.bf16.mxu0 0
  %1590 = vmatpush1.bf16.msra.mxu0 0
  %1591 = vmatprep.subr.bf16.mxu0 0
  %1592 = vmatpush1.bf16.msra.mxu0 0
  %1593 = vmatprep.subr.bf16.mxu0 0
  %1594 = vmatpush1.bf16.msra.mxu0 0
  %1595 = vmatprep.subr.bf16.mxu0 0
  %1596 = vmatpush1.bf16.msra.mxu0 %v1572
  %1597 = vmatprep.subr.bf16.mxu0 0
  %1598 = vmatpush1.bf16.msra.mxu0 %v1571
  %1599 = vmatprep.subr.bf16.mxu0 0
  %1600 = vmatpush2.bf16.msra.mxu0 0
  %1601 = vmatprep.subr.bf16.mxu0 0
  %1602 = vmatpush2.bf16.msra.mxu0 0
  %1603 = vmatprep.subr.bf16.mxu0 0
  %1604 = vmatpush2.bf16.msra.mxu0 0
  %1605 = vmatprep.subr.bf16.mxu0 0
  %1606 = vmatpush2.bf16.msra.mxu0 0
  %1607 = vmatprep.subr.bf16.mxu0 0
  %1608 = vmatpush2.bf16.msra.mxu0 0
  %1609 = vmatprep.subr.bf16.mxu0 0
  %1610 = vmatpush2.bf16.msra.mxu0 0
  %1611 = vmatprep.subr.bf16.mxu0 0
  %1612 = vmatpush2.bf16.msra.mxu0 0
  %1613 = vmatprep.subr.bf16.mxu0 0
  %1614 = vmatpush2.bf16.msra.mxu0 0
  %1615 = vmatprep.mubr.bf16.mxu0 0
  %1616 = vmatmul.mubr.bf16.gmra.mxu0 %v1581
  %v1617 = vpop.f32.mrf.mxu0
  %v1618 = vadd.f32 %v1578, %v1617
  %v1619 = vpop.f32.mrf.mxu0
  %v1620 = vpop.f32.mrf.mxu0
  %v1621 = vadd.f32 %v1578, %v1620
  %v1622 = vpop.f32.mrf.mxu0
  %1623 = vdwg.mxu0
  %v1624 = vmax.f32 %v1618, 0.0
  %v1625 = vmax.f32 %v1621, 0.0
  %v1626 = vld [vmem:[%s9] sm:$0xff]
  %v1627 = vld [vmem:[%s9 + $0x8] sm:$0xff]
  %v1628 = vld [vmem:[%s9 + $0x10] sm:$0xff]
  %v1629 = vld [vmem:[%s9 + $0x18] sm:$0xff]
  %v1630 = vld [vmem:[%s9 + $0x20] sm:$0xff]
  %v1631 = vld [vmem:[%s9 + $0x28] sm:$0xff]
  %v1632 = vld [vmem:[%s9 + $0x30] sm:$0xff]
  %v1633 = vld [vmem:[%s9 + $0x38] sm:$0xff]
  %v1634 = vpack.c.bf16 %v1625, %v1624
  %v1635 = vpack.c.bf16 %v1627, %v1626
  %v1636 = vpack.c.bf16 %v1629, %v1628
  %v1637 = vpack.c.bf16 %v1631, %v1630
  %v1638 = vpack.c.bf16 %v1633, %v1632
  %v1639 = vld [vmem:[%s10] sm:$0x1]
  %v1641 = vlaneseq
  %v1642 = vshrl.u32 %v1641, 7
  %v1643 = vsub.s32 0, %v1642
  %v1644 = vrot.slane %v1639, %v1643
  %vm1646 = vcmask 523264
  %v1648 = vsel %vm1646, %v1634, 0
  %1650 = vmatprep.subr.bf16.mxu0 0
  %1651 = vmatpush1.bf16.msra.mxu0 0
  %1652 = vmatprep.subr.bf16.mxu0 0
  %1653 = vmatpush1.bf16.msra.mxu0 0
  %1654 = vmatprep.subr.bf16.mxu0 0
  %1655 = vmatpush1.bf16.msra.mxu0 0
  %1656 = vmatprep.subr.bf16.mxu0 0
  %1657 = vmatpush1.bf16.msra.mxu0 0
  %1658 = vmatprep.subr.bf16.mxu0 0
  %1659 = vmatpush1.bf16.msra.mxu0 %v1638
  %1660 = vmatprep.subr.bf16.mxu0 0
  %1661 = vmatpush1.bf16.msra.mxu0 %v1637
  %1662 = vmatprep.subr.bf16.mxu0 0
  %1663 = vmatpush1.bf16.msra.mxu0 %v1636
  %1664 = vmatprep.subr.bf16.mxu0 0
  %1665 = vmatpush1.bf16.msra.mxu0 %v1635
  %1666 = vmatprep.subr.bf16.mxu0 0
  %1667 = vmatpush2.bf16.msra.mxu0 0
  %1668 = vmatprep.subr.bf16.mxu0 0
  %1669 = vmatpush2.bf16.msra.mxu0 0
  %1670 = vmatprep.subr.bf16.mxu0 0
  %1671 = vmatpush2.bf16.msra.mxu0 0
  %1672 = vmatprep.subr.bf16.mxu0 0
  %1673 = vmatpush2.bf16.msra.mxu0 0
  %1674 = vmatprep.subr.bf16.mxu0 0
  %1675 = vmatpush2.bf16.msra.mxu0 0
  %1676 = vmatprep.subr.bf16.mxu0 0
  %1677 = vmatpush2.bf16.msra.mxu0 0
  %1678 = vmatprep.subr.bf16.mxu0 0
  %1679 = vmatpush2.bf16.msra.mxu0 0
  %1680 = vmatprep.subr.bf16.mxu0 0
  %1681 = vmatpush2.bf16.msra.mxu0 0
  %1682 = vmatprep.mubr.bf16.mxu0 0
  %1683 = vmatmul.mubr.bf16.gmra.mxu0 %v1648
  %v1684 = vpop.f32.mrf.mxu0
  %v1685 = vadd.f32 %v1644, %v1684
  %v1686 = vpop.f32.mrf.mxu0
  %v1687 = vpop.f32.mrf.mxu0
  %v1688 = vadd.f32 %v1644, %v1687
  %v1689 = vpop.f32.mrf.mxu0
  %1690 = vdwg.mxu0
  %v1691 = vadd.f32 %v1564, %v1685
  %v1692 = vadd.f32 %v1565, %v1688
  %v1693 = vld [vmem:[%s11] sm:$0x1]
  %v1694 = vld [vmem:[%s12] sm:$0x1]
  %v1695 = vsel %vm61, %v1691, 0.0
  %1696 = vadd.xlane.f32.xlu0 %v1695
  %v1697 = vpop.xlane.xlu0 %1696
  %v1698 = vsel %vm61, %v1692, 0.0
  %1699 = vadd.xlane.f32.xlu0 %v1698
  %v1700 = vpop.xlane.xlu0 %1699
  %v1701 = vmul.f32 %v1697, %v1529
  %v1702 = vmul.f32 %v1700, %v1529
  %v1703 = vsub.f32 %v1691, %v1701
  %v1704 = vsub.f32 %v1692, %v1702
  %v1705 = vmul.f32 %v1703, %v1703
  %v1706 = vmul.f32 %v1704, %v1704
  %v1707 = vsel %vm61, %v1705, 0.0
  %1708 = vadd.xlane.f32.xlu0 %v1707
  %v1709 = vpop.xlane.xlu0 %1708
  %v1710 = vsel %vm61, %v1706, 0.0
  %1711 = vadd.xlane.f32.xlu0 %v1710
  %v1712 = vpop.xlane.xlu0 %1711
  %v1713 = vmul.f32 %v1709, %v1529
  %v1714 = vmul.f32 %v1712, %v1529
  %v1715 = vadd.f32 %v1713, 1e-05
  %v1716 = vadd.f32 %v1714, 1e-05
  %v1717 = vrsqrt.pop %v1715
  %v1718 = vrsqrt.pop %v1716
  %v1719 = vmul.f32 %v1703, %v1717
  %v1720 = vmul.f32 %v1704, %v1718
  %v1722 = vlaneseq
  %v1723 = vshrl.u32 %v1722, 7
  %v1724 = vsub.s32 0, %v1723
  %v1725 = vrot.slane %v1693, %v1724
  %v1727 = vmul.f32 %v1719, %v1725
  %v1728 = vmul.f32 %v1720, %v1725
  %v1730 = vlaneseq
  %v1731 = vshrl.u32 %v1730, 7
  %v1732 = vsub.s32 0, %v1731
  %v1733 = vrot.slane %v1694, %v1732
  %v1735 = vadd.f32 %v1727, %v1733
  %v1736 = vadd.f32 %v1728, %v1733
  %1737 = vst.msk [vmem:[%s13] sm:$0xff] %vm61, %v1735
  %1738 = vst.msk [vmem:[%s13 + $0x8] sm:$0xff] %vm61, %v1736
  // Predicated region
  $region54: #{_transformer_forward.4} parent=0 // pred_check
    _
  $region55: #{_transformer_forward.4} parent=0 // pred_check_branch
    %1740 = sbr.rel (0) target = $region57
  $region56: #{_transformer_forward.4} parent=0 // pred_region
    _
  $region57: #{_transformer_forward.4} parent=0 // pred_fallthru
    _
  // Predicated region
  $region58: #{_transformer_forward.4} parent=0 // pred_check
    _
  $region59: #{_transformer_forward.4} parent=0 // pred_check_branch
    %1742 = sbr.rel (0) target = $region61
  $region60: #{_transformer_forward.4} parent=0 // pred_region
    _
  $region61: #{_transformer_forward.4} parent=0 // pred_fallthru
    _

// kernel: closed_call.38
$region0: #{closed_call.38}
  #allocation0 [shape = 'u32[]', space=smem, size = 0x4, offset = 0x4, fixed_abs, tag = 'smem constant byte address 0x4 - core index']
  #allocation1 [shape = 'u32[144,128]{1,0:T(1,128)}', space=vmem, size = 0x12000, scoped, tag = 'internal scratch']
  %s0 = inlined_call_operand.vmem [shape: f32[8,32], index: 0, kind: input, shape index: {}]
  %s1 = inlined_call_operand.vmem [shape: f32[32,16], index: 1, kind: input, shape index: {}]
  %s2 = inlined_call_operand.vmem [shape: f32[1,16], index: 2, kind: input, shape index: {}]
  %s3 = inlined_call_operand.vmem [shape: f32[8,16], index: 3, kind: output, shape index: {}]
  %s4 = sld [smem:[#allocation0]]
  $region22: #{closed_call.38} parent=0
    _
  %s6 = ssub.s32 1, %s4
  %s7 = scalar_select 0, %s6, %s4
  // Predicated region
  $region2: #{closed_call.38} parent=0 // pred_check
    _
  $region3: #{closed_call.38} parent=0 // pred_check_branch
    %9 = sbr.rel (0) target = $region5
  $region4: #{closed_call.38} parent=0 // pred_region
    _
  $region5: #{closed_call.38} parent=0 // pred_fallthru
    _
  // Predicated region
  $region6: #{closed_call.38} parent=0 // pred_check
    _
  $region7: #{closed_call.38} parent=0 // pred_check_branch
    %11 = sbr.rel (0) target = $region9
  $region8: #{closed_call.38} parent=0 // pred_region
    _
  $region9: #{closed_call.38} parent=0 // pred_fallthru
    _
  // Predicated region
  $region10: #{closed_call.38} parent=0 // pred_check
    _
  $region11: #{closed_call.38} parent=0 // pred_check_branch
    %13 = sbr.rel (0) target = $region13
  $region12: #{closed_call.38} parent=0 // pred_region
    _
  $region13: #{closed_call.38} parent=0 // pred_fallthru
    _
  %v15 = vld [vmem:[%s0] sm:$0xff]
  %v16 = vld [vmem:[%s1] sm:$0xff]
  %v17 = vld [vmem:[%s1 + $0x8] sm:$0xff]
  %v18 = vld [vmem:[%s1 + $0x10] sm:$0xff]
  %v19 = vld [vmem:[%s1 + $0x18] sm:$0xff]
  %v20 = vpack.c.bf16 %v15, %v15
  %v21 = vpack.c.bf16 %v17, %v16
  %v22 = vpack.c.bf16 %v19, %v18
  %v23 = vld [vmem:[%s2] sm:$0x1]
  %v25 = vlaneseq
  %v26 = vshrl.u32 %v25, 7
  %v27 = vsub.s32 0, %v26
  %v28 = vrot.slane %v23, %v27
  %vm30 = vcmask 261120
  %v32 = vsel %vm30, %v20, 0
  %34 = vmatprep.subr.bf16.mxu0 0
  %35 = vmatpush1.bf16.msra.mxu0 0
  %36 = vmatprep.subr.bf16.mxu0 0
  %37 = vmatpush1.bf16.msra.mxu0 0
  %38 = vmatprep.subr.bf16.mxu0 0
  %39 = vmatpush1.bf16.msra.mxu0 0
  %40 = vmatprep.subr.bf16.mxu0 0
  %41 = vmatpush1.bf16.msra.mxu0 0
  %42 = vmatprep.subr.bf16.mxu0 0
  %43 = vmatpush1.bf16.msra.mxu0 0
  %44 = vmatprep.subr.bf16.mxu0 0
  %45 = vmatpush1.bf16.msra.mxu0 0
  %46 = vmatprep.subr.bf16.mxu0 0
  %47 = vmatpush1.bf16.msra.mxu0 %v22
  %48 = vmatprep.subr.bf16.mxu0 0
  %49 = vmatpush1.bf16.msra.mxu0 %v21
  %50 = vmatprep.subr.bf16.mxu0 0
  %51 = vmatpush2.bf16.msra.mxu0 0
  %52 = vmatprep.subr.bf16.mxu0 0
  %53 = vmatpush2.bf16.msra.mxu0 0
  %54 = vmatprep.subr.bf16.mxu0 0
  %55 = vmatpush2.bf16.msra.mxu0 0
  %56 = vmatprep.subr.bf16.mxu0 0
  %57 = vmatpush2.bf16.msra.mxu0 0
  %58 = vmatprep.subr.bf16.mxu0 0
  %59 = vmatpush2.bf16.msra.mxu0 0
  %60 = vmatprep.subr.bf16.mxu0 0
  %61 = vmatpush2.bf16.msra.mxu0 0
  %62 = vmatprep.subr.bf16.mxu0 0
  %63 = vmatpush2.bf16.msra.mxu0 0
  %64 = vmatprep.subr.bf16.mxu0 0
  %65 = vmatpush2.bf16.msra.mxu0 0
  %66 = vmatprep.mubr.bf16.mxu0 0
  %67 = vmatmul.mubr.bf16.gmra.mxu0 %v32
  %v68 = vpop.f32.mrf.mxu0
  %v69 = vadd.f32 %v28, %v68
  %v70 = vpop.f32.mrf.mxu0
  %v71 = vpop.f32.mrf.mxu0
  %v72 = vpop.f32.mrf.mxu0
  %73 = vdwg.mxu0
  %vm74 = vcmask 130048
  %75 = vst.msk [vmem:[%s3] sm:$0xff] %vm74, %v69
  // Predicated region
  $region14: #{closed_call.38} parent=0 // pred_check
    _
  $region15: #{closed_call.38} parent=0 // pred_check_branch
    %77 = sbr.rel (0) target = $region17
  $region16: #{closed_call.38} parent=0 // pred_region
    _
  $region17: #{closed_call.38} parent=0 // pred_fallthru
    _
  // Predicated region
  $region18: #{closed_call.38} parent=0 // pred_check
    _
  $region19: #{closed_call.38} parent=0 // pred_check_branch
    %79 = sbr.rel (0) target = $region21
  $region20: #{closed_call.38} parent=0 // pred_region
    _
  $region21: #{closed_call.38} parent=0 // pred_fallthru
    _

// kernel: closed_call.36
$region0: #{closed_call.36}
  #allocation0 [shape = 'u32[]', space=smem, size = 0x4, offset = 0x4, fixed_abs, tag = 'smem constant byte address 0x4 - core index']
  #allocation1 [shape = 'u32[144,128]{1,0:T(1,128)}', space=vmem, size = 0x12000, scoped, tag = 'internal scratch']
  %s0 = inlined_call_operand.vmem [shape: f32[8,32], index: 0, kind: input, shape index: {}]
  %s1 = inlined_call_operand.vmem [shape: f32[16,64], index: 1, kind: input, shape index: {}]
  %s2 = inlined_call_operand.vmem [shape: f32[1,4], index: 2, kind: input, shape index: {}]
  %s3 = inlined_call_operand.vmem [shape: f32[32,96], index: 3, kind: input, shape index: {}]
  %s4 = inlined_call_operand.vmem [shape: f32[1,96], index: 4, kind: input, shape index: {}]
  %s5 = inlined_call_operand.vmem [shape: f32[32,32], index: 5, kind: input, shape index: {}]
  %s6 = inlined_call_operand.vmem [shape: f32[1,32], index: 6, kind: input, shape index: {}]
  %s7 = inlined_call_operand.vmem [shape: f32[1,32], index: 7, kind: input, shape index: {}]
  %s8 = inlined_call_operand.vmem [shape: f32[1,32], index: 8, kind: input, shape index: {}]
  %s9 = inlined_call_operand.vmem [shape: f32[32,32], index: 9, kind: input, shape index: {}]
  %s10 = inlined_call_operand.vmem [shape: f32[1,32], index: 10, kind: input, shape index: {}]
  %s11 = inlined_call_operand.vmem [shape: f32[32,32], index: 11, kind: input, shape index: {}]
  %s12 = inlined_call_operand.vmem [shape: f32[1,32], index: 12, kind: input, shape index: {}]
  %s13 = inlined_call_operand.vmem [shape: f32[1,32], index: 13, kind: input, shape index: {}]
  %s14 = inlined_call_operand.vmem [shape: f32[1,32], index: 14, kind: input, shape index: {}]
  %s15 = inlined_call_operand.vmem [shape: f32[32,64], index: 15, kind: input, shape index: {}]
  %s16 = inlined_call_operand.vmem [shape: f32[1,64], index: 16, kind: input, shape index: {}]
  %s17 = inlined_call_operand.vmem [shape: f32[64,32], index: 17, kind: input, shape index: {}]
  %s18 = inlined_call_operand.vmem [shape: f32[1,32], index: 18, kind: input, shape index: {}]
  %s19 = inlined_call_operand.vmem [shape: f32[1,32], index: 19, kind: input, shape index: {}]
  %s20 = inlined_call_operand.vmem [shape: f32[1,32], index: 20, kind: input, shape index: {}]
  %s21 = inlined_call_operand.vmem [shape: f32[8,32], index: 21, kind: output, shape index: {}]
  %s22 = sld [smem:[#allocation0]]
  $region94: #{closed_call.36} parent=0
    _
  %s24 = ssub.s32 1, %s22
  %s25 = scalar_select 0, %s24, %s22
  // Predicated region
  $region2: #{closed_call.36} parent=0 // pred_check
    _
  $region3: #{closed_call.36} parent=0 // pred_check_branch
    %27 = sbr.rel (0) target = $region5
  $region4: #{closed_call.36} parent=0 // pred_region
    _
  $region5: #{closed_call.36} parent=0 // pred_fallthru
    _
  // Predicated region
  $region6: #{closed_call.36} parent=0 // pred_check
    _
  $region7: #{closed_call.36} parent=0 // pred_check_branch
    %29 = sbr.rel (0) target = $region9
  $region8: #{closed_call.36} parent=0 // pred_region
    _
  $region9: #{closed_call.36} parent=0 // pred_fallthru
    _
  // Predicated region
  $region10: #{closed_call.36} parent=0 // pred_check
    _
  $region11: #{closed_call.36} parent=0 // pred_check_branch
    %31 = sbr.rel (0) target = $region13
  $region12: #{closed_call.36} parent=0 // pred_region
    _
  $region13: #{closed_call.36} parent=0 // pred_fallthru
    _
  // Predicated region
  $region14: #{closed_call.36} parent=0 // pred_check
    _
  $region15: #{closed_call.36} parent=0 // pred_check_branch
    %33 = sbr.rel (0) target = $region17
  $region16: #{closed_call.36} parent=0 // pred_region
    _
  $region17: #{closed_call.36} parent=0 // pred_fallthru
    _
  // Predicated region
  $region18: #{closed_call.36} parent=0 // pred_check
    _
  $region19: #{closed_call.36} parent=0 // pred_check_branch
    %35 = sbr.rel (0) target = $region21
  $region20: #{closed_call.36} parent=0 // pred_region
    _
  $region21: #{closed_call.36} parent=0 // pred_fallthru
    _
  // Predicated region
  $region22: #{closed_call.36} parent=0 // pred_check
    _
  $region23: #{closed_call.36} parent=0 // pred_check_branch
    %37 = sbr.rel (0) target = $region25
  $region24: #{closed_call.36} parent=0 // pred_region
    _
  $region25: #{closed_call.36} parent=0 // pred_fallthru
    _
  // Predicated region
  $region26: #{closed_call.36} parent=0 // pred_check
    _
  $region27: #{closed_call.36} parent=0 // pred_check_branch
    %39 = sbr.rel (0) target = $region29
  $region28: #{closed_call.36} parent=0 // pred_region
    _
  $region29: #{closed_call.36} parent=0 // pred_fallthru
    _
  // Predicated region
  $region30: #{closed_call.36} parent=0 // pred_check
    _
  $region31: #{closed_call.36} parent=0 // pred_check_branch
    %41 = sbr.rel (0) target = $region33
  $region32: #{closed_call.36} parent=0 // pred_region
    _
  $region33: #{closed_call.36} parent=0 // pred_fallthru
    _
  // Predicated region
  $region34: #{closed_call.36} parent=0 // pred_check
    _
  $region35: #{closed_call.36} parent=0 // pred_check_branch
    %43 = sbr.rel (0) target = $region37
  $region36: #{closed_call.36} parent=0 // pred_region
    _
  $region37: #{closed_call.36} parent=0 // pred_fallthru
    _
  // Predicated region
  $region38: #{closed_call.36} parent=0 // pred_check
    _
  $region39: #{closed_call.36} parent=0 // pred_check_branch
    %45 = sbr.rel (0) target = $region41
  $region40: #{closed_call.36} parent=0 // pred_region
    _
  $region41: #{closed_call.36} parent=0 // pred_fallthru
    _
  // Predicated region
  $region42: #{closed_call.36} parent=0 // pred_check
    _
  $region43: #{closed_call.36} parent=0 // pred_check_branch
    %47 = sbr.rel (0) target = $region45
  $region44: #{closed_call.36} parent=0 // pred_region
    _
  $region45: #{closed_call.36} parent=0 // pred_fallthru
    _
  // Predicated region
  $region46: #{closed_call.36} parent=0 // pred_check
    _
  $region47: #{closed_call.36} parent=0 // pred_check_branch
    %49 = sbr.rel (0) target = $region49
  $region48: #{closed_call.36} parent=0 // pred_region
    _
  $region49: #{closed_call.36} parent=0 // pred_fallthru
    _
  // Predicated region
  $region50: #{closed_call.36} parent=0 // pred_check
    _
  $region51: #{closed_call.36} parent=0 // pred_check_branch
    %51 = sbr.rel (0) target = $region53
  $region52: #{closed_call.36} parent=0 // pred_region
    _
  $region53: #{closed_call.36} parent=0 // pred_fallthru
    _
  // Predicated region
  $region54: #{closed_call.36} parent=0 // pred_check
    _
  $region55: #{closed_call.36} parent=0 // pred_check_branch
    %53 = sbr.rel (0) target = $region57
  $region56: #{closed_call.36} parent=0 // pred_region
    _
  $region57: #{closed_call.36} parent=0 // pred_fallthru
    _
  // Predicated region
  $region58: #{closed_call.36} parent=0 // pred_check
    _
  $region59: #{closed_call.36} parent=0 // pred_check_branch
    %55 = sbr.rel (0) target = $region61
  $region60: #{closed_call.36} parent=0 // pred_region
    _
  $region61: #{closed_call.36} parent=0 // pred_fallthru
    _
  // Predicated region
  $region62: #{closed_call.36} parent=0 // pred_check
    _
  $region63: #{closed_call.36} parent=0 // pred_check_branch
    %57 = sbr.rel (0) target = $region65
  $region64: #{closed_call.36} parent=0 // pred_region
    _
  $region65: #{closed_call.36} parent=0 // pred_fallthru
    _
  // Predicated region
  $region66: #{closed_call.36} parent=0 // pred_check
    _
  $region67: #{closed_call.36} parent=0 // pred_check_branch
    %59 = sbr.rel (0) target = $region69
  $region68: #{closed_call.36} parent=0 // pred_region
    _
  $region69: #{closed_call.36} parent=0 // pred_fallthru
    _
  // Predicated region
  $region70: #{closed_call.36} parent=0 // pred_check
    _
  $region71: #{closed_call.36} parent=0 // pred_check_branch
    %61 = sbr.rel (0) target = $region73
  $region72: #{closed_call.36} parent=0 // pred_region
    _
  $region73: #{closed_call.36} parent=0 // pred_fallthru
    _
  // Predicated region
  $region74: #{closed_call.36} parent=0 // pred_check
    _
  $region75: #{closed_call.36} parent=0 // pred_check_branch
    %63 = sbr.rel (0) target = $region77
  $region76: #{closed_call.36} parent=0 // pred_region
    _
  $region77: #{closed_call.36} parent=0 // pred_fallthru
    _
  // Predicated region
  $region78: #{closed_call.36} parent=0 // pred_check
    _
  $region79: #{closed_call.36} parent=0 // pred_check_branch
    %65 = sbr.rel (0) target = $region81
  $region80: #{closed_call.36} parent=0 // pred_region
    _
  $region81: #{closed_call.36} parent=0 // pred_fallthru
    _
  // Predicated region
  $region82: #{closed_call.36} parent=0 // pred_check
    _
  $region83: #{closed_call.36} parent=0 // pred_check_branch
    %67 = sbr.rel (0) target = $region85
  $region84: #{closed_call.36} parent=0 // pred_region
    _
  $region85: #{closed_call.36} parent=0 // pred_fallthru
    _
  %v69 = vld [vmem:[%s0] sm:$0xff]
  %v70 = vld [vmem:[%s3] sm:$0xff]
  %v71 = vld [vmem:[%s3 + $0x8] sm:$0xff]
  %v72 = vld [vmem:[%s3 + $0x10] sm:$0xff]
  %v73 = vld [vmem:[%s3 + $0x18] sm:$0xff]
  %v74 = vpack.c.bf16 %v69, %v69
  %v75 = vpack.c.bf16 %v71, %v70
  %v76 = vpack.c.bf16 %v73, %v72
  %v77 = vld [vmem:[%s4] sm:$0x1]
  %v79 = vlaneseq
  %v80 = vshrl.u32 %v79, 7
  %v81 = vsub.s32 0, %v80
  %v82 = vrot.slane %v77, %v81
  %vm84 = vcmask 261120
  %v86 = vsel %vm84, %v74, 0
  %88 = vmatprep.subr.bf16.mxu0 0
  %89 = vmatpush1.bf16.msra.mxu0 0
  %90 = vmatprep.subr.bf16.mxu0 0
  %91 = vmatpush1.bf16.msra.mxu0 0
  %92 = vmatprep.subr.bf16.mxu0 0
  %93 = vmatpush1.bf16.msra.mxu0 0
  %94 = vmatprep.subr.bf16.mxu0 0
  %95 = vmatpush1.bf16.msra.mxu0 0
  %96 = vmatprep.subr.bf16.mxu0 0
  %97 = vmatpush1.bf16.msra.mxu0 0
  %98 = vmatprep.subr.bf16.mxu0 0
  %99 = vmatpush1.bf16.msra.mxu0 0
  %100 = vmatprep.subr.bf16.mxu0 0
  %101 = vmatpush1.bf16.msra.mxu0 %v76
  %102 = vmatprep.subr.bf16.mxu0 0
  %103 = vmatpush1.bf16.msra.mxu0 %v75
  %104 = vmatprep.subr.bf16.mxu0 0
  %105 = vmatpush2.bf16.msra.mxu0 0
  %106 = vmatprep.subr.bf16.mxu0 0
  %107 = vmatpush2.bf16.msra.mxu0 0
  %108 = vmatprep.subr.bf16.mxu0 0
  %109 = vmatpush2.bf16.msra.mxu0 0
  %110 = vmatprep.subr.bf16.mxu0 0
  %111 = vmatpush2.bf16.msra.mxu0 0
  %112 = vmatprep.subr.bf16.mxu0 0
  %113 = vmatpush2.bf16.msra.mxu0 0
  %114 = vmatprep.subr.bf16.mxu0 0
  %115 = vmatpush2.bf16.msra.mxu0 0
  %116 = vmatprep.subr.bf16.mxu0 0
  %117 = vmatpush2.bf16.msra.mxu0 0
  %118 = vmatprep.subr.bf16.mxu0 0
  %119 = vmatpush2.bf16.msra.mxu0 0
  %120 = vmatprep.mubr.bf16.mxu0 0
  %121 = vmatmul.mubr.bf16.gmra.mxu0 %v86
  %v122 = vpop.f32.mrf.mxu0
  %v123 = vadd.f32 %v82, %v122
  %v124 = vpop.f32.mrf.mxu0
  %v125 = vpop.f32.mrf.mxu0
  %v126 = vpop.f32.mrf.mxu0
  %127 = vdwg.mxu0
  %v128 = vld [vmem:[%s2] sm:$0x1]
  %v129 = vmul.f32 %v123, 0.35355338
  %v131 = vlaneseq
  %v132 = vshrl.u32 %v131, 7
  %v133 = vsub.s32 0, %v132
  %v134 = vrot.slane %v128, %v133
  %137 = vrot.lane.b32.xlu0 %v123, 96
  %v138 = vpop.permute.xlu0 %137
  %vm139 = vcmask 64512
  %v141 = vsel %vm139, %v129, 0
  %v143 = vsel %vm139, %v138, 0
  %145 = vmatprep.subr.mxu0 0.0
  %146 = vmatpush1.xpose.msra.mxu0 0.0
  %147 = vmatprep.subr.mxu0 0.0
  %148 = vmatpush1.xpose.msra.mxu0 0.0
  %149 = vmatprep.subr.mxu0 0.0
  %150 = vmatpush1.xpose.msra.mxu0 0.0
  %151 = vmatprep.subr.mxu0 0.0
  %152 = vmatpush1.xpose.msra.mxu0 0.0
  %153 = vmatprep.subr.mxu0 0.0
  %154 = vmatpush1.xpose.msra.mxu0 0.0
  %155 = vmatprep.subr.mxu0 0.0
  %156 = vmatpush1.xpose.msra.mxu0 0.0
  %157 = vmatprep.subr.mxu0 0.0
  %158 = vmatpush1.xpose.msra.mxu0 0.0
  %159 = vmatprep.subr.mxu0 0.0
  %160 = vmatpush1.xpose.msra.mxu0 0.0
  %161 = vmatprep.subr.mxu0 0.0
  %162 = vmatpush1.xpose.msra.mxu0 0.0
  %163 = vmatprep.subr.mxu0 0.0
  %164 = vmatpush1.xpose.msra.mxu0 0.0
  %165 = vmatprep.subr.mxu0 0.0
  %166 = vmatpush1.xpose.msra.mxu0 0.0
  %167 = vmatprep.subr.mxu0 0.0
  %168 = vmatpush1.xpose.msra.mxu0 0.0
  %169 = vmatprep.subr.mxu0 0.0
  %170 = vmatpush1.xpose.msra.mxu0 0.0
  %171 = vmatprep.subr.mxu0 0.0
  %172 = vmatpush1.xpose.msra.mxu0 0.0
  %173 = vmatprep.subr.mxu0 0.0
  %174 = vmatpush1.xpose.msra.mxu0 0.0
  %175 = vmatprep.subr.mxu0 0.0
  %176 = vmatpush1.xpose.msra.mxu0 %v143
  %177 = vmatprep.subr.mxu0 0.0
  %178 = vmatpush2.xpose.msra.mxu0 0.0
  %179 = vmatprep.subr.mxu0 0.0
  %180 = vmatpush2.xpose.msra.mxu0 0.0
  %181 = vmatprep.subr.mxu0 0.0
  %182 = vmatpush2.xpose.msra.mxu0 0.0
  %183 = vmatprep.subr.mxu0 0.0
  %184 = vmatpush2.xpose.msra.mxu0 0.0
  %185 = vmatprep.subr.mxu0 0.0
  %186 = vmatpush2.xpose.msra.mxu0 0.0
  %187 = vmatprep.subr.mxu0 0.0
  %188 = vmatpush2.xpose.msra.mxu0 0.0
  %189 = vmatprep.subr.mxu0 0.0
  %190 = vmatpush2.xpose.msra.mxu0 0.0
  %191 = vmatprep.subr.mxu0 0.0
  %192 = vmatpush2.xpose.msra.mxu0 0.0
  %193 = vmatprep.subr.mxu0 0.0
  %194 = vmatpush2.xpose.msra.mxu0 0.0
  %195 = vmatprep.subr.mxu0 0.0
  %196 = vmatpush2.xpose.msra.mxu0 0.0
  %197 = vmatprep.subr.mxu0 0.0
  %198 = vmatpush2.xpose.msra.mxu0 0.0
  %199 = vmatprep.subr.mxu0 0.0
  %200 = vmatpush2.xpose.msra.mxu0 0.0
  %201 = vmatprep.subr.mxu0 0.0
  %202 = vmatpush2.xpose.msra.mxu0 0.0
  %203 = vmatprep.subr.mxu0 0.0
  %204 = vmatpush2.xpose.msra.mxu0 0.0
  %205 = vmatprep.subr.mxu0 0.0
  %206 = vmatpush2.xpose.msra.mxu0 0.0
  %207 = vmatprep.subr.mxu0 0.0
  %208 = vmatpush2.xpose.msra.mxu0 0.0
  %209 = vmatprep.mubr.f32.mxu0 0.0
  %210 = vmatmul.mubr.f32.gmra.mxu0 %v141
  %v211 = vpop.f32.mrf.mxu0
  %v212 = vadd.f32 %v134, %v211
  %v213 = vpop.f32.mrf.mxu0
  %214 = vdwg.mxu0
  %vm215 = vcmask 27648
  %v216 = vsel %vm215, %v212, -inf
  %217 = vmax.xlane.f32.xlu0 %v216
  %v218 = vpop.xlane.xlu0 %217
  %v219 = vsub.f32 %v212, %v218
  %v220 = vmul.f32 %v219, 1.442695
  %v221 = vpow.pop %v220
  %v222 = vsel %vm215, %v221, 0.0
  %223 = vadd.xlane.f32.xlu0 %v222
  %v224 = vpop.xlane.xlu0 %223
  %v225 = vrcp.pop %v224
  %v226 = vmul.f32 %v221, %v225
  %227 = vrot.lane.b32.xlu0 %v123, 64
  %v228 = vpop.permute.xlu0 %227
  %vm229 = vcmask 31744
  %v231 = vsel %vm229, %v226, 0
  %vm233 = vcmask 1043456
  %v234 = vsel %vm233, %v228, 0
  %236 = vmatprep.subr.mxu0 0.0
  %237 = vmatpush1.msra.mxu0 0.0
  %238 = vmatprep.subr.mxu0 0.0
  %239 = vmatpush1.msra.mxu0 0.0
  %240 = vmatprep.subr.mxu0 0.0
  %241 = vmatpush1.msra.mxu0 0.0
  %242 = vmatprep.subr.mxu0 0.0
  %243 = vmatpush1.msra.mxu0 0.0
  %244 = vmatprep.subr.mxu0 0.0
  %245 = vmatpush1.msra.mxu0 0.0
  %246 = vmatprep.subr.mxu0 0.0
  %247 = vmatpush1.msra.mxu0 0.0
  %248 = vmatprep.subr.mxu0 0.0
  %249 = vmatpush1.msra.mxu0 0.0
  %250 = vmatprep.subr.mxu0 0.0
  %251 = vmatpush1.msra.mxu0 0.0
  %252 = vmatprep.subr.mxu0 0.0
  %253 = vmatpush1.msra.mxu0 0.0
  %254 = vmatprep.subr.mxu0 0.0
  %255 = vmatpush1.msra.mxu0 0.0
  %256 = vmatprep.subr.mxu0 0.0
  %257 = vmatpush1.msra.mxu0 0.0
  %258 = vmatprep.subr.mxu0 0.0
  %259 = vmatpush1.msra.mxu0 0.0
  %260 = vmatprep.subr.mxu0 0.0
  %261 = vmatpush1.msra.mxu0 0.0
  %262 = vmatprep.subr.mxu0 0.0
  %263 = vmatpush1.msra.mxu0 0.0
  %264 = vmatprep.subr.mxu0 0.0
  %265 = vmatpush1.msra.mxu0 0.0
  %266 = vmatprep.subr.mxu0 0.0
  %267 = vmatpush1.msra.mxu0 %v234
  %268 = vmatprep.subr.mxu0 0.0
  %269 = vmatpush2.msra.mxu0 0.0
  %270 = vmatprep.subr.mxu0 0.0
  %271 = vmatpush2.msra.mxu0 0.0
  %272 = vmatprep.subr.mxu0 0.0
  %273 = vmatpush2.msra.mxu0 0.0
  %274 = vmatprep.subr.mxu0 0.0
  %275 = vmatpush2.msra.mxu0 0.0
  %276 = vmatprep.subr.mxu0 0.0
  %277 = vmatpush2.msra.mxu0 0.0
  %278 = vmatprep.subr.mxu0 0.0
  %279 = vmatpush2.msra.mxu0 0.0
  %280 = vmatprep.subr.mxu0 0.0
  %281 = vmatpush2.msra.mxu0 0.0
  %282 = vmatprep.subr.mxu0 0.0
  %283 = vmatpush2.msra.mxu0 0.0
  %284 = vmatprep.subr.mxu0 0.0
  %285 = vmatpush2.msra.mxu0 0.0
  %286 = vmatprep.subr.mxu0 0.0
  %287 = vmatpush2.msra.mxu0 0.0
  %288 = vmatprep.subr.mxu0 0.0
  %289 = vmatpush2.msra.mxu0 0.0
  %290 = vmatprep.subr.mxu0 0.0
  %291 = vmatpush2.msra.mxu0 0.0
  %292 = vmatprep.subr.mxu0 0.0
  %293 = vmatpush2.msra.mxu0 0.0
  %294 = vmatprep.subr.mxu0 0.0
  %295 = vmatpush2.msra.mxu0 0.0
  %296 = vmatprep.subr.mxu0 0.0
  %297 = vmatpush2.msra.mxu0 0.0
  %298 = vmatprep.subr.mxu0 0.0
  %299 = vmatpush2.msra.mxu0 0.0
  %300 = vmatprep.mubr.f32.mxu0 0.0
  %301 = vmatmul.mubr.f32.gmra.mxu0 %v231
  %v302 = vpop.f32.mrf.mxu0
  %v303 = vadd.f32 0.0, %v302
  %v304 = vpop.f32.mrf.mxu0
  %305 = vdwg.mxu0
  %306 = vrot.lane.b32.xlu0 %v129, 120
  %v307 = vpop.permute.xlu0 %306
  %308 = vrot.lane.b32.xlu0 %v123, 88
  %v309 = vpop.permute.xlu0 %308
  %v310 = vsel %vm139, %v307, 0
  %v312 = vsel %vm139, %v309, 0
  %314 = vmatprep.subr.mxu0 0.0
  %315 = vmatpush1.xpose.msra.mxu0 0.0
  %316 = vmatprep.subr.mxu0 0.0
  %317 = vmatpush1.xpose.msra.mxu0 0.0
  %318 = vmatprep.subr.mxu0 0.0
  %319 = vmatpush1.xpose.msra.mxu0 0.0
  %320 = vmatprep.subr.mxu0 0.0
  %321 = vmatpush1.xpose.msra.mxu0 0.0
  %322 = vmatprep.subr.mxu0 0.0
  %323 = vmatpush1.xpose.msra.mxu0 0.0
  %324 = vmatprep.subr.mxu0 0.0
  %325 = vmatpush1.xpose.msra.mxu0 0.0
  %326 = vmatprep.subr.mxu0 0.0
  %327 = vmatpush1.xpose.msra.mxu0 0.0
  %328 = vmatprep.subr.mxu0 0.0
  %329 = vmatpush1.xpose.msra.mxu0 0.0
  %330 = vmatprep.subr.mxu0 0.0
  %331 = vmatpush1.xpose.msra.mxu0 0.0
  %332 = vmatprep.subr.mxu0 0.0
  %333 = vmatpush1.xpose.msra.mxu0 0.0
  %334 = vmatprep.subr.mxu0 0.0
  %335 = vmatpush1.xpose.msra.mxu0 0.0
  %336 = vmatprep.subr.mxu0 0.0
  %337 = vmatpush1.xpose.msra.mxu0 0.0
  %338 = vmatprep.subr.mxu0 0.0
  %339 = vmatpush1.xpose.msra.mxu0 0.0
  %340 = vmatprep.subr.mxu0 0.0
  %341 = vmatpush1.xpose.msra.mxu0 0.0
  %342 = vmatprep.subr.mxu0 0.0
  %343 = vmatpush1.xpose.msra.mxu0 0.0
  %344 = vmatprep.subr.mxu0 0.0
  %345 = vmatpush1.xpose.msra.mxu0 %v312
  %346 = vmatprep.subr.mxu0 0.0
  %347 = vmatpush2.xpose.msra.mxu0 0.0
  %348 = vmatprep.subr.mxu0 0.0
  %349 = vmatpush2.xpose.msra.mxu0 0.0
  %350 = vmatprep.subr.mxu0 0.0
  %351 = vmatpush2.xpose.msra.mxu0 0.0
  %352 = vmatprep.subr.mxu0 0.0
  %353 = vmatpush2.xpose.msra.mxu0 0.0
  %354 = vmatprep.subr.mxu0 0.0
  %355 = vmatpush2.xpose.msra.mxu0 0.0
  %356 = vmatprep.subr.mxu0 0.0
  %357 = vmatpush2.xpose.msra.mxu0 0.0
  %358 = vmatprep.subr.mxu0 0.0
  %359 = vmatpush2.xpose.msra.mxu0 0.0
  %360 = vmatprep.subr.mxu0 0.0
  %361 = vmatpush2.xpose.msra.mxu0 0.0
  %362 = vmatprep.subr.mxu0 0.0
  %363 = vmatpush2.xpose.msra.mxu0 0.0
  %364 = vmatprep.subr.mxu0 0.0
  %365 = vmatpush2.xpose.msra.mxu0 0.0
  %366 = vmatprep.subr.mxu0 0.0
  %367 = vmatpush2.xpose.msra.mxu0 0.0
  %368 = vmatprep.subr.mxu0 0.0
  %369 = vmatpush2.xpose.msra.mxu0 0.0
  %370 = vmatprep.subr.mxu0 0.0
  %371 = vmatpush2.xpose.msra.mxu0 0.0
  %372 = vmatprep.subr.mxu0 0.0
  %373 = vmatpush2.xpose.msra.mxu0 0.0
  %374 = vmatprep.subr.mxu0 0.0
  %375 = vmatpush2.xpose.msra.mxu0 0.0
  %376 = vmatprep.subr.mxu0 0.0
  %377 = vmatpush2.xpose.msra.mxu0 0.0
  %378 = vmatprep.mubr.f32.mxu0 0.0
  %379 = vmatmul.mubr.f32.gmra.mxu0 %v310
  %v380 = vpop.f32.mrf.mxu0
  %v381 = vadd.f32 %v134, %v380
  %v382 = vpop.f32.mrf.mxu0
  %383 = vdwg.mxu0
  %v384 = vsel %vm215, %v381, -inf
  %385 = vmax.xlane.f32.xlu0 %v384
  %v386 = vpop.xlane.xlu0 %385
  %v387 = vsub.f32 %v381, %v386
  %v388 = vmul.f32 %v387, 1.442695
  %v389 = vpow.pop %v388
  %v390 = vsel %vm215, %v389, 0.0
  %391 = vadd.xlane.f32.xlu0 %v390
  %v392 = vpop.xlane.xlu0 %391
  %v393 = vrcp.pop %v392
  %v394 = vmul.f32 %v389, %v393
  %395 = vrot.lane.b32.xlu0 %v123, 56
  %v396 = vpop.permute.xlu0 %395
  %v398 = vsel %vm229, %v394, 0
  %v400 = vsel %vm233, %v396, 0
  %402 = vmatprep.subr.mxu0 0.0
  %403 = vmatpush1.msra.mxu0 0.0
  %404 = vmatprep.subr.mxu0 0.0
  %405 = vmatpush1.msra.mxu0 0.0
  %406 = vmatprep.subr.mxu0 0.0
  %407 = vmatpush1.msra.mxu0 0.0
  %408 = vmatprep.subr.mxu0 0.0
  %409 = vmatpush1.msra.mxu0 0.0
  %410 = vmatprep.subr.mxu0 0.0
  %411 = vmatpush1.msra.mxu0 0.0
  %412 = vmatprep.subr.mxu0 0.0
  %413 = vmatpush1.msra.mxu0 0.0
  %414 = vmatprep.subr.mxu0 0.0
  %415 = vmatpush1.msra.mxu0 0.0
  %416 = vmatprep.subr.mxu0 0.0
  %417 = vmatpush1.msra.mxu0 0.0
  %418 = vmatprep.subr.mxu0 0.0
  %419 = vmatpush1.msra.mxu0 0.0
  %420 = vmatprep.subr.mxu0 0.0
  %421 = vmatpush1.msra.mxu0 0.0
  %422 = vmatprep.subr.mxu0 0.0
  %423 = vmatpush1.msra.mxu0 0.0
  %424 = vmatprep.subr.mxu0 0.0
  %425 = vmatpush1.msra.mxu0 0.0
  %426 = vmatprep.subr.mxu0 0.0
  %427 = vmatpush1.msra.mxu0 0.0
  %428 = vmatprep.subr.mxu0 0.0
  %429 = vmatpush1.msra.mxu0 0.0
  %430 = vmatprep.subr.mxu0 0.0
  %431 = vmatpush1.msra.mxu0 0.0
  %432 = vmatprep.subr.mxu0 0.0
  %433 = vmatpush1.msra.mxu0 %v400
  %434 = vmatprep.subr.mxu0 0.0
  %435 = vmatpush2.msra.mxu0 0.0
  %436 = vmatprep.subr.mxu0 0.0
  %437 = vmatpush2.msra.mxu0 0.0
  %438 = vmatprep.subr.mxu0 0.0
  %439 = vmatpush2.msra.mxu0 0.0
  %440 = vmatprep.subr.mxu0 0.0
  %441 = vmatpush2.msra.mxu0 0.0
  %442 = vmatprep.subr.mxu0 0.0
  %443 = vmatpush2.msra.mxu0 0.0
  %444 = vmatprep.subr.mxu0 0.0
  %445 = vmatpush2.msra.mxu0 0.0
  %446 = vmatprep.subr.mxu0 0.0
  %447 = vmatpush2.msra.mxu0 0.0
  %448 = vmatprep.subr.mxu0 0.0
  %449 = vmatpush2.msra.mxu0 0.0
  %450 = vmatprep.subr.mxu0 0.0
  %451 = vmatpush2.msra.mxu0 0.0
  %452 = vmatprep.subr.mxu0 0.0
  %453 = vmatpush2.msra.mxu0 0.0
  %454 = vmatprep.subr.mxu0 0.0
  %455 = vmatpush2.msra.mxu0 0.0
  %456 = vmatprep.subr.mxu0 0.0
  %457 = vmatpush2.msra.mxu0 0.0
  %458 = vmatprep.subr.mxu0 0.0
  %459 = vmatpush2.msra.mxu0 0.0
  %460 = vmatprep.subr.mxu0 0.0
  %461 = vmatpush2.msra.mxu0 0.0
  %462 = vmatprep.subr.mxu0 0.0
  %463 = vmatpush2.msra.mxu0 0.0
  %464 = vmatprep.subr.mxu0 0.0
  %465 = vmatpush2.msra.mxu0 0.0
  %466 = vmatprep.mubr.f32.mxu0 0.0
  %467 = vmatmul.mubr.f32.gmra.mxu0 %v398
  %v468 = vpop.f32.mrf.mxu0
  %v469 = vadd.f32 0.0, %v468
  %v470 = vpop.f32.mrf.mxu0
  %471 = vdwg.mxu0
  %472 = vrot.lane.b32.xlu0 %v129, 112
  %v473 = vpop.permute.xlu0 %472
  %474 = vrot.lane.b32.xlu0 %v123, 80
  %v475 = vpop.permute.xlu0 %474
  %v476 = vsel %vm139, %v473, 0
  %v478 = vsel %vm139, %v475, 0
  %480 = vmatprep.subr.mxu0 0.0
  %481 = vmatpush1.xpose.msra.mxu0 0.0
  %482 = vmatprep.subr.mxu0 0.0
  %483 = vmatpush1.xpose.msra.mxu0 0.0
  %484 = vmatprep.subr.mxu0 0.0
  %485 = vmatpush1.xpose.msra.mxu0 0.0
  %486 = vmatprep.subr.mxu0 0.0
  %487 = vmatpush1.xpose.msra.mxu0 0.0
  %488 = vmatprep.subr.mxu0 0.0
  %489 = vmatpush1.xpose.msra.mxu0 0.0
  %490 = vmatprep.subr.mxu0 0.0
  %491 = vmatpush1.xpose.msra.mxu0 0.0
  %492 = vmatprep.subr.mxu0 0.0
  %493 = vmatpush1.xpose.msra.mxu0 0.0
  %494 = vmatprep.subr.mxu0 0.0
  %495 = vmatpush1.xpose.msra.mxu0 0.0
  %496 = vmatprep.subr.mxu0 0.0
  %497 = vmatpush1.xpose.msra.mxu0 0.0
  %498 = vmatprep.subr.mxu0 0.0
  %499 = vmatpush1.xpose.msra.mxu0 0.0
  %500 = vmatprep.subr.mxu0 0.0
  %501 = vmatpush1.xpose.msra.mxu0 0.0
  %502 = vmatprep.subr.mxu0 0.0
  %503 = vmatpush1.xpose.msra.mxu0 0.0
  %504 = vmatprep.subr.mxu0 0.0
  %505 = vmatpush1.xpose.msra.mxu0 0.0
  %506 = vmatprep.subr.mxu0 0.0
  %507 = vmatpush1.xpose.msra.mxu0 0.0
  %508 = vmatprep.subr.mxu0 0.0
  %509 = vmatpush1.xpose.msra.mxu0 0.0
  %510 = vmatprep.subr.mxu0 0.0
  %511 = vmatpush1.xpose.msra.mxu0 %v478
  %512 = vmatprep.subr.mxu0 0.0
  %513 = vmatpush2.xpose.msra.mxu0 0.0
  %514 = vmatprep.subr.mxu0 0.0
  %515 = vmatpush2.xpose.msra.mxu0 0.0
  %516 = vmatprep.subr.mxu0 0.0
  %517 = vmatpush2.xpose.msra.mxu0 0.0
  %518 = vmatprep.subr.mxu0 0.0
  %519 = vmatpush2.xpose.msra.mxu0 0.0
  %520 = vmatprep.subr.mxu0 0.0
  %521 = vmatpush2.xpose.msra.mxu0 0.0
  %522 = vmatprep.subr.mxu0 0.0
  %523 = vmatpush2.xpose.msra.mxu0 0.0
  %524 = vmatprep.subr.mxu0 0.0
  %525 = vmatpush2.xpose.msra.mxu0 0.0
  %526 = vmatprep.subr.mxu0 0.0
  %527 = vmatpush2.xpose.msra.mxu0 0.0
  %528 = vmatprep.subr.mxu0 0.0
  %529 = vmatpush2.xpose.msra.mxu0 0.0
  %530 = vmatprep.subr.mxu0 0.0
  %531 = vmatpush2.xpose.msra.mxu0 0.0
  %532 = vmatprep.subr.mxu0 0.0
  %533 = vmatpush2.xpose.msra.mxu0 0.0
  %534 = vmatprep.subr.mxu0 0.0
  %535 = vmatpush2.xpose.msra.mxu0 0.0
  %536 = vmatprep.subr.mxu0 0.0
  %537 = vmatpush2.xpose.msra.mxu0 0.0
  %538 = vmatprep.subr.mxu0 0.0
  %539 = vmatpush2.xpose.msra.mxu0 0.0
  %540 = vmatprep.subr.mxu0 0.0
  %541 = vmatpush2.xpose.msra.mxu0 0.0
  %542 = vmatprep.subr.mxu0 0.0
  %543 = vmatpush2.xpose.msra.mxu0 0.0
  %544 = vmatprep.mubr.f32.mxu0 0.0
  %545 = vmatmul.mubr.f32.gmra.mxu0 %v476
  %v546 = vpop.f32.mrf.mxu0
  %v547 = vadd.f32 %v134, %v546
  %v548 = vpop.f32.mrf.mxu0
  %549 = vdwg.mxu0
  %v550 = vsel %vm215, %v547, -inf
  %551 = vmax.xlane.f32.xlu0 %v550
  %v552 = vpop.xlane.xlu0 %551
  %v553 = vsub.f32 %v547, %v552
  %v554 = vmul.f32 %v553, 1.442695
  %v555 = vpow.pop %v554
  %v556 = vsel %vm215, %v555, 0.0
  %557 = vadd.xlane.f32.xlu0 %v556
  %v558 = vpop.xlane.xlu0 %557
  %v559 = vrcp.pop %v558
  %v560 = vmul.f32 %v555, %v559
  %561 = vrot.lane.b32.xlu0 %v123, 48
  %v562 = vpop.permute.xlu0 %561
  %v564 = vsel %vm229, %v560, 0
  %v566 = vsel %vm233, %v562, 0
  %568 = vmatprep.subr.mxu0 0.0
  %569 = vmatpush1.msra.mxu0 0.0
  %570 = vmatprep.subr.mxu0 0.0
  %571 = vmatpush1.msra.mxu0 0.0
  %572 = vmatprep.subr.mxu0 0.0
  %573 = vmatpush1.msra.mxu0 0.0
  %574 = vmatprep.subr.mxu0 0.0
  %575 = vmatpush1.msra.mxu0 0.0
  %576 = vmatprep.subr.mxu0 0.0
  %577 = vmatpush1.msra.mxu0 0.0
  %578 = vmatprep.subr.mxu0 0.0
  %579 = vmatpush1.msra.mxu0 0.0
  %580 = vmatprep.subr.mxu0 0.0
  %581 = vmatpush1.msra.mxu0 0.0
  %582 = vmatprep.subr.mxu0 0.0
  %583 = vmatpush1.msra.mxu0 0.0
  %584 = vmatprep.subr.mxu0 0.0
  %585 = vmatpush1.msra.mxu0 0.0
  %586 = vmatprep.subr.mxu0 0.0
  %587 = vmatpush1.msra.mxu0 0.0
  %588 = vmatprep.subr.mxu0 0.0
  %589 = vmatpush1.msra.mxu0 0.0
  %590 = vmatprep.subr.mxu0 0.0
  %591 = vmatpush1.msra.mxu0 0.0
  %592 = vmatprep.subr.mxu0 0.0
  %593 = vmatpush1.msra.mxu0 0.0
  %594 = vmatprep.subr.mxu0 0.0
  %595 = vmatpush1.msra.mxu0 0.0
  %596 = vmatprep.subr.mxu0 0.0
  %597 = vmatpush1.msra.mxu0 0.0
  %598 = vmatprep.subr.mxu0 0.0
  %599 = vmatpush1.msra.mxu0 %v566
  %600 = vmatprep.subr.mxu0 0.0
  %601 = vmatpush2.msra.mxu0 0.0
  %602 = vmatprep.subr.mxu0 0.0
  %603 = vmatpush2.msra.mxu0 0.0
  %604 = vmatprep.subr.mxu0 0.0
  %605 = vmatpush2.msra.mxu0 0.0
  %606 = vmatprep.subr.mxu0 0.0
  %607 = vmatpush2.msra.mxu0 0.0
  %608 = vmatprep.subr.mxu0 0.0
  %609 = vmatpush2.msra.mxu0 0.0
  %610 = vmatprep.subr.mxu0 0.0
  %611 = vmatpush2.msra.mxu0 0.0
  %612 = vmatprep.subr.mxu0 0.0
  %613 = vmatpush2.msra.mxu0 0.0
  %614 = vmatprep.subr.mxu0 0.0
  %615 = vmatpush2.msra.mxu0 0.0
  %616 = vmatprep.subr.mxu0 0.0
  %617 = vmatpush2.msra.mxu0 0.0
  %618 = vmatprep.subr.mxu0 0.0
  %619 = vmatpush2.msra.mxu0 0.0
  %620 = vmatprep.subr.mxu0 0.0
  %621 = vmatpush2.msra.mxu0 0.0
  %622 = vmatprep.subr.mxu0 0.0
  %623 = vmatpush2.msra.mxu0 0.0
  %624 = vmatprep.subr.mxu0 0.0
  %625 = vmatpush2.msra.mxu0 0.0
  %626 = vmatprep.subr.mxu0 0.0
  %627 = vmatpush2.msra.mxu0 0.0
  %628 = vmatprep.subr.mxu0 0.0
  %629 = vmatpush2.msra.mxu0 0.0
  %630 = vmatprep.subr.mxu0 0.0
  %631 = vmatpush2.msra.mxu0 0.0
  %632 = vmatprep.mubr.f32.mxu0 0.0
  %633 = vmatmul.mubr.f32.gmra.mxu0 %v564
  %v634 = vpop.f32.mrf.mxu0
  %v635 = vadd.f32 0.0, %v634
  %v636 = vpop.f32.mrf.mxu0
  %637 = vdwg.mxu0
  %638 = vrot.lane.b32.xlu0 %v129, 104
  %v639 = vpop.permute.xlu0 %638
  %640 = vrot.lane.b32.xlu0 %v123, 72
  %v641 = vpop.permute.xlu0 %640
  %v642 = vsel %vm139, %v639, 0
  %v644 = vsel %vm139, %v641, 0
  %646 = vmatprep.subr.mxu0 0.0
  %647 = vmatpush1.xpose.msra.mxu0 0.0
  %648 = vmatprep.subr.mxu0 0.0
  %649 = vmatpush1.xpose.msra.mxu0 0.0
  %650 = vmatprep.subr.mxu0 0.0
  %651 = vmatpush1.xpose.msra.mxu0 0.0
  %652 = vmatprep.subr.mxu0 0.0
  %653 = vmatpush1.xpose.msra.mxu0 0.0
  %654 = vmatprep.subr.mxu0 0.0
  %655 = vmatpush1.xpose.msra.mxu0 0.0
  %656 = vmatprep.subr.mxu0 0.0
  %657 = vmatpush1.xpose.msra.mxu0 0.0
  %658 = vmatprep.subr.mxu0 0.0
  %659 = vmatpush1.xpose.msra.mxu0 0.0
  %660 = vmatprep.subr.mxu0 0.0
  %661 = vmatpush1.xpose.msra.mxu0 0.0
  %662 = vmatprep.subr.mxu0 0.0
  %663 = vmatpush1.xpose.msra.mxu0 0.0
  %664 = vmatprep.subr.mxu0 0.0
  %665 = vmatpush1.xpose.msra.mxu0 0.0
  %666 = vmatprep.subr.mxu0 0.0
  %667 = vmatpush1.xpose.msra.mxu0 0.0
  %668 = vmatprep.subr.mxu0 0.0
  %669 = vmatpush1.xpose.msra.mxu0 0.0
  %670 = vmatprep.subr.mxu0 0.0
  %671 = vmatpush1.xpose.msra.mxu0 0.0
  %672 = vmatprep.subr.mxu0 0.0
  %673 = vmatpush1.xpose.msra.mxu0 0.0
  %674 = vmatprep.subr.mxu0 0.0
  %675 = vmatpush1.xpose.msra.mxu0 0.0
  %676 = vmatprep.subr.mxu0 0.0
  %677 = vmatpush1.xpose.msra.mxu0 %v644
  %678 = vmatprep.subr.mxu0 0.0
  %679 = vmatpush2.xpose.msra.mxu0 0.0
  %680 = vmatprep.subr.mxu0 0.0
  %681 = vmatpush2.xpose.msra.mxu0 0.0
  %682 = vmatprep.subr.mxu0 0.0
  %683 = vmatpush2.xpose.msra.mxu0 0.0
  %684 = vmatprep.subr.mxu0 0.0
  %685 = vmatpush2.xpose.msra.mxu0 0.0
  %686 = vmatprep.subr.mxu0 0.0
  %687 = vmatpush2.xpose.msra.mxu0 0.0
  %688 = vmatprep.subr.mxu0 0.0
  %689 = vmatpush2.xpose.msra.mxu0 0.0
  %690 = vmatprep.subr.mxu0 0.0
  %691 = vmatpush2.xpose.msra.mxu0 0.0
  %692 = vmatprep.subr.mxu0 0.0
  %693 = vmatpush2.xpose.msra.mxu0 0.0
  %694 = vmatprep.subr.mxu0 0.0
  %695 = vmatpush2.xpose.msra.mxu0 0.0
  %696 = vmatprep.subr.mxu0 0.0
  %697 = vmatpush2.xpose.msra.mxu0 0.0
  %698 = vmatprep.subr.mxu0 0.0
  %699 = vmatpush2.xpose.msra.mxu0 0.0
  %700 = vmatprep.subr.mxu0 0.0
  %701 = vmatpush2.xpose.msra.mxu0 0.0
  %702 = vmatprep.subr.mxu0 0.0
  %703 = vmatpush2.xpose.msra.mxu0 0.0
  %704 = vmatprep.subr.mxu0 0.0
  %705 = vmatpush2.xpose.msra.mxu0 0.0
  %706 = vmatprep.subr.mxu0 0.0
  %707 = vmatpush2.xpose.msra.mxu0 0.0
  %708 = vmatprep.subr.mxu0 0.0
  %709 = vmatpush2.xpose.msra.mxu0 0.0
  %710 = vmatprep.mubr.f32.mxu0 0.0
  %711 = vmatmul.mubr.f32.gmra.mxu0 %v642
  %v712 = vpop.f32.mrf.mxu0
  %v713 = vadd.f32 %v134, %v712
  %v714 = vpop.f32.mrf.mxu0
  %715 = vdwg.mxu0
  %v716 = vsel %vm215, %v713, -inf
  %717 = vmax.xlane.f32.xlu0 %v716
  %v718 = vpop.xlane.xlu0 %717
  %v719 = vsub.f32 %v713, %v718
  %v720 = vmul.f32 %v719, 1.442695
  %v721 = vpow.pop %v720
  %v722 = vsel %vm215, %v721, 0.0
  %723 = vadd.xlane.f32.xlu0 %v722
  %v724 = vpop.xlane.xlu0 %723
  %v725 = vrcp.pop %v724
  %v726 = vmul.f32 %v721, %v725
  %727 = vrot.lane.b32.xlu0 %v123, 40
  %v728 = vpop.permute.xlu0 %727
  %v730 = vsel %vm229, %v726, 0
  %v732 = vsel %vm233, %v728, 0
  %734 = vmatprep.subr.mxu0 0.0
  %735 = vmatpush1.msra.mxu0 0.0
  %736 = vmatprep.subr.mxu0 0.0
  %737 = vmatpush1.msra.mxu0 0.0
  %738 = vmatprep.subr.mxu0 0.0
  %739 = vmatpush1.msra.mxu0 0.0
  %740 = vmatprep.subr.mxu0 0.0
  %741 = vmatpush1.msra.mxu0 0.0
  %742 = vmatprep.subr.mxu0 0.0
  %743 = vmatpush1.msra.mxu0 0.0
  %744 = vmatprep.subr.mxu0 0.0
  %745 = vmatpush1.msra.mxu0 0.0
  %746 = vmatprep.subr.mxu0 0.0
  %747 = vmatpush1.msra.mxu0 0.0
  %748 = vmatprep.subr.mxu0 0.0
  %749 = vmatpush1.msra.mxu0 0.0
  %750 = vmatprep.subr.mxu0 0.0
  %751 = vmatpush1.msra.mxu0 0.0
  %752 = vmatprep.subr.mxu0 0.0
  %753 = vmatpush1.msra.mxu0 0.0
  %754 = vmatprep.subr.mxu0 0.0
  %755 = vmatpush1.msra.mxu0 0.0
  %756 = vmatprep.subr.mxu0 0.0
  %757 = vmatpush1.msra.mxu0 0.0
  %758 = vmatprep.subr.mxu0 0.0
  %759 = vmatpush1.msra.mxu0 0.0
  %760 = vmatprep.subr.mxu0 0.0
  %761 = vmatpush1.msra.mxu0 0.0
  %762 = vmatprep.subr.mxu0 0.0
  %763 = vmatpush1.msra.mxu0 0.0
  %764 = vmatprep.subr.mxu0 0.0
  %765 = vmatpush1.msra.mxu0 %v732
  %766 = vmatprep.subr.mxu0 0.0
  %767 = vmatpush2.msra.mxu0 0.0
  %768 = vmatprep.subr.mxu0 0.0
  %769 = vmatpush2.msra.mxu0 0.0
  %770 = vmatprep.subr.mxu0 0.0
  %771 = vmatpush2.msra.mxu0 0.0
  %772 = vmatprep.subr.mxu0 0.0
  %773 = vmatpush2.msra.mxu0 0.0
  %774 = vmatprep.subr.mxu0 0.0
  %775 = vmatpush2.msra.mxu0 0.0
  %776 = vmatprep.subr.mxu0 0.0
  %777 = vmatpush2.msra.mxu0 0.0
  %778 = vmatprep.subr.mxu0 0.0
  %779 = vmatpush2.msra.mxu0 0.0
  %780 = vmatprep.subr.mxu0 0.0
  %781 = vmatpush2.msra.mxu0 0.0
  %782 = vmatprep.subr.mxu0 0.0
  %783 = vmatpush2.msra.mxu0 0.0
  %784 = vmatprep.subr.mxu0 0.0
  %785 = vmatpush2.msra.mxu0 0.0
  %786 = vmatprep.subr.mxu0 0.0
  %787 = vmatpush2.msra.mxu0 0.0
  %788 = vmatprep.subr.mxu0 0.0
  %789 = vmatpush2.msra.mxu0 0.0
  %790 = vmatprep.subr.mxu0 0.0
  %791 = vmatpush2.msra.mxu0 0.0
  %792 = vmatprep.subr.mxu0 0.0
  %793 = vmatpush2.msra.mxu0 0.0
  %794 = vmatprep.subr.mxu0 0.0
  %795 = vmatpush2.msra.mxu0 0.0
  %796 = vmatprep.subr.mxu0 0.0
  %797 = vmatpush2.msra.mxu0 0.0
  %798 = vmatprep.mubr.f32.mxu0 0.0
  %799 = vmatmul.mubr.f32.gmra.mxu0 %v730
  %v800 = vpop.f32.mrf.mxu0
  %v801 = vadd.f32 0.0, %v800
  %v802 = vpop.f32.mrf.mxu0
  %803 = vdwg.mxu0
  %805 = vrot.lane.b32.xlu0 %v469, 8
  %v806 = vpop.permute.xlu0 %805
  %809 = vrot.lane.b32.xlu0 %v635, 16
  %v810 = vpop.permute.xlu0 %809
  %813 = vrot.lane.b32.xlu0 %v801, 24
  %v814 = vpop.permute.xlu0 %813
  %v816 = vsel %vm139, %v303, %v806
  %vm817 = vcmask 130048
  %v818 = vsel %vm817, %v816, %v810
  %vm819 = vcmask 195584
  %v820 = vsel %vm819, %v818, %v814
  %v821 = vrot.slane %v129, 4
  %v822 = vrot.slane %v123, 4
  %823 = vrot.lane.b32.xlu0 %v822, 96
  %v824 = vpop.permute.xlu0 %823
  %v825 = vsel %vm139, %v821, 0
  %v827 = vsel %vm139, %v824, 0
  %829 = vmatprep.subr.mxu0 0.0
  %830 = vmatpush1.xpose.msra.mxu0 0.0
  %831 = vmatprep.subr.mxu0 0.0
  %832 = vmatpush1.xpose.msra.mxu0 0.0
  %833 = vmatprep.subr.mxu0 0.0
  %834 = vmatpush1.xpose.msra.mxu0 0.0
  %835 = vmatprep.subr.mxu0 0.0
  %836 = vmatpush1.xpose.msra.mxu0 0.0
  %837 = vmatprep.subr.mxu0 0.0
  %838 = vmatpush1.xpose.msra.mxu0 0.0
  %839 = vmatprep.subr.mxu0 0.0
  %840 = vmatpush1.xpose.msra.mxu0 0.0
  %841 = vmatprep.subr.mxu0 0.0
  %842 = vmatpush1.xpose.msra.mxu0 0.0
  %843 = vmatprep.subr.mxu0 0.0
  %844 = vmatpush1.xpose.msra.mxu0 0.0
  %845 = vmatprep.subr.mxu0 0.0
  %846 = vmatpush1.xpose.msra.mxu0 0.0
  %847 = vmatprep.subr.mxu0 0.0
  %848 = vmatpush1.xpose.msra.mxu0 0.0
  %849 = vmatprep.subr.mxu0 0.0
  %850 = vmatpush1.xpose.msra.mxu0 0.0
  %851 = vmatprep.subr.mxu0 0.0
  %852 = vmatpush1.xpose.msra.mxu0 0.0
  %853 = vmatprep.subr.mxu0 0.0
  %854 = vmatpush1.xpose.msra.mxu0 0.0
  %855 = vmatprep.subr.mxu0 0.0
  %856 = vmatpush1.xpose.msra.mxu0 0.0
  %857 = vmatprep.subr.mxu0 0.0
  %858 = vmatpush1.xpose.msra.mxu0 0.0
  %859 = vmatprep.subr.mxu0 0.0
  %860 = vmatpush1.xpose.msra.mxu0 %v827
  %861 = vmatprep.subr.mxu0 0.0
  %862 = vmatpush2.xpose.msra.mxu0 0.0
  %863 = vmatprep.subr.mxu0 0.0
  %864 = vmatpush2.xpose.msra.mxu0 0.0
  %865 = vmatprep.subr.mxu0 0.0
  %866 = vmatpush2.xpose.msra.mxu0 0.0
  %867 = vmatprep.subr.mxu0 0.0
  %868 = vmatpush2.xpose.msra.mxu0 0.0
  %869 = vmatprep.subr.mxu0 0.0
  %870 = vmatpush2.xpose.msra.mxu0 0.0
  %871 = vmatprep.subr.mxu0 0.0
  %872 = vmatpush2.xpose.msra.mxu0 0.0
  %873 = vmatprep.subr.mxu0 0.0
  %874 = vmatpush2.xpose.msra.mxu0 0.0
  %875 = vmatprep.subr.mxu0 0.0
  %876 = vmatpush2.xpose.msra.mxu0 0.0
  %877 = vmatprep.subr.mxu0 0.0
  %878 = vmatpush2.xpose.msra.mxu0 0.0
  %879 = vmatprep.subr.mxu0 0.0
  %880 = vmatpush2.xpose.msra.mxu0 0.0
  %881 = vmatprep.subr.mxu0 0.0
  %882 = vmatpush2.xpose.msra.mxu0 0.0
  %883 = vmatprep.subr.mxu0 0.0
  %884 = vmatpush2.xpose.msra.mxu0 0.0
  %885 = vmatprep.subr.mxu0 0.0
  %886 = vmatpush2.xpose.msra.mxu0 0.0
  %887 = vmatprep.subr.mxu0 0.0
  %888 = vmatpush2.xpose.msra.mxu0 0.0
  %889 = vmatprep.subr.mxu0 0.0
  %890 = vmatpush2.xpose.msra.mxu0 0.0
  %891 = vmatprep.subr.mxu0 0.0
  %892 = vmatpush2.xpose.msra.mxu0 0.0
  %893 = vmatprep.mubr.f32.mxu0 0.0
  %894 = vmatmul.mubr.f32.gmra.mxu0 %v825
  %v895 = vpop.f32.mrf.mxu0
  %v896 = vadd.f32 %v134, %v895
  %v897 = vpop.f32.mrf.mxu0
  %898 = vdwg.mxu0
  %v899 = vsel %vm215, %v896, -inf
  %900 = vmax.xlane.f32.xlu0 %v899
  %v901 = vpop.xlane.xlu0 %900
  %v902 = vsub.f32 %v896, %v901
  %v903 = vmul.f32 %v902, 1.442695
  %v904 = vpow.pop %v903
  %v905 = vsel %vm215, %v904, 0.0
  %906 = vadd.xlane.f32.xlu0 %v905
  %v907 = vpop.xlane.xlu0 %906
  %v908 = vrcp.pop %v907
  %v909 = vmul.f32 %v904, %v908
  %910 = vrot.lane.b32.xlu0 %v822, 64
  %v911 = vpop.permute.xlu0 %910
  %v913 = vsel %vm229, %v909, 0
  %v915 = vsel %vm233, %v911, 0
  %917 = vmatprep.subr.mxu0 0.0
  %918 = vmatpush1.msra.mxu0 0.0
  %919 = vmatprep.subr.mxu0 0.0
  %920 = vmatpush1.msra.mxu0 0.0
  %921 = vmatprep.subr.mxu0 0.0
  %922 = vmatpush1.msra.mxu0 0.0
  %923 = vmatprep.subr.mxu0 0.0
  %924 = vmatpush1.msra.mxu0 0.0
  %925 = vmatprep.subr.mxu0 0.0
  %926 = vmatpush1.msra.mxu0 0.0
  %927 = vmatprep.subr.mxu0 0.0
  %928 = vmatpush1.msra.mxu0 0.0
  %929 = vmatprep.subr.mxu0 0.0
  %930 = vmatpush1.msra.mxu0 0.0
  %931 = vmatprep.subr.mxu0 0.0
  %932 = vmatpush1.msra.mxu0 0.0
  %933 = vmatprep.subr.mxu0 0.0
  %934 = vmatpush1.msra.mxu0 0.0
  %935 = vmatprep.subr.mxu0 0.0
  %936 = vmatpush1.msra.mxu0 0.0
  %937 = vmatprep.subr.mxu0 0.0
  %938 = vmatpush1.msra.mxu0 0.0
  %939 = vmatprep.subr.mxu0 0.0
  %940 = vmatpush1.msra.mxu0 0.0
  %941 = vmatprep.subr.mxu0 0.0
  %942 = vmatpush1.msra.mxu0 0.0
  %943 = vmatprep.subr.mxu0 0.0
  %944 = vmatpush1.msra.mxu0 0.0
  %945 = vmatprep.subr.mxu0 0.0
  %946 = vmatpush1.msra.mxu0 0.0
  %947 = vmatprep.subr.mxu0 0.0
  %948 = vmatpush1.msra.mxu0 %v915
  %949 = vmatprep.subr.mxu0 0.0
  %950 = vmatpush2.msra.mxu0 0.0
  %951 = vmatprep.subr.mxu0 0.0
  %952 = vmatpush2.msra.mxu0 0.0
  %953 = vmatprep.subr.mxu0 0.0
  %954 = vmatpush2.msra.mxu0 0.0
  %955 = vmatprep.subr.mxu0 0.0
  %956 = vmatpush2.msra.mxu0 0.0
  %957 = vmatprep.subr.mxu0 0.0
  %958 = vmatpush2.msra.mxu0 0.0
  %959 = vmatprep.subr.mxu0 0.0
  %960 = vmatpush2.msra.mxu0 0.0
  %961 = vmatprep.subr.mxu0 0.0
  %962 = vmatpush2.msra.mxu0 0.0
  %963 = vmatprep.subr.mxu0 0.0
  %964 = vmatpush2.msra.mxu0 0.0
  %965 = vmatprep.subr.mxu0 0.0
  %966 = vmatpush2.msra.mxu0 0.0
  %967 = vmatprep.subr.mxu0 0.0
  %968 = vmatpush2.msra.mxu0 0.0
  %969 = vmatprep.subr.mxu0 0.0
  %970 = vmatpush2.msra.mxu0 0.0
  %971 = vmatprep.subr.mxu0 0.0
  %972 = vmatpush2.msra.mxu0 0.0
  %973 = vmatprep.subr.mxu0 0.0
  %974 = vmatpush2.msra.mxu0 0.0
  %975 = vmatprep.subr.mxu0 0.0
  %976 = vmatpush2.msra.mxu0 0.0
  %977 = vmatprep.subr.mxu0 0.0
  %978 = vmatpush2.msra.mxu0 0.0
  %979 = vmatprep.subr.mxu0 0.0
  %980 = vmatpush2.msra.mxu0 0.0
  %981 = vmatprep.mubr.f32.mxu0 0.0
  %982 = vmatmul.mubr.f32.gmra.mxu0 %v913
  %v983 = vpop.f32.mrf.mxu0
  %v984 = vadd.f32 0.0, %v983
  %v985 = vpop.f32.mrf.mxu0
  %986 = vdwg.mxu0
  %987 = vrot.lane.b32.xlu0 %v821, 120
  %v988 = vpop.permute.xlu0 %987
  %989 = vrot.lane.b32.xlu0 %v822, 88
  %v990 = vpop.permute.xlu0 %989
  %v991 = vsel %vm139, %v988, 0
  %v993 = vsel %vm139, %v990, 0
  %995 = vmatprep.subr.mxu0 0.0
  %996 = vmatpush1.xpose.msra.mxu0 0.0
  %997 = vmatprep.subr.mxu0 0.0
  %998 = vmatpush1.xpose.msra.mxu0 0.0
  %999 = vmatprep.subr.mxu0 0.0
  %1000 = vmatpush1.xpose.msra.mxu0 0.0
  %1001 = vmatprep.subr.mxu0 0.0
  %1002 = vmatpush1.xpose.msra.mxu0 0.0
  %1003 = vmatprep.subr.mxu0 0.0
  %1004 = vmatpush1.xpose.msra.mxu0 0.0
  %1005 = vmatprep.subr.mxu0 0.0
  %1006 = vmatpush1.xpose.msra.mxu0 0.0
  %1007 = vmatprep.subr.mxu0 0.0
  %1008 = vmatpush1.xpose.msra.mxu0 0.0
  %1009 = vmatprep.subr.mxu0 0.0
  %1010 = vmatpush1.xpose.msra.mxu0 0.0
  %1011 = vmatprep.subr.mxu0 0.0
  %1012 = vmatpush1.xpose.msra.mxu0 0.0
  %1013 = vmatprep.subr.mxu0 0.0
  %1014 = vmatpush1.xpose.msra.mxu0 0.0
  %1015 = vmatprep.subr.mxu0 0.0
  %1016 = vmatpush1.xpose.msra.mxu0 0.0
  %1017 = vmatprep.subr.mxu0 0.0
  %1018 = vmatpush1.xpose.msra.mxu0 0.0
  %1019 = vmatprep.subr.mxu0 0.0
  %1020 = vmatpush1.xpose.msra.mxu0 0.0
  %1021 = vmatprep.subr.mxu0 0.0
  %1022 = vmatpush1.xpose.msra.mxu0 0.0
  %1023 = vmatprep.subr.mxu0 0.0
  %1024 = vmatpush1.xpose.msra.mxu0 0.0
  %1025 = vmatprep.subr.mxu0 0.0
  %1026 = vmatpush1.xpose.msra.mxu0 %v993
  %1027 = vmatprep.subr.mxu0 0.0
  %1028 = vmatpush2.xpose.msra.mxu0 0.0
  %1029 = vmatprep.subr.mxu0 0.0
  %1030 = vmatpush2.xpose.msra.mxu0 0.0
  %1031 = vmatprep.subr.mxu0 0.0
  %1032 = vmatpush2.xpose.msra.mxu0 0.0
  %1033 = vmatprep.subr.mxu0 0.0
  %1034 = vmatpush2.xpose.msra.mxu0 0.0
  %1035 = vmatprep.subr.mxu0 0.0
  %1036 = vmatpush2.xpose.msra.mxu0 0.0
  %1037 = vmatprep.subr.mxu0 0.0
  %1038 = vmatpush2.xpose.msra.mxu0 0.0
  %1039 = vmatprep.subr.mxu0 0.0
  %1040 = vmatpush2.xpose.msra.mxu0 0.0
  %1041 = vmatprep.subr.mxu0 0.0
  %1042 = vmatpush2.xpose.msra.mxu0 0.0
  %1043 = vmatprep.subr.mxu0 0.0
  %1044 = vmatpush2.xpose.msra.mxu0 0.0
  %1045 = vmatprep.subr.mxu0 0.0
  %1046 = vmatpush2.xpose.msra.mxu0 0.0
  %1047 = vmatprep.subr.mxu0 0.0
  %1048 = vmatpush2.xpose.msra.mxu0 0.0
  %1049 = vmatprep.subr.mxu0 0.0
  %1050 = vmatpush2.xpose.msra.mxu0 0.0
  %1051 = vmatprep.subr.mxu0 0.0
  %1052 = vmatpush2.xpose.msra.mxu0 0.0
  %1053 = vmatprep.subr.mxu0 0.0
  %1054 = vmatpush2.xpose.msra.mxu0 0.0
  %1055 = vmatprep.subr.mxu0 0.0
  %1056 = vmatpush2.xpose.msra.mxu0 0.0
  %1057 = vmatprep.subr.mxu0 0.0
  %1058 = vmatpush2.xpose.msra.mxu0 0.0
  %1059 = vmatprep.mubr.f32.mxu0 0.0
  %1060 = vmatmul.mubr.f32.gmra.mxu0 %v991
  %v1061 = vpop.f32.mrf.mxu0
  %v1062 = vadd.f32 %v134, %v1061
  %v1063 = vpop.f32.mrf.mxu0
  %1064 = vdwg.mxu0
  %v1065 = vsel %vm215, %v1062, -inf
  %1066 = vmax.xlane.f32.xlu0 %v1065
  %v1067 = vpop.xlane.xlu0 %1066
  %v1068 = vsub.f32 %v1062, %v1067
  %v1069 = vmul.f32 %v1068, 1.442695
  %v1070 = vpow.pop %v1069
  %v1071 = vsel %vm215, %v1070, 0.0
  %1072 = vadd.xlane.f32.xlu0 %v1071
  %v1073 = vpop.xlane.xlu0 %1072
  %v1074 = vrcp.pop %v1073
  %v1075 = vmul.f32 %v1070, %v1074
  %1076 = vrot.lane.b32.xlu0 %v822, 56
  %v1077 = vpop.permute.xlu0 %1076
  %v1079 = vsel %vm229, %v1075, 0
  %v1081 = vsel %vm233, %v1077, 0
  %1083 = vmatprep.subr.mxu0 0.0
  %1084 = vmatpush1.msra.mxu0 0.0
  %1085 = vmatprep.subr.mxu0 0.0
  %1086 = vmatpush1.msra.mxu0 0.0
  %1087 = vmatprep.subr.mxu0 0.0
  %1088 = vmatpush1.msra.mxu0 0.0
  %1089 = vmatprep.subr.mxu0 0.0
  %1090 = vmatpush1.msra.mxu0 0.0
  %1091 = vmatprep.subr.mxu0 0.0
  %1092 = vmatpush1.msra.mxu0 0.0
  %1093 = vmatprep.subr.mxu0 0.0
  %1094 = vmatpush1.msra.mxu0 0.0
  %1095 = vmatprep.subr.mxu0 0.0
  %1096 = vmatpush1.msra.mxu0 0.0
  %1097 = vmatprep.subr.mxu0 0.0
  %1098 = vmatpush1.msra.mxu0 0.0
  %1099 = vmatprep.subr.mxu0 0.0
  %1100 = vmatpush1.msra.mxu0 0.0
  %1101 = vmatprep.subr.mxu0 0.0
  %1102 = vmatpush1.msra.mxu0 0.0
  %1103 = vmatprep.subr.mxu0 0.0
  %1104 = vmatpush1.msra.mxu0 0.0
  %1105 = vmatprep.subr.mxu0 0.0
  %1106 = vmatpush1.msra.mxu0 0.0
  %1107 = vmatprep.subr.mxu0 0.0
  %1108 = vmatpush1.msra.mxu0 0.0
  %1109 = vmatprep.subr.mxu0 0.0
  %1110 = vmatpush1.msra.mxu0 0.0
  %1111 = vmatprep.subr.mxu0 0.0
  %1112 = vmatpush1.msra.mxu0 0.0
  %1113 = vmatprep.subr.mxu0 0.0
  %1114 = vmatpush1.msra.mxu0 %v1081
  %1115 = vmatprep.subr.mxu0 0.0
  %1116 = vmatpush2.msra.mxu0 0.0
  %1117 = vmatprep.subr.mxu0 0.0
  %1118 = vmatpush2.msra.mxu0 0.0
  %1119 = vmatprep.subr.mxu0 0.0
  %1120 = vmatpush2.msra.mxu0 0.0
  %1121 = vmatprep.subr.mxu0 0.0
  %1122 = vmatpush2.msra.mxu0 0.0
  %1123 = vmatprep.subr.mxu0 0.0
  %1124 = vmatpush2.msra.mxu0 0.0
  %1125 = vmatprep.subr.mxu0 0.0
  %1126 = vmatpush2.msra.mxu0 0.0
  %1127 = vmatprep.subr.mxu0 0.0
  %1128 = vmatpush2.msra.mxu0 0.0
  %1129 = vmatprep.subr.mxu0 0.0
  %1130 = vmatpush2.msra.mxu0 0.0
  %1131 = vmatprep.subr.mxu0 0.0
  %1132 = vmatpush2.msra.mxu0 0.0
  %1133 = vmatprep.subr.mxu0 0.0
  %1134 = vmatpush2.msra.mxu0 0.0
  %1135 = vmatprep.subr.mxu0 0.0
  %1136 = vmatpush2.msra.mxu0 0.0
  %1137 = vmatprep.subr.mxu0 0.0
  %1138 = vmatpush2.msra.mxu0 0.0
  %1139 = vmatprep.subr.mxu0 0.0
  %1140 = vmatpush2.msra.mxu0 0.0
  %1141 = vmatprep.subr.mxu0 0.0
  %1142 = vmatpush2.msra.mxu0 0.0
  %1143 = vmatprep.subr.mxu0 0.0
  %1144 = vmatpush2.msra.mxu0 0.0
  %1145 = vmatprep.subr.mxu0 0.0
  %1146 = vmatpush2.msra.mxu0 0.0
  %1147 = vmatprep.mubr.f32.mxu0 0.0
  %1148 = vmatmul.mubr.f32.gmra.mxu0 %v1079
  %v1149 = vpop.f32.mrf.mxu0
  %v1150 = vadd.f32 0.0, %v1149
  %v1151 = vpop.f32.mrf.mxu0
  %1152 = vdwg.mxu0
  %1153 = vrot.lane.b32.xlu0 %v821, 112
  %v1154 = vpop.permute.xlu0 %1153
  %1155 = vrot.lane.b32.xlu0 %v822, 80
  %v1156 = vpop.permute.xlu0 %1155
  %v1157 = vsel %vm139, %v1154, 0
  %v1159 = vsel %vm139, %v1156, 0
  %1161 = vmatprep.subr.mxu0 0.0
  %1162 = vmatpush1.xpose.msra.mxu0 0.0
  %1163 = vmatprep.subr.mxu0 0.0
  %1164 = vmatpush1.xpose.msra.mxu0 0.0
  %1165 = vmatprep.subr.mxu0 0.0
  %1166 = vmatpush1.xpose.msra.mxu0 0.0
  %1167 = vmatprep.subr.mxu0 0.0
  %1168 = vmatpush1.xpose.msra.mxu0 0.0
  %1169 = vmatprep.subr.mxu0 0.0
  %1170 = vmatpush1.xpose.msra.mxu0 0.0
  %1171 = vmatprep.subr.mxu0 0.0
  %1172 = vmatpush1.xpose.msra.mxu0 0.0
  %1173 = vmatprep.subr.mxu0 0.0
  %1174 = vmatpush1.xpose.msra.mxu0 0.0
  %1175 = vmatprep.subr.mxu0 0.0
  %1176 = vmatpush1.xpose.msra.mxu0 0.0
  %1177 = vmatprep.subr.mxu0 0.0
  %1178 = vmatpush1.xpose.msra.mxu0 0.0
  %1179 = vmatprep.subr.mxu0 0.0
  %1180 = vmatpush1.xpose.msra.mxu0 0.0
  %1181 = vmatprep.subr.mxu0 0.0
  %1182 = vmatpush1.xpose.msra.mxu0 0.0
  %1183 = vmatprep.subr.mxu0 0.0
  %1184 = vmatpush1.xpose.msra.mxu0 0.0
  %1185 = vmatprep.subr.mxu0 0.0
  %1186 = vmatpush1.xpose.msra.mxu0 0.0
  %1187 = vmatprep.subr.mxu0 0.0
  %1188 = vmatpush1.xpose.msra.mxu0 0.0
  %1189 = vmatprep.subr.mxu0 0.0
  %1190 = vmatpush1.xpose.msra.mxu0 0.0
  %1191 = vmatprep.subr.mxu0 0.0
  %1192 = vmatpush1.xpose.msra.mxu0 %v1159
  %1193 = vmatprep.subr.mxu0 0.0
  %1194 = vmatpush2.xpose.msra.mxu0 0.0
  %1195 = vmatprep.subr.mxu0 0.0
  %1196 = vmatpush2.xpose.msra.mxu0 0.0
  %1197 = vmatprep.subr.mxu0 0.0
  %1198 = vmatpush2.xpose.msra.mxu0 0.0
  %1199 = vmatprep.subr.mxu0 0.0
  %1200 = vmatpush2.xpose.msra.mxu0 0.0
  %1201 = vmatprep.subr.mxu0 0.0
  %1202 = vmatpush2.xpose.msra.mxu0 0.0
  %1203 = vmatprep.subr.mxu0 0.0
  %1204 = vmatpush2.xpose.msra.mxu0 0.0
  %1205 = vmatprep.subr.mxu0 0.0
  %1206 = vmatpush2.xpose.msra.mxu0 0.0
  %1207 = vmatprep.subr.mxu0 0.0
  %1208 = vmatpush2.xpose.msra.mxu0 0.0
  %1209 = vmatprep.subr.mxu0 0.0
  %1210 = vmatpush2.xpose.msra.mxu0 0.0
  %1211 = vmatprep.subr.mxu0 0.0
  %1212 = vmatpush2.xpose.msra.mxu0 0.0
  %1213 = vmatprep.subr.mxu0 0.0
  %1214 = vmatpush2.xpose.msra.mxu0 0.0
  %1215 = vmatprep.subr.mxu0 0.0
  %1216 = vmatpush2.xpose.msra.mxu0 0.0
  %1217 = vmatprep.subr.mxu0 0.0
  %1218 = vmatpush2.xpose.msra.mxu0 0.0
  %1219 = vmatprep.subr.mxu0 0.0
  %1220 = vmatpush2.xpose.msra.mxu0 0.0
  %1221 = vmatprep.subr.mxu0 0.0
  %1222 = vmatpush2.xpose.msra.mxu0 0.0
  %1223 = vmatprep.subr.mxu0 0.0
  %1224 = vmatpush2.xpose.msra.mxu0 0.0
  %1225 = vmatprep.mubr.f32.mxu0 0.0
  %1226 = vmatmul.mubr.f32.gmra.mxu0 %v1157
  %v1227 = vpop.f32.mrf.mxu0
  %v1228 = vadd.f32 %v134, %v1227
  %v1229 = vpop.f32.mrf.mxu0
  %1230 = vdwg.mxu0
  %v1231 = vsel %vm215, %v1228, -inf
  %1232 = vmax.xlane.f32.xlu0 %v1231
  %v1233 = vpop.xlane.xlu0 %1232
  %v1234 = vsub.f32 %v1228, %v1233
  %v1235 = vmul.f32 %v1234, 1.442695
  %v1236 = vpow.pop %v1235
  %v1237 = vsel %vm215, %v1236, 0.0
  %1238 = vadd.xlane.f32.xlu0 %v1237
  %v1239 = vpop.xlane.xlu0 %1238
  %v1240 = vrcp.pop %v1239
  %v1241 = vmul.f32 %v1236, %v1240
  %1242 = vrot.lane.b32.xlu0 %v822, 48
  %v1243 = vpop.permute.xlu0 %1242
  %v1245 = vsel %vm229, %v1241, 0
  %v1247 = vsel %vm233, %v1243, 0
  %1249 = vmatprep.subr.mxu0 0.0
  %1250 = vmatpush1.msra.mxu0 0.0
  %1251 = vmatprep.subr.mxu0 0.0
  %1252 = vmatpush1.msra.mxu0 0.0
  %1253 = vmatprep.subr.mxu0 0.0
  %1254 = vmatpush1.msra.mxu0 0.0
  %1255 = vmatprep.subr.mxu0 0.0
  %1256 = vmatpush1.msra.mxu0 0.0
  %1257 = vmatprep.subr.mxu0 0.0
  %1258 = vmatpush1.msra.mxu0 0.0
  %1259 = vmatprep.subr.mxu0 0.0
  %1260 = vmatpush1.msra.mxu0 0.0
  %1261 = vmatprep.subr.mxu0 0.0
  %1262 = vmatpush1.msra.mxu0 0.0
  %1263 = vmatprep.subr.mxu0 0.0
  %1264 = vmatpush1.msra.mxu0 0.0
  %1265 = vmatprep.subr.mxu0 0.0
  %1266 = vmatpush1.msra.mxu0 0.0
  %1267 = vmatprep.subr.mxu0 0.0
  %1268 = vmatpush1.msra.mxu0 0.0
  %1269 = vmatprep.subr.mxu0 0.0
  %1270 = vmatpush1.msra.mxu0 0.0
  %1271 = vmatprep.subr.mxu0 0.0
  %1272 = vmatpush1.msra.mxu0 0.0
  %1273 = vmatprep.subr.mxu0 0.0
  %1274 = vmatpush1.msra.mxu0 0.0
  %1275 = vmatprep.subr.mxu0 0.0
  %1276 = vmatpush1.msra.mxu0 0.0
  %1277 = vmatprep.subr.mxu0 0.0
  %1278 = vmatpush1.msra.mxu0 0.0
  %1279 = vmatprep.subr.mxu0 0.0
  %1280 = vmatpush1.msra.mxu0 %v1247
  %1281 = vmatprep.subr.mxu0 0.0
  %1282 = vmatpush2.msra.mxu0 0.0
  %1283 = vmatprep.subr.mxu0 0.0
  %1284 = vmatpush2.msra.mxu0 0.0
  %1285 = vmatprep.subr.mxu0 0.0
  %1286 = vmatpush2.msra.mxu0 0.0
  %1287 = vmatprep.subr.mxu0 0.0
  %1288 = vmatpush2.msra.mxu0 0.0
  %1289 = vmatprep.subr.mxu0 0.0
  %1290 = vmatpush2.msra.mxu0 0.0
  %1291 = vmatprep.subr.mxu0 0.0
  %1292 = vmatpush2.msra.mxu0 0.0
  %1293 = vmatprep.subr.mxu0 0.0
  %1294 = vmatpush2.msra.mxu0 0.0
  %1295 = vmatprep.subr.mxu0 0.0
  %1296 = vmatpush2.msra.mxu0 0.0
  %1297 = vmatprep.subr.mxu0 0.0
  %1298 = vmatpush2.msra.mxu0 0.0
  %1299 = vmatprep.subr.mxu0 0.0
  %1300 = vmatpush2.msra.mxu0 0.0
  %1301 = vmatprep.subr.mxu0 0.0
  %1302 = vmatpush2.msra.mxu0 0.0
  %1303 = vmatprep.subr.mxu0 0.0
  %1304 = vmatpush2.msra.mxu0 0.0
  %1305 = vmatprep.subr.mxu0 0.0
  %1306 = vmatpush2.msra.mxu0 0.0
  %1307 = vmatprep.subr.mxu0 0.0
  %1308 = vmatpush2.msra.mxu0 0.0
  %1309 = vmatprep.subr.mxu0 0.0
  %1310 = vmatpush2.msra.mxu0 0.0
  %1311 = vmatprep.subr.mxu0 0.0
  %1312 = vmatpush2.msra.mxu0 0.0
  %1313 = vmatprep.mubr.f32.mxu0 0.0
  %1314 = vmatmul.mubr.f32.gmra.mxu0 %v1245
  %v1315 = vpop.f32.mrf.mxu0
  %v1316 = vadd.f32 0.0, %v1315
  %v1317 = vpop.f32.mrf.mxu0
  %1318 = vdwg.mxu0
  %1319 = vrot.lane.b32.xlu0 %v821, 104
  %v1320 = vpop.permute.xlu0 %1319
  %1321 = vrot.lane.b32.xlu0 %v822, 72
  %v1322 = vpop.permute.xlu0 %1321
  %v1323 = vsel %vm139, %v1320, 0
  %v1325 = vsel %vm139, %v1322, 0
  %1327 = vmatprep.subr.mxu0 0.0
  %1328 = vmatpush1.xpose.msra.mxu0 0.0
  %1329 = vmatprep.subr.mxu0 0.0
  %1330 = vmatpush1.xpose.msra.mxu0 0.0
  %1331 = vmatprep.subr.mxu0 0.0
  %1332 = vmatpush1.xpose.msra.mxu0 0.0
  %1333 = vmatprep.subr.mxu0 0.0
  %1334 = vmatpush1.xpose.msra.mxu0 0.0
  %1335 = vmatprep.subr.mxu0 0.0
  %1336 = vmatpush1.xpose.msra.mxu0 0.0
  %1337 = vmatprep.subr.mxu0 0.0
  %1338 = vmatpush1.xpose.msra.mxu0 0.0
  %1339 = vmatprep.subr.mxu0 0.0
  %1340 = vmatpush1.xpose.msra.mxu0 0.0
  %1341 = vmatprep.subr.mxu0 0.0
  %1342 = vmatpush1.xpose.msra.mxu0 0.0
  %1343 = vmatprep.subr.mxu0 0.0
  %1344 = vmatpush1.xpose.msra.mxu0 0.0
  %1345 = vmatprep.subr.mxu0 0.0
  %1346 = vmatpush1.xpose.msra.mxu0 0.0
  %1347 = vmatprep.subr.mxu0 0.0
  %1348 = vmatpush1.xpose.msra.mxu0 0.0
  %1349 = vmatprep.subr.mxu0 0.0
  %1350 = vmatpush1.xpose.msra.mxu0 0.0
  %1351 = vmatprep.subr.mxu0 0.0
  %1352 = vmatpush1.xpose.msra.mxu0 0.0
  %1353 = vmatprep.subr.mxu0 0.0
  %1354 = vmatpush1.xpose.msra.mxu0 0.0
  %1355 = vmatprep.subr.mxu0 0.0
  %1356 = vmatpush1.xpose.msra.mxu0 0.0
  %1357 = vmatprep.subr.mxu0 0.0
  %1358 = vmatpush1.xpose.msra.mxu0 %v1325
  %1359 = vmatprep.subr.mxu0 0.0
  %1360 = vmatpush2.xpose.msra.mxu0 0.0
  %1361 = vmatprep.subr.mxu0 0.0
  %1362 = vmatpush2.xpose.msra.mxu0 0.0
  %1363 = vmatprep.subr.mxu0 0.0
  %1364 = vmatpush2.xpose.msra.mxu0 0.0
  %1365 = vmatprep.subr.mxu0 0.0
  %1366 = vmatpush2.xpose.msra.mxu0 0.0
  %1367 = vmatprep.subr.mxu0 0.0
  %1368 = vmatpush2.xpose.msra.mxu0 0.0
  %1369 = vmatprep.subr.mxu0 0.0
  %1370 = vmatpush2.xpose.msra.mxu0 0.0
  %1371 = vmatprep.subr.mxu0 0.0
  %1372 = vmatpush2.xpose.msra.mxu0 0.0
  %1373 = vmatprep.subr.mxu0 0.0
  %1374 = vmatpush2.xpose.msra.mxu0 0.0
  %1375 = vmatprep.subr.mxu0 0.0
  %1376 = vmatpush2.xpose.msra.mxu0 0.0
  %1377 = vmatprep.subr.mxu0 0.0
  %1378 = vmatpush2.xpose.msra.mxu0 0.0
  %1379 = vmatprep.subr.mxu0 0.0
  %1380 = vmatpush2.xpose.msra.mxu0 0.0
  %1381 = vmatprep.subr.mxu0 0.0
  %1382 = vmatpush2.xpose.msra.mxu0 0.0
  %1383 = vmatprep.subr.mxu0 0.0
  %1384 = vmatpush2.xpose.msra.mxu0 0.0
  %1385 = vmatprep.subr.mxu0 0.0
  %1386 = vmatpush2.xpose.msra.mxu0 0.0
  %1387 = vmatprep.subr.mxu0 0.0
  %1388 = vmatpush2.xpose.msra.mxu0 0.0
  %1389 = vmatprep.subr.mxu0 0.0
  %1390 = vmatpush2.xpose.msra.mxu0 0.0
  %1391 = vmatprep.mubr.f32.mxu0 0.0
  %1392 = vmatmul.mubr.f32.gmra.mxu0 %v1323
  %v1393 = vpop.f32.mrf.mxu0
  %v1394 = vadd.f32 %v134, %v1393
  %v1395 = vpop.f32.mrf.mxu0
  %1396 = vdwg.mxu0
  %v1397 = vsel %vm215, %v1394, -inf
  %1398 = vmax.xlane.f32.xlu0 %v1397
  %v1399 = vpop.xlane.xlu0 %1398
  %v1400 = vsub.f32 %v1394, %v1399
  %v1401 = vmul.f32 %v1400, 1.442695
  %v1402 = vpow.pop %v1401
  %v1403 = vsel %vm215, %v1402, 0.0
  %1404 = vadd.xlane.f32.xlu0 %v1403
  %v1405 = vpop.xlane.xlu0 %1404
  %v1406 = vrcp.pop %v1405
  %v1407 = vmul.f32 %v1402, %v1406
  %1408 = vrot.lane.b32.xlu0 %v822, 40
  %v1409 = vpop.permute.xlu0 %1408
  %v1411 = vsel %vm229, %v1407, 0
  %v1413 = vsel %vm233, %v1409, 0
  %1415 = vmatprep.subr.mxu0 0.0
  %1416 = vmatpush1.msra.mxu0 0.0
  %1417 = vmatprep.subr.mxu0 0.0
  %1418 = vmatpush1.msra.mxu0 0.0
  %1419 = vmatprep.subr.mxu0 0.0
  %1420 = vmatpush1.msra.mxu0 0.0
  %1421 = vmatprep.subr.mxu0 0.0
  %1422 = vmatpush1.msra.mxu0 0.0
  %1423 = vmatprep.subr.mxu0 0.0
  %1424 = vmatpush1.msra.mxu0 0.0
  %1425 = vmatprep.subr.mxu0 0.0
  %1426 = vmatpush1.msra.mxu0 0.0
  %1427 = vmatprep.subr.mxu0 0.0
  %1428 = vmatpush1.msra.mxu0 0.0
  %1429 = vmatprep.subr.mxu0 0.0
  %1430 = vmatpush1.msra.mxu0 0.0
  %1431 = vmatprep.subr.mxu0 0.0
  %1432 = vmatpush1.msra.mxu0 0.0
  %1433 = vmatprep.subr.mxu0 0.0
  %1434 = vmatpush1.msra.mxu0 0.0
  %1435 = vmatprep.subr.mxu0 0.0
  %1436 = vmatpush1.msra.mxu0 0.0
  %1437 = vmatprep.subr.mxu0 0.0
  %1438 = vmatpush1.msra.mxu0 0.0
  %1439 = vmatprep.subr.mxu0 0.0
  %1440 = vmatpush1.msra.mxu0 0.0
  %1441 = vmatprep.subr.mxu0 0.0
  %1442 = vmatpush1.msra.mxu0 0.0
  %1443 = vmatprep.subr.mxu0 0.0
  %1444 = vmatpush1.msra.mxu0 0.0
  %1445 = vmatprep.subr.mxu0 0.0
  %1446 = vmatpush1.msra.mxu0 %v1413
  %1447 = vmatprep.subr.mxu0 0.0
  %1448 = vmatpush2.msra.mxu0 0.0
  %1449 = vmatprep.subr.mxu0 0.0
  %1450 = vmatpush2.msra.mxu0 0.0
  %1451 = vmatprep.subr.mxu0 0.0
  %1452 = vmatpush2.msra.mxu0 0.0
  %1453 = vmatprep.subr.mxu0 0.0
  %1454 = vmatpush2.msra.mxu0 0.0
  %1455 = vmatprep.subr.mxu0 0.0
  %1456 = vmatpush2.msra.mxu0 0.0
  %1457 = vmatprep.subr.mxu0 0.0
  %1458 = vmatpush2.msra.mxu0 0.0
  %1459 = vmatprep.subr.mxu0 0.0
  %1460 = vmatpush2.msra.mxu0 0.0
  %1461 = vmatprep.subr.mxu0 0.0
  %1462 = vmatpush2.msra.mxu0 0.0
  %1463 = vmatprep.subr.mxu0 0.0
  %1464 = vmatpush2.msra.mxu0 0.0
  %1465 = vmatprep.subr.mxu0 0.0
  %1466 = vmatpush2.msra.mxu0 0.0
  %1467 = vmatprep.subr.mxu0 0.0
  %1468 = vmatpush2.msra.mxu0 0.0
  %1469 = vmatprep.subr.mxu0 0.0
  %1470 = vmatpush2.msra.mxu0 0.0
  %1471 = vmatprep.subr.mxu0 0.0
  %1472 = vmatpush2.msra.mxu0 0.0
  %1473 = vmatprep.subr.mxu0 0.0
  %1474 = vmatpush2.msra.mxu0 0.0
  %1475 = vmatprep.subr.mxu0 0.0
  %1476 = vmatpush2.msra.mxu0 0.0
  %1477 = vmatprep.subr.mxu0 0.0
  %1478 = vmatpush2.msra.mxu0 0.0
  %1479 = vmatprep.mubr.f32.mxu0 0.0
  %1480 = vmatmul.mubr.f32.gmra.mxu0 %v1411
  %v1481 = vpop.f32.mrf.mxu0
  %v1482 = vadd.f32 0.0, %v1481
  %v1483 = vpop.f32.mrf.mxu0
  %1484 = vdwg.mxu0
  %1486 = vrot.lane.b32.xlu0 %v1150, 8
  %v1487 = vpop.permute.xlu0 %1486
  %1490 = vrot.lane.b32.xlu0 %v1316, 16
  %v1491 = vpop.permute.xlu0 %1490
  %1494 = vrot.lane.b32.xlu0 %v1482, 24
  %v1495 = vpop.permute.xlu0 %1494
  %v1497 = vsel %vm139, %v984, %v1487
  %v1498 = vsel %vm817, %v1497, %v1491
  %v1499 = vsel %vm819, %v1498, %v1495
  %v1501 = vrot.slane %v1499, 4
  %v1503 = vsel %vm233, %v820, %v1501
  %v1504 = vld [vmem:[%s5] sm:$0xff]
  %v1505 = vld [vmem:[%s5 + $0x8] sm:$0xff]
  %v1506 = vld [vmem:[%s5 + $0x10] sm:$0xff]
  %v1507 = vld [vmem:[%s5 + $0x18] sm:$0xff]
  %v1508 = vpack.c.bf16 %v1503, %v1503
  %v1509 = vpack.c.bf16 %v1505, %v1504
  %v1510 = vpack.c.bf16 %v1507, %v1506
  %v1511 = vld [vmem:[%s6] sm:$0x1]
  %v1513 = vlaneseq
  %v1514 = vshrl.u32 %v1513, 7
  %v1515 = vsub.s32 0, %v1514
  %v1516 = vrot.slane %v1511, %v1515
  %v1519 = vsel %vm84, %v1508, 0
  %1521 = vmatprep.subr.bf16.mxu0 0
  %1522 = vmatpush1.bf16.msra.mxu0 0
  %1523 = vmatprep.subr.bf16.mxu0 0
  %1524 = vmatpush1.bf16.msra.mxu0 0
  %1525 = vmatprep.subr.bf16.mxu0 0
  %1526 = vmatpush1.bf16.msra.mxu0 0
  %1527 = vmatprep.subr.bf16.mxu0 0
  %1528 = vmatpush1.bf16.msra.mxu0 0
  %1529 = vmatprep.subr.bf16.mxu0 0
  %1530 = vmatpush1.bf16.msra.mxu0 0
  %1531 = vmatprep.subr.bf16.mxu0 0
  %1532 = vmatpush1.bf16.msra.mxu0 0
  %1533 = vmatprep.subr.bf16.mxu0 0
  %1534 = vmatpush1.bf16.msra.mxu0 %v1510
  %1535 = vmatprep.subr.bf16.mxu0 0
  %1536 = vmatpush1.bf16.msra.mxu0 %v1509
  %1537 = vmatprep.subr.bf16.mxu0 0
  %1538 = vmatpush2.bf16.msra.mxu0 0
  %1539 = vmatprep.subr.bf16.mxu0 0
  %1540 = vmatpush2.bf16.msra.mxu0 0
  %1541 = vmatprep.subr.bf16.mxu0 0
  %1542 = vmatpush2.bf16.msra.mxu0 0
  %1543 = vmatprep.subr.bf16.mxu0 0
  %1544 = vmatpush2.bf16.msra.mxu0 0
  %1545 = vmatprep.subr.bf16.mxu0 0
  %1546 = vmatpush2.bf16.msra.mxu0 0
  %1547 = vmatprep.subr.bf16.mxu0 0
  %1548 = vmatpush2.bf16.msra.mxu0 0
  %1549 = vmatprep.subr.bf16.mxu0 0
  %1550 = vmatpush2.bf16.msra.mxu0 0
  %1551 = vmatprep.subr.bf16.mxu0 0
  %1552 = vmatpush2.bf16.msra.mxu0 0
  %1553 = vmatprep.mubr.bf16.mxu0 0
  %1554 = vmatmul.mubr.bf16.gmra.mxu0 %v1519
  %v1555 = vpop.f32.mrf.mxu0
  %v1556 = vadd.f32 %v1516, %v1555
  %v1557 = vpop.f32.mrf.mxu0
  %v1558 = vpop.f32.mrf.mxu0
  %v1559 = vpop.f32.mrf.mxu0
  %1560 = vdwg.mxu0
  %v1561 = vadd.f32 %v69, %v1556
  %v1562 = vld [vmem:[%s7] sm:$0x1]
  %v1563 = vld [vmem:[%s8] sm:$0x1]
  %v1564 = vsel %vm84, %v1561, 0.0
  %1565 = vadd.xlane.f32.xlu0 %v1564
  %v1566 = vpop.xlane.xlu0 %1565
  %v1567 = vrcp.pop 32.0
  %v1568 = vmul.f32 %v1566, %v1567
  %v1569 = vsub.f32 %v1561, %v1568
  %v1570 = vmul.f32 %v1569, %v1569
  %v1571 = vsel %vm84, %v1570, 0.0
  %1572 = vadd.xlane.f32.xlu0 %v1571
  %v1573 = vpop.xlane.xlu0 %1572
  %v1574 = vmul.f32 %v1573, %v1567
  %v1575 = vadd.f32 %v1574, 1e-05
  %v1576 = vrsqrt.pop %v1575
  %v1577 = vmul.f32 %v1569, %v1576
  %v1579 = vlaneseq
  %v1580 = vshrl.u32 %v1579, 7
  %v1581 = vsub.s32 0, %v1580
  %v1582 = vrot.slane %v1562, %v1581
  %v1584 = vmul.f32 %v1577, %v1582
  %v1586 = vlaneseq
  %v1587 = vshrl.u32 %v1586, 7
  %v1588 = vsub.s32 0, %v1587
  %v1589 = vrot.slane %v1563, %v1588
  %v1591 = vadd.f32 %v1584, %v1589
  %v1592 = vld [vmem:[%s1] sm:$0xff]
  %v1593 = vld [vmem:[%s1 + $0x8] sm:$0xff]
  %v1594 = vld [vmem:[%s9] sm:$0xff]
  %v1595 = vld [vmem:[%s9 + $0x8] sm:$0xff]
  %v1596 = vld [vmem:[%s9 + $0x10] sm:$0xff]
  %v1597 = vld [vmem:[%s9 + $0x18] sm:$0xff]
  %v1598 = vpack.c.bf16 %v1591, %v1591
  %v1599 = vpack.c.bf16 %v1595, %v1594
  %v1600 = vpack.c.bf16 %v1597, %v1596
  %v1601 = vld [vmem:[%s10] sm:$0x1]
  %v1603 = vlaneseq
  %v1604 = vshrl.u32 %v1603, 7
  %v1605 = vsub.s32 0, %v1604
  %v1606 = vrot.slane %v1601, %v1605
  %v1609 = vsel %vm84, %v1598, 0
  %1611 = vmatprep.subr.bf16.mxu0 0
  %1612 = vmatpush1.bf16.msra.mxu0 0
  %1613 = vmatprep.subr.bf16.mxu0 0
  %1614 = vmatpush1.bf16.msra.mxu0 0
  %1615 = vmatprep.subr.bf16.mxu0 0
  %1616 = vmatpush1.bf16.msra.mxu0 0
  %1617 = vmatprep.subr.bf16.mxu0 0
  %1618 = vmatpush1.bf16.msra.mxu0 0
  %1619 = vmatprep.subr.bf16.mxu0 0
  %1620 = vmatpush1.bf16.msra.mxu0 0
  %1621 = vmatprep.subr.bf16.mxu0 0
  %1622 = vmatpush1.bf16.msra.mxu0 0
  %1623 = vmatprep.subr.bf16.mxu0 0
  %1624 = vmatpush1.bf16.msra.mxu0 %v1600
  %1625 = vmatprep.subr.bf16.mxu0 0
  %1626 = vmatpush1.bf16.msra.mxu0 %v1599
  %1627 = vmatprep.subr.bf16.mxu0 0
  %1628 = vmatpush2.bf16.msra.mxu0 0
  %1629 = vmatprep.subr.bf16.mxu0 0
  %1630 = vmatpush2.bf16.msra.mxu0 0
  %1631 = vmatprep.subr.bf16.mxu0 0
  %1632 = vmatpush2.bf16.msra.mxu0 0
  %1633 = vmatprep.subr.bf16.mxu0 0
  %1634 = vmatpush2.bf16.msra.mxu0 0
  %1635 = vmatprep.subr.bf16.mxu0 0
  %1636 = vmatpush2.bf16.msra.mxu0 0
  %1637 = vmatprep.subr.bf16.mxu0 0
  %1638 = vmatpush2.bf16.msra.mxu0 0
  %1639 = vmatprep.subr.bf16.mxu0 0
  %1640 = vmatpush2.bf16.msra.mxu0 0
  %1641 = vmatprep.subr.bf16.mxu0 0
  %1642 = vmatpush2.bf16.msra.mxu0 0
  %1643 = vmatprep.mubr.bf16.mxu0 0
  %1644 = vmatmul.mubr.bf16.gmra.mxu0 %v1609
  %v1645 = vpop.f32.mrf.mxu0
  %v1646 = vadd.f32 %v1606, %v1645
  %v1647 = vpop.f32.mrf.mxu0
  %v1648 = vpop.f32.mrf.mxu0
  %v1649 = vpop.f32.mrf.mxu0
  %1650 = vdwg.mxu0
  %v1651 = vmul.f32 %v1646, 0.35355338
  %v1653 = vsel %vm139, %v1651, 0
  %v1656 = vsel %vm139, %v1592, 0
  %1658 = vmatprep.subr.mxu0 0.0
  %1659 = vmatpush1.xpose.msra.mxu0 0.0
  %1660 = vmatprep.subr.mxu0 0.0
  %1661 = vmatpush1.xpose.msra.mxu0 0.0
  %1662 = vmatprep.subr.mxu0 0.0
  %1663 = vmatpush1.xpose.msra.mxu0 0.0
  %1664 = vmatprep.subr.mxu0 0.0
  %1665 = vmatpush1.xpose.msra.mxu0 0.0
  %1666 = vmatprep.subr.mxu0 0.0
  %1667 = vmatpush1.xpose.msra.mxu0 0.0
  %1668 = vmatprep.subr.mxu0 0.0
  %1669 = vmatpush1.xpose.msra.mxu0 0.0
  %1670 = vmatprep.subr.mxu0 0.0
  %1671 = vmatpush1.xpose.msra.mxu0 0.0
  %1672 = vmatprep.subr.mxu0 0.0
  %1673 = vmatpush1.xpose.msra.mxu0 0.0
  %1674 = vmatprep.subr.mxu0 0.0
  %1675 = vmatpush1.xpose.msra.mxu0 0.0
  %1676 = vmatprep.subr.mxu0 0.0
  %1677 = vmatpush1.xpose.msra.mxu0 0.0
  %1678 = vmatprep.subr.mxu0 0.0
  %1679 = vmatpush1.xpose.msra.mxu0 0.0
  %1680 = vmatprep.subr.mxu0 0.0
  %1681 = vmatpush1.xpose.msra.mxu0 0.0
  %1682 = vmatprep.subr.mxu0 0.0
  %1683 = vmatpush1.xpose.msra.mxu0 0.0
  %1684 = vmatprep.subr.mxu0 0.0
  %1685 = vmatpush1.xpose.msra.mxu0 0.0
  %1686 = vmatprep.subr.mxu0 0.0
  %1687 = vmatpush1.xpose.msra.mxu0 0.0
  %1688 = vmatprep.subr.mxu0 0.0
  %1689 = vmatpush1.xpose.msra.mxu0 %v1656
  %1690 = vmatprep.subr.mxu0 0.0
  %1691 = vmatpush2.xpose.msra.mxu0 0.0
  %1692 = vmatprep.subr.mxu0 0.0
  %1693 = vmatpush2.xpose.msra.mxu0 0.0
  %1694 = vmatprep.subr.mxu0 0.0
  %1695 = vmatpush2.xpose.msra.mxu0 0.0
  %1696 = vmatprep.subr.mxu0 0.0
  %1697 = vmatpush2.xpose.msra.mxu0 0.0
  %1698 = vmatprep.subr.mxu0 0.0
  %1699 = vmatpush2.xpose.msra.mxu0 0.0
  %1700 = vmatprep.subr.mxu0 0.0
  %1701 = vmatpush2.xpose.msra.mxu0 0.0
  %1702 = vmatprep.subr.mxu0 0.0
  %1703 = vmatpush2.xpose.msra.mxu0 0.0
  %1704 = vmatprep.subr.mxu0 0.0
  %1705 = vmatpush2.xpose.msra.mxu0 0.0
  %1706 = vmatprep.subr.mxu0 0.0
  %1707 = vmatpush2.xpose.msra.mxu0 0.0
  %1708 = vmatprep.subr.mxu0 0.0
  %1709 = vmatpush2.xpose.msra.mxu0 0.0
  %1710 = vmatprep.subr.mxu0 0.0
  %1711 = vmatpush2.xpose.msra.mxu0 0.0
  %1712 = vmatprep.subr.mxu0 0.0
  %1713 = vmatpush2.xpose.msra.mxu0 0.0
  %1714 = vmatprep.subr.mxu0 0.0
  %1715 = vmatpush2.xpose.msra.mxu0 0.0
  %1716 = vmatprep.subr.mxu0 0.0
  %1717 = vmatpush2.xpose.msra.mxu0 0.0
  %1718 = vmatprep.subr.mxu0 0.0
  %1719 = vmatpush2.xpose.msra.mxu0 0.0
  %1720 = vmatprep.subr.mxu0 0.0
  %1721 = vmatpush2.xpose.msra.mxu0 0.0
  %1722 = vmatprep.mubr.f32.mxu0 0.0
  %1723 = vmatmul.mubr.f32.gmra.mxu0 %v1653
  %v1724 = vpop.f32.mrf.mxu0
  %v1725 = vadd.f32 0.0, %v1724
  %v1726 = vpop.f32.mrf.mxu0
  %1727 = vdwg.mxu0
  %vm1728 = vcmask 60416
  %v1729 = vsel %vm1728, %v1725, -inf
  %1730 = vmax.xlane.f32.xlu0 %v1729
  %v1731 = vpop.xlane.xlu0 %1730
  %v1732 = vsub.f32 %v1725, %v1731
  %v1733 = vmul.f32 %v1732, 1.442695
  %v1734 = vpow.pop %v1733
  %v1735 = vsel %vm1728, %v1734, 0.0
  %1736 = vadd.xlane.f32.xlu0 %v1735
  %v1737 = vpop.xlane.xlu0 %1736
  %v1738 = vrcp.pop %v1737
  %v1739 = vmul.f32 %v1734, %v1738
  %1740 = vrot.lane.b32.xlu0 %v1592, 96
  %v1741 = vpop.permute.xlu0 %1740
  %v1744 = vsel %vm139, %v1739, 0
  %1746 = vmatprep.subr.mxu0 0.0
  %1747 = vmatpush1.msra.mxu0 0.0
  %1748 = vmatprep.subr.mxu0 0.0
  %1749 = vmatpush1.msra.mxu0 0.0
  %1750 = vmatprep.subr.mxu0 0.0
  %1751 = vmatpush1.msra.mxu0 0.0
  %1752 = vmatprep.subr.mxu0 0.0
  %1753 = vmatpush1.msra.mxu0 0.0
  %1754 = vmatprep.subr.mxu0 0.0
  %1755 = vmatpush1.msra.mxu0 0.0
  %1756 = vmatprep.subr.mxu0 0.0
  %1757 = vmatpush1.msra.mxu0 0.0
  %1758 = vmatprep.subr.mxu0 0.0
  %1759 = vmatpush1.msra.mxu0 0.0
  %1760 = vmatprep.subr.mxu0 0.0
  %1761 = vmatpush1.msra.mxu0 0.0
  %1762 = vmatprep.subr.mxu0 0.0
  %1763 = vmatpush1.msra.mxu0 0.0
  %1764 = vmatprep.subr.mxu0 0.0
  %1765 = vmatpush1.msra.mxu0 0.0
  %1766 = vmatprep.subr.mxu0 0.0
  %1767 = vmatpush1.msra.mxu0 0.0
  %1768 = vmatprep.subr.mxu0 0.0
  %1769 = vmatpush1.msra.mxu0 0.0
  %1770 = vmatprep.subr.mxu0 0.0
  %1771 = vmatpush1.msra.mxu0 0.0
  %1772 = vmatprep.subr.mxu0 0.0
  %1773 = vmatpush1.msra.mxu0 0.0
  %1774 = vmatprep.subr.mxu0 0.0
  %1775 = vmatpush1.msra.mxu0 0.0
  %1776 = vmatprep.subr.mxu0 0.0
  %1777 = vmatpush1.msra.mxu0 %v1741
  %1778 = vmatprep.subr.mxu0 0.0
  %1779 = vmatpush2.msra.mxu0 0.0
  %1780 = vmatprep.subr.mxu0 0.0
  %1781 = vmatpush2.msra.mxu0 0.0
  %1782 = vmatprep.subr.mxu0 0.0
  %1783 = vmatpush2.msra.mxu0 0.0
  %1784 = vmatprep.subr.mxu0 0.0
  %1785 = vmatpush2.msra.mxu0 0.0
  %1786 = vmatprep.subr.mxu0 0.0
  %1787 = vmatpush2.msra.mxu0 0.0
  %1788 = vmatprep.subr.mxu0 0.0
  %1789 = vmatpush2.msra.mxu0 0.0
  %1790 = vmatprep.subr.mxu0 0.0
  %1791 = vmatpush2.msra.mxu0 0.0
  %1792 = vmatprep.subr.mxu0 0.0
  %1793 = vmatpush2.msra.mxu0 0.0
  %1794 = vmatprep.subr.mxu0 0.0
  %1795 = vmatpush2.msra.mxu0 0.0
  %1796 = vmatprep.subr.mxu0 0.0
  %1797 = vmatpush2.msra.mxu0 0.0
  %1798 = vmatprep.subr.mxu0 0.0
  %1799 = vmatpush2.msra.mxu0 0.0
  %1800 = vmatprep.subr.mxu0 0.0
  %1801 = vmatpush2.msra.mxu0 0.0
  %1802 = vmatprep.subr.mxu0 0.0
  %1803 = vmatpush2.msra.mxu0 0.0
  %1804 = vmatprep.subr.mxu0 0.0
  %1805 = vmatpush2.msra.mxu0 0.0
  %1806 = vmatprep.subr.mxu0 0.0
  %1807 = vmatpush2.msra.mxu0 0.0
  %1808 = vmatprep.subr.mxu0 0.0
  %1809 = vmatpush2.msra.mxu0 0.0
  %1810 = vmatprep.mubr.f32.mxu0 0.0
  %1811 = vmatmul.mubr.f32.gmra.mxu0 %v1744
  %v1812 = vpop.f32.mrf.mxu0
  %v1813 = vadd.f32 0.0, %v1812
  %v1814 = vpop.f32.mrf.mxu0
  %1815 = vdwg.mxu0
  %1816 = vrot.lane.b32.xlu0 %v1651, 120
  %v1817 = vpop.permute.xlu0 %1816
  %1818 = vrot.lane.b32.xlu0 %v1592, 120
  %v1819 = vpop.permute.xlu0 %1818
  %v1820 = vsel %vm139, %v1817, 0
  %v1822 = vsel %vm139, %v1819, 0
  %1824 = vmatprep.subr.mxu0 0.0
  %1825 = vmatpush1.xpose.msra.mxu0 0.0
  %1826 = vmatprep.subr.mxu0 0.0
  %1827 = vmatpush1.xpose.msra.mxu0 0.0
  %1828 = vmatprep.subr.mxu0 0.0
  %1829 = vmatpush1.xpose.msra.mxu0 0.0
  %1830 = vmatprep.subr.mxu0 0.0
  %1831 = vmatpush1.xpose.msra.mxu0 0.0
  %1832 = vmatprep.subr.mxu0 0.0
  %1833 = vmatpush1.xpose.msra.mxu0 0.0
  %1834 = vmatprep.subr.mxu0 0.0
  %1835 = vmatpush1.xpose.msra.mxu0 0.0
  %1836 = vmatprep.subr.mxu0 0.0
  %1837 = vmatpush1.xpose.msra.mxu0 0.0
  %1838 = vmatprep.subr.mxu0 0.0
  %1839 = vmatpush1.xpose.msra.mxu0 0.0
  %1840 = vmatprep.subr.mxu0 0.0
  %1841 = vmatpush1.xpose.msra.mxu0 0.0
  %1842 = vmatprep.subr.mxu0 0.0
  %1843 = vmatpush1.xpose.msra.mxu0 0.0
  %1844 = vmatprep.subr.mxu0 0.0
  %1845 = vmatpush1.xpose.msra.mxu0 0.0
  %1846 = vmatprep.subr.mxu0 0.0
  %1847 = vmatpush1.xpose.msra.mxu0 0.0
  %1848 = vmatprep.subr.mxu0 0.0
  %1849 = vmatpush1.xpose.msra.mxu0 0.0
  %1850 = vmatprep.subr.mxu0 0.0
  %1851 = vmatpush1.xpose.msra.mxu0 0.0
  %1852 = vmatprep.subr.mxu0 0.0
  %1853 = vmatpush1.xpose.msra.mxu0 0.0
  %1854 = vmatprep.subr.mxu0 0.0
  %1855 = vmatpush1.xpose.msra.mxu0 %v1822
  %1856 = vmatprep.subr.mxu0 0.0
  %1857 = vmatpush2.xpose.msra.mxu0 0.0
  %1858 = vmatprep.subr.mxu0 0.0
  %1859 = vmatpush2.xpose.msra.mxu0 0.0
  %1860 = vmatprep.subr.mxu0 0.0
  %1861 = vmatpush2.xpose.msra.mxu0 0.0
  %1862 = vmatprep.subr.mxu0 0.0
  %1863 = vmatpush2.xpose.msra.mxu0 0.0
  %1864 = vmatprep.subr.mxu0 0.0
  %1865 = vmatpush2.xpose.msra.mxu0 0.0
  %1866 = vmatprep.subr.mxu0 0.0
  %1867 = vmatpush2.xpose.msra.mxu0 0.0
  %1868 = vmatprep.subr.mxu0 0.0
  %1869 = vmatpush2.xpose.msra.mxu0 0.0
  %1870 = vmatprep.subr.mxu0 0.0
  %1871 = vmatpush2.xpose.msra.mxu0 0.0
  %1872 = vmatprep.subr.mxu0 0.0
  %1873 = vmatpush2.xpose.msra.mxu0 0.0
  %1874 = vmatprep.subr.mxu0 0.0
  %1875 = vmatpush2.xpose.msra.mxu0 0.0
  %1876 = vmatprep.subr.mxu0 0.0
  %1877 = vmatpush2.xpose.msra.mxu0 0.0
  %1878 = vmatprep.subr.mxu0 0.0
  %1879 = vmatpush2.xpose.msra.mxu0 0.0
  %1880 = vmatprep.subr.mxu0 0.0
  %1881 = vmatpush2.xpose.msra.mxu0 0.0
  %1882 = vmatprep.subr.mxu0 0.0
  %1883 = vmatpush2.xpose.msra.mxu0 0.0
  %1884 = vmatprep.subr.mxu0 0.0
  %1885 = vmatpush2.xpose.msra.mxu0 0.0
  %1886 = vmatprep.subr.mxu0 0.0
  %1887 = vmatpush2.xpose.msra.mxu0 0.0
  %1888 = vmatprep.mubr.f32.mxu0 0.0
  %1889 = vmatmul.mubr.f32.gmra.mxu0 %v1820
  %v1890 = vpop.f32.mrf.mxu0
  %v1891 = vadd.f32 0.0, %v1890
  %v1892 = vpop.f32.mrf.mxu0
  %1893 = vdwg.mxu0
  %v1894 = vsel %vm1728, %v1891, -inf
  %1895 = vmax.xlane.f32.xlu0 %v1894
  %v1896 = vpop.xlane.xlu0 %1895
  %v1897 = vsub.f32 %v1891, %v1896
  %v1898 = vmul.f32 %v1897, 1.442695
  %v1899 = vpow.pop %v1898
  %v1900 = vsel %vm1728, %v1899, 0.0
  %1901 = vadd.xlane.f32.xlu0 %v1900
  %v1902 = vpop.xlane.xlu0 %1901
  %v1903 = vrcp.pop %v1902
  %v1904 = vmul.f32 %v1899, %v1903
  %1905 = vrot.lane.b32.xlu0 %v1592, 88
  %v1906 = vpop.permute.xlu0 %1905
  %v1909 = vsel %vm139, %v1904, 0
  %1911 = vmatprep.subr.mxu0 0.0
  %1912 = vmatpush1.msra.mxu0 0.0
  %1913 = vmatprep.subr.mxu0 0.0
  %1914 = vmatpush1.msra.mxu0 0.0
  %1915 = vmatprep.subr.mxu0 0.0
  %1916 = vmatpush1.msra.mxu0 0.0
  %1917 = vmatprep.subr.mxu0 0.0
  %1918 = vmatpush1.msra.mxu0 0.0
  %1919 = vmatprep.subr.mxu0 0.0
  %1920 = vmatpush1.msra.mxu0 0.0
  %1921 = vmatprep.subr.mxu0 0.0
  %1922 = vmatpush1.msra.mxu0 0.0
  %1923 = vmatprep.subr.mxu0 0.0
  %1924 = vmatpush1.msra.mxu0 0.0
  %1925 = vmatprep.subr.mxu0 0.0
  %1926 = vmatpush1.msra.mxu0 0.0
  %1927 = vmatprep.subr.mxu0 0.0
  %1928 = vmatpush1.msra.mxu0 0.0
  %1929 = vmatprep.subr.mxu0 0.0
  %1930 = vmatpush1.msra.mxu0 0.0
  %1931 = vmatprep.subr.mxu0 0.0
  %1932 = vmatpush1.msra.mxu0 0.0
  %1933 = vmatprep.subr.mxu0 0.0
  %1934 = vmatpush1.msra.mxu0 0.0
  %1935 = vmatprep.subr.mxu0 0.0
  %1936 = vmatpush1.msra.mxu0 0.0
  %1937 = vmatprep.subr.mxu0 0.0
  %1938 = vmatpush1.msra.mxu0 0.0
  %1939 = vmatprep.subr.mxu0 0.0
  %1940 = vmatpush1.msra.mxu0 0.0
  %1941 = vmatprep.subr.mxu0 0.0
  %1942 = vmatpush1.msra.mxu0 %v1906
  %1943 = vmatprep.subr.mxu0 0.0
  %1944 = vmatpush2.msra.mxu0 0.0
  %1945 = vmatprep.subr.mxu0 0.0
  %1946 = vmatpush2.msra.mxu0 0.0
  %1947 = vmatprep.subr.mxu0 0.0
  %1948 = vmatpush2.msra.mxu0 0.0
  %1949 = vmatprep.subr.mxu0 0.0
  %1950 = vmatpush2.msra.mxu0 0.0
  %1951 = vmatprep.subr.mxu0 0.0
  %1952 = vmatpush2.msra.mxu0 0.0
  %1953 = vmatprep.subr.mxu0 0.0
  %1954 = vmatpush2.msra.mxu0 0.0
  %1955 = vmatprep.subr.mxu0 0.0
  %1956 = vmatpush2.msra.mxu0 0.0
  %1957 = vmatprep.subr.mxu0 0.0
  %1958 = vmatpush2.msra.mxu0 0.0
  %1959 = vmatprep.subr.mxu0 0.0
  %1960 = vmatpush2.msra.mxu0 0.0
  %1961 = vmatprep.subr.mxu0 0.0
  %1962 = vmatpush2.msra.mxu0 0.0
  %1963 = vmatprep.subr.mxu0 0.0
  %1964 = vmatpush2.msra.mxu0 0.0
  %1965 = vmatprep.subr.mxu0 0.0
  %1966 = vmatpush2.msra.mxu0 0.0
  %1967 = vmatprep.subr.mxu0 0.0
  %1968 = vmatpush2.msra.mxu0 0.0
  %1969 = vmatprep.subr.mxu0 0.0
  %1970 = vmatpush2.msra.mxu0 0.0
  %1971 = vmatprep.subr.mxu0 0.0
  %1972 = vmatpush2.msra.mxu0 0.0
  %1973 = vmatprep.subr.mxu0 0.0
  %1974 = vmatpush2.msra.mxu0 0.0
  %1975 = vmatprep.mubr.f32.mxu0 0.0
  %1976 = vmatmul.mubr.f32.gmra.mxu0 %v1909
  %v1977 = vpop.f32.mrf.mxu0
  %v1978 = vadd.f32 0.0, %v1977
  %v1979 = vpop.f32.mrf.mxu0
  %1980 = vdwg.mxu0
  %1981 = vrot.lane.b32.xlu0 %v1651, 112
  %v1982 = vpop.permute.xlu0 %1981
  %1983 = vrot.lane.b32.xlu0 %v1592, 112
  %v1984 = vpop.permute.xlu0 %1983
  %v1985 = vsel %vm139, %v1982, 0
  %v1987 = vsel %vm139, %v1984, 0
  %1989 = vmatprep.subr.mxu0 0.0
  %1990 = vmatpush1.xpose.msra.mxu0 0.0
  %1991 = vmatprep.subr.mxu0 0.0
  %1992 = vmatpush1.xpose.msra.mxu0 0.0
  %1993 = vmatprep.subr.mxu0 0.0
  %1994 = vmatpush1.xpose.msra.mxu0 0.0
  %1995 = vmatprep.subr.mxu0 0.0
  %1996 = vmatpush1.xpose.msra.mxu0 0.0
  %1997 = vmatprep.subr.mxu0 0.0
  %1998 = vmatpush1.xpose.msra.mxu0 0.0
  %1999 = vmatprep.subr.mxu0 0.0
  %2000 = vmatpush1.xpose.msra.mxu0 0.0
  %2001 = vmatprep.subr.mxu0 0.0
  %2002 = vmatpush1.xpose.msra.mxu0 0.0
  %2003 = vmatprep.subr.mxu0 0.0
  %2004 = vmatpush1.xpose.msra.mxu0 0.0
  %2005 = vmatprep.subr.mxu0 0.0
  %2006 = vmatpush1.xpose.msra.mxu0 0.0
  %2007 = vmatprep.subr.mxu0 0.0
  %2008 = vmatpush1.xpose.msra.mxu0 0.0
  %2009 = vmatprep.subr.mxu0 0.0
  %2010 = vmatpush1.xpose.msra.mxu0 0.0
  %2011 = vmatprep.subr.mxu0 0.0
  %2012 = vmatpush1.xpose.msra.mxu0 0.0
  %2013 = vmatprep.subr.mxu0 0.0
  %2014 = vmatpush1.xpose.msra.mxu0 0.0
  %2015 = vmatprep.subr.mxu0 0.0
  %2016 = vmatpush1.xpose.msra.mxu0 0.0
  %2017 = vmatprep.subr.mxu0 0.0
  %2018 = vmatpush1.xpose.msra.mxu0 0.0
  %2019 = vmatprep.subr.mxu0 0.0
  %2020 = vmatpush1.xpose.msra.mxu0 %v1987
  %2021 = vmatprep.subr.mxu0 0.0
  %2022 = vmatpush2.xpose.msra.mxu0 0.0
  %2023 = vmatprep.subr.mxu0 0.0
  %2024 = vmatpush2.xpose.msra.mxu0 0.0
  %2025 = vmatprep.subr.mxu0 0.0
  %2026 = vmatpush2.xpose.msra.mxu0 0.0
  %2027 = vmatprep.subr.mxu0 0.0
  %2028 = vmatpush2.xpose.msra.mxu0 0.0
  %2029 = vmatprep.subr.mxu0 0.0
  %2030 = vmatpush2.xpose.msra.mxu0 0.0
  %2031 = vmatprep.subr.mxu0 0.0
  %2032 = vmatpush2.xpose.msra.mxu0 0.0
  %2033 = vmatprep.subr.mxu0 0.0
  %2034 = vmatpush2.xpose.msra.mxu0 0.0
  %2035 = vmatprep.subr.mxu0 0.0
  %2036 = vmatpush2.xpose.msra.mxu0 0.0
  %2037 = vmatprep.subr.mxu0 0.0
  %2038 = vmatpush2.xpose.msra.mxu0 0.0
  %2039 = vmatprep.subr.mxu0 0.0
  %2040 = vmatpush2.xpose.msra.mxu0 0.0
  %2041 = vmatprep.subr.mxu0 0.0
  %2042 = vmatpush2.xpose.msra.mxu0 0.0
  %2043 = vmatprep.subr.mxu0 0.0
  %2044 = vmatpush2.xpose.msra.mxu0 0.0
  %2045 = vmatprep.subr.mxu0 0.0
  %2046 = vmatpush2.xpose.msra.mxu0 0.0
  %2047 = vmatprep.subr.mxu0 0.0
  %2048 = vmatpush2.xpose.msra.mxu0 0.0
  %2049 = vmatprep.subr.mxu0 0.0
  %2050 = vmatpush2.xpose.msra.mxu0 0.0
  %2051 = vmatprep.subr.mxu0 0.0
  %2052 = vmatpush2.xpose.msra.mxu0 0.0
  %2053 = vmatprep.mubr.f32.mxu0 0.0
  %2054 = vmatmul.mubr.f32.gmra.mxu0 %v1985
  %v2055 = vpop.f32.mrf.mxu0
  %v2056 = vadd.f32 0.0, %v2055
  %v2057 = vpop.f32.mrf.mxu0
  %2058 = vdwg.mxu0
  %v2059 = vsel %vm1728, %v2056, -inf
  %2060 = vmax.xlane.f32.xlu0 %v2059
  %v2061 = vpop.xlane.xlu0 %2060
  %v2062 = vsub.f32 %v2056, %v2061
  %v2063 = vmul.f32 %v2062, 1.442695
  %v2064 = vpow.pop %v2063
  %v2065 = vsel %vm1728, %v2064, 0.0
  %2066 = vadd.xlane.f32.xlu0 %v2065
  %v2067 = vpop.xlane.xlu0 %2066
  %v2068 = vrcp.pop %v2067
  %v2069 = vmul.f32 %v2064, %v2068
  %2070 = vrot.lane.b32.xlu0 %v1592, 80
  %v2071 = vpop.permute.xlu0 %2070
  %v2074 = vsel %vm139, %v2069, 0
  %2076 = vmatprep.subr.mxu0 0.0
  %2077 = vmatpush1.msra.mxu0 0.0
  %2078 = vmatprep.subr.mxu0 0.0
  %2079 = vmatpush1.msra.mxu0 0.0
  %2080 = vmatprep.subr.mxu0 0.0
  %2081 = vmatpush1.msra.mxu0 0.0
  %2082 = vmatprep.subr.mxu0 0.0
  %2083 = vmatpush1.msra.mxu0 0.0
  %2084 = vmatprep.subr.mxu0 0.0
  %2085 = vmatpush1.msra.mxu0 0.0
  %2086 = vmatprep.subr.mxu0 0.0
  %2087 = vmatpush1.msra.mxu0 0.0
  %2088 = vmatprep.subr.mxu0 0.0
  %2089 = vmatpush1.msra.mxu0 0.0
  %2090 = vmatprep.subr.mxu0 0.0
  %2091 = vmatpush1.msra.mxu0 0.0
  %2092 = vmatprep.subr.mxu0 0.0
  %2093 = vmatpush1.msra.mxu0 0.0
  %2094 = vmatprep.subr.mxu0 0.0
  %2095 = vmatpush1.msra.mxu0 0.0
  %2096 = vmatprep.subr.mxu0 0.0
  %2097 = vmatpush1.msra.mxu0 0.0
  %2098 = vmatprep.subr.mxu0 0.0
  %2099 = vmatpush1.msra.mxu0 0.0
  %2100 = vmatprep.subr.mxu0 0.0
  %2101 = vmatpush1.msra.mxu0 0.0
  %2102 = vmatprep.subr.mxu0 0.0
  %2103 = vmatpush1.msra.mxu0 0.0
  %2104 = vmatprep.subr.mxu0 0.0
  %2105 = vmatpush1.msra.mxu0 0.0
  %2106 = vmatprep.subr.mxu0 0.0
  %2107 = vmatpush1.msra.mxu0 %v2071
  %2108 = vmatprep.subr.mxu0 0.0
  %2109 = vmatpush2.msra.mxu0 0.0
  %2110 = vmatprep.subr.mxu0 0.0
  %2111 = vmatpush2.msra.mxu0 0.0
  %2112 = vmatprep.subr.mxu0 0.0
  %2113 = vmatpush2.msra.mxu0 0.0
  %2114 = vmatprep.subr.mxu0 0.0
  %2115 = vmatpush2.msra.mxu0 0.0
  %2116 = vmatprep.subr.mxu0 0.0
  %2117 = vmatpush2.msra.mxu0 0.0
  %2118 = vmatprep.subr.mxu0 0.0
  %2119 = vmatpush2.msra.mxu0 0.0
  %2120 = vmatprep.subr.mxu0 0.0
  %2121 = vmatpush2.msra.mxu0 0.0
  %2122 = vmatprep.subr.mxu0 0.0
  %2123 = vmatpush2.msra.mxu0 0.0
  %2124 = vmatprep.subr.mxu0 0.0
  %2125 = vmatpush2.msra.mxu0 0.0
  %2126 = vmatprep.subr.mxu0 0.0
  %2127 = vmatpush2.msra.mxu0 0.0
  %2128 = vmatprep.subr.mxu0 0.0
  %2129 = vmatpush2.msra.mxu0 0.0
  %2130 = vmatprep.subr.mxu0 0.0
  %2131 = vmatpush2.msra.mxu0 0.0
  %2132 = vmatprep.subr.mxu0 0.0
  %2133 = vmatpush2.msra.mxu0 0.0
  %2134 = vmatprep.subr.mxu0 0.0
  %2135 = vmatpush2.msra.mxu0 0.0
  %2136 = vmatprep.subr.mxu0 0.0
  %2137 = vmatpush2.msra.mxu0 0.0
  %2138 = vmatprep.subr.mxu0 0.0
  %2139 = vmatpush2.msra.mxu0 0.0
  %2140 = vmatprep.mubr.f32.mxu0 0.0
  %2141 = vmatmul.mubr.f32.gmra.mxu0 %v2074
  %v2142 = vpop.f32.mrf.mxu0
  %v2143 = vadd.f32 0.0, %v2142
  %v2144 = vpop.f32.mrf.mxu0
  %2145 = vdwg.mxu0
  %2146 = vrot.lane.b32.xlu0 %v1651, 104
  %v2147 = vpop.permute.xlu0 %2146
  %2148 = vrot.lane.b32.xlu0 %v1592, 104
  %v2149 = vpop.permute.xlu0 %2148
  %v2150 = vsel %vm139, %v2147, 0
  %v2152 = vsel %vm139, %v2149, 0
  %2154 = vmatprep.subr.mxu0 0.0
  %2155 = vmatpush1.xpose.msra.mxu0 0.0
  %2156 = vmatprep.subr.mxu0 0.0
  %2157 = vmatpush1.xpose.msra.mxu0 0.0
  %2158 = vmatprep.subr.mxu0 0.0
  %2159 = vmatpush1.xpose.msra.mxu0 0.0
  %2160 = vmatprep.subr.mxu0 0.0
  %2161 = vmatpush1.xpose.msra.mxu0 0.0
  %2162 = vmatprep.subr.mxu0 0.0
  %2163 = vmatpush1.xpose.msra.mxu0 0.0
  %2164 = vmatprep.subr.mxu0 0.0
  %2165 = vmatpush1.xpose.msra.mxu0 0.0
  %2166 = vmatprep.subr.mxu0 0.0
  %2167 = vmatpush1.xpose.msra.mxu0 0.0
  %2168 = vmatprep.subr.mxu0 0.0
  %2169 = vmatpush1.xpose.msra.mxu0 0.0
  %2170 = vmatprep.subr.mxu0 0.0
  %2171 = vmatpush1.xpose.msra.mxu0 0.0
  %2172 = vmatprep.subr.mxu0 0.0
  %2173 = vmatpush1.xpose.msra.mxu0 0.0
  %2174 = vmatprep.subr.mxu0 0.0
  %2175 = vmatpush1.xpose.msra.mxu0 0.0
  %2176 = vmatprep.subr.mxu0 0.0
  %2177 = vmatpush1.xpose.msra.mxu0 0.0
  %2178 = vmatprep.subr.mxu0 0.0
  %2179 = vmatpush1.xpose.msra.mxu0 0.0
  %2180 = vmatprep.subr.mxu0 0.0
  %2181 = vmatpush1.xpose.msra.mxu0 0.0
  %2182 = vmatprep.subr.mxu0 0.0
  %2183 = vmatpush1.xpose.msra.mxu0 0.0
  %2184 = vmatprep.subr.mxu0 0.0
  %2185 = vmatpush1.xpose.msra.mxu0 %v2152
  %2186 = vmatprep.subr.mxu0 0.0
  %2187 = vmatpush2.xpose.msra.mxu0 0.0
  %2188 = vmatprep.subr.mxu0 0.0
  %2189 = vmatpush2.xpose.msra.mxu0 0.0
  %2190 = vmatprep.subr.mxu0 0.0
  %2191 = vmatpush2.xpose.msra.mxu0 0.0
  %2192 = vmatprep.subr.mxu0 0.0
  %2193 = vmatpush2.xpose.msra.mxu0 0.0
  %2194 = vmatprep.subr.mxu0 0.0
  %2195 = vmatpush2.xpose.msra.mxu0 0.0
  %2196 = vmatprep.subr.mxu0 0.0
  %2197 = vmatpush2.xpose.msra.mxu0 0.0
  %2198 = vmatprep.subr.mxu0 0.0
  %2199 = vmatpush2.xpose.msra.mxu0 0.0
  %2200 = vmatprep.subr.mxu0 0.0
  %2201 = vmatpush2.xpose.msra.mxu0 0.0
  %2202 = vmatprep.subr.mxu0 0.0
  %2203 = vmatpush2.xpose.msra.mxu0 0.0
  %2204 = vmatprep.subr.mxu0 0.0
  %2205 = vmatpush2.xpose.msra.mxu0 0.0
  %2206 = vmatprep.subr.mxu0 0.0
  %2207 = vmatpush2.xpose.msra.mxu0 0.0
  %2208 = vmatprep.subr.mxu0 0.0
  %2209 = vmatpush2.xpose.msra.mxu0 0.0
  %2210 = vmatprep.subr.mxu0 0.0
  %2211 = vmatpush2.xpose.msra.mxu0 0.0
  %2212 = vmatprep.subr.mxu0 0.0
  %2213 = vmatpush2.xpose.msra.mxu0 0.0
  %2214 = vmatprep.subr.mxu0 0.0
  %2215 = vmatpush2.xpose.msra.mxu0 0.0
  %2216 = vmatprep.subr.mxu0 0.0
  %2217 = vmatpush2.xpose.msra.mxu0 0.0
  %2218 = vmatprep.mubr.f32.mxu0 0.0
  %2219 = vmatmul.mubr.f32.gmra.mxu0 %v2150
  %v2220 = vpop.f32.mrf.mxu0
  %v2221 = vadd.f32 0.0, %v2220
  %v2222 = vpop.f32.mrf.mxu0
  %2223 = vdwg.mxu0
  %v2224 = vsel %vm1728, %v2221, -inf
  %2225 = vmax.xlane.f32.xlu0 %v2224
  %v2226 = vpop.xlane.xlu0 %2225
  %v2227 = vsub.f32 %v2221, %v2226
  %v2228 = vmul.f32 %v2227, 1.442695
  %v2229 = vpow.pop %v2228
  %v2230 = vsel %vm1728, %v2229, 0.0
  %2231 = vadd.xlane.f32.xlu0 %v2230
  %v2232 = vpop.xlane.xlu0 %2231
  %v2233 = vrcp.pop %v2232
  %v2234 = vmul.f32 %v2229, %v2233
  %2235 = vrot.lane.b32.xlu0 %v1592, 72
  %v2236 = vpop.permute.xlu0 %2235
  %v2239 = vsel %vm139, %v2234, 0
  %2241 = vmatprep.subr.mxu0 0.0
  %2242 = vmatpush1.msra.mxu0 0.0
  %2243 = vmatprep.subr.mxu0 0.0
  %2244 = vmatpush1.msra.mxu0 0.0
  %2245 = vmatprep.subr.mxu0 0.0
  %2246 = vmatpush1.msra.mxu0 0.0
  %2247 = vmatprep.subr.mxu0 0.0
  %2248 = vmatpush1.msra.mxu0 0.0
  %2249 = vmatprep.subr.mxu0 0.0
  %2250 = vmatpush1.msra.mxu0 0.0
  %2251 = vmatprep.subr.mxu0 0.0
  %2252 = vmatpush1.msra.mxu0 0.0
  %2253 = vmatprep.subr.mxu0 0.0
  %2254 = vmatpush1.msra.mxu0 0.0
  %2255 = vmatprep.subr.mxu0 0.0
  %2256 = vmatpush1.msra.mxu0 0.0
  %2257 = vmatprep.subr.mxu0 0.0
  %2258 = vmatpush1.msra.mxu0 0.0
  %2259 = vmatprep.subr.mxu0 0.0
  %2260 = vmatpush1.msra.mxu0 0.0
  %2261 = vmatprep.subr.mxu0 0.0
  %2262 = vmatpush1.msra.mxu0 0.0
  %2263 = vmatprep.subr.mxu0 0.0
  %2264 = vmatpush1.msra.mxu0 0.0
  %2265 = vmatprep.subr.mxu0 0.0
  %2266 = vmatpush1.msra.mxu0 0.0
  %2267 = vmatprep.subr.mxu0 0.0
  %2268 = vmatpush1.msra.mxu0 0.0
  %2269 = vmatprep.subr.mxu0 0.0
  %2270 = vmatpush1.msra.mxu0 0.0
  %2271 = vmatprep.subr.mxu0 0.0
  %2272 = vmatpush1.msra.mxu0 %v2236
  %2273 = vmatprep.subr.mxu0 0.0
  %2274 = vmatpush2.msra.mxu0 0.0
  %2275 = vmatprep.subr.mxu0 0.0
  %2276 = vmatpush2.msra.mxu0 0.0
  %2277 = vmatprep.subr.mxu0 0.0
  %2278 = vmatpush2.msra.mxu0 0.0
  %2279 = vmatprep.subr.mxu0 0.0
  %2280 = vmatpush2.msra.mxu0 0.0
  %2281 = vmatprep.subr.mxu0 0.0
  %2282 = vmatpush2.msra.mxu0 0.0
  %2283 = vmatprep.subr.mxu0 0.0
  %2284 = vmatpush2.msra.mxu0 0.0
  %2285 = vmatprep.subr.mxu0 0.0
  %2286 = vmatpush2.msra.mxu0 0.0
  %2287 = vmatprep.subr.mxu0 0.0
  %2288 = vmatpush2.msra.mxu0 0.0
  %2289 = vmatprep.subr.mxu0 0.0
  %2290 = vmatpush2.msra.mxu0 0.0
  %2291 = vmatprep.subr.mxu0 0.0
  %2292 = vmatpush2.msra.mxu0 0.0
  %2293 = vmatprep.subr.mxu0 0.0
  %2294 = vmatpush2.msra.mxu0 0.0
  %2295 = vmatprep.subr.mxu0 0.0
  %2296 = vmatpush2.msra.mxu0 0.0
  %2297 = vmatprep.subr.mxu0 0.0
  %2298 = vmatpush2.msra.mxu0 0.0
  %2299 = vmatprep.subr.mxu0 0.0
  %2300 = vmatpush2.msra.mxu0 0.0
  %2301 = vmatprep.subr.mxu0 0.0
  %2302 = vmatpush2.msra.mxu0 0.0
  %2303 = vmatprep.subr.mxu0 0.0
  %2304 = vmatpush2.msra.mxu0 0.0
  %2305 = vmatprep.mubr.f32.mxu0 0.0
  %2306 = vmatmul.mubr.f32.gmra.mxu0 %v2239
  %v2307 = vpop.f32.mrf.mxu0
  %v2308 = vadd.f32 0.0, %v2307
  %v2309 = vpop.f32.mrf.mxu0
  %2310 = vdwg.mxu0
  %2312 = vrot.lane.b32.xlu0 %v1978, 8
  %v2313 = vpop.permute.xlu0 %2312
  %2316 = vrot.lane.b32.xlu0 %v2143, 16
  %v2317 = vpop.permute.xlu0 %2316
  %2320 = vrot.lane.b32.xlu0 %v2308, 24
  %v2321 = vpop.permute.xlu0 %2320
  %v2323 = vsel %vm139, %v1813, %v2313
  %v2324 = vsel %vm817, %v2323, %v2317
  %v2325 = vsel %vm819, %v2324, %v2321
  %v2326 = vrot.slane %v1651, 4
  %v2327 = vsel %vm139, %v2326, 0
  %v2330 = vsel %vm139, %v1593, 0
  %2332 = vmatprep.subr.mxu0 0.0
  %2333 = vmatpush1.xpose.msra.mxu0 0.0
  %2334 = vmatprep.subr.mxu0 0.0
  %2335 = vmatpush1.xpose.msra.mxu0 0.0
  %2336 = vmatprep.subr.mxu0 0.0
  %2337 = vmatpush1.xpose.msra.mxu0 0.0
  %2338 = vmatprep.subr.mxu0 0.0
  %2339 = vmatpush1.xpose.msra.mxu0 0.0
  %2340 = vmatprep.subr.mxu0 0.0
  %2341 = vmatpush1.xpose.msra.mxu0 0.0
  %2342 = vmatprep.subr.mxu0 0.0
  %2343 = vmatpush1.xpose.msra.mxu0 0.0
  %2344 = vmatprep.subr.mxu0 0.0
  %2345 = vmatpush1.xpose.msra.mxu0 0.0
  %2346 = vmatprep.subr.mxu0 0.0
  %2347 = vmatpush1.xpose.msra.mxu0 0.0
  %2348 = vmatprep.subr.mxu0 0.0
  %2349 = vmatpush1.xpose.msra.mxu0 0.0
  %2350 = vmatprep.subr.mxu0 0.0
  %2351 = vmatpush1.xpose.msra.mxu0 0.0
  %2352 = vmatprep.subr.mxu0 0.0
  %2353 = vmatpush1.xpose.msra.mxu0 0.0
  %2354 = vmatprep.subr.mxu0 0.0
  %2355 = vmatpush1.xpose.msra.mxu0 0.0
  %2356 = vmatprep.subr.mxu0 0.0
  %2357 = vmatpush1.xpose.msra.mxu0 0.0
  %2358 = vmatprep.subr.mxu0 0.0
  %2359 = vmatpush1.xpose.msra.mxu0 0.0
  %2360 = vmatprep.subr.mxu0 0.0
  %2361 = vmatpush1.xpose.msra.mxu0 0.0
  %2362 = vmatprep.subr.mxu0 0.0
  %2363 = vmatpush1.xpose.msra.mxu0 %v2330
  %2364 = vmatprep.subr.mxu0 0.0
  %2365 = vmatpush2.xpose.msra.mxu0 0.0
  %2366 = vmatprep.subr.mxu0 0.0
  %2367 = vmatpush2.xpose.msra.mxu0 0.0
  %2368 = vmatprep.subr.mxu0 0.0
  %2369 = vmatpush2.xpose.msra.mxu0 0.0
  %2370 = vmatprep.subr.mxu0 0.0
  %2371 = vmatpush2.xpose.msra.mxu0 0.0
  %2372 = vmatprep.subr.mxu0 0.0
  %2373 = vmatpush2.xpose.msra.mxu0 0.0
  %2374 = vmatprep.subr.mxu0 0.0
  %2375 = vmatpush2.xpose.msra.mxu0 0.0
  %2376 = vmatprep.subr.mxu0 0.0
  %2377 = vmatpush2.xpose.msra.mxu0 0.0
  %2378 = vmatprep.subr.mxu0 0.0
  %2379 = vmatpush2.xpose.msra.mxu0 0.0
  %2380 = vmatprep.subr.mxu0 0.0
  %2381 = vmatpush2.xpose.msra.mxu0 0.0
  %2382 = vmatprep.subr.mxu0 0.0
  %2383 = vmatpush2.xpose.msra.mxu0 0.0
  %2384 = vmatprep.subr.mxu0 0.0
  %2385 = vmatpush2.xpose.msra.mxu0 0.0
  %2386 = vmatprep.subr.mxu0 0.0
  %2387 = vmatpush2.xpose.msra.mxu0 0.0
  %2388 = vmatprep.subr.mxu0 0.0
  %2389 = vmatpush2.xpose.msra.mxu0 0.0
  %2390 = vmatprep.subr.mxu0 0.0
  %2391 = vmatpush2.xpose.msra.mxu0 0.0
  %2392 = vmatprep.subr.mxu0 0.0
  %2393 = vmatpush2.xpose.msra.mxu0 0.0
  %2394 = vmatprep.subr.mxu0 0.0
  %2395 = vmatpush2.xpose.msra.mxu0 0.0
  %2396 = vmatprep.mubr.f32.mxu0 0.0
  %2397 = vmatmul.mubr.f32.gmra.mxu0 %v2327
  %v2398 = vpop.f32.mrf.mxu0
  %v2399 = vadd.f32 0.0, %v2398
  %v2400 = vpop.f32.mrf.mxu0
  %2401 = vdwg.mxu0
  %v2402 = vsel %vm1728, %v2399, -inf
  %2403 = vmax.xlane.f32.xlu0 %v2402
  %v2404 = vpop.xlane.xlu0 %2403
  %v2405 = vsub.f32 %v2399, %v2404
  %v2406 = vmul.f32 %v2405, 1.442695
  %v2407 = vpow.pop %v2406
  %v2408 = vsel %vm1728, %v2407, 0.0
  %2409 = vadd.xlane.f32.xlu0 %v2408
  %v2410 = vpop.xlane.xlu0 %2409
  %v2411 = vrcp.pop %v2410
  %v2412 = vmul.f32 %v2407, %v2411
  %2413 = vrot.lane.b32.xlu0 %v1593, 96
  %v2414 = vpop.permute.xlu0 %2413
  %v2417 = vsel %vm139, %v2412, 0
  %2419 = vmatprep.subr.mxu0 0.0
  %2420 = vmatpush1.msra.mxu0 0.0
  %2421 = vmatprep.subr.mxu0 0.0
  %2422 = vmatpush1.msra.mxu0 0.0
  %2423 = vmatprep.subr.mxu0 0.0
  %2424 = vmatpush1.msra.mxu0 0.0
  %2425 = vmatprep.subr.mxu0 0.0
  %2426 = vmatpush1.msra.mxu0 0.0
  %2427 = vmatprep.subr.mxu0 0.0
  %2428 = vmatpush1.msra.mxu0 0.0
  %2429 = vmatprep.subr.mxu0 0.0
  %2430 = vmatpush1.msra.mxu0 0.0
  %2431 = vmatprep.subr.mxu0 0.0
  %2432 = vmatpush1.msra.mxu0 0.0
  %2433 = vmatprep.subr.mxu0 0.0
  %2434 = vmatpush1.msra.mxu0 0.0
  %2435 = vmatprep.subr.mxu0 0.0
  %2436 = vmatpush1.msra.mxu0 0.0
  %2437 = vmatprep.subr.mxu0 0.0
  %2438 = vmatpush1.msra.mxu0 0.0
  %2439 = vmatprep.subr.mxu0 0.0
  %2440 = vmatpush1.msra.mxu0 0.0
  %2441 = vmatprep.subr.mxu0 0.0
  %2442 = vmatpush1.msra.mxu0 0.0
  %2443 = vmatprep.subr.mxu0 0.0
  %2444 = vmatpush1.msra.mxu0 0.0
  %2445 = vmatprep.subr.mxu0 0.0
  %2446 = vmatpush1.msra.mxu0 0.0
  %2447 = vmatprep.subr.mxu0 0.0
  %2448 = vmatpush1.msra.mxu0 0.0
  %2449 = vmatprep.subr.mxu0 0.0
  %2450 = vmatpush1.msra.mxu0 %v2414
  %2451 = vmatprep.subr.mxu0 0.0
  %2452 = vmatpush2.msra.mxu0 0.0
  %2453 = vmatprep.subr.mxu0 0.0
  %2454 = vmatpush2.msra.mxu0 0.0
  %2455 = vmatprep.subr.mxu0 0.0
  %2456 = vmatpush2.msra.mxu0 0.0
  %2457 = vmatprep.subr.mxu0 0.0
  %2458 = vmatpush2.msra.mxu0 0.0
  %2459 = vmatprep.subr.mxu0 0.0
  %2460 = vmatpush2.msra.mxu0 0.0
  %2461 = vmatprep.subr.mxu0 0.0
  %2462 = vmatpush2.msra.mxu0 0.0
  %2463 = vmatprep.subr.mxu0 0.0
  %2464 = vmatpush2.msra.mxu0 0.0
  %2465 = vmatprep.subr.mxu0 0.0
  %2466 = vmatpush2.msra.mxu0 0.0
  %2467 = vmatprep.subr.mxu0 0.0
  %2468 = vmatpush2.msra.mxu0 0.0
  %2469 = vmatprep.subr.mxu0 0.0
  %2470 = vmatpush2.msra.mxu0 0.0
  %2471 = vmatprep.subr.mxu0 0.0
  %2472 = vmatpush2.msra.mxu0 0.0
  %2473 = vmatprep.subr.mxu0 0.0
  %2474 = vmatpush2.msra.mxu0 0.0
  %2475 = vmatprep.subr.mxu0 0.0
  %2476 = vmatpush2.msra.mxu0 0.0
  %2477 = vmatprep.subr.mxu0 0.0
  %2478 = vmatpush2.msra.mxu0 0.0
  %2479 = vmatprep.subr.mxu0 0.0
  %2480 = vmatpush2.msra.mxu0 0.0
  %2481 = vmatprep.subr.mxu0 0.0
  %2482 = vmatpush2.msra.mxu0 0.0
  %2483 = vmatprep.mubr.f32.mxu0 0.0
  %2484 = vmatmul.mubr.f32.gmra.mxu0 %v2417
  %v2485 = vpop.f32.mrf.mxu0
  %v2486 = vadd.f32 0.0, %v2485
  %v2487 = vpop.f32.mrf.mxu0
  %2488 = vdwg.mxu0
  %2489 = vrot.lane.b32.xlu0 %v2326, 120
  %v2490 = vpop.permute.xlu0 %2489
  %2491 = vrot.lane.b32.xlu0 %v1593, 120
  %v2492 = vpop.permute.xlu0 %2491
  %v2493 = vsel %vm139, %v2490, 0
  %v2495 = vsel %vm139, %v2492, 0
  %2497 = vmatprep.subr.mxu0 0.0
  %2498 = vmatpush1.xpose.msra.mxu0 0.0
  %2499 = vmatprep.subr.mxu0 0.0
  %2500 = vmatpush1.xpose.msra.mxu0 0.0
  %2501 = vmatprep.subr.mxu0 0.0
  %2502 = vmatpush1.xpose.msra.mxu0 0.0
  %2503 = vmatprep.subr.mxu0 0.0
  %2504 = vmatpush1.xpose.msra.mxu0 0.0
  %2505 = vmatprep.subr.mxu0 0.0
  %2506 = vmatpush1.xpose.msra.mxu0 0.0
  %2507 = vmatprep.subr.mxu0 0.0
  %2508 = vmatpush1.xpose.msra.mxu0 0.0
  %2509 = vmatprep.subr.mxu0 0.0
  %2510 = vmatpush1.xpose.msra.mxu0 0.0
  %2511 = vmatprep.subr.mxu0 0.0
  %2512 = vmatpush1.xpose.msra.mxu0 0.0
  %2513 = vmatprep.subr.mxu0 0.0
  %2514 = vmatpush1.xpose.msra.mxu0 0.0
  %2515 = vmatprep.subr.mxu0 0.0
  %2516 = vmatpush1.xpose.msra.mxu0 0.0
  %2517 = vmatprep.subr.mxu0 0.0
  %2518 = vmatpush1.xpose.msra.mxu0 0.0
  %2519 = vmatprep.subr.mxu0 0.0
  %2520 = vmatpush1.xpose.msra.mxu0 0.0
  %2521 = vmatprep.subr.mxu0 0.0
  %2522 = vmatpush1.xpose.msra.mxu0 0.0
  %2523 = vmatprep.subr.mxu0 0.0
  %2524 = vmatpush1.xpose.msra.mxu0 0.0
  %2525 = vmatprep.subr.mxu0 0.0
  %2526 = vmatpush1.xpose.msra.mxu0 0.0
  %2527 = vmatprep.subr.mxu0 0.0
  %2528 = vmatpush1.xpose.msra.mxu0 %v2495
  %2529 = vmatprep.subr.mxu0 0.0
  %2530 = vmatpush2.xpose.msra.mxu0 0.0
  %2531 = vmatprep.subr.mxu0 0.0
  %2532 = vmatpush2.xpose.msra.mxu0 0.0
  %2533 = vmatprep.subr.mxu0 0.0
  %2534 = vmatpush2.xpose.msra.mxu0 0.0
  %2535 = vmatprep.subr.mxu0 0.0
  %2536 = vmatpush2.xpose.msra.mxu0 0.0
  %2537 = vmatprep.subr.mxu0 0.0
  %2538 = vmatpush2.xpose.msra.mxu0 0.0
  %2539 = vmatprep.subr.mxu0 0.0
  %2540 = vmatpush2.xpose.msra.mxu0 0.0
  %2541 = vmatprep.subr.mxu0 0.0
  %2542 = vmatpush2.xpose.msra.mxu0 0.0
  %2543 = vmatprep.subr.mxu0 0.0
  %2544 = vmatpush2.xpose.msra.mxu0 0.0
  %2545 = vmatprep.subr.mxu0 0.0
  %2546 = vmatpush2.xpose.msra.mxu0 0.0
  %2547 = vmatprep.subr.mxu0 0.0
  %2548 = vmatpush2.xpose.msra.mxu0 0.0
  %2549 = vmatprep.subr.mxu0 0.0
  %2550 = vmatpush2.xpose.msra.mxu0 0.0
  %2551 = vmatprep.subr.mxu0 0.0
  %2552 = vmatpush2.xpose.msra.mxu0 0.0
  %2553 = vmatprep.subr.mxu0 0.0
  %2554 = vmatpush2.xpose.msra.mxu0 0.0
  %2555 = vmatprep.subr.mxu0 0.0
  %2556 = vmatpush2.xpose.msra.mxu0 0.0
  %2557 = vmatprep.subr.mxu0 0.0
  %2558 = vmatpush2.xpose.msra.mxu0 0.0
  %2559 = vmatprep.subr.mxu0 0.0
  %2560 = vmatpush2.xpose.msra.mxu0 0.0
  %2561 = vmatprep.mubr.f32.mxu0 0.0
  %2562 = vmatmul.mubr.f32.gmra.mxu0 %v2493
  %v2563 = vpop.f32.mrf.mxu0
  %v2564 = vadd.f32 0.0, %v2563
  %v2565 = vpop.f32.mrf.mxu0
  %2566 = vdwg.mxu0
  %v2567 = vsel %vm1728, %v2564, -inf
  %2568 = vmax.xlane.f32.xlu0 %v2567
  %v2569 = vpop.xlane.xlu0 %2568
  %v2570 = vsub.f32 %v2564, %v2569
  %v2571 = vmul.f32 %v2570, 1.442695
  %v2572 = vpow.pop %v2571
  %v2573 = vsel %vm1728, %v2572, 0.0
  %2574 = vadd.xlane.f32.xlu0 %v2573
  %v2575 = vpop.xlane.xlu0 %2574
  %v2576 = vrcp.pop %v2575
  %v2577 = vmul.f32 %v2572, %v2576
  %2578 = vrot.lane.b32.xlu0 %v1593, 88
  %v2579 = vpop.permute.xlu0 %2578
  %v2582 = vsel %vm139, %v2577, 0
  %2584 = vmatprep.subr.mxu0 0.0
  %2585 = vmatpush1.msra.mxu0 0.0
  %2586 = vmatprep.subr.mxu0 0.0
  %2587 = vmatpush1.msra.mxu0 0.0
  %2588 = vmatprep.subr.mxu0 0.0
  %2589 = vmatpush1.msra.mxu0 0.0
  %2590 = vmatprep.subr.mxu0 0.0
  %2591 = vmatpush1.msra.mxu0 0.0
  %2592 = vmatprep.subr.mxu0 0.0
  %2593 = vmatpush1.msra.mxu0 0.0
  %2594 = vmatprep.subr.mxu0 0.0
  %2595 = vmatpush1.msra.mxu0 0.0
  %2596 = vmatprep.subr.mxu0 0.0
  %2597 = vmatpush1.msra.mxu0 0.0
  %2598 = vmatprep.subr.mxu0 0.0
  %2599 = vmatpush1.msra.mxu0 0.0
  %2600 = vmatprep.subr.mxu0 0.0
  %2601 = vmatpush1.msra.mxu0 0.0
  %2602 = vmatprep.subr.mxu0 0.0
  %2603 = vmatpush1.msra.mxu0 0.0
  %2604 = vmatprep.subr.mxu0 0.0
  %2605 = vmatpush1.msra.mxu0 0.0
  %2606 = vmatprep.subr.mxu0 0.0
  %2607 = vmatpush1.msra.mxu0 0.0
  %2608 = vmatprep.subr.mxu0 0.0
  %2609 = vmatpush1.msra.mxu0 0.0
  %2610 = vmatprep.subr.mxu0 0.0
  %2611 = vmatpush1.msra.mxu0 0.0
  %2612 = vmatprep.subr.mxu0 0.0
  %2613 = vmatpush1.msra.mxu0 0.0
  %2614 = vmatprep.subr.mxu0 0.0
  %2615 = vmatpush1.msra.mxu0 %v2579
  %2616 = vmatprep.subr.mxu0 0.0
  %2617 = vmatpush2.msra.mxu0 0.0
  %2618 = vmatprep.subr.mxu0 0.0
  %2619 = vmatpush2.msra.mxu0 0.0
  %2620 = vmatprep.subr.mxu0 0.0
  %2621 = vmatpush2.msra.mxu0 0.0
  %2622 = vmatprep.subr.mxu0 0.0
  %2623 = vmatpush2.msra.mxu0 0.0
  %2624 = vmatprep.subr.mxu0 0.0
  %2625 = vmatpush2.msra.mxu0 0.0
  %2626 = vmatprep.subr.mxu0 0.0
  %2627 = vmatpush2.msra.mxu0 0.0
  %2628 = vmatprep.subr.mxu0 0.0
  %2629 = vmatpush2.msra.mxu0 0.0
  %2630 = vmatprep.subr.mxu0 0.0
  %2631 = vmatpush2.msra.mxu0 0.0
  %2632 = vmatprep.subr.mxu0 0.0
  %2633 = vmatpush2.msra.mxu0 0.0
  %2634 = vmatprep.subr.mxu0 0.0
  %2635 = vmatpush2.msra.mxu0 0.0
  %2636 = vmatprep.subr.mxu0 0.0
  %2637 = vmatpush2.msra.mxu0 0.0
  %2638 = vmatprep.subr.mxu0 0.0
  %2639 = vmatpush2.msra.mxu0 0.0
  %2640 = vmatprep.subr.mxu0 0.0
  %2641 = vmatpush2.msra.mxu0 0.0
  %2642 = vmatprep.subr.mxu0 0.0
  %2643 = vmatpush2.msra.mxu0 0.0
  %2644 = vmatprep.subr.mxu0 0.0
  %2645 = vmatpush2.msra.mxu0 0.0
  %2646 = vmatprep.subr.mxu0 0.0
  %2647 = vmatpush2.msra.mxu0 0.0
  %2648 = vmatprep.mubr.f32.mxu0 0.0
  %2649 = vmatmul.mubr.f32.gmra.mxu0 %v2582
  %v2650 = vpop.f32.mrf.mxu0
  %v2651 = vadd.f32 0.0, %v2650
  %v2652 = vpop.f32.mrf.mxu0
  %2653 = vdwg.mxu0
  %2654 = vrot.lane.b32.xlu0 %v2326, 112
  %v2655 = vpop.permute.xlu0 %2654
  %2656 = vrot.lane.b32.xlu0 %v1593, 112
  %v2657 = vpop.permute.xlu0 %2656
  %v2658 = vsel %vm139, %v2655, 0
  %v2660 = vsel %vm139, %v2657, 0
  %2662 = vmatprep.subr.mxu0 0.0
  %2663 = vmatpush1.xpose.msra.mxu0 0.0
  %2664 = vmatprep.subr.mxu0 0.0
  %2665 = vmatpush1.xpose.msra.mxu0 0.0
  %2666 = vmatprep.subr.mxu0 0.0
  %2667 = vmatpush1.xpose.msra.mxu0 0.0
  %2668 = vmatprep.subr.mxu0 0.0
  %2669 = vmatpush1.xpose.msra.mxu0 0.0
  %2670 = vmatprep.subr.mxu0 0.0
  %2671 = vmatpush1.xpose.msra.mxu0 0.0
  %2672 = vmatprep.subr.mxu0 0.0
  %2673 = vmatpush1.xpose.msra.mxu0 0.0
  %2674 = vmatprep.subr.mxu0 0.0
  %2675 = vmatpush1.xpose.msra.mxu0 0.0
  %2676 = vmatprep.subr.mxu0 0.0
  %2677 = vmatpush1.xpose.msra.mxu0 0.0
  %2678 = vmatprep.subr.mxu0 0.0
  %2679 = vmatpush1.xpose.msra.mxu0 0.0
  %2680 = vmatprep.subr.mxu0 0.0
  %2681 = vmatpush1.xpose.msra.mxu0 0.0
  %2682 = vmatprep.subr.mxu0 0.0
  %2683 = vmatpush1.xpose.msra.mxu0 0.0
  %2684 = vmatprep.subr.mxu0 0.0
  %2685 = vmatpush1.xpose.msra.mxu0 0.0
  %2686 = vmatprep.subr.mxu0 0.0
  %2687 = vmatpush1.xpose.msra.mxu0 0.0
  %2688 = vmatprep.subr.mxu0 0.0
  %2689 = vmatpush1.xpose.msra.mxu0 0.0
  %2690 = vmatprep.subr.mxu0 0.0
  %2691 = vmatpush1.xpose.msra.mxu0 0.0
  %2692 = vmatprep.subr.mxu0 0.0
  %2693 = vmatpush1.xpose.msra.mxu0 %v2660
  %2694 = vmatprep.subr.mxu0 0.0
  %2695 = vmatpush2.xpose.msra.mxu0 0.0
  %2696 = vmatprep.subr.mxu0 0.0
  %2697 = vmatpush2.xpose.msra.mxu0 0.0
  %2698 = vmatprep.subr.mxu0 0.0
  %2699 = vmatpush2.xpose.msra.mxu0 0.0
  %2700 = vmatprep.subr.mxu0 0.0
  %2701 = vmatpush2.xpose.msra.mxu0 0.0
  %2702 = vmatprep.subr.mxu0 0.0
  %2703 = vmatpush2.xpose.msra.mxu0 0.0
  %2704 = vmatprep.subr.mxu0 0.0
  %2705 = vmatpush2.xpose.msra.mxu0 0.0
  %2706 = vmatprep.subr.mxu0 0.0
  %2707 = vmatpush2.xpose.msra.mxu0 0.0
  %2708 = vmatprep.subr.mxu0 0.0
  %2709 = vmatpush2.xpose.msra.mxu0 0.0
  %2710 = vmatprep.subr.mxu0 0.0
  %2711 = vmatpush2.xpose.msra.mxu0 0.0
  %2712 = vmatprep.subr.mxu0 0.0
  %2713 = vmatpush2.xpose.msra.mxu0 0.0
  %2714 = vmatprep.subr.mxu0 0.0
  %2715 = vmatpush2.xpose.msra.mxu0 0.0
  %2716 = vmatprep.subr.mxu0 0.0
  %2717 = vmatpush2.xpose.msra.mxu0 0.0
  %2718 = vmatprep.subr.mxu0 0.0
  %2719 = vmatpush2.xpose.msra.mxu0 0.0
  %2720 = vmatprep.subr.mxu0 0.0
  %2721 = vmatpush2.xpose.msra.mxu0 0.0
  %2722 = vmatprep.subr.mxu0 0.0
  %2723 = vmatpush2.xpose.msra.mxu0 0.0
  %2724 = vmatprep.subr.mxu0 0.0
  %2725 = vmatpush2.xpose.msra.mxu0 0.0
  %2726 = vmatprep.mubr.f32.mxu0 0.0
  %2727 = vmatmul.mubr.f32.gmra.mxu0 %v2658
  %v2728 = vpop.f32.mrf.mxu0
  %v2729 = vadd.f32 0.0, %v2728
  %v2730 = vpop.f32.mrf.mxu0
  %2731 = vdwg.mxu0
  %v2732 = vsel %vm1728, %v2729, -inf
  %2733 = vmax.xlane.f32.xlu0 %v2732
  %v2734 = vpop.xlane.xlu0 %2733
  %v2735 = vsub.f32 %v2729, %v2734
  %v2736 = vmul.f32 %v2735, 1.442695
  %v2737 = vpow.pop %v2736
  %v2738 = vsel %vm1728, %v2737, 0.0
  %2739 = vadd.xlane.f32.xlu0 %v2738
  %v2740 = vpop.xlane.xlu0 %2739
  %v2741 = vrcp.pop %v2740
  %v2742 = vmul.f32 %v2737, %v2741
  %2743 = vrot.lane.b32.xlu0 %v1593, 80
  %v2744 = vpop.permute.xlu0 %2743
  %v2747 = vsel %vm139, %v2742, 0
  %2749 = vmatprep.subr.mxu0 0.0
  %2750 = vmatpush1.msra.mxu0 0.0
  %2751 = vmatprep.subr.mxu0 0.0
  %2752 = vmatpush1.msra.mxu0 0.0
  %2753 = vmatprep.subr.mxu0 0.0
  %2754 = vmatpush1.msra.mxu0 0.0
  %2755 = vmatprep.subr.mxu0 0.0
  %2756 = vmatpush1.msra.mxu0 0.0
  %2757 = vmatprep.subr.mxu0 0.0
  %2758 = vmatpush1.msra.mxu0 0.0
  %2759 = vmatprep.subr.mxu0 0.0
  %2760 = vmatpush1.msra.mxu0 0.0
  %2761 = vmatprep.subr.mxu0 0.0
  %2762 = vmatpush1.msra.mxu0 0.0
  %2763 = vmatprep.subr.mxu0 0.0
  %2764 = vmatpush1.msra.mxu0 0.0
  %2765 = vmatprep.subr.mxu0 0.0
  %2766 = vmatpush1.msra.mxu0 0.0
  %2767 = vmatprep.subr.mxu0 0.0
  %2768 = vmatpush1.msra.mxu0 0.0
  %2769 = vmatprep.subr.mxu0 0.0
  %2770 = vmatpush1.msra.mxu0 0.0
  %2771 = vmatprep.subr.mxu0 0.0
  %2772 = vmatpush1.msra.mxu0 0.0
  %2773 = vmatprep.subr.mxu0 0.0
  %2774 = vmatpush1.msra.mxu0 0.0
  %2775 = vmatprep.subr.mxu0 0.0
  %2776 = vmatpush1.msra.mxu0 0.0
  %2777 = vmatprep.subr.mxu0 0.0
  %2778 = vmatpush1.msra.mxu0 0.0
  %2779 = vmatprep.subr.mxu0 0.0
  %2780 = vmatpush1.msra.mxu0 %v2744
  %2781 = vmatprep.subr.mxu0 0.0
  %2782 = vmatpush2.msra.mxu0 0.0
  %2783 = vmatprep.subr.mxu0 0.0
  %2784 = vmatpush2.msra.mxu0 0.0
  %2785 = vmatprep.subr.mxu0 0.0
  %2786 = vmatpush2.msra.mxu0 0.0
  %2787 = vmatprep.subr.mxu0 0.0
  %2788 = vmatpush2.msra.mxu0 0.0
  %2789 = vmatprep.subr.mxu0 0.0
  %2790 = vmatpush2.msra.mxu0 0.0
  %2791 = vmatprep.subr.mxu0 0.0
  %2792 = vmatpush2.msra.mxu0 0.0
  %2793 = vmatprep.subr.mxu0 0.0
  %2794 = vmatpush2.msra.mxu0 0.0
  %2795 = vmatprep.subr.mxu0 0.0
  %2796 = vmatpush2.msra.mxu0 0.0
  %2797 = vmatprep.subr.mxu0 0.0
  %2798 = vmatpush2.msra.mxu0 0.0
  %2799 = vmatprep.subr.mxu0 0.0
  %2800 = vmatpush2.msra.mxu0 0.0
  %2801 = vmatprep.subr.mxu0 0.0
  %2802 = vmatpush2.msra.mxu0 0.0
  %2803 = vmatprep.subr.mxu0 0.0
  %2804 = vmatpush2.msra.mxu0 0.0
  %2805 = vmatprep.subr.mxu0 0.0
  %2806 = vmatpush2.msra.mxu0 0.0
  %2807 = vmatprep.subr.mxu0 0.0
  %2808 = vmatpush2.msra.mxu0 0.0
  %2809 = vmatprep.subr.mxu0 0.0
  %2810 = vmatpush2.msra.mxu0 0.0
  %2811 = vmatprep.subr.mxu0 0.0
  %2812 = vmatpush2.msra.mxu0 0.0
  %2813 = vmatprep.mubr.f32.mxu0 0.0
  %2814 = vmatmul.mubr.f32.gmra.mxu0 %v2747
  %v2815 = vpop.f32.mrf.mxu0
  %v2816 = vadd.f32 0.0, %v2815
  %v2817 = vpop.f32.mrf.mxu0
  %2818 = vdwg.mxu0
  %2819 = vrot.lane.b32.xlu0 %v2326, 104
  %v2820 = vpop.permute.xlu0 %2819
  %2821 = vrot.lane.b32.xlu0 %v1593, 104
  %v2822 = vpop.permute.xlu0 %2821
  %v2823 = vsel %vm139, %v2820, 0
  %v2825 = vsel %vm139, %v2822, 0
  %2827 = vmatprep.subr.mxu0 0.0
  %2828 = vmatpush1.xpose.msra.mxu0 0.0
  %2829 = vmatprep.subr.mxu0 0.0
  %2830 = vmatpush1.xpose.msra.mxu0 0.0
  %2831 = vmatprep.subr.mxu0 0.0
  %2832 = vmatpush1.xpose.msra.mxu0 0.0
  %2833 = vmatprep.subr.mxu0 0.0
  %2834 = vmatpush1.xpose.msra.mxu0 0.0
  %2835 = vmatprep.subr.mxu0 0.0
  %2836 = vmatpush1.xpose.msra.mxu0 0.0
  %2837 = vmatprep.subr.mxu0 0.0
  %2838 = vmatpush1.xpose.msra.mxu0 0.0
  %2839 = vmatprep.subr.mxu0 0.0
  %2840 = vmatpush1.xpose.msra.mxu0 0.0
  %2841 = vmatprep.subr.mxu0 0.0
  %2842 = vmatpush1.xpose.msra.mxu0 0.0
  %2843 = vmatprep.subr.mxu0 0.0
  %2844 = vmatpush1.xpose.msra.mxu0 0.0
  %2845 = vmatprep.subr.mxu0 0.0
  %2846 = vmatpush1.xpose.msra.mxu0 0.0
  %2847 = vmatprep.subr.mxu0 0.0
  %2848 = vmatpush1.xpose.msra.mxu0 0.0
  %2849 = vmatprep.subr.mxu0 0.0
  %2850 = vmatpush1.xpose.msra.mxu0 0.0
  %2851 = vmatprep.subr.mxu0 0.0
  %2852 = vmatpush1.xpose.msra.mxu0 0.0
  %2853 = vmatprep.subr.mxu0 0.0
  %2854 = vmatpush1.xpose.msra.mxu0 0.0
  %2855 = vmatprep.subr.mxu0 0.0
  %2856 = vmatpush1.xpose.msra.mxu0 0.0
  %2857 = vmatprep.subr.mxu0 0.0
  %2858 = vmatpush1.xpose.msra.mxu0 %v2825
  %2859 = vmatprep.subr.mxu0 0.0
  %2860 = vmatpush2.xpose.msra.mxu0 0.0
  %2861 = vmatprep.subr.mxu0 0.0
  %2862 = vmatpush2.xpose.msra.mxu0 0.0
  %2863 = vmatprep.subr.mxu0 0.0
  %2864 = vmatpush2.xpose.msra.mxu0 0.0
  %2865 = vmatprep.subr.mxu0 0.0
  %2866 = vmatpush2.xpose.msra.mxu0 0.0
  %2867 = vmatprep.subr.mxu0 0.0
  %2868 = vmatpush2.xpose.msra.mxu0 0.0
  %2869 = vmatprep.subr.mxu0 0.0
  %2870 = vmatpush2.xpose.msra.mxu0 0.0
  %2871 = vmatprep.subr.mxu0 0.0
  %2872 = vmatpush2.xpose.msra.mxu0 0.0
  %2873 = vmatprep.subr.mxu0 0.0
  %2874 = vmatpush2.xpose.msra.mxu0 0.0
  %2875 = vmatprep.subr.mxu0 0.0
  %2876 = vmatpush2.xpose.msra.mxu0 0.0
  %2877 = vmatprep.subr.mxu0 0.0
  %2878 = vmatpush2.xpose.msra.mxu0 0.0
  %2879 = vmatprep.subr.mxu0 0.0
  %2880 = vmatpush2.xpose.msra.mxu0 0.0
  %2881 = vmatprep.subr.mxu0 0.0
  %2882 = vmatpush2.xpose.msra.mxu0 0.0
  %2883 = vmatprep.subr.mxu0 0.0
  %2884 = vmatpush2.xpose.msra.mxu0 0.0
  %2885 = vmatprep.subr.mxu0 0.0
  %2886 = vmatpush2.xpose.msra.mxu0 0.0
  %2887 = vmatprep.subr.mxu0 0.0
  %2888 = vmatpush2.xpose.msra.mxu0 0.0
  %2889 = vmatprep.subr.mxu0 0.0
  %2890 = vmatpush2.xpose.msra.mxu0 0.0
  %2891 = vmatprep.mubr.f32.mxu0 0.0
  %2892 = vmatmul.mubr.f32.gmra.mxu0 %v2823
  %v2893 = vpop.f32.mrf.mxu0
  %v2894 = vadd.f32 0.0, %v2893
  %v2895 = vpop.f32.mrf.mxu0
  %2896 = vdwg.mxu0
  %v2897 = vsel %vm1728, %v2894, -inf
  %2898 = vmax.xlane.f32.xlu0 %v2897
  %v2899 = vpop.xlane.xlu0 %2898
  %v2900 = vsub.f32 %v2894, %v2899
  %v2901 = vmul.f32 %v2900, 1.442695
  %v2902 = vpow.pop %v2901
  %v2903 = vsel %vm1728, %v2902, 0.0
  %2904 = vadd.xlane.f32.xlu0 %v2903
  %v2905 = vpop.xlane.xlu0 %2904
  %v2906 = vrcp.pop %v2905
  %v2907 = vmul.f32 %v2902, %v2906
  %2908 = vrot.lane.b32.xlu0 %v1593, 72
  %v2909 = vpop.permute.xlu0 %2908
  %v2912 = vsel %vm139, %v2907, 0
  %2914 = vmatprep.subr.mxu0 0.0
  %2915 = vmatpush1.msra.mxu0 0.0
  %2916 = vmatprep.subr.mxu0 0.0
  %2917 = vmatpush1.msra.mxu0 0.0
  %2918 = vmatprep.subr.mxu0 0.0
  %2919 = vmatpush1.msra.mxu0 0.0
  %2920 = vmatprep.subr.mxu0 0.0
  %2921 = vmatpush1.msra.mxu0 0.0
  %2922 = vmatprep.subr.mxu0 0.0
  %2923 = vmatpush1.msra.mxu0 0.0
  %2924 = vmatprep.subr.mxu0 0.0
  %2925 = vmatpush1.msra.mxu0 0.0
  %2926 = vmatprep.subr.mxu0 0.0
  %2927 = vmatpush1.msra.mxu0 0.0
  %2928 = vmatprep.subr.mxu0 0.0
  %2929 = vmatpush1.msra.mxu0 0.0
  %2930 = vmatprep.subr.mxu0 0.0
  %2931 = vmatpush1.msra.mxu0 0.0
  %2932 = vmatprep.subr.mxu0 0.0
  %2933 = vmatpush1.msra.mxu0 0.0
  %2934 = vmatprep.subr.mxu0 0.0
  %2935 = vmatpush1.msra.mxu0 0.0
  %2936 = vmatprep.subr.mxu0 0.0
  %2937 = vmatpush1.msra.mxu0 0.0
  %2938 = vmatprep.subr.mxu0 0.0
  %2939 = vmatpush1.msra.mxu0 0.0
  %2940 = vmatprep.subr.mxu0 0.0
  %2941 = vmatpush1.msra.mxu0 0.0
  %2942 = vmatprep.subr.mxu0 0.0
  %2943 = vmatpush1.msra.mxu0 0.0
  %2944 = vmatprep.subr.mxu0 0.0
  %2945 = vmatpush1.msra.mxu0 %v2909
  %2946 = vmatprep.subr.mxu0 0.0
  %2947 = vmatpush2.msra.mxu0 0.0
  %2948 = vmatprep.subr.mxu0 0.0
  %2949 = vmatpush2.msra.mxu0 0.0
  %2950 = vmatprep.subr.mxu0 0.0
  %2951 = vmatpush2.msra.mxu0 0.0
  %2952 = vmatprep.subr.mxu0 0.0
  %2953 = vmatpush2.msra.mxu0 0.0
  %2954 = vmatprep.subr.mxu0 0.0
  %2955 = vmatpush2.msra.mxu0 0.0
  %2956 = vmatprep.subr.mxu0 0.0
  %2957 = vmatpush2.msra.mxu0 0.0
  %2958 = vmatprep.subr.mxu0 0.0
  %2959 = vmatpush2.msra.mxu0 0.0
  %2960 = vmatprep.subr.mxu0 0.0
  %2961 = vmatpush2.msra.mxu0 0.0
  %2962 = vmatprep.subr.mxu0 0.0
  %2963 = vmatpush2.msra.mxu0 0.0
  %2964 = vmatprep.subr.mxu0 0.0
  %2965 = vmatpush2.msra.mxu0 0.0
  %2966 = vmatprep.subr.mxu0 0.0
  %2967 = vmatpush2.msra.mxu0 0.0
  %2968 = vmatprep.subr.mxu0 0.0
  %2969 = vmatpush2.msra.mxu0 0.0
  %2970 = vmatprep.subr.mxu0 0.0
  %2971 = vmatpush2.msra.mxu0 0.0
  %2972 = vmatprep.subr.mxu0 0.0
  %2973 = vmatpush2.msra.mxu0 0.0
  %2974 = vmatprep.subr.mxu0 0.0
  %2975 = vmatpush2.msra.mxu0 0.0
  %2976 = vmatprep.subr.mxu0 0.0
  %2977 = vmatpush2.msra.mxu0 0.0
  %2978 = vmatprep.mubr.f32.mxu0 0.0
  %2979 = vmatmul.mubr.f32.gmra.mxu0 %v2912
  %v2980 = vpop.f32.mrf.mxu0
  %v2981 = vadd.f32 0.0, %v2980
  %v2982 = vpop.f32.mrf.mxu0
  %2983 = vdwg.mxu0
  %2985 = vrot.lane.b32.xlu0 %v2651, 8
  %v2986 = vpop.permute.xlu0 %2985
  %2989 = vrot.lane.b32.xlu0 %v2816, 16
  %v2990 = vpop.permute.xlu0 %2989
  %2993 = vrot.lane.b32.xlu0 %v2981, 24
  %v2994 = vpop.permute.xlu0 %2993
  %v2996 = vsel %vm139, %v2486, %v2986
  %v2997 = vsel %vm817, %v2996, %v2990
  %v2998 = vsel %vm819, %v2997, %v2994
  %v3000 = vrot.slane %v2998, 4
  %v3002 = vsel %vm233, %v2325, %v3000
  %v3003 = vld [vmem:[%s11] sm:$0xff]
  %v3004 = vld [vmem:[%s11 + $0x8] sm:$0xff]
  %v3005 = vld [vmem:[%s11 + $0x10] sm:$0xff]
  %v3006 = vld [vmem:[%s11 + $0x18] sm:$0xff]
  %v3007 = vpack.c.bf16 %v3002, %v3002
  %v3008 = vpack.c.bf16 %v3004, %v3003
  %v3009 = vpack.c.bf16 %v3006, %v3005
  %v3010 = vld [vmem:[%s12] sm:$0x1]
  %v3012 = vlaneseq
  %v3013 = vshrl.u32 %v3012, 7
  %v3014 = vsub.s32 0, %v3013
  %v3015 = vrot.slane %v3010, %v3014
  %v3018 = vsel %vm84, %v3007, 0
  %3020 = vmatprep.subr.bf16.mxu0 0
  %3021 = vmatpush1.bf16.msra.mxu0 0
  %3022 = vmatprep.subr.bf16.mxu0 0
  %3023 = vmatpush1.bf16.msra.mxu0 0
  %3024 = vmatprep.subr.bf16.mxu0 0
  %3025 = vmatpush1.bf16.msra.mxu0 0
  %3026 = vmatprep.subr.bf16.mxu0 0
  %3027 = vmatpush1.bf16.msra.mxu0 0
  %3028 = vmatprep.subr.bf16.mxu0 0
  %3029 = vmatpush1.bf16.msra.mxu0 0
  %3030 = vmatprep.subr.bf16.mxu0 0
  %3031 = vmatpush1.bf16.msra.mxu0 0
  %3032 = vmatprep.subr.bf16.mxu0 0
  %3033 = vmatpush1.bf16.msra.mxu0 %v3009
  %3034 = vmatprep.subr.bf16.mxu0 0
  %3035 = vmatpush1.bf16.msra.mxu0 %v3008
  %3036 = vmatprep.subr.bf16.mxu0 0
  %3037 = vmatpush2.bf16.msra.mxu0 0
  %3038 = vmatprep.subr.bf16.mxu0 0
  %3039 = vmatpush2.bf16.msra.mxu0 0
  %3040 = vmatprep.subr.bf16.mxu0 0
  %3041 = vmatpush2.bf16.msra.mxu0 0
  %3042 = vmatprep.subr.bf16.mxu0 0
  %3043 = vmatpush2.bf16.msra.mxu0 0
  %3044 = vmatprep.subr.bf16.mxu0 0
  %3045 = vmatpush2.bf16.msra.mxu0 0
  %3046 = vmatprep.subr.bf16.mxu0 0
  %3047 = vmatpush2.bf16.msra.mxu0 0
  %3048 = vmatprep.subr.bf16.mxu0 0
  %3049 = vmatpush2.bf16.msra.mxu0 0
  %3050 = vmatprep.subr.bf16.mxu0 0
  %3051 = vmatpush2.bf16.msra.mxu0 0
  %3052 = vmatprep.mubr.bf16.mxu0 0
  %3053 = vmatmul.mubr.bf16.gmra.mxu0 %v3018
  %v3054 = vpop.f32.mrf.mxu0
  %v3055 = vadd.f32 %v3015, %v3054
  %v3056 = vpop.f32.mrf.mxu0
  %v3057 = vpop.f32.mrf.mxu0
  %v3058 = vpop.f32.mrf.mxu0
  %3059 = vdwg.mxu0
  %v3060 = vadd.f32 %v1591, %v3055
  %v3061 = vld [vmem:[%s13] sm:$0x1]
  %v3062 = vld [vmem:[%s14] sm:$0x1]
  %v3063 = vsel %vm84, %v3060, 0.0
  %3064 = vadd.xlane.f32.xlu0 %v3063
  %v3065 = vpop.xlane.xlu0 %3064
  %v3066 = vmul.f32 %v3065, %v1567
  %v3067 = vsub.f32 %v3060, %v3066
  %v3068 = vmul.f32 %v3067, %v3067
  %v3069 = vsel %vm84, %v3068, 0.0
  %3070 = vadd.xlane.f32.xlu0 %v3069
  %v3071 = vpop.xlane.xlu0 %3070
  %v3072 = vmul.f32 %v3071, %v1567
  %v3073 = vadd.f32 %v3072, 1e-05
  %v3074 = vrsqrt.pop %v3073
  %v3075 = vmul.f32 %v3067, %v3074
  %v3077 = vlaneseq
  %v3078 = vshrl.u32 %v3077, 7
  %v3079 = vsub.s32 0, %v3078
  %v3080 = vrot.slane %v3061, %v3079
  %v3082 = vmul.f32 %v3075, %v3080
  %v3084 = vlaneseq
  %v3085 = vshrl.u32 %v3084, 7
  %v3086 = vsub.s32 0, %v3085
  %v3087 = vrot.slane %v3062, %v3086
  %v3089 = vadd.f32 %v3082, %v3087
  %v3090 = vld [vmem:[%s15] sm:$0xff]
  %v3091 = vld [vmem:[%s15 + $0x8] sm:$0xff]
  %v3092 = vld [vmem:[%s15 + $0x10] sm:$0xff]
  %v3093 = vld [vmem:[%s15 + $0x18] sm:$0xff]
  %v3094 = vpack.c.bf16 %v3089, %v3089
  %v3095 = vpack.c.bf16 %v3091, %v3090
  %v3096 = vpack.c.bf16 %v3093, %v3092
  %v3097 = vld [vmem:[%s16] sm:$0x1]
  %v3099 = vlaneseq
  %v3100 = vshrl.u32 %v3099, 7
  %v3101 = vsub.s32 0, %v3100
  %v3102 = vrot.slane %v3097, %v3101
  %v3105 = vsel %vm84, %v3094, 0
  %3107 = vmatprep.subr.bf16.mxu0 0
  %3108 = vmatpush1.bf16.msra.mxu0 0
  %3109 = vmatprep.subr.bf16.mxu0 0
  %3110 = vmatpush1.bf16.msra.mxu0 0
  %3111 = vmatprep.subr.bf16.mxu0 0
  %3112 = vmatpush1.bf16.msra.mxu0 0
  %3113 = vmatprep.subr.bf16.mxu0 0
  %3114 = vmatpush1.bf16.msra.mxu0 0
  %3115 = vmatprep.subr.bf16.mxu0 0
  %3116 = vmatpush1.bf16.msra.mxu0 0
  %3117 = vmatprep.subr.bf16.mxu0 0
  %3118 = vmatpush1.bf16.msra.mxu0 0
  %3119 = vmatprep.subr.bf16.mxu0 0
  %3120 = vmatpush1.bf16.msra.mxu0 %v3096
  %3121 = vmatprep.subr.bf16.mxu0 0
  %3122 = vmatpush1.bf16.msra.mxu0 %v3095
  %3123 = vmatprep.subr.bf16.mxu0 0
  %3124 = vmatpush2.bf16.msra.mxu0 0
  %3125 = vmatprep.subr.bf16.mxu0 0
  %3126 = vmatpush2.bf16.msra.mxu0 0
  %3127 = vmatprep.subr.bf16.mxu0 0
  %3128 = vmatpush2.bf16.msra.mxu0 0
  %3129 = vmatprep.subr.bf16.mxu0 0
  %3130 = vmatpush2.bf16.msra.mxu0 0
  %3131 = vmatprep.subr.bf16.mxu0 0
  %3132 = vmatpush2.bf16.msra.mxu0 0
  %3133 = vmatprep.subr.bf16.mxu0 0
  %3134 = vmatpush2.bf16.msra.mxu0 0
  %3135 = vmatprep.subr.bf16.mxu0 0
  %3136 = vmatpush2.bf16.msra.mxu0 0
  %3137 = vmatprep.subr.bf16.mxu0 0
  %3138 = vmatpush2.bf16.msra.mxu0 0
  %3139 = vmatprep.mubr.bf16.mxu0 0
  %3140 = vmatmul.mubr.bf16.gmra.mxu0 %v3105
  %v3141 = vpop.f32.mrf.mxu0
  %v3142 = vadd.f32 %v3102, %v3141
  %v3143 = vpop.f32.mrf.mxu0
  %v3144 = vpop.f32.mrf.mxu0
  %v3145 = vpop.f32.mrf.mxu0
  %3146 = vdwg.mxu0
  %v3147 = vmax.f32 %v3142, 0.0
  %v3148 = vld [vmem:[%s17] sm:$0xff]
  %v3149 = vld [vmem:[%s17 + $0x8] sm:$0xff]
  %v3150 = vld [vmem:[%s17 + $0x10] sm:$0xff]
  %v3151 = vld [vmem:[%s17 + $0x18] sm:$0xff]
  %v3152 = vld [vmem:[%s17 + $0x20] sm:$0xff]
  %v3153 = vld [vmem:[%s17 + $0x28] sm:$0xff]
  %v3154 = vld [vmem:[%s17 + $0x30] sm:$0xff]
  %v3155 = vld [vmem:[%s17 + $0x38] sm:$0xff]
  %v3156 = vpack.c.bf16 %v3147, %v3147
  %v3157 = vpack.c.bf16 %v3149, %v3148
  %v3158 = vpack.c.bf16 %v3151, %v3150
  %v3159 = vpack.c.bf16 %v3153, %v3152
  %v3160 = vpack.c.bf16 %v3155, %v3154
  %v3161 = vld [vmem:[%s18] sm:$0x1]
  %v3163 = vlaneseq
  %v3164 = vshrl.u32 %v3163, 7
  %v3165 = vsub.s32 0, %v3164
  %v3166 = vrot.slane %v3161, %v3165
  %vm3168 = vcmask 523264
  %v3170 = vsel %vm3168, %v3156, 0
  %3172 = vmatprep.subr.bf16.mxu0 0
  %3173 = vmatpush1.bf16.msra.mxu0 0
  %3174 = vmatprep.subr.bf16.mxu0 0
  %3175 = vmatpush1.bf16.msra.mxu0 0
  %3176 = vmatprep.subr.bf16.mxu0 0
  %3177 = vmatpush1.bf16.msra.mxu0 0
  %3178 = vmatprep.subr.bf16.mxu0 0
  %3179 = vmatpush1.bf16.msra.mxu0 0
  %3180 = vmatprep.subr.bf16.mxu0 0
  %3181 = vmatpush1.bf16.msra.mxu0 %v3160
  %3182 = vmatprep.subr.bf16.mxu0 0
  %3183 = vmatpush1.bf16.msra.mxu0 %v3159
  %3184 = vmatprep.subr.bf16.mxu0 0
  %3185 = vmatpush1.bf16.msra.mxu0 %v3158
  %3186 = vmatprep.subr.bf16.mxu0 0
  %3187 = vmatpush1.bf16.msra.mxu0 %v3157
  %3188 = vmatprep.subr.bf16.mxu0 0
  %3189 = vmatpush2.bf16.msra.mxu0 0
  %3190 = vmatprep.subr.bf16.mxu0 0
  %3191 = vmatpush2.bf16.msra.mxu0 0
  %3192 = vmatprep.subr.bf16.mxu0 0
  %3193 = vmatpush2.bf16.msra.mxu0 0
  %3194 = vmatprep.subr.bf16.mxu0 0
  %3195 = vmatpush2.bf16.msra.mxu0 0
  %3196 = vmatprep.subr.bf16.mxu0 0
  %3197 = vmatpush2.bf16.msra.mxu0 0
  %3198 = vmatprep.subr.bf16.mxu0 0
  %3199 = vmatpush2.bf16.msra.mxu0 0
  %3200 = vmatprep.subr.bf16.mxu0 0
  %3201 = vmatpush2.bf16.msra.mxu0 0
  %3202 = vmatprep.subr.bf16.mxu0 0
  %3203 = vmatpush2.bf16.msra.mxu0 0
  %3204 = vmatprep.mubr.bf16.mxu0 0
  %3205 = vmatmul.mubr.bf16.gmra.mxu0 %v3170
  %v3206 = vpop.f32.mrf.mxu0
  %v3207 = vadd.f32 %v3166, %v3206
  %v3208 = vpop.f32.mrf.mxu0
  %v3209 = vpop.f32.mrf.mxu0
  %v3210 = vpop.f32.mrf.mxu0
  %3211 = vdwg.mxu0
  %v3212 = vadd.f32 %v3089, %v3207
  %v3213 = vld [vmem:[%s19] sm:$0x1]
  %v3214 = vld [vmem:[%s20] sm:$0x1]
  %v3215 = vsel %vm84, %v3212, 0.0
  %3216 = vadd.xlane.f32.xlu0 %v3215
  %v3217 = vpop.xlane.xlu0 %3216
  %v3218 = vmul.f32 %v3217, %v1567
  %v3219 = vsub.f32 %v3212, %v3218
  %v3220 = vmul.f32 %v3219, %v3219
  %v3221 = vsel %vm84, %v3220, 0.0
  %3222 = vadd.xlane.f32.xlu0 %v3221
  %v3223 = vpop.xlane.xlu0 %3222
  %v3224 = vmul.f32 %v3223, %v1567
  %v3225 = vadd.f32 %v3224, 1e-05
  %v3226 = vrsqrt.pop %v3225
  %v3227 = vmul.f32 %v3219, %v3226
  %v3229 = vlaneseq
  %v3230 = vshrl.u32 %v3229, 7
  %v3231 = vsub.s32 0, %v3230
  %v3232 = vrot.slane %v3213, %v3231
  %v3234 = vmul.f32 %v3227, %v3232
  %v3236 = vlaneseq
  %v3237 = vshrl.u32 %v3236, 7
  %v3238 = vsub.s32 0, %v3237
  %v3239 = vrot.slane %v3214, %v3238
  %v3241 = vadd.f32 %v3234, %v3239
  %3242 = vst.msk [vmem:[%s21] sm:$0xff] %vm84, %v3241
  // Predicated region
  $region86: #{closed_call.36} parent=0 // pred_check
    _
  $region87: #{closed_call.36} parent=0 // pred_check_branch
    %3244 = sbr.rel (0) target = $region89
  $region88: #{closed_call.36} parent=0 // pred_region
    _
  $region89: #{closed_call.36} parent=0 // pred_fallthru
    _
  // Predicated region
  $region90: #{closed_call.36} parent=0 // pred_check
    _
  $region91: #{closed_call.36} parent=0 // pred_check_branch
    %3246 = sbr.rel (0) target = $region93
  $region92: #{closed_call.36} parent=0 // pred_region
    _
  $region93: #{closed_call.36} parent=0 // pred_fallthru
    _

</llo_original>
